<compile_context>
chip_gen: v7x
topology: tpu7x:2x2x1
jax: 0.10.0
libtpu: 0.0.40
codegen_flags: <defaults>
</compile_context>

<pallas_src>
import functools

import jax
import jax.numpy as jnp
from jax.experimental import pallas as pl
from jax.experimental.pallas import tpu as pltpu


def _round_up(x, m):
    return (x + m - 1) // m * m


# ----------------------------------------------------------------------------
# Static layer table.
#   kh, pt, pb : kernel height and zero padding (deconvs: pt=pb=kh-1,
#                convs: ZeroPad2d((0,0,4,3)) -> pt=4, pb=3)
#   cin/cout   : true PyTorch channel counts
#   cin_p/cout_p: lane-padded (multiple-of-128) counts used in-kernel
# ----------------------------------------------------------------------------
def _layer_cfgs(n_chars):
    co_last = _round_up(max(n_chars, 1), 128)
    return (
        dict(kh=6, pt=5, pb=5, cin=384, cout=256,     cin_p=384, cout_p=256,     hin=6,  hout=11, bn=True),   # deconv1
        dict(kh=5, pt=4, pb=4, cin=256, cout=192,     cin_p=256, cout_p=256,     hin=11, hout=15, bn=True),   # deconv2
        dict(kh=6, pt=5, pb=5, cin=192, cout=128,     cin_p=256, cout_p=128,     hin=15, hout=20, bn=True),   # deconv3
        dict(kh=8, pt=4, pb=3, cin=128, cout=128,     cin_p=128, cout_p=128,     hin=20, hout=20, bn=True),   # conv1
        dict(kh=8, pt=4, pb=3, cin=128, cout=64,      cin_p=128, cout_p=128,     hin=20, hout=20, bn=True),   # conv2
        dict(kh=8, pt=4, pb=3, cin=64,  cout=n_chars, cin_p=128, cout_p=co_last, hin=20, hout=20, bn=False),  # conv3
    )


# ----------------------------------------------------------------------------
# Fused kernel: Linear -> 6 (de)conv layers, all VMEM resident.
# ----------------------------------------------------------------------------
def _netg_kernel(*refs, B, cfgs, eps):
    f32, bf16 = jnp.float32, jnp.bfloat16
    it = iter(refs)
    x_ref, lin_w_ref, lin_b_ref = next(it), next(it), next(it)
    layer_refs = []
    for cfg in cfgs:
        w_ref, b_ref = next(it), next(it)
        g_ref, bt_ref = (next(it), next(it)) if cfg["bn"] else (None, None)
        layer_refs.append((w_ref, b_ref, g_ref, bt_ref))
    out_ref = next(it)
    pads = [next(it) for _ in range(len(cfgs))]            # padded bf16 inputs

    # Zero the padded scratches once (padding rows must stay zero; the data
    # rows are overwritten exactly once per layer below).
    for p in pads:
        p[...] = jnp.zeros_like(p)

    # ---- Linear: columns are pre-permuted (col = h*384 + c), so scattering
    # 384-wide lane slices row-block by row-block yields the h-major layout
    # directly in layer 0's padded scratch. ----
    y = jnp.dot(x_ref[...].astype(bf16), lin_w_ref[...],
                preferred_element_type=f32) + lin_b_ref[...]
    c0 = cfgs[0]["cin_p"]
    pt0 = cfgs[0]["pt"]
    for h in range(cfgs[0]["hin"]):
        pads[0][(pt0 + h) * B:(pt0 + h + 1) * B, :] = \
            y[:, h * c0:(h + 1) * c0].astype(bf16)

    # ---- (De)conv stack: ONE matmul per layer on the lane-concatenated
    # shifted slices of the zero-padded bf16 input scratch. ----
    for li, (cfg, (w_ref, b_ref, g_ref, bt_ref)) in enumerate(zip(cfgs, layer_refs)):
        kh, hout = cfg["kh"], cfg["hout"]
        in_pad = pads[li]
        lhs = jnp.concatenate(
            [in_pad[k * B:(k + hout) * B, :] for k in range(kh)], axis=1)
        yv = jnp.dot(lhs, w_ref[...], preferred_element_type=f32) + b_ref[...]
        if cfg["bn"]:
            # BatchNorm2d, training mode: biased batch stats over the true
            # N*H rows, computed in f32 on the register-resident value.
            mean = jnp.mean(yv, axis=0, keepdims=True)
            var = jnp.mean(jnp.square(yv - mean), axis=0, keepdims=True)
            yv = (yv - mean) * jax.lax.rsqrt(var + eps)
            yv = yv * g_ref[...] + bt_ref[...]
            yv = jnp.maximum(yv, 0.0)
            nxt = pads[li + 1]
            pt_n = cfgs[li + 1]["pt"]
            nxt[pt_n * B:(pt_n + hout) * B, :] = yv.astype(bf16)
        else:
            out_ref[...] = yv                              # final layer, f32


# ----------------------------------------------------------------------------
# One-time parameter repacking (PyTorch layouts -> kernel layouts).
# ----------------------------------------------------------------------------
def _pack_taps(taps, cin_p, cout_p):
    # taps (kh, cin, cout) f32 -> (kh*cin_p, cout_p) bf16, zero padded so the
    # row index matches the lane-concatenated LHS column index k*cin_p + c.
    kh, cin, cout = taps.shape
    t = jnp.zeros((kh, cin_p, cout_p), jnp.float32).at[:, :cin, :cout].set(taps)
    return t.reshape(kh * cin_p, cout_p).astype(jnp.bfloat16)


def _convt_taps(wt):
    # ConvTranspose2d weight (Cin, Cout, kh, 1) -> (kh, Cin, Cout), flipped.
    return jnp.transpose(jnp.flip(wt[..., 0], axis=-1), (2, 0, 1))


def _conv_taps(w):
    # Conv2d weight (Cout, Cin, kh, 1) -> (kh, Cin, Cout).
    return jnp.transpose(w[..., 0], (2, 1, 0))


def _pack_linear(w, b, latent_size):
    # nn.Linear(latent, 6*384): weight (2304, latent); PyTorch feature index is
    # c*6 + h (from .view(B, 384, 6, 1)).  Permute so column index = h*384 + c,
    # making the kernel's linear output h-major with zero transposes.
    wp = jnp.transpose(w.reshape(384, 6, latent_size), (1, 0, 2))
    wp = wp.reshape(6 * 384, latent_size)
    bp = jnp.transpose(b.reshape(384, 6), (1, 0)).reshape(1, 6 * 384)
    return jnp.transpose(wp, (1, 0)).astype(jnp.bfloat16), bp.astype(jnp.float32)


# ----------------------------------------------------------------------------
# Forward wrapper: one pallas_call + tiny output re-layout / channel slice.
# ----------------------------------------------------------------------------
def make_forward(n_chars, eps=1e-5):
    cfgs = _layer_cfgs(n_chars)

    def forward(packed, x):
        B = x.shape[0]
        seq = cfgs[-1]["hout"]                            # 20
        cout_last = cfgs[-1]["cout_p"]
        scratch = [pltpu.VMEM(((c["hin"] + c["pt"] + c["pb"]) * B, c["cin_p"]),
                              jnp.bfloat16) for c in cfgs]
        kernel = functools.partial(_netg_kernel, B=B, cfgs=cfgs, eps=eps)
        args = [x.astype(jnp.float32), packed["lin_w"], packed["lin_b"]]
        for li, c in enumerate(cfgs):
            args += [packed[f"w{li}"], packed[f"b{li}"]]
            if c["bn"]:
                args += [packed[f"g{li}"], packed[f"beta{li}"]]
        y = pl.pallas_call(
            kernel,
            out_shape=jax.ShapeDtypeStruct((seq * B, cout_last), jnp.float32),
            scratch_shapes=scratch,
        )(*args)
        y = y[:, :n_chars]                                # drop lane padding
        # Rows are h-major (h*B + b) -> (B, H, C)
        bhc = jnp.transpose(y.reshape(seq, B, n_chars), (1, 0, 2))
        # PyTorch final `x.view(B, H, C)` on the contiguous NCHW (B, C, H, 1)
        # tensor is a raw reshape (NOT a transpose) — reproduce exactly.
        return jnp.transpose(bhc, (0, 2, 1)).reshape(B, seq, n_chars)

    return forward


# ----------------------------------------------------------------------------
# Deterministic synthetic parameters (PyTorch module shapes), pre-packed.
# ----------------------------------------------------------------------------
def make_params(key, n_chars, latent_size):
    def xavier(k, shape, fan_in, fan_out):
        std = (2.0 / (fan_in + fan_out)) ** 0.5
        return std * jax.random.normal(k, shape, jnp.float32)

    ks = jax.random.split(key, 8)
    cfgs = _layer_cfgs(n_chars)
    packed = {}

    # Linear(latent, 2304)
    lw = xavier(ks[0], (6 * 384, latent_size), latent_size, 6 * 384)
    lb = jnp.zeros((6 * 384,), jnp.float32)
    packed["lin_w"], packed["lin_b"] = _pack_linear(lw, lb, latent_size)

    for li, c in enumerate(cfgs):
        cin, cout, kh = c["cin"], c["cout"], c["kh"]
        if li < 3:   # ConvTranspose2d weight (Cin, Cout, kh, 1)
            w = xavier(ks[1 + li], (cin, cout, kh, 1), cin * kh, cout * kh)
            taps = _convt_taps(w)
        else:        # Conv2d weight (Cout, Cin, kh, 1)
            w = xavier(ks[1 + li], (cout, cin, kh, 1), cin * kh, cout * kh)
            taps = _conv_taps(w)
        packed[f"w{li}"] = _pack_taps(taps, c["cin_p"], c["cout_p"])
        packed[f"b{li}"] = jnp.zeros((1, c["cout_p"]), jnp.float32)   # bias init 0
        if c["bn"]:
            # PyTorch default BN init: weight=1, bias=0.  Padded channels are
            # exactly zero-valued, so gamma there is irrelevant; beta must be 0.
            packed[f"g{li}"] = jnp.ones((1, c["cout_p"]), jnp.float32)
            packed[f"beta{li}"] = jnp.zeros((1, c["cout_p"]), jnp.float32)
    return packed


if __name__ == "__main__":
    B, latent_size, n_chars, seq_len, hidden = 2, 32, 8, 20, 32  # hidden unused in fwd
    assert seq_len == 20

    key = jax.random.PRNGKey(0)
    k_param, k_x = jax.random.split(key)
    params = make_params(k_param, n_chars=n_chars, latent_size=latent_size)
    x = jax.random.normal(k_x, (B, latent_size), jnp.float32)

    forward = jax.jit(make_forward(n_chars))
    out = jax.block_until_ready(forward(params, x))
    assert out.shape == (B, seq_len, n_chars), out.shape
    assert bool(jnp.all(jnp.isfinite(out)))
    print("KERNEL_OK")
</pallas_src>

<mosaic_0001>
module attributes {stable_mosaic.version = 11 : i64} {
  func.func @_netg_kernel(%arg0: memref<2x32xf32, #tpu.memory_space<vmem>>, %arg1: memref<32x2304xbf16, #tpu.memory_space<vmem>>, %arg2: memref<1x2304xf32, #tpu.memory_space<vmem>>, %arg3: memref<2304x256xbf16, #tpu.memory_space<vmem>>, %arg4: memref<1x256xf32, #tpu.memory_space<vmem>>, %arg5: memref<1x256xf32, #tpu.memory_space<vmem>>, %arg6: memref<1x256xf32, #tpu.memory_space<vmem>>, %arg7: memref<1280x256xbf16, #tpu.memory_space<vmem>>, %arg8: memref<1x256xf32, #tpu.memory_space<vmem>>, %arg9: memref<1x256xf32, #tpu.memory_space<vmem>>, %arg10: memref<1x256xf32, #tpu.memory_space<vmem>>, %arg11: memref<1536x128xbf16, #tpu.memory_space<vmem>>, %arg12: memref<1x128xf32, #tpu.memory_space<vmem>>, %arg13: memref<1x128xf32, #tpu.memory_space<vmem>>, %arg14: memref<1x128xf32, #tpu.memory_space<vmem>>, %arg15: memref<1024x128xbf16, #tpu.memory_space<vmem>>, %arg16: memref<1x128xf32, #tpu.memory_space<vmem>>, %arg17: memref<1x128xf32, #tpu.memory_space<vmem>>, %arg18: memref<1x128xf32, #tpu.memory_space<vmem>>, %arg19: memref<1024x128xbf16, #tpu.memory_space<vmem>>, %arg20: memref<1x128xf32, #tpu.memory_space<vmem>>, %arg21: memref<1x128xf32, #tpu.memory_space<vmem>>, %arg22: memref<1x128xf32, #tpu.memory_space<vmem>>, %arg23: memref<1024x128xbf16, #tpu.memory_space<vmem>>, %arg24: memref<1x128xf32, #tpu.memory_space<vmem>>, %arg25: memref<40x128xf32, #tpu.memory_space<vmem>>, %arg26: memref<32x384xbf16, #tpu.memory_space<vmem>>, %arg27: memref<38x256xbf16, #tpu.memory_space<vmem>>, %arg28: memref<50x256xbf16, #tpu.memory_space<vmem>>, %arg29: memref<54x128xbf16, #tpu.memory_space<vmem>>, %arg30: memref<54x128xbf16, #tpu.memory_space<vmem>>, %arg31: memref<54x128xbf16, #tpu.memory_space<vmem>>) attributes {dimension_semantics = [], scalar_prefetch = 0 : i64, scratch_operands = 6 : i64, tpu.core_type = #tpu.core_type<tc>} {
    %cst = arith.constant 0.000000e+00 : bf16
    %0 = vector.broadcast %cst : bf16 to vector<32x384xbf16>
    %c0 = arith.constant 0 : index
    %c0_0 = arith.constant 0 : index
    %1 = vector.load %arg26[%c0, %c0_0] : memref<32x384xbf16, #tpu.memory_space<vmem>>, vector<32x384xbf16>
    tpu.vector_store %arg26[%c0, %c0_0], %0 {strides = array<i32>} : memref<32x384xbf16, #tpu.memory_space<vmem>>, vector<32x384xbf16>,
    %cst_1 = arith.constant 0.000000e+00 : bf16
    %2 = vector.broadcast %cst_1 : bf16 to vector<38x256xbf16>
    %c0_2 = arith.constant 0 : index
    %c0_3 = arith.constant 0 : index
    %3 = vector.load %arg27[%c0_2, %c0_3] : memref<38x256xbf16, #tpu.memory_space<vmem>>, vector<38x256xbf16>
    tpu.vector_store %arg27[%c0_2, %c0_3], %2 {strides = array<i32>} : memref<38x256xbf16, #tpu.memory_space<vmem>>, vector<38x256xbf16>,
    %cst_4 = arith.constant 0.000000e+00 : bf16
    %4 = vector.broadcast %cst_4 : bf16 to vector<50x256xbf16>
    %c0_5 = arith.constant 0 : index
    %c0_6 = arith.constant 0 : index
    %5 = vector.load %arg28[%c0_5, %c0_6] : memref<50x256xbf16, #tpu.memory_space<vmem>>, vector<50x256xbf16>
    tpu.vector_store %arg28[%c0_5, %c0_6], %4 {strides = array<i32>} : memref<50x256xbf16, #tpu.memory_space<vmem>>, vector<50x256xbf16>,
    %cst_7 = arith.constant 0.000000e+00 : bf16
    %6 = vector.broadcast %cst_7 : bf16 to vector<54x128xbf16>
    %c0_8 = arith.constant 0 : index
    %c0_9 = arith.constant 0 : index
    %7 = vector.load %arg29[%c0_8, %c0_9] : memref<54x128xbf16, #tpu.memory_space<vmem>>, vector<54x128xbf16>
    tpu.vector_store %arg29[%c0_8, %c0_9], %6 {strides = array<i32>} : memref<54x128xbf16, #tpu.memory_space<vmem>>, vector<54x128xbf16>,
    %cst_10 = arith.constant 0.000000e+00 : bf16
    %8 = vector.broadcast %cst_10 : bf16 to vector<54x128xbf16>
    %c0_11 = arith.constant 0 : index
    %c0_12 = arith.constant 0 : index
    %9 = vector.load %arg30[%c0_11, %c0_12] : memref<54x128xbf16, #tpu.memory_space<vmem>>, vector<54x128xbf16>
    tpu.vector_store %arg30[%c0_11, %c0_12], %8 {strides = array<i32>} : memref<54x128xbf16, #tpu.memory_space<vmem>>, vector<54x128xbf16>,
    %cst_13 = arith.constant 0.000000e+00 : bf16
    %10 = vector.broadcast %cst_13 : bf16 to vector<54x128xbf16>
    %c0_14 = arith.constant 0 : index
    %c0_15 = arith.constant 0 : index
    %11 = vector.load %arg31[%c0_14, %c0_15] : memref<54x128xbf16, #tpu.memory_space<vmem>>, vector<54x128xbf16>
    tpu.vector_store %arg31[%c0_14, %c0_15], %10 {strides = array<i32>} : memref<54x128xbf16, #tpu.memory_space<vmem>>, vector<54x128xbf16>,
    %c0_16 = arith.constant 0 : index
    %c0_17 = arith.constant 0 : index
    %12 = vector.load %arg0[%c0_16, %c0_17] : memref<2x32xf32, #tpu.memory_space<vmem>>, vector<2x32xf32>
    %13 = arith.truncf %12 : vector<2x32xf32> to vector<2x32xbf16>
    %c0_18 = arith.constant 0 : index
    %c0_19 = arith.constant 0 : index
    %14 = vector.load %arg1[%c0_18, %c0_19] : memref<32x2304xbf16, #tpu.memory_space<vmem>>, vector<32x2304xbf16>
    %cst_20 = arith.constant dense<0.000000e+00> : vector<2x2304xf32>
    %15 = tpu.matmul %13, %14, %cst_20 {dimension_numbers = #tpu.dot_dimension_numbers<[1], [0], [0], [1], [0, 0, 1, 1], [], []>} : vector<2x32xbf16>, vector<32x2304xbf16>, vector<2x2304xf32> -> vector<2x2304xf32>
    %c0_21 = arith.constant 0 : index
    %c0_22 = arith.constant 0 : index
    %16 = vector.load %arg2[%c0_21, %c0_22] : memref<1x2304xf32, #tpu.memory_space<vmem>>, vector<1x2304xf32>
    %17 = vector.broadcast %16 : vector<1x2304xf32> to vector<2x2304xf32>
    %18 = arith.addf %15, %17 : vector<2x2304xf32>
    %19 = vector.extract_strided_slice %18 {offsets = [0, 0], sizes = [2, 384], strides = [1, 1]} : vector<2x2304xf32> to vector<2x384xf32>
    %20 = arith.truncf %19 : vector<2x384xf32> to vector<2x384xbf16>
    %c10 = arith.constant 10 : index
    %c0_23 = arith.constant 0 : index
    %21 = vector.load %arg26[%c10, %c0_23] : memref<32x384xbf16, #tpu.memory_space<vmem>>, vector<2x384xbf16>
    tpu.vector_store %arg26[%c10, %c0_23], %20 {strides = array<i32>} : memref<32x384xbf16, #tpu.memory_space<vmem>>, vector<2x384xbf16>,
    %22 = vector.extract_strided_slice %18 {offsets = [0, 384], sizes = [2, 384], strides = [1, 1]} : vector<2x2304xf32> to vector<2x384xf32>
    %23 = arith.truncf %22 : vector<2x384xf32> to vector<2x384xbf16>
    %c12 = arith.constant 12 : index
    %c0_24 = arith.constant 0 : index
    %24 = vector.load %arg26[%c12, %c0_24] : memref<32x384xbf16, #tpu.memory_space<vmem>>, vector<2x384xbf16>
    tpu.vector_store %arg26[%c12, %c0_24], %23 {strides = array<i32>} : memref<32x384xbf16, #tpu.memory_space<vmem>>, vector<2x384xbf16>,
    %25 = vector.extract_strided_slice %18 {offsets = [0, 768], sizes = [2, 384], strides = [1, 1]} : vector<2x2304xf32> to vector<2x384xf32>
    %26 = arith.truncf %25 : vector<2x384xf32> to vector<2x384xbf16>
    %c14 = arith.constant 14 : index
    %c0_25 = arith.constant 0 : index
    %27 = vector.load %arg26[%c14, %c0_25] : memref<32x384xbf16, #tpu.memory_space<vmem>>, vector<2x384xbf16>
    tpu.vector_store %arg26[%c14, %c0_25], %26 {strides = array<i32>} : memref<32x384xbf16, #tpu.memory_space<vmem>>, vector<2x384xbf16>,
    %28 = vector.extract_strided_slice %18 {offsets = [0, 1152], sizes = [2, 384], strides = [1, 1]} : vector<2x2304xf32> to vector<2x384xf32>
    %29 = arith.truncf %28 : vector<2x384xf32> to vector<2x384xbf16>
    %c16 = arith.constant 16 : index
    %c0_26 = arith.constant 0 : index
    %30 = vector.load %arg26[%c16, %c0_26] : memref<32x384xbf16, #tpu.memory_space<vmem>>, vector<2x384xbf16>
    tpu.vector_store %arg26[%c16, %c0_26], %29 {strides = array<i32>} : memref<32x384xbf16, #tpu.memory_space<vmem>>, vector<2x384xbf16>,
    %31 = vector.extract_strided_slice %18 {offsets = [0, 1536], sizes = [2, 384], strides = [1, 1]} : vector<2x2304xf32> to vector<2x384xf32>
    %32 = arith.truncf %31 : vector<2x384xf32> to vector<2x384xbf16>
    %c18 = arith.constant 18 : index
    %c0_27 = arith.constant 0 : index
    %33 = vector.load %arg26[%c18, %c0_27] : memref<32x384xbf16, #tpu.memory_space<vmem>>, vector<2x384xbf16>
    tpu.vector_store %arg26[%c18, %c0_27], %32 {strides = array<i32>} : memref<32x384xbf16, #tpu.memory_space<vmem>>, vector<2x384xbf16>,
    %34 = vector.extract_strided_slice %18 {offsets = [0, 1920], sizes = [2, 384], strides = [1, 1]} : vector<2x2304xf32> to vector<2x384xf32>
    %35 = arith.truncf %34 : vector<2x384xf32> to vector<2x384xbf16>
    %c20 = arith.constant 20 : index
    %c0_28 = arith.constant 0 : index
    %36 = vector.load %arg26[%c20, %c0_28] : memref<32x384xbf16, #tpu.memory_space<vmem>>, vector<2x384xbf16>
    tpu.vector_store %arg26[%c20, %c0_28], %35 {strides = array<i32>} : memref<32x384xbf16, #tpu.memory_space<vmem>>, vector<2x384xbf16>,
    %c0_29 = arith.constant 0 : index
    %c0_30 = arith.constant 0 : index
    %37 = vector.load %arg26[%c0_29, %c0_30] : memref<32x384xbf16, #tpu.memory_space<vmem>>, vector<22x384xbf16>
    %c2 = arith.constant 2 : index
    %c0_31 = arith.constant 0 : index
    %38 = vector.load %arg26[%c2, %c0_31] : memref<32x384xbf16, #tpu.memory_space<vmem>>, vector<22x384xbf16>
    %c4 = arith.constant 4 : index
    %c0_32 = arith.constant 0 : index
    %39 = vector.load %arg26[%c4, %c0_32] : memref<32x384xbf16, #tpu.memory_space<vmem>>, vector<22x384xbf16>
    %c6 = arith.constant 6 : index
    %c0_33 = arith.constant 0 : index
    %40 = vector.load %arg26[%c6, %c0_33] : memref<32x384xbf16, #tpu.memory_space<vmem>>, vector<22x384xbf16>
    %c8 = arith.constant 8 : index
    %c0_34 = arith.constant 0 : index
    %41 = vector.load %arg26[%c8, %c0_34] : memref<32x384xbf16, #tpu.memory_space<vmem>>, vector<22x384xbf16>
    %c10_35 = arith.constant 10 : index
    %c0_36 = arith.constant 0 : index
    %42 = vector.load %arg26[%c10_35, %c0_36] : memref<32x384xbf16, #tpu.memory_space<vmem>>, vector<22x384xbf16>
    %43 = tpu.concatenate %37, %38, %39, %40, %41, %42 in 1 : vector<22x384xbf16>, vector<22x384xbf16>, vector<22x384xbf16>, vector<22x384xbf16>, vector<22x384xbf16>, vector<22x384xbf16> -> vector<22x2304xbf16>
    %c0_37 = arith.constant 0 : index
    %c0_38 = arith.constant 0 : index
    %44 = vector.load %arg3[%c0_37, %c0_38] : memref<2304x256xbf16, #tpu.memory_space<vmem>>, vector<2304x256xbf16>
    %cst_39 = arith.constant dense<0.000000e+00> : vector<22x256xf32>
    %45 = tpu.matmul %43, %44, %cst_39 {dimension_numbers = #tpu.dot_dimension_numbers<[1], [0], [0], [1], [0, 0, 1, 1], [], []>} : vector<22x2304xbf16>, vector<2304x256xbf16>, vector<22x256xf32> -> vector<22x256xf32>
    %c0_40 = arith.constant 0 : index
    %c0_41 = arith.constant 0 : index
    %46 = vector.load %arg4[%c0_40, %c0_41] : memref<1x256xf32, #tpu.memory_space<vmem>>, vector<1x256xf32>
    %47 = vector.broadcast %46 : vector<1x256xf32> to vector<22x256xf32>
    %48 = arith.addf %45, %47 : vector<22x256xf32>
    %cst_42 = arith.constant dense<0.000000e+00> : vector<256xf32>
    %49 = vector.multi_reduction <add>, %48, %cst_42 [0] : vector<22x256xf32> to vector<256xf32>
    %50 = vector.shape_cast %49 : vector<256xf32> to vector<1x256xf32>
    %cst_43 = arith.constant 2.200000e+01 : f32
    %51 = vector.broadcast %cst_43 : f32 to vector<1x256xf32>
    %52 = arith.divf %50, %51 : vector<1x256xf32>
    %53 = vector.broadcast %52 : vector<1x256xf32> to vector<22x256xf32>
    %54 = arith.subf %48, %53 : vector<22x256xf32>
    %55 = arith.mulf %54, %54 : vector<22x256xf32>
    %cst_44 = arith.constant dense<0.000000e+00> : vector<256xf32>
    %56 = vector.multi_reduction <add>, %55, %cst_44 [0] : vector<22x256xf32> to vector<256xf32>
    %57 = vector.shape_cast %56 : vector<256xf32> to vector<1x256xf32>
    %cst_45 = arith.constant 2.200000e+01 : f32
    %58 = vector.broadcast %cst_45 : f32 to vector<1x256xf32>
    %59 = arith.divf %57, %58 : vector<1x256xf32>
    %60 = vector.broadcast %52 : vector<1x256xf32> to vector<22x256xf32>
    %61 = arith.subf %48, %60 : vector<22x256xf32>
    %cst_46 = arith.constant 9.99999974E-6 : f32
    %62 = vector.broadcast %cst_46 : f32 to vector<1x256xf32>
    %63 = arith.addf %59, %62 : vector<1x256xf32>
    %64 = math.rsqrt %63 : vector<1x256xf32>
    %65 = vector.broadcast %64 : vector<1x256xf32> to vector<22x256xf32>
    %66 = arith.mulf %61, %65 : vector<22x256xf32>
    %c0_47 = arith.constant 0 : index
    %c0_48 = arith.constant 0 : index
    %67 = vector.load %arg5[%c0_47, %c0_48] : memref<1x256xf32, #tpu.memory_space<vmem>>, vector<1x256xf32>
    %68 = vector.broadcast %67 : vector<1x256xf32> to vector<22x256xf32>
    %69 = arith.mulf %66, %68 : vector<22x256xf32>
    %c0_49 = arith.constant 0 : index
    %c0_50 = arith.constant 0 : index
    %70 = vector.load %arg6[%c0_49, %c0_50] : memref<1x256xf32, #tpu.memory_space<vmem>>, vector<1x256xf32>
    %71 = vector.broadcast %70 : vector<1x256xf32> to vector<22x256xf32>
    %72 = arith.addf %69, %71 : vector<22x256xf32>
    %cst_51 = arith.constant 0.000000e+00 : f32
    %73 = vector.broadcast %cst_51 : f32 to vector<22x256xf32>
    %74 = arith.maximumf %72, %73 : vector<22x256xf32>
    %75 = arith.truncf %74 : vector<22x256xf32> to vector<22x256xbf16>
    %c8_52 = arith.constant 8 : index
    %c0_53 = arith.constant 0 : index
    %76 = vector.load %arg27[%c8_52, %c0_53] : memref<38x256xbf16, #tpu.memory_space<vmem>>, vector<22x256xbf16>
    tpu.vector_store %arg27[%c8_52, %c0_53], %75 {strides = array<i32>} : memref<38x256xbf16, #tpu.memory_space<vmem>>, vector<22x256xbf16>,
    %c0_54 = arith.constant 0 : index
    %c0_55 = arith.constant 0 : index
    %77 = vector.load %arg27[%c0_54, %c0_55] : memref<38x256xbf16, #tpu.memory_space<vmem>>, vector<30x256xbf16>
    %c2_56 = arith.constant 2 : index
    %c0_57 = arith.constant 0 : index
    %78 = vector.load %arg27[%c2_56, %c0_57] : memref<38x256xbf16, #tpu.memory_space<vmem>>, vector<30x256xbf16>
    %c4_58 = arith.constant 4 : index
    %c0_59 = arith.constant 0 : index
    %79 = vector.load %arg27[%c4_58, %c0_59] : memref<38x256xbf16, #tpu.memory_space<vmem>>, vector<30x256xbf16>
    %c6_60 = arith.constant 6 : index
    %c0_61 = arith.constant 0 : index
    %80 = vector.load %arg27[%c6_60, %c0_61] : memref<38x256xbf16, #tpu.memory_space<vmem>>, vector<30x256xbf16>
    %c8_62 = arith.constant 8 : index
    %c0_63 = arith.constant 0 : index
    %81 = vector.load %arg27[%c8_62, %c0_63] : memref<38x256xbf16, #tpu.memory_space<vmem>>, vector<30x256xbf16>
    %82 = tpu.concatenate %77, %78, %79, %80, %81 in 1 : vector<30x256xbf16>, vector<30x256xbf16>, vector<30x256xbf16>, vector<30x256xbf16>, vector<30x256xbf16> -> vector<30x1280xbf16>
    %c0_64 = arith.constant 0 : index
    %c0_65 = arith.constant 0 : index
    %83 = vector.load %arg7[%c0_64, %c0_65] : memref<1280x256xbf16, #tpu.memory_space<vmem>>, vector<1280x256xbf16>
    %cst_66 = arith.constant dense<0.000000e+00> : vector<30x256xf32>
    %84 = tpu.matmul %82, %83, %cst_66 {dimension_numbers = #tpu.dot_dimension_numbers<[1], [0], [0], [1], [0, 0, 1, 1], [], []>} : vector<30x1280xbf16>, vector<1280x256xbf16>, vector<30x256xf32> -> vector<30x256xf32>
    %c0_67 = arith.constant 0 : index
    %c0_68 = arith.constant 0 : index
    %85 = vector.load %arg8[%c0_67, %c0_68] : memref<1x256xf32, #tpu.memory_space<vmem>>, vector<1x256xf32>
    %86 = vector.broadcast %85 : vector<1x256xf32> to vector<30x256xf32>
    %87 = arith.addf %84, %86 : vector<30x256xf32>
    %cst_69 = arith.constant dense<0.000000e+00> : vector<256xf32>
    %88 = vector.multi_reduction <add>, %87, %cst_69 [0] : vector<30x256xf32> to vector<256xf32>
    %89 = vector.shape_cast %88 : vector<256xf32> to vector<1x256xf32>
    %cst_70 = arith.constant 3.000000e+01 : f32
    %90 = vector.broadcast %cst_70 : f32 to vector<1x256xf32>
    %91 = arith.divf %89, %90 : vector<1x256xf32>
    %92 = vector.broadcast %91 : vector<1x256xf32> to vector<30x256xf32>
    %93 = arith.subf %87, %92 : vector<30x256xf32>
    %94 = arith.mulf %93, %93 : vector<30x256xf32>
    %cst_71 = arith.constant dense<0.000000e+00> : vector<256xf32>
    %95 = vector.multi_reduction <add>, %94, %cst_71 [0] : vector<30x256xf32> to vector<256xf32>
    %96 = vector.shape_cast %95 : vector<256xf32> to vector<1x256xf32>
    %cst_72 = arith.constant 3.000000e+01 : f32
    %97 = vector.broadcast %cst_72 : f32 to vector<1x256xf32>
    %98 = arith.divf %96, %97 : vector<1x256xf32>
    %99 = vector.broadcast %91 : vector<1x256xf32> to vector<30x256xf32>
    %100 = arith.subf %87, %99 : vector<30x256xf32>
    %cst_73 = arith.constant 9.99999974E-6 : f32
    %101 = vector.broadcast %cst_73 : f32 to vector<1x256xf32>
    %102 = arith.addf %98, %101 : vector<1x256xf32>
    %103 = math.rsqrt %102 : vector<1x256xf32>
    %104 = vector.broadcast %103 : vector<1x256xf32> to vector<30x256xf32>
    %105 = arith.mulf %100, %104 : vector<30x256xf32>
    %c0_74 = arith.constant 0 : index
    %c0_75 = arith.constant 0 : index
    %106 = vector.load %arg9[%c0_74, %c0_75] : memref<1x256xf32, #tpu.memory_space<vmem>>, vector<1x256xf32>
    %107 = vector.broadcast %106 : vector<1x256xf32> to vector<30x256xf32>
    %108 = arith.mulf %105, %107 : vector<30x256xf32>
    %c0_76 = arith.constant 0 : index
    %c0_77 = arith.constant 0 : index
    %109 = vector.load %arg10[%c0_76, %c0_77] : memref<1x256xf32, #tpu.memory_space<vmem>>, vector<1x256xf32>
    %110 = vector.broadcast %109 : vector<1x256xf32> to vector<30x256xf32>
    %111 = arith.addf %108, %110 : vector<30x256xf32>
    %cst_78 = arith.constant 0.000000e+00 : f32
    %112 = vector.broadcast %cst_78 : f32 to vector<30x256xf32>
    %113 = arith.maximumf %111, %112 : vector<30x256xf32>
    %114 = arith.truncf %113 : vector<30x256xf32> to vector<30x256xbf16>
    %c10_79 = arith.constant 10 : index
    %c0_80 = arith.constant 0 : index
    %115 = vector.load %arg28[%c10_79, %c0_80] : memref<50x256xbf16, #tpu.memory_space<vmem>>, vector<30x256xbf16>
    tpu.vector_store %arg28[%c10_79, %c0_80], %114 {strides = array<i32>} : memref<50x256xbf16, #tpu.memory_space<vmem>>, vector<30x256xbf16>,
    %c0_81 = arith.constant 0 : index
    %c0_82 = arith.constant 0 : index
    %116 = vector.load %arg28[%c0_81, %c0_82] : memref<50x256xbf16, #tpu.memory_space<vmem>>, vector<40x256xbf16>
    %c2_83 = arith.constant 2 : index
    %c0_84 = arith.constant 0 : index
    %117 = vector.load %arg28[%c2_83, %c0_84] : memref<50x256xbf16, #tpu.memory_space<vmem>>, vector<40x256xbf16>
    %c4_85 = arith.constant 4 : index
    %c0_86 = arith.constant 0 : index
    %118 = vector.load %arg28[%c4_85, %c0_86] : memref<50x256xbf16, #tpu.memory_space<vmem>>, vector<40x256xbf16>
    %c6_87 = arith.constant 6 : index
    %c0_88 = arith.constant 0 : index
    %119 = vector.load %arg28[%c6_87, %c0_88] : memref<50x256xbf16, #tpu.memory_space<vmem>>, vector<40x256xbf16>
    %c8_89 = arith.constant 8 : index
    %c0_90 = arith.constant 0 : index
    %120 = vector.load %arg28[%c8_89, %c0_90] : memref<50x256xbf16, #tpu.memory_space<vmem>>, vector<40x256xbf16>
    %c10_91 = arith.constant 10 : index
    %c0_92 = arith.constant 0 : index
    %121 = vector.load %arg28[%c10_91, %c0_92] : memref<50x256xbf16, #tpu.memory_space<vmem>>, vector<40x256xbf16>
    %122 = tpu.concatenate %116, %117, %118, %119, %120, %121 in 1 : vector<40x256xbf16>, vector<40x256xbf16>, vector<40x256xbf16>, vector<40x256xbf16>, vector<40x256xbf16>, vector<40x256xbf16> -> vector<40x1536xbf16>
    %c0_93 = arith.constant 0 : index
    %c0_94 = arith.constant 0 : index
    %123 = vector.load %arg11[%c0_93, %c0_94] : memref<1536x128xbf16, #tpu.memory_space<vmem>>, vector<1536x128xbf16>
    %cst_95 = arith.constant dense<0.000000e+00> : vector<40x128xf32>
    %124 = tpu.matmul %122, %123, %cst_95 {dimension_numbers = #tpu.dot_dimension_numbers<[1], [0], [0], [1], [0, 0, 1, 1], [], []>} : vector<40x1536xbf16>, vector<1536x128xbf16>, vector<40x128xf32> -> vector<40x128xf32>
    %c0_96 = arith.constant 0 : index
    %c0_97 = arith.constant 0 : index
    %125 = vector.load %arg12[%c0_96, %c0_97] : memref<1x128xf32, #tpu.memory_space<vmem>>, vector<1x128xf32>
    %126 = vector.broadcast %125 : vector<1x128xf32> to vector<40x128xf32>
    %127 = arith.addf %124, %126 : vector<40x128xf32>
    %cst_98 = arith.constant dense<0.000000e+00> : vector<128xf32>
    %128 = vector.multi_reduction <add>, %127, %cst_98 [0] : vector<40x128xf32> to vector<128xf32>
    %129 = vector.shape_cast %128 : vector<128xf32> to vector<1x128xf32>
    %cst_99 = arith.constant 4.000000e+01 : f32
    %130 = vector.broadcast %cst_99 : f32 to vector<1x128xf32>
    %131 = arith.divf %129, %130 : vector<1x128xf32>
    %132 = vector.broadcast %131 : vector<1x128xf32> to vector<40x128xf32>
    %133 = arith.subf %127, %132 : vector<40x128xf32>
    %134 = arith.mulf %133, %133 : vector<40x128xf32>
    %cst_100 = arith.constant dense<0.000000e+00> : vector<128xf32>
    %135 = vector.multi_reduction <add>, %134, %cst_100 [0] : vector<40x128xf32> to vector<128xf32>
    %136 = vector.shape_cast %135 : vector<128xf32> to vector<1x128xf32>
    %cst_101 = arith.constant 4.000000e+01 : f32
    %137 = vector.broadcast %cst_101 : f32 to vector<1x128xf32>
    %138 = arith.divf %136, %137 : vector<1x128xf32>
    %139 = vector.broadcast %131 : vector<1x128xf32> to vector<40x128xf32>
    %140 = arith.subf %127, %139 : vector<40x128xf32>
    %cst_102 = arith.constant 9.99999974E-6 : f32
    %141 = vector.broadcast %cst_102 : f32 to vector<1x128xf32>
    %142 = arith.addf %138, %141 : vector<1x128xf32>
    %143 = math.rsqrt %142 : vector<1x128xf32>
    %144 = vector.broadcast %143 : vector<1x128xf32> to vector<40x128xf32>
    %145 = arith.mulf %140, %144 : vector<40x128xf32>
    %c0_103 = arith.constant 0 : index
    %c0_104 = arith.constant 0 : index
    %146 = vector.load %arg13[%c0_103, %c0_104] : memref<1x128xf32, #tpu.memory_space<vmem>>, vector<1x128xf32>
    %147 = vector.broadcast %146 : vector<1x128xf32> to vector<40x128xf32>
    %148 = arith.mulf %145, %147 : vector<40x128xf32>
    %c0_105 = arith.constant 0 : index
    %c0_106 = arith.constant 0 : index
    %149 = vector.load %arg14[%c0_105, %c0_106] : memref<1x128xf32, #tpu.memory_space<vmem>>, vector<1x128xf32>
    %150 = vector.broadcast %149 : vector<1x128xf32> to vector<40x128xf32>
    %151 = arith.addf %148, %150 : vector<40x128xf32>
    %cst_107 = arith.constant 0.000000e+00 : f32
    %152 = vector.broadcast %cst_107 : f32 to vector<40x128xf32>
    %153 = arith.maximumf %151, %152 : vector<40x128xf32>
    %154 = arith.truncf %153 : vector<40x128xf32> to vector<40x128xbf16>
    %c8_108 = arith.constant 8 : index
    %c0_109 = arith.constant 0 : index
    %155 = vector.load %arg29[%c8_108, %c0_109] : memref<54x128xbf16, #tpu.memory_space<vmem>>, vector<40x128xbf16>
    tpu.vector_store %arg29[%c8_108, %c0_109], %154 {strides = array<i32>} : memref<54x128xbf16, #tpu.memory_space<vmem>>, vector<40x128xbf16>,
    %c0_110 = arith.constant 0 : index
    %c0_111 = arith.constant 0 : index
    %156 = vector.load %arg29[%c0_110, %c0_111] : memref<54x128xbf16, #tpu.memory_space<vmem>>, vector<40x128xbf16>
    %c2_112 = arith.constant 2 : index
    %c0_113 = arith.constant 0 : index
    %157 = vector.load %arg29[%c2_112, %c0_113] : memref<54x128xbf16, #tpu.memory_space<vmem>>, vector<40x128xbf16>
    %c4_114 = arith.constant 4 : index
    %c0_115 = arith.constant 0 : index
    %158 = vector.load %arg29[%c4_114, %c0_115] : memref<54x128xbf16, #tpu.memory_space<vmem>>, vector<40x128xbf16>
    %c6_116 = arith.constant 6 : index
    %c0_117 = arith.constant 0 : index
    %159 = vector.load %arg29[%c6_116, %c0_117] : memref<54x128xbf16, #tpu.memory_space<vmem>>, vector<40x128xbf16>
    %c8_118 = arith.constant 8 : index
    %c0_119 = arith.constant 0 : index
    %160 = vector.load %arg29[%c8_118, %c0_119] : memref<54x128xbf16, #tpu.memory_space<vmem>>, vector<40x128xbf16>
    %c10_120 = arith.constant 10 : index
    %c0_121 = arith.constant 0 : index
    %161 = vector.load %arg29[%c10_120, %c0_121] : memref<54x128xbf16, #tpu.memory_space<vmem>>, vector<40x128xbf16>
    %c12_122 = arith.constant 12 : index
    %c0_123 = arith.constant 0 : index
    %162 = vector.load %arg29[%c12_122, %c0_123] : memref<54x128xbf16, #tpu.memory_space<vmem>>, vector<40x128xbf16>
    %c14_124 = arith.constant 14 : index
    %c0_125 = arith.constant 0 : index
    %163 = vector.load %arg29[%c14_124, %c0_125] : memref<54x128xbf16, #tpu.memory_space<vmem>>, vector<40x128xbf16>
    %164 = tpu.concatenate %156, %157, %158, %159, %160, %161, %162, %163 in 1 : vector<40x128xbf16>, vector<40x128xbf16>, vector<40x128xbf16>, vector<40x128xbf16>, vector<40x128xbf16>, vector<40x128xbf16>, vector<40x128xbf16>, vector<40x128xbf16> -> vector<40x1024xbf16>
    %c0_126 = arith.constant 0 : index
    %c0_127 = arith.constant 0 : index
    %165 = vector.load %arg15[%c0_126, %c0_127] : memref<1024x128xbf16, #tpu.memory_space<vmem>>, vector<1024x128xbf16>
    %cst_128 = arith.constant dense<0.000000e+00> : vector<40x128xf32>
    %166 = tpu.matmul %164, %165, %cst_128 {dimension_numbers = #tpu.dot_dimension_numbers<[1], [0], [0], [1], [0, 0, 1, 1], [], []>} : vector<40x1024xbf16>, vector<1024x128xbf16>, vector<40x128xf32> -> vector<40x128xf32>
    %c0_129 = arith.constant 0 : index
    %c0_130 = arith.constant 0 : index
    %167 = vector.load %arg16[%c0_129, %c0_130] : memref<1x128xf32, #tpu.memory_space<vmem>>, vector<1x128xf32>
    %168 = vector.broadcast %167 : vector<1x128xf32> to vector<40x128xf32>
    %169 = arith.addf %166, %168 : vector<40x128xf32>
    %cst_131 = arith.constant dense<0.000000e+00> : vector<128xf32>
    %170 = vector.multi_reduction <add>, %169, %cst_131 [0] : vector<40x128xf32> to vector<128xf32>
    %171 = vector.shape_cast %170 : vector<128xf32> to vector<1x128xf32>
    %cst_132 = arith.constant 4.000000e+01 : f32
    %172 = vector.broadcast %cst_132 : f32 to vector<1x128xf32>
    %173 = arith.divf %171, %172 : vector<1x128xf32>
    %174 = vector.broadcast %173 : vector<1x128xf32> to vector<40x128xf32>
    %175 = arith.subf %169, %174 : vector<40x128xf32>
    %176 = arith.mulf %175, %175 : vector<40x128xf32>
    %cst_133 = arith.constant dense<0.000000e+00> : vector<128xf32>
    %177 = vector.multi_reduction <add>, %176, %cst_133 [0] : vector<40x128xf32> to vector<128xf32>
    %178 = vector.shape_cast %177 : vector<128xf32> to vector<1x128xf32>
    %cst_134 = arith.constant 4.000000e+01 : f32
    %179 = vector.broadcast %cst_134 : f32 to vector<1x128xf32>
    %180 = arith.divf %178, %179 : vector<1x128xf32>
    %181 = vector.broadcast %173 : vector<1x128xf32> to vector<40x128xf32>
    %182 = arith.subf %169, %181 : vector<40x128xf32>
    %cst_135 = arith.constant 9.99999974E-6 : f32
    %183 = vector.broadcast %cst_135 : f32 to vector<1x128xf32>
    %184 = arith.addf %180, %183 : vector<1x128xf32>
    %185 = math.rsqrt %184 : vector<1x128xf32>
    %186 = vector.broadcast %185 : vector<1x128xf32> to vector<40x128xf32>
    %187 = arith.mulf %182, %186 : vector<40x128xf32>
    %c0_136 = arith.constant 0 : index
    %c0_137 = arith.constant 0 : index
    %188 = vector.load %arg17[%c0_136, %c0_137] : memref<1x128xf32, #tpu.memory_space<vmem>>, vector<1x128xf32>
    %189 = vector.broadcast %188 : vector<1x128xf32> to vector<40x128xf32>
    %190 = arith.mulf %187, %189 : vector<40x128xf32>
    %c0_138 = arith.constant 0 : index
    %c0_139 = arith.constant 0 : index
    %191 = vector.load %arg18[%c0_138, %c0_139] : memref<1x128xf32, #tpu.memory_space<vmem>>, vector<1x128xf32>
    %192 = vector.broadcast %191 : vector<1x128xf32> to vector<40x128xf32>
    %193 = arith.addf %190, %192 : vector<40x128xf32>
    %cst_140 = arith.constant 0.000000e+00 : f32
    %194 = vector.broadcast %cst_140 : f32 to vector<40x128xf32>
    %195 = arith.maximumf %193, %194 : vector<40x128xf32>
    %196 = arith.truncf %195 : vector<40x128xf32> to vector<40x128xbf16>
    %c8_141 = arith.constant 8 : index
    %c0_142 = arith.constant 0 : index
    %197 = vector.load %arg30[%c8_141, %c0_142] : memref<54x128xbf16, #tpu.memory_space<vmem>>, vector<40x128xbf16>
    tpu.vector_store %arg30[%c8_141, %c0_142], %196 {strides = array<i32>} : memref<54x128xbf16, #tpu.memory_space<vmem>>, vector<40x128xbf16>,
    %c0_143 = arith.constant 0 : index
    %c0_144 = arith.constant 0 : index
    %198 = vector.load %arg30[%c0_143, %c0_144] : memref<54x128xbf16, #tpu.memory_space<vmem>>, vector<40x128xbf16>
    %c2_145 = arith.constant 2 : index
    %c0_146 = arith.constant 0 : index
    %199 = vector.load %arg30[%c2_145, %c0_146] : memref<54x128xbf16, #tpu.memory_space<vmem>>, vector<40x128xbf16>
    %c4_147 = arith.constant 4 : index
    %c0_148 = arith.constant 0 : index
    %200 = vector.load %arg30[%c4_147, %c0_148] : memref<54x128xbf16, #tpu.memory_space<vmem>>, vector<40x128xbf16>
    %c6_149 = arith.constant 6 : index
    %c0_150 = arith.constant 0 : index
    %201 = vector.load %arg30[%c6_149, %c0_150] : memref<54x128xbf16, #tpu.memory_space<vmem>>, vector<40x128xbf16>
    %c8_151 = arith.constant 8 : index
    %c0_152 = arith.constant 0 : index
    %202 = vector.load %arg30[%c8_151, %c0_152] : memref<54x128xbf16, #tpu.memory_space<vmem>>, vector<40x128xbf16>
    %c10_153 = arith.constant 10 : index
    %c0_154 = arith.constant 0 : index
    %203 = vector.load %arg30[%c10_153, %c0_154] : memref<54x128xbf16, #tpu.memory_space<vmem>>, vector<40x128xbf16>
    %c12_155 = arith.constant 12 : index
    %c0_156 = arith.constant 0 : index
    %204 = vector.load %arg30[%c12_155, %c0_156] : memref<54x128xbf16, #tpu.memory_space<vmem>>, vector<40x128xbf16>
    %c14_157 = arith.constant 14 : index
    %c0_158 = arith.constant 0 : index
    %205 = vector.load %arg30[%c14_157, %c0_158] : memref<54x128xbf16, #tpu.memory_space<vmem>>, vector<40x128xbf16>
    %206 = tpu.concatenate %198, %199, %200, %201, %202, %203, %204, %205 in 1 : vector<40x128xbf16>, vector<40x128xbf16>, vector<40x128xbf16>, vector<40x128xbf16>, vector<40x128xbf16>, vector<40x128xbf16>, vector<40x128xbf16>, vector<40x128xbf16> -> vector<40x1024xbf16>
    %c0_159 = arith.constant 0 : index
    %c0_160 = arith.constant 0 : index
    %207 = vector.load %arg19[%c0_159, %c0_160] : memref<1024x128xbf16, #tpu.memory_space<vmem>>, vector<1024x128xbf16>
    %cst_161 = arith.constant dense<0.000000e+00> : vector<40x128xf32>
    %208 = tpu.matmul %206, %207, %cst_161 {dimension_numbers = #tpu.dot_dimension_numbers<[1], [0], [0], [1], [0, 0, 1, 1], [], []>} : vector<40x1024xbf16>, vector<1024x128xbf16>, vector<40x128xf32> -> vector<40x128xf32>
    %c0_162 = arith.constant 0 : index
    %c0_163 = arith.constant 0 : index
    %209 = vector.load %arg20[%c0_162, %c0_163] : memref<1x128xf32, #tpu.memory_space<vmem>>, vector<1x128xf32>
    %210 = vector.broadcast %209 : vector<1x128xf32> to vector<40x128xf32>
    %211 = arith.addf %208, %210 : vector<40x128xf32>
    %cst_164 = arith.constant dense<0.000000e+00> : vector<128xf32>
    %212 = vector.multi_reduction <add>, %211, %cst_164 [0] : vector<40x128xf32> to vector<128xf32>
    %213 = vector.shape_cast %212 : vector<128xf32> to vector<1x128xf32>
    %cst_165 = arith.constant 4.000000e+01 : f32
    %214 = vector.broadcast %cst_165 : f32 to vector<1x128xf32>
    %215 = arith.divf %213, %214 : vector<1x128xf32>
    %216 = vector.broadcast %215 : vector<1x128xf32> to vector<40x128xf32>
    %217 = arith.subf %211, %216 : vector<40x128xf32>
    %218 = arith.mulf %217, %217 : vector<40x128xf32>
    %cst_166 = arith.constant dense<0.000000e+00> : vector<128xf32>
    %219 = vector.multi_reduction <add>, %218, %cst_166 [0] : vector<40x128xf32> to vector<128xf32>
    %220 = vector.shape_cast %219 : vector<128xf32> to vector<1x128xf32>
    %cst_167 = arith.constant 4.000000e+01 : f32
    %221 = vector.broadcast %cst_167 : f32 to vector<1x128xf32>
    %222 = arith.divf %220, %221 : vector<1x128xf32>
    %223 = vector.broadcast %215 : vector<1x128xf32> to vector<40x128xf32>
    %224 = arith.subf %211, %223 : vector<40x128xf32>
    %cst_168 = arith.constant 9.99999974E-6 : f32
    %225 = vector.broadcast %cst_168 : f32 to vector<1x128xf32>
    %226 = arith.addf %222, %225 : vector<1x128xf32>
    %227 = math.rsqrt %226 : vector<1x128xf32>
    %228 = vector.broadcast %227 : vector<1x128xf32> to vector<40x128xf32>
    %229 = arith.mulf %224, %228 : vector<40x128xf32>
    %c0_169 = arith.constant 0 : index
    %c0_170 = arith.constant 0 : index
    %230 = vector.load %arg21[%c0_169, %c0_170] : memref<1x128xf32, #tpu.memory_space<vmem>>, vector<1x128xf32>
    %231 = vector.broadcast %230 : vector<1x128xf32> to vector<40x128xf32>
    %232 = arith.mulf %229, %231 : vector<40x128xf32>
    %c0_171 = arith.constant 0 : index
    %c0_172 = arith.constant 0 : index
    %233 = vector.load %arg22[%c0_171, %c0_172] : memref<1x128xf32, #tpu.memory_space<vmem>>, vector<1x128xf32>
    %234 = vector.broadcast %233 : vector<1x128xf32> to vector<40x128xf32>
    %235 = arith.addf %232, %234 : vector<40x128xf32>
    %cst_173 = arith.constant 0.000000e+00 : f32
    %236 = vector.broadcast %cst_173 : f32 to vector<40x128xf32>
    %237 = arith.maximumf %235, %236 : vector<40x128xf32>
    %238 = arith.truncf %237 : vector<40x128xf32> to vector<40x128xbf16>
    %c8_174 = arith.constant 8 : index
    %c0_175 = arith.constant 0 : index
    %239 = vector.load %arg31[%c8_174, %c0_175] : memref<54x128xbf16, #tpu.memory_space<vmem>>, vector<40x128xbf16>
    tpu.vector_store %arg31[%c8_174, %c0_175], %238 {strides = array<i32>} : memref<54x128xbf16, #tpu.memory_space<vmem>>, vector<40x128xbf16>,
    %c0_176 = arith.constant 0 : index
    %c0_177 = arith.constant 0 : index
    %240 = vector.load %arg31[%c0_176, %c0_177] : memref<54x128xbf16, #tpu.memory_space<vmem>>, vector<40x128xbf16>
    %c2_178 = arith.constant 2 : index
    %c0_179 = arith.constant 0 : index
    %241 = vector.load %arg31[%c2_178, %c0_179] : memref<54x128xbf16, #tpu.memory_space<vmem>>, vector<40x128xbf16>
    %c4_180 = arith.constant 4 : index
    %c0_181 = arith.constant 0 : index
    %242 = vector.load %arg31[%c4_180, %c0_181] : memref<54x128xbf16, #tpu.memory_space<vmem>>, vector<40x128xbf16>
    %c6_182 = arith.constant 6 : index
    %c0_183 = arith.constant 0 : index
    %243 = vector.load %arg31[%c6_182, %c0_183] : memref<54x128xbf16, #tpu.memory_space<vmem>>, vector<40x128xbf16>
    %c8_184 = arith.constant 8 : index
    %c0_185 = arith.constant 0 : index
    %244 = vector.load %arg31[%c8_184, %c0_185] : memref<54x128xbf16, #tpu.memory_space<vmem>>, vector<40x128xbf16>
    %c10_186 = arith.constant 10 : index
    %c0_187 = arith.constant 0 : index
    %245 = vector.load %arg31[%c10_186, %c0_187] : memref<54x128xbf16, #tpu.memory_space<vmem>>, vector<40x128xbf16>
    %c12_188 = arith.constant 12 : index
    %c0_189 = arith.constant 0 : index
    %246 = vector.load %arg31[%c12_188, %c0_189] : memref<54x128xbf16, #tpu.memory_space<vmem>>, vector<40x128xbf16>
    %c14_190 = arith.constant 14 : index
    %c0_191 = arith.constant 0 : index
    %247 = vector.load %arg31[%c14_190, %c0_191] : memref<54x128xbf16, #tpu.memory_space<vmem>>, vector<40x128xbf16>
    %248 = tpu.concatenate %240, %241, %242, %243, %244, %245, %246, %247 in 1 : vector<40x128xbf16>, vector<40x128xbf16>, vector<40x128xbf16>, vector<40x128xbf16>, vector<40x128xbf16>, vector<40x128xbf16>, vector<40x128xbf16>, vector<40x128xbf16> -> vector<40x1024xbf16>
    %c0_192 = arith.constant 0 : index
    %c0_193 = arith.constant 0 : index
    %249 = vector.load %arg23[%c0_192, %c0_193] : memref<1024x128xbf16, #tpu.memory_space<vmem>>, vector<1024x128xbf16>
    %cst_194 = arith.constant dense<0.000000e+00> : vector<40x128xf32>
    %250 = tpu.matmul %248, %249, %cst_194 {dimension_numbers = #tpu.dot_dimension_numbers<[1], [0], [0], [1], [0, 0, 1, 1], [], []>} : vector<40x1024xbf16>, vector<1024x128xbf16>, vector<40x128xf32> -> vector<40x128xf32>
    %c0_195 = arith.constant 0 : index
    %c0_196 = arith.constant 0 : index
    %251 = vector.load %arg24[%c0_195, %c0_196] : memref<1x128xf32, #tpu.memory_space<vmem>>, vector<1x128xf32>
    %252 = vector.broadcast %251 : vector<1x128xf32> to vector<40x128xf32>
    %253 = arith.addf %250, %252 : vector<40x128xf32>
    %c0_197 = arith.constant 0 : index
    %c0_198 = arith.constant 0 : index
    %254 = vector.load %arg25[%c0_197, %c0_198] : memref<40x128xf32, #tpu.memory_space<vmem>>, vector<40x128xf32>
    tpu.vector_store %arg25[%c0_197, %c0_198], %253 {strides = array<i32>} : memref<40x128xf32, #tpu.memory_space<vmem>>, vector<40x128xf32>,
    return
  }
}

</mosaic_0001>

<llo_original>
// kernel: forward.1
$region0: #{forward.1}
  #allocation0 [shape = 'u32[]', space=smem, size = 0x4, offset = 0x4, fixed_abs, tag = 'smem constant byte address 0x4 - core index']
  #allocation1 [shape = 'u32[144,128]{1,0:T(1,128)}', space=vmem, size = 0x12000, scoped, tag = 'internal scratch']
  #allocation2 [shape = 'bf16[32,384]{1,0:T(16,128)(2,1)}', space=vmem, size = 0x6000, scoped, tag = 'scratch operand']
  #allocation3 [shape = 'bf16[38,256]{1,0:T(8,128)(2,1)}', space=vmem, size = 0x5000, scoped, tag = 'scratch operand']
  #allocation4 [shape = 'bf16[50,256]{1,0:T(8,128)(2,1)}', space=vmem, size = 0x7000, scoped, tag = 'scratch operand']
  #allocation5 [shape = 'bf16[54,128]{1,0:T(8,128)(2,1)}', space=vmem, size = 0x3800, scoped, tag = 'scratch operand']
  #allocation6 [shape = 'bf16[54,128]{1,0:T(8,128)(2,1)}', space=vmem, size = 0x3800, scoped, tag = 'scratch operand']
  #allocation7 [shape = 'bf16[54,128]{1,0:T(8,128)(2,1)}', space=vmem, size = 0x3800, scoped, tag = 'scratch operand']
  %s0 = inlined_call_operand.hbm [shape: f32[2,32], index: 0, kind: input, shape index: {}]
  %s1 = inlined_call_operand.hbm [shape: bf16[32,2304], index: 1, kind: input, shape index: {}]
  %s2 = inlined_call_operand.hbm [shape: f32[1,2304], index: 2, kind: input, shape index: {}]
  %s3 = inlined_call_operand.hbm [shape: bf16[2304,256], index: 3, kind: input, shape index: {}]
  %s4 = inlined_call_operand.hbm [shape: f32[1,256], index: 4, kind: input, shape index: {}]
  %s5 = inlined_call_operand.hbm [shape: f32[1,256], index: 5, kind: input, shape index: {}]
  %s6 = inlined_call_operand.hbm [shape: f32[1,256], index: 6, kind: input, shape index: {}]
  %s7 = inlined_call_operand.hbm [shape: bf16[1280,256], index: 7, kind: input, shape index: {}]
  %s8 = inlined_call_operand.hbm [shape: f32[1,256], index: 8, kind: input, shape index: {}]
  %s9 = inlined_call_operand.hbm [shape: f32[1,256], index: 9, kind: input, shape index: {}]
  %s10 = inlined_call_operand.hbm [shape: f32[1,256], index: 10, kind: input, shape index: {}]
  %s11 = inlined_call_operand.hbm [shape: bf16[1536,128], index: 11, kind: input, shape index: {}]
  %s12 = inlined_call_operand.hbm [shape: f32[1,128], index: 12, kind: input, shape index: {}]
  %s13 = inlined_call_operand.hbm [shape: f32[1,128], index: 13, kind: input, shape index: {}]
  %s14 = inlined_call_operand.hbm [shape: f32[1,128], index: 14, kind: input, shape index: {}]
  %s15 = inlined_call_operand.hbm [shape: bf16[1024,128], index: 15, kind: input, shape index: {}]
  %s16 = inlined_call_operand.hbm [shape: f32[1,128], index: 16, kind: input, shape index: {}]
  %s17 = inlined_call_operand.hbm [shape: f32[1,128], index: 17, kind: input, shape index: {}]
  %s18 = inlined_call_operand.hbm [shape: f32[1,128], index: 18, kind: input, shape index: {}]
  %s19 = inlined_call_operand.hbm [shape: bf16[1024,128], index: 19, kind: input, shape index: {}]
  %s20 = inlined_call_operand.hbm [shape: f32[1,128], index: 20, kind: input, shape index: {}]
  %s21 = inlined_call_operand.hbm [shape: f32[1,128], index: 21, kind: input, shape index: {}]
  %s22 = inlined_call_operand.hbm [shape: f32[1,128], index: 22, kind: input, shape index: {}]
  %s23 = inlined_call_operand.hbm [shape: bf16[1024,128], index: 23, kind: input, shape index: {}]
  %s24 = inlined_call_operand.hbm [shape: f32[1,128], index: 24, kind: input, shape index: {}]
  %s25 = inlined_call_operand.vmem [shape: f32[40,128], index: 25, kind: output, shape index: {}]
  %s26 = sld [smem:[#allocation0]]
  $region210: #{forward.1} parent=0
    _
  %s28 = ssub.s32 1, %s26
  %s29 = scalar_select 0, %s28, %s26
  $region1: #{forward.1} parent=0
    #allocation8 [shape = 'u8[1024]{0}', space=vmem, size = 0x400, scoped, tag = 'input window, operand 0, single buffered']
    #allocation9 [shape = 's32[1]{0}', space=sflag, size = 0x4, scoped, tag = 'scoped memory for forward.1']
    #allocation10 [shape = 'u8[147456]{0}', space=vmem, size = 0x24000, scoped, tag = 'input window, operand 1, single buffered']
    #allocation11 [shape = 's32[1]{0}', space=sflag, size = 0x4, scoped, tag = 'scoped memory for forward.1']
    #allocation12 [shape = 'u8[9216]{0}', space=vmem, size = 0x2400, scoped, tag = 'input window, operand 2, single buffered']
    #allocation13 [shape = 'u8[1179648]{0}', space=vmem, size = 0x120000, scoped, tag = 'input window, operand 3, single buffered']
    #allocation14 [shape = 's32[1]{0}', space=sflag, size = 0x4, scoped, tag = 'scoped memory for forward.1']
    #allocation15 [shape = 'u8[1024]{0}', space=vmem, size = 0x400, scoped, tag = 'input window, operand 4, single buffered']
    #allocation16 [shape = 'u8[1024]{0}', space=vmem, size = 0x400, scoped, tag = 'input window, operand 5, single buffered']
    #allocation17 [shape = 's32[1]{0}', space=sflag, size = 0x4, scoped, tag = 'scoped memory for forward.1']
    #allocation18 [shape = 'u8[1024]{0}', space=vmem, size = 0x400, scoped, tag = 'input window, operand 6, single buffered']
    #allocation19 [shape = 'u8[655360]{0}', space=vmem, size = 0xa0000, scoped, tag = 'input window, operand 7, single buffered']
    #allocation20 [shape = 's32[1]{0}', space=sflag, size = 0x4, scoped, tag = 'scoped memory for forward.1']
    #allocation21 [shape = 'u8[1024]{0}', space=vmem, size = 0x400, scoped, tag = 'input window, operand 8, single buffered']
    #allocation22 [shape = 'u8[1024]{0}', space=vmem, size = 0x400, scoped, tag = 'input window, operand 9, single buffered']
    #allocation23 [shape = 's32[1]{0}', space=sflag, size = 0x4, scoped, tag = 'scoped memory for forward.1']
    #allocation24 [shape = 'u8[1024]{0}', space=vmem, size = 0x400, scoped, tag = 'input window, operand 10, single buffered']
    #allocation25 [shape = 'u8[393216]{0}', space=vmem, size = 0x60000, scoped, tag = 'input window, operand 11, single buffered']
    #allocation26 [shape = 's32[1]{0}', space=sflag, size = 0x4, scoped, tag = 'scoped memory for forward.1']
    #allocation27 [shape = 'u8[512]{0}', space=vmem, size = 0x400, scoped, tag = 'input window, operand 12, single buffered']
    #allocation28 [shape = 'u8[512]{0}', space=vmem, size = 0x400, scoped, tag = 'input window, operand 13, single buffered']
    #allocation29 [shape = 's32[1]{0}', space=sflag, size = 0x4, scoped, tag = 'scoped memory for forward.1']
    #allocation30 [shape = 'u8[512]{0}', space=vmem, size = 0x400, scoped, tag = 'input window, operand 14, single buffered']
    #allocation31 [shape = 'u8[262144]{0}', space=vmem, size = 0x40000, scoped, tag = 'input window, operand 15, single buffered']
    #allocation32 [shape = 's32[1]{0}', space=sflag, size = 0x4, scoped, tag = 'scoped memory for forward.1']
    #allocation33 [shape = 'u8[512]{0}', space=vmem, size = 0x400, scoped, tag = 'input window, operand 16, single buffered']
    #allocation34 [shape = 'u8[512]{0}', space=vmem, size = 0x400, scoped, tag = 'input window, operand 17, single buffered']
    #allocation35 [shape = 's32[1]{0}', space=sflag, size = 0x4, scoped, tag = 'scoped memory for forward.1']
    #allocation36 [shape = 'u8[512]{0}', space=vmem, size = 0x400, scoped, tag = 'input window, operand 18, single buffered']
    #allocation37 [shape = 'u8[262144]{0}', space=vmem, size = 0x40000, scoped, tag = 'input window, operand 19, single buffered']
    #allocation38 [shape = 's32[1]{0}', space=sflag, size = 0x4, scoped, tag = 'scoped memory for forward.1']
    #allocation39 [shape = 'u8[512]{0}', space=vmem, size = 0x400, scoped, tag = 'input window, operand 20, single buffered']
    #allocation40 [shape = 'u8[512]{0}', space=vmem, size = 0x400, scoped, tag = 'input window, operand 21, single buffered']
    #allocation41 [shape = 's32[1]{0}', space=sflag, size = 0x4, scoped, tag = 'scoped memory for forward.1']
    #allocation42 [shape = 'u8[512]{0}', space=vmem, size = 0x400, scoped, tag = 'input window, operand 22, single buffered']
    #allocation43 [shape = 'u8[262144]{0}', space=vmem, size = 0x40000, scoped, tag = 'input window, operand 23, single buffered']
    #allocation44 [shape = 's32[1]{0}', space=sflag, size = 0x4, scoped, tag = 'scoped memory for forward.1']
    #allocation45 [shape = 'u8[512]{0}', space=vmem, size = 0x400, scoped, tag = 'input window, operand 24, single buffered']
    %30 = vsyncpa [#allocation9], 0
    %31 = vsyncpa [#allocation11], 0
    %32 = vsyncpa [#allocation14], 0
    %33 = vsyncpa [#allocation17], 0
    %34 = vsyncpa [#allocation20], 0
    %35 = vsyncpa [#allocation23], 0
    %36 = vsyncpa [#allocation26], 0
    %37 = vsyncpa [#allocation29], 0
    %38 = vsyncpa [#allocation32], 0
    %39 = vsyncpa [#allocation35], 0
    %40 = vsyncpa [#allocation38], 0
    %41 = vsyncpa [#allocation41], 0
    %42 = vsyncpa [#allocation44], 0
    // Predicated region
    $region2: #{forward.1} parent=1 // pred_check
      _
    $region3: #{forward.1} parent=1 // pred_check_branch
      %44 = sbr.rel (0) target = $region5
    $region4: #{forward.1} parent=1 // pred_region
      %s46 = ssub.s32 32, 32
      %47 = vsyncadd [#allocation9], %s46
      %s49 = sshll.u32 [#allocation8], 4
      %s50 = int_to_ptr.vmem [resolvable:$true] %s49
      %52 = dma.hbm_to_vmem [thread:$0]  %s0, 32, %s50, [#allocation9]
    $region5: #{forward.1} parent=1 // pred_fallthru
      _
    // Predicated region
    $region6: #{forward.1} parent=1 // pred_check
      _
    $region7: #{forward.1} parent=1 // pred_check_branch
      %54 = sbr.rel (0) target = $region9
    $region8: #{forward.1} parent=1 // pred_region
      %s56 = ssub.s32 4608, 4608
      %57 = vsyncadd [#allocation11], %s56
      %s58 = sshll.u32 [#allocation10], 4
      %s59 = int_to_ptr.vmem [resolvable:$true] %s58
      %64 = dma.hbm_to_vmem [thread:$0]  %s1, 4608, %s59, [#allocation11], 1152, 1152, 72
    $region9: #{forward.1} parent=1 // pred_fallthru
      _
    // Predicated region
    $region10: #{forward.1} parent=1 // pred_check
      _
    $region11: #{forward.1} parent=1 // pred_check_branch
      %66 = sbr.rel (0) target = $region13
    $region12: #{forward.1} parent=1 // pred_region
      %s68 = ssub.s32 288, 288
      %69 = vsyncadd [#allocation11], %s68
      %s71 = sshll.u32 [#allocation12], 4
      %s72 = int_to_ptr.vmem [resolvable:$true] %s71
      %74 = dma.hbm_to_vmem [thread:$0]  %s2, 288, %s72, [#allocation11]
    $region13: #{forward.1} parent=1 // pred_fallthru
      _
    // Predicated region
    $region14: #{forward.1} parent=1 // pred_check
      _
    $region15: #{forward.1} parent=1 // pred_check_branch
      %76 = sbr.rel (0) target = $region17
    $region16: #{forward.1} parent=1 // pred_region
      %s78 = ssub.s32 36864, 36864
      %79 = vsyncadd [#allocation14], %s78
      %s80 = sshll.u32 [#allocation13], 4
      %s81 = int_to_ptr.vmem [resolvable:$true] %s80
      %86 = dma.hbm_to_vmem [thread:$0]  %s3, 36864, %s81, [#allocation14], 128, 128, 8
    $region17: #{forward.1} parent=1 // pred_fallthru
      _
    // Predicated region
    $region18: #{forward.1} parent=1 // pred_check
      _
    $region19: #{forward.1} parent=1 // pred_check_branch
      %88 = sbr.rel (0) target = $region21
    $region20: #{forward.1} parent=1 // pred_region
      %s90 = ssub.s32 32, 32
      %91 = vsyncadd [#allocation14], %s90
      %s93 = sshll.u32 [#allocation15], 4
      %s94 = int_to_ptr.vmem [resolvable:$true] %s93
      %96 = dma.hbm_to_vmem [thread:$0]  %s4, 32, %s94, [#allocation14]
    $region21: #{forward.1} parent=1 // pred_fallthru
      _
    // Predicated region
    $region22: #{forward.1} parent=1 // pred_check
      _
    $region23: #{forward.1} parent=1 // pred_check_branch
      %98 = sbr.rel (0) target = $region25
    $region24: #{forward.1} parent=1 // pred_region
      %s100 = ssub.s32 32, 32
      %101 = vsyncadd [#allocation17], %s100
      %s103 = sshll.u32 [#allocation16], 4
      %s104 = int_to_ptr.vmem [resolvable:$true] %s103
      %106 = dma.hbm_to_vmem [thread:$0]  %s5, 32, %s104, [#allocation17]
    $region25: #{forward.1} parent=1 // pred_fallthru
      _
    // Predicated region
    $region26: #{forward.1} parent=1 // pred_check
      _
    $region27: #{forward.1} parent=1 // pred_check_branch
      %108 = sbr.rel (0) target = $region29
    $region28: #{forward.1} parent=1 // pred_region
      %s110 = ssub.s32 32, 32
      %111 = vsyncadd [#allocation17], %s110
      %s113 = sshll.u32 [#allocation18], 4
      %s114 = int_to_ptr.vmem [resolvable:$true] %s113
      %116 = dma.hbm_to_vmem [thread:$0]  %s6, 32, %s114, [#allocation17]
    $region29: #{forward.1} parent=1 // pred_fallthru
      _
    // Predicated region
    $region30: #{forward.1} parent=1 // pred_check
      _
    $region31: #{forward.1} parent=1 // pred_check_branch
      %118 = sbr.rel (0) target = $region33
    $region32: #{forward.1} parent=1 // pred_region
      %s120 = ssub.s32 20480, 20480
      %121 = vsyncadd [#allocation20], %s120
      %s122 = sshll.u32 [#allocation19], 4
      %s123 = int_to_ptr.vmem [resolvable:$true] %s122
      %128 = dma.hbm_to_vmem [thread:$0]  %s7, 20480, %s123, [#allocation20], 128, 128, 8
    $region33: #{forward.1} parent=1 // pred_fallthru
      _
    // Predicated region
    $region34: #{forward.1} parent=1 // pred_check
      _
    $region35: #{forward.1} parent=1 // pred_check_branch
      %130 = sbr.rel (0) target = $region37
    $region36: #{forward.1} parent=1 // pred_region
      %s132 = ssub.s32 32, 32
      %133 = vsyncadd [#allocation20], %s132
      %s135 = sshll.u32 [#allocation21], 4
      %s136 = int_to_ptr.vmem [resolvable:$true] %s135
      %138 = dma.hbm_to_vmem [thread:$0]  %s8, 32, %s136, [#allocation20]
    $region37: #{forward.1} parent=1 // pred_fallthru
      _
    // Predicated region
    $region38: #{forward.1} parent=1 // pred_check
      _
    $region39: #{forward.1} parent=1 // pred_check_branch
      %140 = sbr.rel (0) target = $region41
    $region40: #{forward.1} parent=1 // pred_region
      %s142 = ssub.s32 32, 32
      %143 = vsyncadd [#allocation23], %s142
      %s145 = sshll.u32 [#allocation22], 4
      %s146 = int_to_ptr.vmem [resolvable:$true] %s145
      %148 = dma.hbm_to_vmem [thread:$0]  %s9, 32, %s146, [#allocation23]
    $region41: #{forward.1} parent=1 // pred_fallthru
      _
    // Predicated region
    $region42: #{forward.1} parent=1 // pred_check
      _
    $region43: #{forward.1} parent=1 // pred_check_branch
      %150 = sbr.rel (0) target = $region45
    $region44: #{forward.1} parent=1 // pred_region
      %s152 = ssub.s32 32, 32
      %153 = vsyncadd [#allocation23], %s152
      %s155 = sshll.u32 [#allocation24], 4
      %s156 = int_to_ptr.vmem [resolvable:$true] %s155
      %158 = dma.hbm_to_vmem [thread:$0]  %s10, 32, %s156, [#allocation23]
    $region45: #{forward.1} parent=1 // pred_fallthru
      _
    // Predicated region
    $region46: #{forward.1} parent=1 // pred_check
      _
    $region47: #{forward.1} parent=1 // pred_check_branch
      %160 = sbr.rel (0) target = $region49
    $region48: #{forward.1} parent=1 // pred_region
      %s162 = ssub.s32 12288, 12288
      %163 = vsyncadd [#allocation26], %s162
      %s164 = sshll.u32 [#allocation25], 4
      %s165 = int_to_ptr.vmem [resolvable:$true] %s164
      %170 = dma.hbm_to_vmem [thread:$0]  %s11, 12288, %s165, [#allocation26], 64, 64, 4
    $region49: #{forward.1} parent=1 // pred_fallthru
      _
    // Predicated region
    $region50: #{forward.1} parent=1 // pred_check
      _
    $region51: #{forward.1} parent=1 // pred_check_branch
      %172 = sbr.rel (0) target = $region53
    $region52: #{forward.1} parent=1 // pred_region
      %s174 = ssub.s32 16, 16
      %175 = vsyncadd [#allocation26], %s174
      %s177 = sshll.u32 [#allocation27], 4
      %s178 = int_to_ptr.vmem [resolvable:$true] %s177
      %180 = dma.hbm_to_vmem [thread:$0]  %s12, 16, %s178, [#allocation26]
    $region53: #{forward.1} parent=1 // pred_fallthru
      _
    // Predicated region
    $region54: #{forward.1} parent=1 // pred_check
      _
    $region55: #{forward.1} parent=1 // pred_check_branch
      %182 = sbr.rel (0) target = $region57
    $region56: #{forward.1} parent=1 // pred_region
      %s184 = ssub.s32 16, 16
      %185 = vsyncadd [#allocation29], %s184
      %s187 = sshll.u32 [#allocation28], 4
      %s188 = int_to_ptr.vmem [resolvable:$true] %s187
      %190 = dma.hbm_to_vmem [thread:$0]  %s13, 16, %s188, [#allocation29]
    $region57: #{forward.1} parent=1 // pred_fallthru
      _
    // Predicated region
    $region58: #{forward.1} parent=1 // pred_check
      _
    $region59: #{forward.1} parent=1 // pred_check_branch
      %192 = sbr.rel (0) target = $region61
    $region60: #{forward.1} parent=1 // pred_region
      %s194 = ssub.s32 16, 16
      %195 = vsyncadd [#allocation29], %s194
      %s197 = sshll.u32 [#allocation30], 4
      %s198 = int_to_ptr.vmem [resolvable:$true] %s197
      %200 = dma.hbm_to_vmem [thread:$0]  %s14, 16, %s198, [#allocation29]
    $region61: #{forward.1} parent=1 // pred_fallthru
      _
    // Predicated region
    $region62: #{forward.1} parent=1 // pred_check
      _
    $region63: #{forward.1} parent=1 // pred_check_branch
      %202 = sbr.rel (0) target = $region65
    $region64: #{forward.1} parent=1 // pred_region
      %s204 = ssub.s32 8192, 8192
      %205 = vsyncadd [#allocation32], %s204
      %s206 = sshll.u32 [#allocation31], 4
      %s207 = int_to_ptr.vmem [resolvable:$true] %s206
      %212 = dma.hbm_to_vmem [thread:$0]  %s15, 8192, %s207, [#allocation32], 64, 64, 4
    $region65: #{forward.1} parent=1 // pred_fallthru
      _
    // Predicated region
    $region66: #{forward.1} parent=1 // pred_check
      _
    $region67: #{forward.1} parent=1 // pred_check_branch
      %214 = sbr.rel (0) target = $region69
    $region68: #{forward.1} parent=1 // pred_region
      %s216 = ssub.s32 16, 16
      %217 = vsyncadd [#allocation32], %s216
      %s219 = sshll.u32 [#allocation33], 4
      %s220 = int_to_ptr.vmem [resolvable:$true] %s219
      %222 = dma.hbm_to_vmem [thread:$0]  %s16, 16, %s220, [#allocation32]
    $region69: #{forward.1} parent=1 // pred_fallthru
      _
    // Predicated region
    $region70: #{forward.1} parent=1 // pred_check
      _
    $region71: #{forward.1} parent=1 // pred_check_branch
      %224 = sbr.rel (0) target = $region73
    $region72: #{forward.1} parent=1 // pred_region
      %s226 = ssub.s32 16, 16
      %227 = vsyncadd [#allocation35], %s226
      %s229 = sshll.u32 [#allocation34], 4
      %s230 = int_to_ptr.vmem [resolvable:$true] %s229
      %232 = dma.hbm_to_vmem [thread:$0]  %s17, 16, %s230, [#allocation35]
    $region73: #{forward.1} parent=1 // pred_fallthru
      _
    // Predicated region
    $region74: #{forward.1} parent=1 // pred_check
      _
    $region75: #{forward.1} parent=1 // pred_check_branch
      %234 = sbr.rel (0) target = $region77
    $region76: #{forward.1} parent=1 // pred_region
      %s236 = ssub.s32 16, 16
      %237 = vsyncadd [#allocation35], %s236
      %s239 = sshll.u32 [#allocation36], 4
      %s240 = int_to_ptr.vmem [resolvable:$true] %s239
      %242 = dma.hbm_to_vmem [thread:$0]  %s18, 16, %s240, [#allocation35]
    $region77: #{forward.1} parent=1 // pred_fallthru
      _
    // Predicated region
    $region78: #{forward.1} parent=1 // pred_check
      _
    $region79: #{forward.1} parent=1 // pred_check_branch
      %244 = sbr.rel (0) target = $region81
    $region80: #{forward.1} parent=1 // pred_region
      %s246 = ssub.s32 8192, 8192
      %247 = vsyncadd [#allocation38], %s246
      %s248 = sshll.u32 [#allocation37], 4
      %s249 = int_to_ptr.vmem [resolvable:$true] %s248
      %254 = dma.hbm_to_vmem [thread:$0]  %s19, 8192, %s249, [#allocation38], 64, 64, 4
    $region81: #{forward.1} parent=1 // pred_fallthru
      _
    // Predicated region
    $region82: #{forward.1} parent=1 // pred_check
      _
    $region83: #{forward.1} parent=1 // pred_check_branch
      %256 = sbr.rel (0) target = $region85
    $region84: #{forward.1} parent=1 // pred_region
      %s258 = ssub.s32 16, 16
      %259 = vsyncadd [#allocation38], %s258
      %s261 = sshll.u32 [#allocation39], 4
      %s262 = int_to_ptr.vmem [resolvable:$true] %s261
      %264 = dma.hbm_to_vmem [thread:$0]  %s20, 16, %s262, [#allocation38]
    $region85: #{forward.1} parent=1 // pred_fallthru
      _
    // Predicated region
    $region86: #{forward.1} parent=1 // pred_check
      _
    $region87: #{forward.1} parent=1 // pred_check_branch
      %266 = sbr.rel (0) target = $region89
    $region88: #{forward.1} parent=1 // pred_region
      %s268 = ssub.s32 16, 16
      %269 = vsyncadd [#allocation41], %s268
      %s271 = sshll.u32 [#allocation40], 4
      %s272 = int_to_ptr.vmem [resolvable:$true] %s271
      %274 = dma.hbm_to_vmem [thread:$0]  %s21, 16, %s272, [#allocation41]
    $region89: #{forward.1} parent=1 // pred_fallthru
      _
    // Predicated region
    $region90: #{forward.1} parent=1 // pred_check
      _
    $region91: #{forward.1} parent=1 // pred_check_branch
      %276 = sbr.rel (0) target = $region93
    $region92: #{forward.1} parent=1 // pred_region
      %s278 = ssub.s32 16, 16
      %279 = vsyncadd [#allocation41], %s278
      %s281 = sshll.u32 [#allocation42], 4
      %s282 = int_to_ptr.vmem [resolvable:$true] %s281
      %284 = dma.hbm_to_vmem [thread:$0]  %s22, 16, %s282, [#allocation41]
    $region93: #{forward.1} parent=1 // pred_fallthru
      _
    // Predicated region
    $region94: #{forward.1} parent=1 // pred_check
      _
    $region95: #{forward.1} parent=1 // pred_check_branch
      %286 = sbr.rel (0) target = $region97
    $region96: #{forward.1} parent=1 // pred_region
      %s288 = ssub.s32 8192, 8192
      %289 = vsyncadd [#allocation44], %s288
      %s290 = sshll.u32 [#allocation43], 4
      %s291 = int_to_ptr.vmem [resolvable:$true] %s290
      %296 = dma.hbm_to_vmem [thread:$0]  %s23, 8192, %s291, [#allocation44], 64, 64, 4
    $region97: #{forward.1} parent=1 // pred_fallthru
      _
    // Predicated region
    $region98: #{forward.1} parent=1 // pred_check
      _
    $region99: #{forward.1} parent=1 // pred_check_branch
      %298 = sbr.rel (0) target = $region101
    $region100: #{forward.1} parent=1 // pred_region
      %s300 = ssub.s32 16, 16
      %301 = vsyncadd [#allocation44], %s300
      %s303 = sshll.u32 [#allocation45], 4
      %s304 = int_to_ptr.vmem [resolvable:$true] %s303
      %306 = dma.hbm_to_vmem [thread:$0]  %s24, 16, %s304, [#allocation44]
    $region101: #{forward.1} parent=1 // pred_fallthru
      _
    // Predicated region
    $region102: #{forward.1} parent=1 // pred_check
      _
    $region103: #{forward.1} parent=1 // pred_check_branch
      %308 = sbr.rel (0) target = $region105
    $region104: #{forward.1} parent=1 // pred_region
      %309 = dma.done [#allocation9], 32
    $region105: #{forward.1} parent=1 // pred_fallthru
      _
    // Predicated region
    $region106: #{forward.1} parent=1 // pred_check
      _
    $region107: #{forward.1} parent=1 // pred_check_branch
      %311 = sbr.rel (0) target = $region109
    $region108: #{forward.1} parent=1 // pred_region
      %312 = dma.done [#allocation11], 4608
    $region109: #{forward.1} parent=1 // pred_fallthru
      _
    // Predicated region
    $region110: #{forward.1} parent=1 // pred_check
      _
    $region111: #{forward.1} parent=1 // pred_check_branch
      %314 = sbr.rel (0) target = $region113
    $region112: #{forward.1} parent=1 // pred_region
      %315 = dma.done [#allocation11], 288
    $region113: #{forward.1} parent=1 // pred_fallthru
      _
    // Predicated region
    $region114: #{forward.1} parent=1 // pred_check
      _
    $region115: #{forward.1} parent=1 // pred_check_branch
      %317 = sbr.rel (0) target = $region117
    $region116: #{forward.1} parent=1 // pred_region
      %318 = dma.done [#allocation14], 36864
    $region117: #{forward.1} parent=1 // pred_fallthru
      _
    // Predicated region
    $region118: #{forward.1} parent=1 // pred_check
      _
    $region119: #{forward.1} parent=1 // pred_check_branch
      %320 = sbr.rel (0) target = $region121
    $region120: #{forward.1} parent=1 // pred_region
      %321 = dma.done [#allocation14], 32
    $region121: #{forward.1} parent=1 // pred_fallthru
      _
    // Predicated region
    $region122: #{forward.1} parent=1 // pred_check
      _
    $region123: #{forward.1} parent=1 // pred_check_branch
      %323 = sbr.rel (0) target = $region125
    $region124: #{forward.1} parent=1 // pred_region
      %324 = dma.done [#allocation17], 32
    $region125: #{forward.1} parent=1 // pred_fallthru
      _
    // Predicated region
    $region126: #{forward.1} parent=1 // pred_check
      _
    $region127: #{forward.1} parent=1 // pred_check_branch
      %326 = sbr.rel (0) target = $region129
    $region128: #{forward.1} parent=1 // pred_region
      %327 = dma.done [#allocation17], 32
    $region129: #{forward.1} parent=1 // pred_fallthru
      _
    // Predicated region
    $region130: #{forward.1} parent=1 // pred_check
      _
    $region131: #{forward.1} parent=1 // pred_check_branch
      %329 = sbr.rel (0) target = $region133
    $region132: #{forward.1} parent=1 // pred_region
      %330 = dma.done [#allocation20], 20480
    $region133: #{forward.1} parent=1 // pred_fallthru
      _
    // Predicated region
    $region134: #{forward.1} parent=1 // pred_check
      _
    $region135: #{forward.1} parent=1 // pred_check_branch
      %332 = sbr.rel (0) target = $region137
    $region136: #{forward.1} parent=1 // pred_region
      %333 = dma.done [#allocation20], 32
    $region137: #{forward.1} parent=1 // pred_fallthru
      _
    // Predicated region
    $region138: #{forward.1} parent=1 // pred_check
      _
    $region139: #{forward.1} parent=1 // pred_check_branch
      %335 = sbr.rel (0) target = $region141
    $region140: #{forward.1} parent=1 // pred_region
      %336 = dma.done [#allocation23], 32
    $region141: #{forward.1} parent=1 // pred_fallthru
      _
    // Predicated region
    $region142: #{forward.1} parent=1 // pred_check
      _
    $region143: #{forward.1} parent=1 // pred_check_branch
      %338 = sbr.rel (0) target = $region145
    $region144: #{forward.1} parent=1 // pred_region
      %339 = dma.done [#allocation23], 32
    $region145: #{forward.1} parent=1 // pred_fallthru
      _
    // Predicated region
    $region146: #{forward.1} parent=1 // pred_check
      _
    $region147: #{forward.1} parent=1 // pred_check_branch
      %341 = sbr.rel (0) target = $region149
    $region148: #{forward.1} parent=1 // pred_region
      %342 = dma.done [#allocation26], 12288
    $region149: #{forward.1} parent=1 // pred_fallthru
      _
    // Predicated region
    $region150: #{forward.1} parent=1 // pred_check
      _
    $region151: #{forward.1} parent=1 // pred_check_branch
      %344 = sbr.rel (0) target = $region153
    $region152: #{forward.1} parent=1 // pred_region
      %345 = dma.done [#allocation26], 16
    $region153: #{forward.1} parent=1 // pred_fallthru
      _
    // Predicated region
    $region154: #{forward.1} parent=1 // pred_check
      _
    $region155: #{forward.1} parent=1 // pred_check_branch
      %347 = sbr.rel (0) target = $region157
    $region156: #{forward.1} parent=1 // pred_region
      %348 = dma.done [#allocation29], 16
    $region157: #{forward.1} parent=1 // pred_fallthru
      _
    // Predicated region
    $region158: #{forward.1} parent=1 // pred_check
      _
    $region159: #{forward.1} parent=1 // pred_check_branch
      %350 = sbr.rel (0) target = $region161
    $region160: #{forward.1} parent=1 // pred_region
      %351 = dma.done [#allocation29], 16
    $region161: #{forward.1} parent=1 // pred_fallthru
      _
    // Predicated region
    $region162: #{forward.1} parent=1 // pred_check
      _
    $region163: #{forward.1} parent=1 // pred_check_branch
      %353 = sbr.rel (0) target = $region165
    $region164: #{forward.1} parent=1 // pred_region
      %354 = dma.done [#allocation32], 8192
    $region165: #{forward.1} parent=1 // pred_fallthru
      _
    // Predicated region
    $region166: #{forward.1} parent=1 // pred_check
      _
    $region167: #{forward.1} parent=1 // pred_check_branch
      %356 = sbr.rel (0) target = $region169
    $region168: #{forward.1} parent=1 // pred_region
      %357 = dma.done [#allocation32], 16
    $region169: #{forward.1} parent=1 // pred_fallthru
      _
    // Predicated region
    $region170: #{forward.1} parent=1 // pred_check
      _
    $region171: #{forward.1} parent=1 // pred_check_branch
      %359 = sbr.rel (0) target = $region173
    $region172: #{forward.1} parent=1 // pred_region
      %360 = dma.done [#allocation35], 16
    $region173: #{forward.1} parent=1 // pred_fallthru
      _
    // Predicated region
    $region174: #{forward.1} parent=1 // pred_check
      _
    $region175: #{forward.1} parent=1 // pred_check_branch
      %362 = sbr.rel (0) target = $region177
    $region176: #{forward.1} parent=1 // pred_region
      %363 = dma.done [#allocation35], 16
    $region177: #{forward.1} parent=1 // pred_fallthru
      _
    // Predicated region
    $region178: #{forward.1} parent=1 // pred_check
      _
    $region179: #{forward.1} parent=1 // pred_check_branch
      %365 = sbr.rel (0) target = $region181
    $region180: #{forward.1} parent=1 // pred_region
      %366 = dma.done [#allocation38], 8192
    $region181: #{forward.1} parent=1 // pred_fallthru
      _
    // Predicated region
    $region182: #{forward.1} parent=1 // pred_check
      _
    $region183: #{forward.1} parent=1 // pred_check_branch
      %368 = sbr.rel (0) target = $region185
    $region184: #{forward.1} parent=1 // pred_region
      %369 = dma.done [#allocation38], 16
    $region185: #{forward.1} parent=1 // pred_fallthru
      _
    // Predicated region
    $region186: #{forward.1} parent=1 // pred_check
      _
    $region187: #{forward.1} parent=1 // pred_check_branch
      %371 = sbr.rel (0) target = $region189
    $region188: #{forward.1} parent=1 // pred_region
      %372 = dma.done [#allocation41], 16
    $region189: #{forward.1} parent=1 // pred_fallthru
      _
    // Predicated region
    $region190: #{forward.1} parent=1 // pred_check
      _
    $region191: #{forward.1} parent=1 // pred_check_branch
      %374 = sbr.rel (0) target = $region193
    $region192: #{forward.1} parent=1 // pred_region
      %375 = dma.done [#allocation41], 16
    $region193: #{forward.1} parent=1 // pred_fallthru
      _
    // Predicated region
    $region194: #{forward.1} parent=1 // pred_check
      _
    $region195: #{forward.1} parent=1 // pred_check_branch
      %377 = sbr.rel (0) target = $region197
    $region196: #{forward.1} parent=1 // pred_region
      %378 = dma.done [#allocation44], 8192
    $region197: #{forward.1} parent=1 // pred_fallthru
      _
    // Predicated region
    $region198: #{forward.1} parent=1 // pred_check
      _
    $region199: #{forward.1} parent=1 // pred_check_branch
      %380 = sbr.rel (0) target = $region201
    $region200: #{forward.1} parent=1 // pred_region
      %381 = dma.done [#allocation44], 16
    $region201: #{forward.1} parent=1 // pred_fallthru
      _
    %383 = vst [vmem:[#allocation2] sm:$0xff] 0
    %384 = vst [vmem:[#allocation2 + $0x8] sm:$0xff] 0
    %385 = vst [vmem:[#allocation2 + $0x10] sm:$0xff] 0
    %386 = vst [vmem:[#allocation2 + $0x18] sm:$0xff] 0
    %387 = vst [vmem:[#allocation2 + $0x20] sm:$0xff] 0
    %388 = vst [vmem:[#allocation2 + $0x28] sm:$0xff] 0
    %389 = vst [vmem:[#allocation3] sm:$0xff] 0
    %390 = vst [vmem:[#allocation3 + $0x8] sm:$0xff] 0
    %391 = vst [vmem:[#allocation3 + $0x10] sm:$0xff] 0
    %392 = vst [vmem:[#allocation3 + $0x18] sm:$0xff] 0
    %393 = vst [vmem:[#allocation3 + $0x20] sm:$0x77] 0
    %394 = vst [vmem:[#allocation4] sm:$0xff] 0
    %395 = vst [vmem:[#allocation4 + $0x8] sm:$0xff] 0
    %396 = vst [vmem:[#allocation4 + $0x10] sm:$0xff] 0
    %397 = vst [vmem:[#allocation4 + $0x18] sm:$0xff] 0
    %398 = vst [vmem:[#allocation4 + $0x20] sm:$0xff] 0
    %399 = vst [vmem:[#allocation4 + $0x28] sm:$0xff] 0
    %400 = vst [vmem:[#allocation4 + $0x30] sm:$0x11] 0
    %401 = vst [vmem:[#allocation5] sm:$0xf] 0
    %402 = vst [vmem:[#allocation5 + $0x4] sm:$0xf] 0
    %403 = vst [vmem:[#allocation5 + $0x8] sm:$0xf] 0
    %404 = vst [vmem:[#allocation5 + $0xc] sm:$0xf] 0
    %405 = vst [vmem:[#allocation5 + $0x10] sm:$0xf] 0
    %406 = vst [vmem:[#allocation5 + $0x14] sm:$0xf] 0
    %407 = vst [vmem:[#allocation5 + $0x18] sm:$0x7] 0
    %408 = vst [vmem:[#allocation6] sm:$0xf] 0
    %409 = vst [vmem:[#allocation6 + $0x4] sm:$0xf] 0
    %410 = vst [vmem:[#allocation6 + $0x8] sm:$0xf] 0
    %411 = vst [vmem:[#allocation6 + $0xc] sm:$0xf] 0
    %412 = vst [vmem:[#allocation6 + $0x10] sm:$0xf] 0
    %413 = vst [vmem:[#allocation6 + $0x14] sm:$0xf] 0
    %414 = vst [vmem:[#allocation6 + $0x18] sm:$0x7] 0
    %415 = vst [vmem:[#allocation7] sm:$0xf] 0
    %416 = vst [vmem:[#allocation7 + $0x4] sm:$0xf] 0
    %417 = vst [vmem:[#allocation7 + $0x8] sm:$0xf] 0
    %418 = vst [vmem:[#allocation7 + $0xc] sm:$0xf] 0
    %419 = vst [vmem:[#allocation7 + $0x10] sm:$0xf] 0
    %420 = vst [vmem:[#allocation7 + $0x14] sm:$0xf] 0
    %421 = vst [vmem:[#allocation7 + $0x18] sm:$0x7] 0
    %v422 = vld [vmem:[#allocation8] sm:$0x3]
    %v423 = vpack.c.bf16 %v422, %v422
    %v424 = vld [vmem:[#allocation10] sm:$0xff]
    %v425 = vld [vmem:[#allocation10 + $0x8] sm:$0xff]
    %v426 = vld [vmem:[#allocation10 + $0x10] sm:$0xff]
    %v427 = vld [vmem:[#allocation10 + $0x18] sm:$0xff]
    %v428 = vld [vmem:[#allocation10 + $0x20] sm:$0xff]
    %v429 = vld [vmem:[#allocation10 + $0x28] sm:$0xff]
    %v430 = vld [vmem:[#allocation10 + $0x30] sm:$0xff]
    %v431 = vld [vmem:[#allocation10 + $0x38] sm:$0xff]
    %v432 = vld [vmem:[#allocation10 + $0x40] sm:$0xff]
    %v433 = vld [vmem:[#allocation10 + $0x48] sm:$0xff]
    %v434 = vld [vmem:[#allocation10 + $0x50] sm:$0xff]
    %v435 = vld [vmem:[#allocation10 + $0x58] sm:$0xff]
    %v436 = vld [vmem:[#allocation10 + $0x60] sm:$0xff]
    %v437 = vld [vmem:[#allocation10 + $0x68] sm:$0xff]
    %v438 = vld [vmem:[#allocation10 + $0x70] sm:$0xff]
    %v439 = vld [vmem:[#allocation10 + $0x78] sm:$0xff]
    %v440 = vld [vmem:[#allocation10 + $0x80] sm:$0xff]
    %v441 = vld [vmem:[#allocation10 + $0x88] sm:$0xff]
    %v442 = vld [vmem:[#allocation10 + $0x90] sm:$0xff]
    %v443 = vld [vmem:[#allocation10 + $0x98] sm:$0xff]
    %v444 = vld [vmem:[#allocation10 + $0xa0] sm:$0xff]
    %v445 = vld [vmem:[#allocation10 + $0xa8] sm:$0xff]
    %v446 = vld [vmem:[#allocation10 + $0xb0] sm:$0xff]
    %v447 = vld [vmem:[#allocation10 + $0xb8] sm:$0xff]
    %v448 = vld [vmem:[#allocation10 + $0xc0] sm:$0xff]
    %v449 = vld [vmem:[#allocation10 + $0xc8] sm:$0xff]
    %v450 = vld [vmem:[#allocation10 + $0xd0] sm:$0xff]
    %v451 = vld [vmem:[#allocation10 + $0xd8] sm:$0xff]
    %v452 = vld [vmem:[#allocation10 + $0xe0] sm:$0xff]
    %v453 = vld [vmem:[#allocation10 + $0xe8] sm:$0xff]
    %v454 = vld [vmem:[#allocation10 + $0xf0] sm:$0xff]
    %v455 = vld [vmem:[#allocation10 + $0xf8] sm:$0xff]
    %v456 = vld [vmem:[#allocation10 + $0x100] sm:$0xff]
    %v457 = vld [vmem:[#allocation10 + $0x108] sm:$0xff]
    %v458 = vld [vmem:[#allocation10 + $0x110] sm:$0xff]
    %v459 = vld [vmem:[#allocation10 + $0x118] sm:$0xff]
    %v460 = vld [vmem:[#allocation12] sm:$0xff]
    %v461 = vld [vmem:[#allocation12 + $0x8] sm:$0xff]
    %v462 = vld [vmem:[#allocation12 + $0x10] sm:$0x3]
    %v466 = vlaneseq
    %v467 = vshrl.u32 %v466, 7
    %v468 = vsub.s32 0, %v467
    %v469 = vrot.slane %v460, %v468
    %v470 = vlaneseq
    %v471 = vshrl.u32 %v470, 7
    %v472 = vsub.s32 1, %v471
    %v473 = vrot.slane %v460, %v472
    %v474 = vlaneseq
    %v475 = vshrl.u32 %v474, 7
    %v476 = vsub.s32 2, %v475
    %v477 = vrot.slane %v460, %v476
    %v478 = vlaneseq
    %v479 = vshrl.u32 %v478, 7
    %v480 = vsub.s32 3, %v479
    %v481 = vrot.slane %v460, %v480
    %v482 = vlaneseq
    %v483 = vshrl.u32 %v482, 7
    %v484 = vsub.s32 4, %v483
    %v485 = vrot.slane %v460, %v484
    %v486 = vlaneseq
    %v487 = vshrl.u32 %v486, 7
    %v488 = vsub.s32 5, %v487
    %v489 = vrot.slane %v460, %v488
    %v490 = vlaneseq
    %v491 = vshrl.u32 %v490, 7
    %v492 = vsub.s32 6, %v491
    %v493 = vrot.slane %v460, %v492
    %v494 = vlaneseq
    %v495 = vshrl.u32 %v494, 7
    %v496 = vsub.s32 7, %v495
    %v497 = vrot.slane %v460, %v496
    %v498 = vlaneseq
    %v499 = vshrl.u32 %v498, 7
    %v500 = vsub.s32 0, %v499
    %v501 = vrot.slane %v461, %v500
    %v502 = vlaneseq
    %v503 = vshrl.u32 %v502, 7
    %v504 = vsub.s32 1, %v503
    %v505 = vrot.slane %v461, %v504
    %v506 = vlaneseq
    %v507 = vshrl.u32 %v506, 7
    %v508 = vsub.s32 2, %v507
    %v509 = vrot.slane %v461, %v508
    %v510 = vlaneseq
    %v511 = vshrl.u32 %v510, 7
    %v512 = vsub.s32 3, %v511
    %v513 = vrot.slane %v461, %v512
    %v514 = vlaneseq
    %v515 = vshrl.u32 %v514, 7
    %v516 = vsub.s32 4, %v515
    %v517 = vrot.slane %v461, %v516
    %v518 = vlaneseq
    %v519 = vshrl.u32 %v518, 7
    %v520 = vsub.s32 5, %v519
    %v521 = vrot.slane %v461, %v520
    %v522 = vlaneseq
    %v523 = vshrl.u32 %v522, 7
    %v524 = vsub.s32 6, %v523
    %v525 = vrot.slane %v461, %v524
    %v526 = vlaneseq
    %v527 = vshrl.u32 %v526, 7
    %v528 = vsub.s32 7, %v527
    %v529 = vrot.slane %v461, %v528
    %v530 = vlaneseq
    %v531 = vshrl.u32 %v530, 7
    %v532 = vsub.s32 0, %v531
    %v533 = vrot.slane %v462, %v532
    %v534 = vlaneseq
    %v535 = vshrl.u32 %v534, 7
    %v536 = vsub.s32 1, %v535
    %v537 = vrot.slane %v462, %v536
    %v592 = vunpack.c.l.b16 %v424
    %v593 = vunpack.c.h.b16 %v424
    %v594 = vunpack.c.l.b16 %v425
    %v595 = vunpack.c.h.b16 %v425
    %v596 = vunpack.c.l.b16 %v426
    %v597 = vunpack.c.h.b16 %v426
    %v598 = vunpack.c.l.b16 %v427
    %v599 = vunpack.c.h.b16 %v427
    %v600 = vunpack.c.l.b16 %v428
    %v601 = vunpack.c.h.b16 %v428
    %v602 = vunpack.c.l.b16 %v429
    %v603 = vunpack.c.h.b16 %v429
    %v604 = vunpack.c.l.b16 %v430
    %v605 = vunpack.c.h.b16 %v430
    %v606 = vunpack.c.l.b16 %v431
    %v607 = vunpack.c.h.b16 %v431
    %v608 = vunpack.c.l.b16 %v432
    %v609 = vunpack.c.h.b16 %v432
    %v610 = vunpack.c.l.b16 %v433
    %v611 = vunpack.c.h.b16 %v433
    %v612 = vunpack.c.l.b16 %v434
    %v613 = vunpack.c.h.b16 %v434
    %v614 = vunpack.c.l.b16 %v435
    %v615 = vunpack.c.h.b16 %v435
    %v616 = vunpack.c.l.b16 %v436
    %v617 = vunpack.c.h.b16 %v436
    %v618 = vunpack.c.l.b16 %v437
    %v619 = vunpack.c.h.b16 %v437
    %v620 = vunpack.c.l.b16 %v438
    %v621 = vunpack.c.h.b16 %v438
    %v622 = vunpack.c.l.b16 %v439
    %v623 = vunpack.c.h.b16 %v439
    %v624 = vunpack.c.l.b16 %v440
    %v625 = vunpack.c.h.b16 %v440
    %v626 = vunpack.c.l.b16 %v441
    %v627 = vunpack.c.h.b16 %v441
    %v628 = vunpack.c.l.b16 %v442
    %v629 = vunpack.c.h.b16 %v442
    %v630 = vunpack.c.l.b16 %v443
    %v631 = vunpack.c.h.b16 %v443
    %v632 = vunpack.c.l.b16 %v444
    %v633 = vunpack.c.h.b16 %v444
    %v634 = vunpack.c.l.b16 %v445
    %v635 = vunpack.c.h.b16 %v445
    %v636 = vunpack.c.l.b16 %v446
    %v637 = vunpack.c.h.b16 %v446
    %v638 = vunpack.c.l.b16 %v447
    %v639 = vunpack.c.h.b16 %v447
    %v640 = vunpack.c.l.b16 %v448
    %v641 = vunpack.c.h.b16 %v448
    %v642 = vunpack.c.l.b16 %v449
    %v643 = vunpack.c.h.b16 %v449
    %v644 = vunpack.c.l.b16 %v450
    %v645 = vunpack.c.h.b16 %v450
    %v646 = vunpack.c.l.b16 %v451
    %v647 = vunpack.c.h.b16 %v451
    %v648 = vunpack.c.l.b16 %v452
    %v649 = vunpack.c.h.b16 %v452
    %v650 = vunpack.c.l.b16 %v453
    %v651 = vunpack.c.h.b16 %v453
    %v652 = vunpack.c.l.b16 %v454
    %v653 = vunpack.c.h.b16 %v454
    %v654 = vunpack.c.l.b16 %v455
    %v655 = vunpack.c.h.b16 %v455
    %v656 = vunpack.c.l.b16 %v456
    %v657 = vunpack.c.h.b16 %v456
    %v658 = vunpack.c.l.b16 %v457
    %v659 = vunpack.c.h.b16 %v457
    %v660 = vunpack.c.l.b16 %v458
    %v661 = vunpack.c.h.b16 %v458
    %v662 = vunpack.c.l.b16 %v459
    %v663 = vunpack.c.h.b16 %v459
    %v664 = vpack.c.b16 %v610, %v592
    %v665 = vpack.c.b16 %v611, %v593
    %v666 = vpack.c.b16 %v612, %v594
    %v667 = vpack.c.b16 %v613, %v595
    %v668 = vpack.c.b16 %v614, %v596
    %v669 = vpack.c.b16 %v615, %v597
    %v670 = vpack.c.b16 %v616, %v598
    %v671 = vpack.c.b16 %v617, %v599
    %v672 = vpack.c.b16 %v618, %v600
    %v673 = vpack.c.b16 %v619, %v601
    %v674 = vpack.c.b16 %v620, %v602
    %v675 = vpack.c.b16 %v621, %v603
    %v676 = vpack.c.b16 %v622, %v604
    %v677 = vpack.c.b16 %v623, %v605
    %v678 = vpack.c.b16 %v624, %v606
    %v679 = vpack.c.b16 %v625, %v607
    %v680 = vpack.c.b16 %v626, %v608
    %v681 = vpack.c.b16 %v627, %v609
    %v682 = vpack.c.b16 %v646, %v628
    %v683 = vpack.c.b16 %v647, %v629
    %v684 = vpack.c.b16 %v648, %v630
    %v685 = vpack.c.b16 %v649, %v631
    %v686 = vpack.c.b16 %v650, %v632
    %v687 = vpack.c.b16 %v651, %v633
    %v688 = vpack.c.b16 %v652, %v634
    %v689 = vpack.c.b16 %v653, %v635
    %v690 = vpack.c.b16 %v654, %v636
    %v691 = vpack.c.b16 %v655, %v637
    %v692 = vpack.c.b16 %v656, %v638
    %v693 = vpack.c.b16 %v657, %v639
    %v694 = vpack.c.b16 %v658, %v640
    %v695 = vpack.c.b16 %v659, %v641
    %v696 = vpack.c.b16 %v660, %v642
    %v697 = vpack.c.b16 %v661, %v643
    %v698 = vpack.c.b16 %v662, %v644
    %v699 = vpack.c.b16 %v663, %v645
    %vm736 = vcmask 261120
    %v738 = vsel %vm736, %v423, 0
    %740 = vmatprep.subr.bf16.mxu0 %v665
    %741 = vmatpush1.bf16.msra.mxu0 %v664
    %742 = vmatprep.subr.bf16.mxu0 %v683
    %743 = vmatpush1.bf16.msra.mxu0 %v682
    %744 = vmatprep.subr.bf16.mxu0 0
    %745 = vmatpush1.bf16.msra.mxu0 0
    %746 = vmatprep.subr.bf16.mxu0 0
    %747 = vmatpush1.bf16.msra.mxu0 0
    %748 = vmatprep.subr.bf16.mxu0 0
    %749 = vmatpush1.bf16.msra.mxu0 0
    %750 = vmatprep.subr.bf16.mxu0 0
    %751 = vmatpush1.bf16.msra.mxu0 0
    %752 = vmatprep.subr.bf16.mxu0 0
    %753 = vmatpush1.bf16.msra.mxu0 0
    %754 = vmatprep.subr.bf16.mxu0 0
    %755 = vmatpush1.bf16.msra.mxu0 0
    %756 = vmatprep.subr.bf16.mxu0 0
    %757 = vmatpush1.bf16.msra.mxu0 0
    %758 = vmatprep.subr.bf16.mxu0 0
    %759 = vmatpush1.bf16.msra.mxu0 0
    %760 = vmatprep.subr.bf16.mxu0 0
    %761 = vmatpush1.bf16.msra.mxu0 0
    %762 = vmatprep.subr.bf16.mxu0 0
    %763 = vmatpush1.bf16.msra.mxu0 0
    %764 = vmatprep.subr.bf16.mxu0 0
    %765 = vmatpush1.bf16.msra.mxu0 0
    %766 = vmatprep.subr.bf16.mxu0 0
    %767 = vmatpush1.bf16.msra.mxu0 0
    %768 = vmatprep.subr.bf16.mxu0 0
    %769 = vmatpush1.bf16.msra.mxu0 0
    %770 = vmatprep.subr.bf16.mxu0 0
    %771 = vmatpush1.bf16.msra.mxu0 0
    %772 = vmatprep.mubr.bf16.mxu0 0
    %773 = vmatmul.mubr.bf16.gmra.mrb[0].mxu0 %v738
    %v774 = vpop.f32.mrb[0].mxu0
    %v775 = vadd.f32 %v469, %v774
    %v776 = vpop.f32.mrb[0].mxu0
    %v777 = vadd.f32 %v473, %v776
    %v778 = vpop.f32.mrb[0].mxu0
    %v779 = vpop.f32.mrb[0].mxu0
    %780 = vdwg.mxu0
    %781 = vmatprep.subr.bf16.mxu0 %v667
    %782 = vmatpush1.bf16.msra.mxu0 %v666
    %783 = vmatprep.subr.bf16.mxu0 %v685
    %784 = vmatpush1.bf16.msra.mxu0 %v684
    %785 = vmatprep.subr.bf16.mxu0 0
    %786 = vmatpush1.bf16.msra.mxu0 0
    %787 = vmatprep.subr.bf16.mxu0 0
    %788 = vmatpush1.bf16.msra.mxu0 0
    %789 = vmatprep.subr.bf16.mxu0 0
    %790 = vmatpush1.bf16.msra.mxu0 0
    %791 = vmatprep.subr.bf16.mxu0 0
    %792 = vmatpush1.bf16.msra.mxu0 0
    %793 = vmatprep.subr.bf16.mxu0 0
    %794 = vmatpush1.bf16.msra.mxu0 0
    %795 = vmatprep.subr.bf16.mxu0 0
    %796 = vmatpush1.bf16.msra.mxu0 0
    %797 = vmatprep.subr.bf16.mxu0 0
    %798 = vmatpush1.bf16.msra.mxu0 0
    %799 = vmatprep.subr.bf16.mxu0 0
    %800 = vmatpush1.bf16.msra.mxu0 0
    %801 = vmatprep.subr.bf16.mxu0 0
    %802 = vmatpush1.bf16.msra.mxu0 0
    %803 = vmatprep.subr.bf16.mxu0 0
    %804 = vmatpush1.bf16.msra.mxu0 0
    %805 = vmatprep.subr.bf16.mxu0 0
    %806 = vmatpush1.bf16.msra.mxu0 0
    %807 = vmatprep.subr.bf16.mxu0 0
    %808 = vmatpush1.bf16.msra.mxu0 0
    %809 = vmatprep.subr.bf16.mxu0 0
    %810 = vmatpush1.bf16.msra.mxu0 0
    %811 = vmatprep.subr.bf16.mxu0 0
    %812 = vmatpush1.bf16.msra.mxu0 0
    %813 = vmatprep.mubr.bf16.mxu0 0
    %814 = vmatmul.mubr.bf16.gmra.mrb[0].mxu0 %v738
    %v815 = vpop.f32.mrb[0].mxu0
    %v816 = vadd.f32 %v477, %v815
    %v817 = vpop.f32.mrb[0].mxu0
    %v818 = vadd.f32 %v481, %v817
    %v819 = vpop.f32.mrb[0].mxu0
    %v820 = vpop.f32.mrb[0].mxu0
    %821 = vdwg.mxu0
    %822 = vmatprep.subr.bf16.mxu0 %v669
    %823 = vmatpush1.bf16.msra.mxu0 %v668
    %824 = vmatprep.subr.bf16.mxu0 %v687
    %825 = vmatpush1.bf16.msra.mxu0 %v686
    %826 = vmatprep.subr.bf16.mxu0 0
    %827 = vmatpush1.bf16.msra.mxu0 0
    %828 = vmatprep.subr.bf16.mxu0 0
    %829 = vmatpush1.bf16.msra.mxu0 0
    %830 = vmatprep.subr.bf16.mxu0 0
    %831 = vmatpush1.bf16.msra.mxu0 0
    %832 = vmatprep.subr.bf16.mxu0 0
    %833 = vmatpush1.bf16.msra.mxu0 0
    %834 = vmatprep.subr.bf16.mxu0 0
    %835 = vmatpush1.bf16.msra.mxu0 0
    %836 = vmatprep.subr.bf16.mxu0 0
    %837 = vmatpush1.bf16.msra.mxu0 0
    %838 = vmatprep.subr.bf16.mxu0 0
    %839 = vmatpush1.bf16.msra.mxu0 0
    %840 = vmatprep.subr.bf16.mxu0 0
    %841 = vmatpush1.bf16.msra.mxu0 0
    %842 = vmatprep.subr.bf16.mxu0 0
    %843 = vmatpush1.bf16.msra.mxu0 0
    %844 = vmatprep.subr.bf16.mxu0 0
    %845 = vmatpush1.bf16.msra.mxu0 0
    %846 = vmatprep.subr.bf16.mxu0 0
    %847 = vmatpush1.bf16.msra.mxu0 0
    %848 = vmatprep.subr.bf16.mxu0 0
    %849 = vmatpush1.bf16.msra.mxu0 0
    %850 = vmatprep.subr.bf16.mxu0 0
    %851 = vmatpush1.bf16.msra.mxu0 0
    %852 = vmatprep.subr.bf16.mxu0 0
    %853 = vmatpush1.bf16.msra.mxu0 0
    %854 = vmatprep.mubr.bf16.mxu0 0
    %855 = vmatmul.mubr.bf16.gmra.mrb[0].mxu0 %v738
    %v856 = vpop.f32.mrb[0].mxu0
    %v857 = vadd.f32 %v485, %v856
    %v858 = vpop.f32.mrb[0].mxu0
    %v859 = vadd.f32 %v489, %v858
    %v860 = vpop.f32.mrb[0].mxu0
    %v861 = vpop.f32.mrb[0].mxu0
    %862 = vdwg.mxu0
    %863 = vmatprep.subr.bf16.mxu0 %v671
    %864 = vmatpush1.bf16.msra.mxu0 %v670
    %865 = vmatprep.subr.bf16.mxu0 %v689
    %866 = vmatpush1.bf16.msra.mxu0 %v688
    %867 = vmatprep.subr.bf16.mxu0 0
    %868 = vmatpush1.bf16.msra.mxu0 0
    %869 = vmatprep.subr.bf16.mxu0 0
    %870 = vmatpush1.bf16.msra.mxu0 0
    %871 = vmatprep.subr.bf16.mxu0 0
    %872 = vmatpush1.bf16.msra.mxu0 0
    %873 = vmatprep.subr.bf16.mxu0 0
    %874 = vmatpush1.bf16.msra.mxu0 0
    %875 = vmatprep.subr.bf16.mxu0 0
    %876 = vmatpush1.bf16.msra.mxu0 0
    %877 = vmatprep.subr.bf16.mxu0 0
    %878 = vmatpush1.bf16.msra.mxu0 0
    %879 = vmatprep.subr.bf16.mxu0 0
    %880 = vmatpush1.bf16.msra.mxu0 0
    %881 = vmatprep.subr.bf16.mxu0 0
    %882 = vmatpush1.bf16.msra.mxu0 0
    %883 = vmatprep.subr.bf16.mxu0 0
    %884 = vmatpush1.bf16.msra.mxu0 0
    %885 = vmatprep.subr.bf16.mxu0 0
    %886 = vmatpush1.bf16.msra.mxu0 0
    %887 = vmatprep.subr.bf16.mxu0 0
    %888 = vmatpush1.bf16.msra.mxu0 0
    %889 = vmatprep.subr.bf16.mxu0 0
    %890 = vmatpush1.bf16.msra.mxu0 0
    %891 = vmatprep.subr.bf16.mxu0 0
    %892 = vmatpush1.bf16.msra.mxu0 0
    %893 = vmatprep.subr.bf16.mxu0 0
    %894 = vmatpush1.bf16.msra.mxu0 0
    %895 = vmatprep.mubr.bf16.mxu0 0
    %896 = vmatmul.mubr.bf16.gmra.mrb[0].mxu0 %v738
    %v897 = vpop.f32.mrb[0].mxu0
    %v898 = vadd.f32 %v493, %v897
    %v899 = vpop.f32.mrb[0].mxu0
    %v900 = vadd.f32 %v497, %v899
    %v901 = vpop.f32.mrb[0].mxu0
    %v902 = vpop.f32.mrb[0].mxu0
    %903 = vdwg.mxu0
    %904 = vmatprep.subr.bf16.mxu0 %v673
    %905 = vmatpush1.bf16.msra.mxu0 %v672
    %906 = vmatprep.subr.bf16.mxu0 %v691
    %907 = vmatpush1.bf16.msra.mxu0 %v690
    %908 = vmatprep.subr.bf16.mxu0 0
    %909 = vmatpush1.bf16.msra.mxu0 0
    %910 = vmatprep.subr.bf16.mxu0 0
    %911 = vmatpush1.bf16.msra.mxu0 0
    %912 = vmatprep.subr.bf16.mxu0 0
    %913 = vmatpush1.bf16.msra.mxu0 0
    %914 = vmatprep.subr.bf16.mxu0 0
    %915 = vmatpush1.bf16.msra.mxu0 0
    %916 = vmatprep.subr.bf16.mxu0 0
    %917 = vmatpush1.bf16.msra.mxu0 0
    %918 = vmatprep.subr.bf16.mxu0 0
    %919 = vmatpush1.bf16.msra.mxu0 0
    %920 = vmatprep.subr.bf16.mxu0 0
    %921 = vmatpush1.bf16.msra.mxu0 0
    %922 = vmatprep.subr.bf16.mxu0 0
    %923 = vmatpush1.bf16.msra.mxu0 0
    %924 = vmatprep.subr.bf16.mxu0 0
    %925 = vmatpush1.bf16.msra.mxu0 0
    %926 = vmatprep.subr.bf16.mxu0 0
    %927 = vmatpush1.bf16.msra.mxu0 0
    %928 = vmatprep.subr.bf16.mxu0 0
    %929 = vmatpush1.bf16.msra.mxu0 0
    %930 = vmatprep.subr.bf16.mxu0 0
    %931 = vmatpush1.bf16.msra.mxu0 0
    %932 = vmatprep.subr.bf16.mxu0 0
    %933 = vmatpush1.bf16.msra.mxu0 0
    %934 = vmatprep.subr.bf16.mxu0 0
    %935 = vmatpush1.bf16.msra.mxu0 0
    %936 = vmatprep.mubr.bf16.mxu0 0
    %937 = vmatmul.mubr.bf16.gmra.mrb[0].mxu0 %v738
    %v938 = vpop.f32.mrb[0].mxu0
    %v939 = vadd.f32 %v501, %v938
    %v940 = vpop.f32.mrb[0].mxu0
    %v941 = vadd.f32 %v505, %v940
    %v942 = vpop.f32.mrb[0].mxu0
    %v943 = vpop.f32.mrb[0].mxu0
    %944 = vdwg.mxu0
    %945 = vmatprep.subr.bf16.mxu0 %v675
    %946 = vmatpush1.bf16.msra.mxu0 %v674
    %947 = vmatprep.subr.bf16.mxu0 %v693
    %948 = vmatpush1.bf16.msra.mxu0 %v692
    %949 = vmatprep.subr.bf16.mxu0 0
    %950 = vmatpush1.bf16.msra.mxu0 0
    %951 = vmatprep.subr.bf16.mxu0 0
    %952 = vmatpush1.bf16.msra.mxu0 0
    %953 = vmatprep.subr.bf16.mxu0 0
    %954 = vmatpush1.bf16.msra.mxu0 0
    %955 = vmatprep.subr.bf16.mxu0 0
    %956 = vmatpush1.bf16.msra.mxu0 0
    %957 = vmatprep.subr.bf16.mxu0 0
    %958 = vmatpush1.bf16.msra.mxu0 0
    %959 = vmatprep.subr.bf16.mxu0 0
    %960 = vmatpush1.bf16.msra.mxu0 0
    %961 = vmatprep.subr.bf16.mxu0 0
    %962 = vmatpush1.bf16.msra.mxu0 0
    %963 = vmatprep.subr.bf16.mxu0 0
    %964 = vmatpush1.bf16.msra.mxu0 0
    %965 = vmatprep.subr.bf16.mxu0 0
    %966 = vmatpush1.bf16.msra.mxu0 0
    %967 = vmatprep.subr.bf16.mxu0 0
    %968 = vmatpush1.bf16.msra.mxu0 0
    %969 = vmatprep.subr.bf16.mxu0 0
    %970 = vmatpush1.bf16.msra.mxu0 0
    %971 = vmatprep.subr.bf16.mxu0 0
    %972 = vmatpush1.bf16.msra.mxu0 0
    %973 = vmatprep.subr.bf16.mxu0 0
    %974 = vmatpush1.bf16.msra.mxu0 0
    %975 = vmatprep.subr.bf16.mxu0 0
    %976 = vmatpush1.bf16.msra.mxu0 0
    %977 = vmatprep.mubr.bf16.mxu0 0
    %978 = vmatmul.mubr.bf16.gmra.mrb[0].mxu0 %v738
    %v979 = vpop.f32.mrb[0].mxu0
    %v980 = vadd.f32 %v509, %v979
    %v981 = vpop.f32.mrb[0].mxu0
    %v982 = vadd.f32 %v513, %v981
    %v983 = vpop.f32.mrb[0].mxu0
    %v984 = vpop.f32.mrb[0].mxu0
    %985 = vdwg.mxu0
    %986 = vmatprep.subr.bf16.mxu0 %v677
    %987 = vmatpush1.bf16.msra.mxu0 %v676
    %988 = vmatprep.subr.bf16.mxu0 %v695
    %989 = vmatpush1.bf16.msra.mxu0 %v694
    %990 = vmatprep.subr.bf16.mxu0 0
    %991 = vmatpush1.bf16.msra.mxu0 0
    %992 = vmatprep.subr.bf16.mxu0 0
    %993 = vmatpush1.bf16.msra.mxu0 0
    %994 = vmatprep.subr.bf16.mxu0 0
    %995 = vmatpush1.bf16.msra.mxu0 0
    %996 = vmatprep.subr.bf16.mxu0 0
    %997 = vmatpush1.bf16.msra.mxu0 0
    %998 = vmatprep.subr.bf16.mxu0 0
    %999 = vmatpush1.bf16.msra.mxu0 0
    %1000 = vmatprep.subr.bf16.mxu0 0
    %1001 = vmatpush1.bf16.msra.mxu0 0
    %1002 = vmatprep.subr.bf16.mxu0 0
    %1003 = vmatpush1.bf16.msra.mxu0 0
    %1004 = vmatprep.subr.bf16.mxu0 0
    %1005 = vmatpush1.bf16.msra.mxu0 0
    %1006 = vmatprep.subr.bf16.mxu0 0
    %1007 = vmatpush1.bf16.msra.mxu0 0
    %1008 = vmatprep.subr.bf16.mxu0 0
    %1009 = vmatpush1.bf16.msra.mxu0 0
    %1010 = vmatprep.subr.bf16.mxu0 0
    %1011 = vmatpush1.bf16.msra.mxu0 0
    %1012 = vmatprep.subr.bf16.mxu0 0
    %1013 = vmatpush1.bf16.msra.mxu0 0
    %1014 = vmatprep.subr.bf16.mxu0 0
    %1015 = vmatpush1.bf16.msra.mxu0 0
    %1016 = vmatprep.subr.bf16.mxu0 0
    %1017 = vmatpush1.bf16.msra.mxu0 0
    %1018 = vmatprep.mubr.bf16.mxu0 0
    %1019 = vmatmul.mubr.bf16.gmra.mrb[0].mxu0 %v738
    %v1020 = vpop.f32.mrb[0].mxu0
    %v1021 = vadd.f32 %v517, %v1020
    %v1022 = vpop.f32.mrb[0].mxu0
    %v1023 = vadd.f32 %v521, %v1022
    %v1024 = vpop.f32.mrb[0].mxu0
    %v1025 = vpop.f32.mrb[0].mxu0
    %1026 = vdwg.mxu0
    %1027 = vmatprep.subr.bf16.mxu0 %v679
    %1028 = vmatpush1.bf16.msra.mxu0 %v678
    %1029 = vmatprep.subr.bf16.mxu0 %v697
    %1030 = vmatpush1.bf16.msra.mxu0 %v696
    %1031 = vmatprep.subr.bf16.mxu0 0
    %1032 = vmatpush1.bf16.msra.mxu0 0
    %1033 = vmatprep.subr.bf16.mxu0 0
    %1034 = vmatpush1.bf16.msra.mxu0 0
    %1035 = vmatprep.subr.bf16.mxu0 0
    %1036 = vmatpush1.bf16.msra.mxu0 0
    %1037 = vmatprep.subr.bf16.mxu0 0
    %1038 = vmatpush1.bf16.msra.mxu0 0
    %1039 = vmatprep.subr.bf16.mxu0 0
    %1040 = vmatpush1.bf16.msra.mxu0 0
    %1041 = vmatprep.subr.bf16.mxu0 0
    %1042 = vmatpush1.bf16.msra.mxu0 0
    %1043 = vmatprep.subr.bf16.mxu0 0
    %1044 = vmatpush1.bf16.msra.mxu0 0
    %1045 = vmatprep.subr.bf16.mxu0 0
    %1046 = vmatpush1.bf16.msra.mxu0 0
    %1047 = vmatprep.subr.bf16.mxu0 0
    %1048 = vmatpush1.bf16.msra.mxu0 0
    %1049 = vmatprep.subr.bf16.mxu0 0
    %1050 = vmatpush1.bf16.msra.mxu0 0
    %1051 = vmatprep.subr.bf16.mxu0 0
    %1052 = vmatpush1.bf16.msra.mxu0 0
    %1053 = vmatprep.subr.bf16.mxu0 0
    %1054 = vmatpush1.bf16.msra.mxu0 0
    %1055 = vmatprep.subr.bf16.mxu0 0
    %1056 = vmatpush1.bf16.msra.mxu0 0
    %1057 = vmatprep.subr.bf16.mxu0 0
    %1058 = vmatpush1.bf16.msra.mxu0 0
    %1059 = vmatprep.mubr.bf16.mxu0 0
    %1060 = vmatmul.mubr.bf16.gmra.mrb[0].mxu0 %v738
    %v1061 = vpop.f32.mrb[0].mxu0
    %v1062 = vadd.f32 %v525, %v1061
    %v1063 = vpop.f32.mrb[0].mxu0
    %v1064 = vadd.f32 %v529, %v1063
    %v1065 = vpop.f32.mrb[0].mxu0
    %v1066 = vpop.f32.mrb[0].mxu0
    %1067 = vdwg.mxu0
    %1068 = vmatprep.subr.bf16.mxu0 %v681
    %1069 = vmatpush1.bf16.msra.mxu0 %v680
    %1070 = vmatprep.subr.bf16.mxu0 %v699
    %1071 = vmatpush1.bf16.msra.mxu0 %v698
    %1072 = vmatprep.subr.bf16.mxu0 0
    %1073 = vmatpush1.bf16.msra.mxu0 0
    %1074 = vmatprep.subr.bf16.mxu0 0
    %1075 = vmatpush1.bf16.msra.mxu0 0
    %1076 = vmatprep.subr.bf16.mxu0 0
    %1077 = vmatpush1.bf16.msra.mxu0 0
    %1078 = vmatprep.subr.bf16.mxu0 0
    %1079 = vmatpush1.bf16.msra.mxu0 0
    %1080 = vmatprep.subr.bf16.mxu0 0
    %1081 = vmatpush1.bf16.msra.mxu0 0
    %1082 = vmatprep.subr.bf16.mxu0 0
    %1083 = vmatpush1.bf16.msra.mxu0 0
    %1084 = vmatprep.subr.bf16.mxu0 0
    %1085 = vmatpush1.bf16.msra.mxu0 0
    %1086 = vmatprep.subr.bf16.mxu0 0
    %1087 = vmatpush1.bf16.msra.mxu0 0
    %1088 = vmatprep.subr.bf16.mxu0 0
    %1089 = vmatpush1.bf16.msra.mxu0 0
    %1090 = vmatprep.subr.bf16.mxu0 0
    %1091 = vmatpush1.bf16.msra.mxu0 0
    %1092 = vmatprep.subr.bf16.mxu0 0
    %1093 = vmatpush1.bf16.msra.mxu0 0
    %1094 = vmatprep.subr.bf16.mxu0 0
    %1095 = vmatpush1.bf16.msra.mxu0 0
    %1096 = vmatprep.subr.bf16.mxu0 0
    %1097 = vmatpush1.bf16.msra.mxu0 0
    %1098 = vmatprep.subr.bf16.mxu0 0
    %1099 = vmatpush1.bf16.msra.mxu0 0
    %1100 = vmatprep.mubr.bf16.mxu0 0
    %1101 = vmatmul.mubr.bf16.gmra.mrb[0].mxu0 %v738
    %v1102 = vpop.f32.mrb[0].mxu0
    %v1103 = vadd.f32 %v533, %v1102
    %v1104 = vpop.f32.mrb[0].mxu0
    %v1105 = vadd.f32 %v537, %v1104
    %v1106 = vpop.f32.mrb[0].mxu0
    %v1107 = vpop.f32.mrb[0].mxu0
    %1108 = vdwg.mxu0
    %v1109 = vpack.c.bf16 %v775, %v775
    %v1110 = vpack.c.bf16 %v777, %v777
    %v1111 = vpack.c.bf16 %v816, %v816
    %v1115 = vrot.slane %v1109, 3
    %v1116 = vrot.slane %v1110, 3
    %v1117 = vrot.slane %v1111, 3
    %1121 = vst [vmem:[#allocation2] sm:$0x20] %v1115
    %1122 = vst [vmem:[#allocation2 + $0x8] sm:$0x20] %v1116
    %1123 = vst [vmem:[#allocation2 + $0x10] sm:$0x20] %v1117
    %v1124 = vpack.c.bf16 %v818, %v818
    %v1125 = vpack.c.bf16 %v857, %v857
    %v1126 = vpack.c.bf16 %v859, %v859
    %v1130 = vrot.slane %v1124, 2
    %v1131 = vrot.slane %v1125, 2
    %v1132 = vrot.slane %v1126, 2
    %1136 = vst [vmem:[#allocation2] sm:$0x40] %v1130
    %1137 = vst [vmem:[#allocation2 + $0x8] sm:$0x40] %v1131
    %1138 = vst [vmem:[#allocation2 + $0x10] sm:$0x40] %v1132
    %v1139 = vpack.c.bf16 %v898, %v898
    %v1140 = vpack.c.bf16 %v900, %v900
    %v1141 = vpack.c.bf16 %v939, %v939
    %v1145 = vrot.slane %v1139, 1
    %v1146 = vrot.slane %v1140, 1
    %v1147 = vrot.slane %v1141, 1
    %1151 = vst [vmem:[#allocation2] sm:$0x80] %v1145
    %1152 = vst [vmem:[#allocation2 + $0x8] sm:$0x80] %v1146
    %1153 = vst [vmem:[#allocation2 + $0x10] sm:$0x80] %v1147
    %v1154 = vpack.c.bf16 %v941, %v941
    %v1155 = vpack.c.bf16 %v980, %v980
    %v1156 = vpack.c.bf16 %v982, %v982
    %1157 = vst [vmem:[#allocation2 + $0x18] sm:$0x1] %v1154
    %1158 = vst [vmem:[#allocation2 + $0x20] sm:$0x1] %v1155
    %1159 = vst [vmem:[#allocation2 + $0x28] sm:$0x1] %v1156
    %v1160 = vpack.c.bf16 %v1021, %v1021
    %v1161 = vpack.c.bf16 %v1023, %v1023
    %v1162 = vpack.c.bf16 %v1062, %v1062
    %v1166 = vrot.slane %v1160, 7
    %v1167 = vrot.slane %v1161, 7
    %v1168 = vrot.slane %v1162, 7
    %1172 = vst [vmem:[#allocation2 + $0x18] sm:$0x2] %v1166
    %1173 = vst [vmem:[#allocation2 + $0x20] sm:$0x2] %v1167
    %1174 = vst [vmem:[#allocation2 + $0x28] sm:$0x2] %v1168
    %v1175 = vpack.c.bf16 %v1064, %v1064
    %v1176 = vpack.c.bf16 %v1103, %v1103
    %v1177 = vpack.c.bf16 %v1105, %v1105
    %v1181 = vrot.slane %v1175, 6
    %v1182 = vrot.slane %v1176, 6
    %v1183 = vrot.slane %v1177, 6
    %1187 = vst [vmem:[#allocation2 + $0x18] sm:$0x4] %v1181
    %1188 = vst [vmem:[#allocation2 + $0x20] sm:$0x4] %v1182
    %1189 = vst [vmem:[#allocation2 + $0x28] sm:$0x4] %v1183
    %v1190 = vld [vmem:[#allocation2] sm:$0xff]
    %v1191 = vld [vmem:[#allocation2 + $0x8] sm:$0xff]
    %v1192 = vld [vmem:[#allocation2 + $0x10] sm:$0xff]
    %v1193 = vld [vmem:[#allocation2 + $0x18] sm:$0x7]
    %v1194 = vld [vmem:[#allocation2 + $0x20] sm:$0x7]
    %v1195 = vld [vmem:[#allocation2 + $0x28] sm:$0x7]
    %v1196 = vld [vmem:[#allocation2] sm:$0xfe]
    %v1197 = vld [vmem:[#allocation2 + $0x8] sm:$0xfe]
    %v1198 = vld [vmem:[#allocation2 + $0x10] sm:$0xfe]
    %v1199 = vld [vmem:[#allocation2 + $0x18] sm:$0xf]
    %v1200 = vld [vmem:[#allocation2 + $0x20] sm:$0xf]
    %v1201 = vld [vmem:[#allocation2 + $0x28] sm:$0xf]
    %v1202 = vld [vmem:[#allocation2] sm:$0xfc]
    %v1203 = vld [vmem:[#allocation2 + $0x8] sm:$0xfc]
    %v1204 = vld [vmem:[#allocation2 + $0x10] sm:$0xfc]
    %v1205 = vld [vmem:[#allocation2 + $0x18] sm:$0x1f]
    %v1206 = vld [vmem:[#allocation2 + $0x20] sm:$0x1f]
    %v1207 = vld [vmem:[#allocation2 + $0x28] sm:$0x1f]
    %v1208 = vld [vmem:[#allocation2] sm:$0xf8]
    %v1209 = vld [vmem:[#allocation2 + $0x8] sm:$0xf8]
    %v1210 = vld [vmem:[#allocation2 + $0x10] sm:$0xf8]
    %v1211 = vld [vmem:[#allocation2 + $0x18] sm:$0x3f]
    %v1212 = vld [vmem:[#allocation2 + $0x20] sm:$0x3f]
    %v1213 = vld [vmem:[#allocation2 + $0x28] sm:$0x3f]
    %v1214 = vld [vmem:[#allocation2] sm:$0xf0]
    %v1215 = vld [vmem:[#allocation2 + $0x8] sm:$0xf0]
    %v1216 = vld [vmem:[#allocation2 + $0x10] sm:$0xf0]
    %v1217 = vld [vmem:[#allocation2 + $0x18] sm:$0x7f]
    %v1218 = vld [vmem:[#allocation2 + $0x20] sm:$0x7f]
    %v1219 = vld [vmem:[#allocation2 + $0x28] sm:$0x7f]
    %v1220 = vld [vmem:[#allocation2] sm:$0xe0]
    %v1221 = vld [vmem:[#allocation2 + $0x8] sm:$0xe0]
    %v1222 = vld [vmem:[#allocation2 + $0x10] sm:$0xe0]
    %v1223 = vld [vmem:[#allocation2 + $0x18] sm:$0xff]
    %v1224 = vld [vmem:[#allocation2 + $0x20] sm:$0xff]
    %v1225 = vld [vmem:[#allocation2 + $0x28] sm:$0xff]
    %vm1232 = vcmask 1046528
    %v1233 = vrot.slane %v1196, 1
    %v1234 = vrot.slane %v1199, 1
    %v1235 = vsel %vm1232, %v1233, %v1234
    %v1236 = vrot.slane %v1197, 1
    %v1237 = vrot.slane %v1200, 1
    %v1238 = vsel %vm1232, %v1236, %v1237
    %v1239 = vrot.slane %v1198, 1
    %v1240 = vrot.slane %v1201, 1
    %v1241 = vsel %vm1232, %v1239, %v1240
    %vm1254 = vcmask 1045504
    %v1255 = vrot.slane %v1202, 2
    %v1256 = vrot.slane %v1205, 2
    %v1257 = vsel %vm1254, %v1255, %v1256
    %v1258 = vrot.slane %v1203, 2
    %v1259 = vrot.slane %v1206, 2
    %v1260 = vsel %vm1254, %v1258, %v1259
    %v1261 = vrot.slane %v1204, 2
    %v1262 = vrot.slane %v1207, 2
    %v1263 = vsel %vm1254, %v1261, %v1262
    %vm1276 = vcmask 1044480
    %v1277 = vrot.slane %v1208, 3
    %v1278 = vrot.slane %v1211, 3
    %v1279 = vsel %vm1276, %v1277, %v1278
    %v1280 = vrot.slane %v1209, 3
    %v1281 = vrot.slane %v1212, 3
    %v1282 = vsel %vm1276, %v1280, %v1281
    %v1283 = vrot.slane %v1210, 3
    %v1284 = vrot.slane %v1213, 3
    %v1285 = vsel %vm1276, %v1283, %v1284
    %vm1298 = vcmask 1043456
    %v1299 = vrot.slane %v1214, 4
    %v1300 = vrot.slane %v1217, 4
    %v1301 = vsel %vm1298, %v1299, %v1300
    %v1302 = vrot.slane %v1215, 4
    %v1303 = vrot.slane %v1218, 4
    %v1304 = vsel %vm1298, %v1302, %v1303
    %v1305 = vrot.slane %v1216, 4
    %v1306 = vrot.slane %v1219, 4
    %v1307 = vsel %vm1298, %v1305, %v1306
    %vm1320 = vcmask 1042432
    %v1321 = vrot.slane %v1220, 5
    %v1322 = vrot.slane %v1223, 5
    %v1323 = vsel %vm1320, %v1321, %v1322
    %v1324 = vrot.slane %v1221, 5
    %v1325 = vrot.slane %v1224, 5
    %v1326 = vsel %vm1320, %v1324, %v1325
    %v1327 = vrot.slane %v1222, 5
    %v1328 = vrot.slane %v1225, 5
    %v1329 = vsel %vm1320, %v1327, %v1328
    %v1336 = vld [vmem:[#allocation13] sm:$0xff]
    %v1337 = vld [vmem:[#allocation13 + $0x8] sm:$0xff]
    %v1338 = vld [vmem:[#allocation13 + $0x10] sm:$0xff]
    %v1339 = vld [vmem:[#allocation13 + $0x18] sm:$0xff]
    %v1340 = vld [vmem:[#allocation13 + $0x20] sm:$0xff]
    %v1341 = vld [vmem:[#allocation13 + $0x28] sm:$0xff]
    %v1342 = vld [vmem:[#allocation13 + $0x30] sm:$0xff]
    %v1343 = vld [vmem:[#allocation13 + $0x38] sm:$0xff]
    %v1344 = vld [vmem:[#allocation13 + $0x40] sm:$0xff]
    %v1345 = vld [vmem:[#allocation13 + $0x48] sm:$0xff]
    %v1346 = vld [vmem:[#allocation13 + $0x50] sm:$0xff]
    %v1347 = vld [vmem:[#allocation13 + $0x58] sm:$0xff]
    %v1348 = vld [vmem:[#allocation13 + $0x60] sm:$0xff]
    %v1349 = vld [vmem:[#allocation13 + $0x68] sm:$0xff]
    %v1350 = vld [vmem:[#allocation13 + $0x70] sm:$0xff]
    %v1351 = vld [vmem:[#allocation13 + $0x78] sm:$0xff]
    %v1352 = vld [vmem:[#allocation13 + $0x80] sm:$0xff]
    %v1353 = vld [vmem:[#allocation13 + $0x88] sm:$0xff]
    %v1354 = vld [vmem:[#allocation13 + $0x90] sm:$0xff]
    %v1355 = vld [vmem:[#allocation13 + $0x98] sm:$0xff]
    %v1356 = vld [vmem:[#allocation13 + $0xa0] sm:$0xff]
    %v1357 = vld [vmem:[#allocation13 + $0xa8] sm:$0xff]
    %v1358 = vld [vmem:[#allocation13 + $0xb0] sm:$0xff]
    %v1359 = vld [vmem:[#allocation13 + $0xb8] sm:$0xff]
    %v1360 = vld [vmem:[#allocation13 + $0xc0] sm:$0xff]
    %v1361 = vld [vmem:[#allocation13 + $0xc8] sm:$0xff]
    %v1362 = vld [vmem:[#allocation13 + $0xd0] sm:$0xff]
    %v1363 = vld [vmem:[#allocation13 + $0xd8] sm:$0xff]
    %v1364 = vld [vmem:[#allocation13 + $0xe0] sm:$0xff]
    %v1365 = vld [vmem:[#allocation13 + $0xe8] sm:$0xff]
    %v1366 = vld [vmem:[#allocation13 + $0xf0] sm:$0xff]
    %v1367 = vld [vmem:[#allocation13 + $0xf8] sm:$0xff]
    %v1368 = vld [vmem:[#allocation13 + $0x100] sm:$0xff]
    %v1369 = vld [vmem:[#allocation13 + $0x108] sm:$0xff]
    %v1370 = vld [vmem:[#allocation13 + $0x110] sm:$0xff]
    %v1371 = vld [vmem:[#allocation13 + $0x118] sm:$0xff]
    %v1372 = vld [vmem:[#allocation13 + $0x120] sm:$0xff]
    %v1373 = vld [vmem:[#allocation13 + $0x128] sm:$0xff]
    %v1374 = vld [vmem:[#allocation13 + $0x130] sm:$0xff]
    %v1375 = vld [vmem:[#allocation13 + $0x138] sm:$0xff]
    %v1376 = vld [vmem:[#allocation13 + $0x140] sm:$0xff]
    %v1377 = vld [vmem:[#allocation13 + $0x148] sm:$0xff]
    %v1378 = vld [vmem:[#allocation13 + $0x150] sm:$0xff]
    %v1379 = vld [vmem:[#allocation13 + $0x158] sm:$0xff]
    %v1380 = vld [vmem:[#allocation13 + $0x160] sm:$0xff]
    %v1381 = vld [vmem:[#allocation13 + $0x168] sm:$0xff]
    %v1382 = vld [vmem:[#allocation13 + $0x170] sm:$0xff]
    %v1383 = vld [vmem:[#allocation13 + $0x178] sm:$0xff]
    %v1384 = vld [vmem:[#allocation13 + $0x180] sm:$0xff]
    %v1385 = vld [vmem:[#allocation13 + $0x188] sm:$0xff]
    %v1386 = vld [vmem:[#allocation13 + $0x190] sm:$0xff]
    %v1387 = vld [vmem:[#allocation13 + $0x198] sm:$0xff]
    %v1388 = vld [vmem:[#allocation13 + $0x1a0] sm:$0xff]
    %v1389 = vld [vmem:[#allocation13 + $0x1a8] sm:$0xff]
    %v1390 = vld [vmem:[#allocation13 + $0x1b0] sm:$0xff]
    %v1391 = vld [vmem:[#allocation13 + $0x1b8] sm:$0xff]
    %v1392 = vld [vmem:[#allocation13 + $0x1c0] sm:$0xff]
    %v1393 = vld [vmem:[#allocation13 + $0x1c8] sm:$0xff]
    %v1394 = vld [vmem:[#allocation13 + $0x1d0] sm:$0xff]
    %v1395 = vld [vmem:[#allocation13 + $0x1d8] sm:$0xff]
    %v1396 = vld [vmem:[#allocation13 + $0x1e0] sm:$0xff]
    %v1397 = vld [vmem:[#allocation13 + $0x1e8] sm:$0xff]
    %v1398 = vld [vmem:[#allocation13 + $0x1f0] sm:$0xff]
    %v1399 = vld [vmem:[#allocation13 + $0x1f8] sm:$0xff]
    %v1400 = vld [vmem:[#allocation13 + $0x200] sm:$0xff]
    %v1401 = vld [vmem:[#allocation13 + $0x208] sm:$0xff]
    %v1402 = vld [vmem:[#allocation13 + $0x210] sm:$0xff]
    %v1403 = vld [vmem:[#allocation13 + $0x218] sm:$0xff]
    %v1404 = vld [vmem:[#allocation13 + $0x220] sm:$0xff]
    %v1405 = vld [vmem:[#allocation13 + $0x228] sm:$0xff]
    %v1406 = vld [vmem:[#allocation13 + $0x230] sm:$0xff]
    %v1407 = vld [vmem:[#allocation13 + $0x238] sm:$0xff]
    %v1408 = vld [vmem:[#allocation13 + $0x240] sm:$0xff]
    %v1409 = vld [vmem:[#allocation13 + $0x248] sm:$0xff]
    %v1410 = vld [vmem:[#allocation13 + $0x250] sm:$0xff]
    %v1411 = vld [vmem:[#allocation13 + $0x258] sm:$0xff]
    %v1412 = vld [vmem:[#allocation13 + $0x260] sm:$0xff]
    %v1413 = vld [vmem:[#allocation13 + $0x268] sm:$0xff]
    %v1414 = vld [vmem:[#allocation13 + $0x270] sm:$0xff]
    %v1415 = vld [vmem:[#allocation13 + $0x278] sm:$0xff]
    %v1416 = vld [vmem:[#allocation13 + $0x280] sm:$0xff]
    %v1417 = vld [vmem:[#allocation13 + $0x288] sm:$0xff]
    %v1418 = vld [vmem:[#allocation13 + $0x290] sm:$0xff]
    %v1419 = vld [vmem:[#allocation13 + $0x298] sm:$0xff]
    %v1420 = vld [vmem:[#allocation13 + $0x2a0] sm:$0xff]
    %v1421 = vld [vmem:[#allocation13 + $0x2a8] sm:$0xff]
    %v1422 = vld [vmem:[#allocation13 + $0x2b0] sm:$0xff]
    %v1423 = vld [vmem:[#allocation13 + $0x2b8] sm:$0xff]
    %v1424 = vld [vmem:[#allocation13 + $0x2c0] sm:$0xff]
    %v1425 = vld [vmem:[#allocation13 + $0x2c8] sm:$0xff]
    %v1426 = vld [vmem:[#allocation13 + $0x2d0] sm:$0xff]
    %v1427 = vld [vmem:[#allocation13 + $0x2d8] sm:$0xff]
    %v1428 = vld [vmem:[#allocation13 + $0x2e0] sm:$0xff]
    %v1429 = vld [vmem:[#allocation13 + $0x2e8] sm:$0xff]
    %v1430 = vld [vmem:[#allocation13 + $0x2f0] sm:$0xff]
    %v1431 = vld [vmem:[#allocation13 + $0x2f8] sm:$0xff]
    %v1432 = vld [vmem:[#allocation13 + $0x300] sm:$0xff]
    %v1433 = vld [vmem:[#allocation13 + $0x308] sm:$0xff]
    %v1434 = vld [vmem:[#allocation13 + $0x310] sm:$0xff]
    %v1435 = vld [vmem:[#allocation13 + $0x318] sm:$0xff]
    %v1436 = vld [vmem:[#allocation13 + $0x320] sm:$0xff]
    %v1437 = vld [vmem:[#allocation13 + $0x328] sm:$0xff]
    %v1438 = vld [vmem:[#allocation13 + $0x330] sm:$0xff]
    %v1439 = vld [vmem:[#allocation13 + $0x338] sm:$0xff]
    %v1440 = vld [vmem:[#allocation13 + $0x340] sm:$0xff]
    %v1441 = vld [vmem:[#allocation13 + $0x348] sm:$0xff]
    %v1442 = vld [vmem:[#allocation13 + $0x350] sm:$0xff]
    %v1443 = vld [vmem:[#allocation13 + $0x358] sm:$0xff]
    %v1444 = vld [vmem:[#allocation13 + $0x360] sm:$0xff]
    %v1445 = vld [vmem:[#allocation13 + $0x368] sm:$0xff]
    %v1446 = vld [vmem:[#allocation13 + $0x370] sm:$0xff]
    %v1447 = vld [vmem:[#allocation13 + $0x378] sm:$0xff]
    %v1448 = vld [vmem:[#allocation13 + $0x380] sm:$0xff]
    %v1449 = vld [vmem:[#allocation13 + $0x388] sm:$0xff]
    %v1450 = vld [vmem:[#allocation13 + $0x390] sm:$0xff]
    %v1451 = vld [vmem:[#allocation13 + $0x398] sm:$0xff]
    %v1452 = vld [vmem:[#allocation13 + $0x3a0] sm:$0xff]
    %v1453 = vld [vmem:[#allocation13 + $0x3a8] sm:$0xff]
    %v1454 = vld [vmem:[#allocation13 + $0x3b0] sm:$0xff]
    %v1455 = vld [vmem:[#allocation13 + $0x3b8] sm:$0xff]
    %v1456 = vld [vmem:[#allocation13 + $0x3c0] sm:$0xff]
    %v1457 = vld [vmem:[#allocation13 + $0x3c8] sm:$0xff]
    %v1458 = vld [vmem:[#allocation13 + $0x3d0] sm:$0xff]
    %v1459 = vld [vmem:[#allocation13 + $0x3d8] sm:$0xff]
    %v1460 = vld [vmem:[#allocation13 + $0x3e0] sm:$0xff]
    %v1461 = vld [vmem:[#allocation13 + $0x3e8] sm:$0xff]
    %v1462 = vld [vmem:[#allocation13 + $0x3f0] sm:$0xff]
    %v1463 = vld [vmem:[#allocation13 + $0x3f8] sm:$0xff]
    %v1464 = vld [vmem:[#allocation13 + $0x400] sm:$0xff]
    %v1465 = vld [vmem:[#allocation13 + $0x408] sm:$0xff]
    %v1466 = vld [vmem:[#allocation13 + $0x410] sm:$0xff]
    %v1467 = vld [vmem:[#allocation13 + $0x418] sm:$0xff]
    %v1468 = vld [vmem:[#allocation13 + $0x420] sm:$0xff]
    %v1469 = vld [vmem:[#allocation13 + $0x428] sm:$0xff]
    %v1470 = vld [vmem:[#allocation13 + $0x430] sm:$0xff]
    %v1471 = vld [vmem:[#allocation13 + $0x438] sm:$0xff]
    %v1472 = vld [vmem:[#allocation13 + $0x440] sm:$0xff]
    %v1473 = vld [vmem:[#allocation13 + $0x448] sm:$0xff]
    %v1474 = vld [vmem:[#allocation13 + $0x450] sm:$0xff]
    %v1475 = vld [vmem:[#allocation13 + $0x458] sm:$0xff]
    %v1476 = vld [vmem:[#allocation13 + $0x460] sm:$0xff]
    %v1477 = vld [vmem:[#allocation13 + $0x468] sm:$0xff]
    %v1478 = vld [vmem:[#allocation13 + $0x470] sm:$0xff]
    %v1479 = vld [vmem:[#allocation13 + $0x478] sm:$0xff]
    %v1480 = vld [vmem:[#allocation13 + $0x480] sm:$0xff]
    %v1481 = vld [vmem:[#allocation13 + $0x488] sm:$0xff]
    %v1482 = vld [vmem:[#allocation13 + $0x490] sm:$0xff]
    %v1483 = vld [vmem:[#allocation13 + $0x498] sm:$0xff]
    %v1484 = vld [vmem:[#allocation13 + $0x4a0] sm:$0xff]
    %v1485 = vld [vmem:[#allocation13 + $0x4a8] sm:$0xff]
    %v1486 = vld [vmem:[#allocation13 + $0x4b0] sm:$0xff]
    %v1487 = vld [vmem:[#allocation13 + $0x4b8] sm:$0xff]
    %v1488 = vld [vmem:[#allocation13 + $0x4c0] sm:$0xff]
    %v1489 = vld [vmem:[#allocation13 + $0x4c8] sm:$0xff]
    %v1490 = vld [vmem:[#allocation13 + $0x4d0] sm:$0xff]
    %v1491 = vld [vmem:[#allocation13 + $0x4d8] sm:$0xff]
    %v1492 = vld [vmem:[#allocation13 + $0x4e0] sm:$0xff]
    %v1493 = vld [vmem:[#allocation13 + $0x4e8] sm:$0xff]
    %v1494 = vld [vmem:[#allocation13 + $0x4f0] sm:$0xff]
    %v1495 = vld [vmem:[#allocation13 + $0x4f8] sm:$0xff]
    %v1496 = vld [vmem:[#allocation13 + $0x500] sm:$0xff]
    %v1497 = vld [vmem:[#allocation13 + $0x508] sm:$0xff]
    %v1498 = vld [vmem:[#allocation13 + $0x510] sm:$0xff]
    %v1499 = vld [vmem:[#allocation13 + $0x518] sm:$0xff]
    %v1500 = vld [vmem:[#allocation13 + $0x520] sm:$0xff]
    %v1501 = vld [vmem:[#allocation13 + $0x528] sm:$0xff]
    %v1502 = vld [vmem:[#allocation13 + $0x530] sm:$0xff]
    %v1503 = vld [vmem:[#allocation13 + $0x538] sm:$0xff]
    %v1504 = vld [vmem:[#allocation13 + $0x540] sm:$0xff]
    %v1505 = vld [vmem:[#allocation13 + $0x548] sm:$0xff]
    %v1506 = vld [vmem:[#allocation13 + $0x550] sm:$0xff]
    %v1507 = vld [vmem:[#allocation13 + $0x558] sm:$0xff]
    %v1508 = vld [vmem:[#allocation13 + $0x560] sm:$0xff]
    %v1509 = vld [vmem:[#allocation13 + $0x568] sm:$0xff]
    %v1510 = vld [vmem:[#allocation13 + $0x570] sm:$0xff]
    %v1511 = vld [vmem:[#allocation13 + $0x578] sm:$0xff]
    %v1512 = vld [vmem:[#allocation13 + $0x580] sm:$0xff]
    %v1513 = vld [vmem:[#allocation13 + $0x588] sm:$0xff]
    %v1514 = vld [vmem:[#allocation13 + $0x590] sm:$0xff]
    %v1515 = vld [vmem:[#allocation13 + $0x598] sm:$0xff]
    %v1516 = vld [vmem:[#allocation13 + $0x5a0] sm:$0xff]
    %v1517 = vld [vmem:[#allocation13 + $0x5a8] sm:$0xff]
    %v1518 = vld [vmem:[#allocation13 + $0x5b0] sm:$0xff]
    %v1519 = vld [vmem:[#allocation13 + $0x5b8] sm:$0xff]
    %v1520 = vld [vmem:[#allocation13 + $0x5c0] sm:$0xff]
    %v1521 = vld [vmem:[#allocation13 + $0x5c8] sm:$0xff]
    %v1522 = vld [vmem:[#allocation13 + $0x5d0] sm:$0xff]
    %v1523 = vld [vmem:[#allocation13 + $0x5d8] sm:$0xff]
    %v1524 = vld [vmem:[#allocation13 + $0x5e0] sm:$0xff]
    %v1525 = vld [vmem:[#allocation13 + $0x5e8] sm:$0xff]
    %v1526 = vld [vmem:[#allocation13 + $0x5f0] sm:$0xff]
    %v1527 = vld [vmem:[#allocation13 + $0x5f8] sm:$0xff]
    %v1528 = vld [vmem:[#allocation13 + $0x600] sm:$0xff]
    %v1529 = vld [vmem:[#allocation13 + $0x608] sm:$0xff]
    %v1530 = vld [vmem:[#allocation13 + $0x610] sm:$0xff]
    %v1531 = vld [vmem:[#allocation13 + $0x618] sm:$0xff]
    %v1532 = vld [vmem:[#allocation13 + $0x620] sm:$0xff]
    %v1533 = vld [vmem:[#allocation13 + $0x628] sm:$0xff]
    %v1534 = vld [vmem:[#allocation13 + $0x630] sm:$0xff]
    %v1535 = vld [vmem:[#allocation13 + $0x638] sm:$0xff]
    %v1536 = vld [vmem:[#allocation13 + $0x640] sm:$0xff]
    %v1537 = vld [vmem:[#allocation13 + $0x648] sm:$0xff]
    %v1538 = vld [vmem:[#allocation13 + $0x650] sm:$0xff]
    %v1539 = vld [vmem:[#allocation13 + $0x658] sm:$0xff]
    %v1540 = vld [vmem:[#allocation13 + $0x660] sm:$0xff]
    %v1541 = vld [vmem:[#allocation13 + $0x668] sm:$0xff]
    %v1542 = vld [vmem:[#allocation13 + $0x670] sm:$0xff]
    %v1543 = vld [vmem:[#allocation13 + $0x678] sm:$0xff]
    %v1544 = vld [vmem:[#allocation13 + $0x680] sm:$0xff]
    %v1545 = vld [vmem:[#allocation13 + $0x688] sm:$0xff]
    %v1546 = vld [vmem:[#allocation13 + $0x690] sm:$0xff]
    %v1547 = vld [vmem:[#allocation13 + $0x698] sm:$0xff]
    %v1548 = vld [vmem:[#allocation13 + $0x6a0] sm:$0xff]
    %v1549 = vld [vmem:[#allocation13 + $0x6a8] sm:$0xff]
    %v1550 = vld [vmem:[#allocation13 + $0x6b0] sm:$0xff]
    %v1551 = vld [vmem:[#allocation13 + $0x6b8] sm:$0xff]
    %v1552 = vld [vmem:[#allocation13 + $0x6c0] sm:$0xff]
    %v1553 = vld [vmem:[#allocation13 + $0x6c8] sm:$0xff]
    %v1554 = vld [vmem:[#allocation13 + $0x6d0] sm:$0xff]
    %v1555 = vld [vmem:[#allocation13 + $0x6d8] sm:$0xff]
    %v1556 = vld [vmem:[#allocation13 + $0x6e0] sm:$0xff]
    %v1557 = vld [vmem:[#allocation13 + $0x6e8] sm:$0xff]
    %v1558 = vld [vmem:[#allocation13 + $0x6f0] sm:$0xff]
    %v1559 = vld [vmem:[#allocation13 + $0x6f8] sm:$0xff]
    %v1560 = vld [vmem:[#allocation13 + $0x700] sm:$0xff]
    %v1561 = vld [vmem:[#allocation13 + $0x708] sm:$0xff]
    %v1562 = vld [vmem:[#allocation13 + $0x710] sm:$0xff]
    %v1563 = vld [vmem:[#allocation13 + $0x718] sm:$0xff]
    %v1564 = vld [vmem:[#allocation13 + $0x720] sm:$0xff]
    %v1565 = vld [vmem:[#allocation13 + $0x728] sm:$0xff]
    %v1566 = vld [vmem:[#allocation13 + $0x730] sm:$0xff]
    %v1567 = vld [vmem:[#allocation13 + $0x738] sm:$0xff]
    %v1568 = vld [vmem:[#allocation13 + $0x740] sm:$0xff]
    %v1569 = vld [vmem:[#allocation13 + $0x748] sm:$0xff]
    %v1570 = vld [vmem:[#allocation13 + $0x750] sm:$0xff]
    %v1571 = vld [vmem:[#allocation13 + $0x758] sm:$0xff]
    %v1572 = vld [vmem:[#allocation13 + $0x760] sm:$0xff]
    %v1573 = vld [vmem:[#allocation13 + $0x768] sm:$0xff]
    %v1574 = vld [vmem:[#allocation13 + $0x770] sm:$0xff]
    %v1575 = vld [vmem:[#allocation13 + $0x778] sm:$0xff]
    %v1576 = vld [vmem:[#allocation13 + $0x780] sm:$0xff]
    %v1577 = vld [vmem:[#allocation13 + $0x788] sm:$0xff]
    %v1578 = vld [vmem:[#allocation13 + $0x790] sm:$0xff]
    %v1579 = vld [vmem:[#allocation13 + $0x798] sm:$0xff]
    %v1580 = vld [vmem:[#allocation13 + $0x7a0] sm:$0xff]
    %v1581 = vld [vmem:[#allocation13 + $0x7a8] sm:$0xff]
    %v1582 = vld [vmem:[#allocation13 + $0x7b0] sm:$0xff]
    %v1583 = vld [vmem:[#allocation13 + $0x7b8] sm:$0xff]
    %v1584 = vld [vmem:[#allocation13 + $0x7c0] sm:$0xff]
    %v1585 = vld [vmem:[#allocation13 + $0x7c8] sm:$0xff]
    %v1586 = vld [vmem:[#allocation13 + $0x7d0] sm:$0xff]
    %v1587 = vld [vmem:[#allocation13 + $0x7d8] sm:$0xff]
    %v1588 = vld [vmem:[#allocation13 + $0x7e0] sm:$0xff]
    %v1589 = vld [vmem:[#allocation13 + $0x7e8] sm:$0xff]
    %v1590 = vld [vmem:[#allocation13 + $0x7f0] sm:$0xff]
    %v1591 = vld [vmem:[#allocation13 + $0x7f8] sm:$0xff]
    %v1592 = vld [vmem:[#allocation13 + $0x800] sm:$0xff]
    %v1593 = vld [vmem:[#allocation13 + $0x808] sm:$0xff]
    %v1594 = vld [vmem:[#allocation13 + $0x810] sm:$0xff]
    %v1595 = vld [vmem:[#allocation13 + $0x818] sm:$0xff]
    %v1596 = vld [vmem:[#allocation13 + $0x820] sm:$0xff]
    %v1597 = vld [vmem:[#allocation13 + $0x828] sm:$0xff]
    %v1598 = vld [vmem:[#allocation13 + $0x830] sm:$0xff]
    %v1599 = vld [vmem:[#allocation13 + $0x838] sm:$0xff]
    %v1600 = vld [vmem:[#allocation13 + $0x840] sm:$0xff]
    %v1601 = vld [vmem:[#allocation13 + $0x848] sm:$0xff]
    %v1602 = vld [vmem:[#allocation13 + $0x850] sm:$0xff]
    %v1603 = vld [vmem:[#allocation13 + $0x858] sm:$0xff]
    %v1604 = vld [vmem:[#allocation13 + $0x860] sm:$0xff]
    %v1605 = vld [vmem:[#allocation13 + $0x868] sm:$0xff]
    %v1606 = vld [vmem:[#allocation13 + $0x870] sm:$0xff]
    %v1607 = vld [vmem:[#allocation13 + $0x878] sm:$0xff]
    %v1608 = vld [vmem:[#allocation13 + $0x880] sm:$0xff]
    %v1609 = vld [vmem:[#allocation13 + $0x888] sm:$0xff]
    %v1610 = vld [vmem:[#allocation13 + $0x890] sm:$0xff]
    %v1611 = vld [vmem:[#allocation13 + $0x898] sm:$0xff]
    %v1612 = vld [vmem:[#allocation13 + $0x8a0] sm:$0xff]
    %v1613 = vld [vmem:[#allocation13 + $0x8a8] sm:$0xff]
    %v1614 = vld [vmem:[#allocation13 + $0x8b0] sm:$0xff]
    %v1615 = vld [vmem:[#allocation13 + $0x8b8] sm:$0xff]
    %v1616 = vld [vmem:[#allocation13 + $0x8c0] sm:$0xff]
    %v1617 = vld [vmem:[#allocation13 + $0x8c8] sm:$0xff]
    %v1618 = vld [vmem:[#allocation13 + $0x8d0] sm:$0xff]
    %v1619 = vld [vmem:[#allocation13 + $0x8d8] sm:$0xff]
    %v1620 = vld [vmem:[#allocation13 + $0x8e0] sm:$0xff]
    %v1621 = vld [vmem:[#allocation13 + $0x8e8] sm:$0xff]
    %v1622 = vld [vmem:[#allocation13 + $0x8f0] sm:$0xff]
    %v1623 = vld [vmem:[#allocation13 + $0x8f8] sm:$0xff]
    %v1624 = vld [vmem:[#allocation15] sm:$0x3]
    %v1626 = vlaneseq
    %v1627 = vshrl.u32 %v1626, 7
    %v1628 = vsub.s32 0, %v1627
    %v1629 = vrot.slane %v1624, %v1628
    %v1630 = vlaneseq
    %v1631 = vshrl.u32 %v1630, 7
    %v1632 = vsub.s32 1, %v1631
    %v1633 = vrot.slane %v1624, %v1632
    %v1924 = vunpack.c.l.b16 %v1336
    %v1925 = vunpack.c.h.b16 %v1336
    %v1926 = vunpack.c.l.b16 %v1337
    %v1927 = vunpack.c.h.b16 %v1337
    %v1928 = vunpack.c.l.b16 %v1338
    %v1929 = vunpack.c.h.b16 %v1338
    %v1930 = vunpack.c.l.b16 %v1339
    %v1931 = vunpack.c.h.b16 %v1339
    %v1932 = vunpack.c.l.b16 %v1340
    %v1933 = vunpack.c.h.b16 %v1340
    %v1934 = vunpack.c.l.b16 %v1341
    %v1935 = vunpack.c.h.b16 %v1341
    %v1936 = vunpack.c.l.b16 %v1342
    %v1937 = vunpack.c.h.b16 %v1342
    %v1938 = vunpack.c.l.b16 %v1343
    %v1939 = vunpack.c.h.b16 %v1343
    %v1940 = vunpack.c.l.b16 %v1344
    %v1941 = vunpack.c.h.b16 %v1344
    %v1942 = vunpack.c.l.b16 %v1345
    %v1943 = vunpack.c.h.b16 %v1345
    %v1944 = vunpack.c.l.b16 %v1346
    %v1945 = vunpack.c.h.b16 %v1346
    %v1946 = vunpack.c.l.b16 %v1347
    %v1947 = vunpack.c.h.b16 %v1347
    %v1948 = vunpack.c.l.b16 %v1348
    %v1949 = vunpack.c.h.b16 %v1348
    %v1950 = vunpack.c.l.b16 %v1349
    %v1951 = vunpack.c.h.b16 %v1349
    %v1952 = vunpack.c.l.b16 %v1350
    %v1953 = vunpack.c.h.b16 %v1350
    %v1954 = vunpack.c.l.b16 %v1351
    %v1955 = vunpack.c.h.b16 %v1351
    %v1956 = vunpack.c.l.b16 %v1352
    %v1957 = vunpack.c.h.b16 %v1352
    %v1958 = vunpack.c.l.b16 %v1353
    %v1959 = vunpack.c.h.b16 %v1353
    %v1960 = vunpack.c.l.b16 %v1354
    %v1961 = vunpack.c.h.b16 %v1354
    %v1962 = vunpack.c.l.b16 %v1355
    %v1963 = vunpack.c.h.b16 %v1355
    %v1964 = vunpack.c.l.b16 %v1356
    %v1965 = vunpack.c.h.b16 %v1356
    %v1966 = vunpack.c.l.b16 %v1357
    %v1967 = vunpack.c.h.b16 %v1357
    %v1968 = vunpack.c.l.b16 %v1358
    %v1969 = vunpack.c.h.b16 %v1358
    %v1970 = vunpack.c.l.b16 %v1359
    %v1971 = vunpack.c.h.b16 %v1359
    %v1972 = vunpack.c.l.b16 %v1360
    %v1973 = vunpack.c.h.b16 %v1360
    %v1974 = vunpack.c.l.b16 %v1361
    %v1975 = vunpack.c.h.b16 %v1361
    %v1976 = vunpack.c.l.b16 %v1362
    %v1977 = vunpack.c.h.b16 %v1362
    %v1978 = vunpack.c.l.b16 %v1363
    %v1979 = vunpack.c.h.b16 %v1363
    %v1980 = vunpack.c.l.b16 %v1364
    %v1981 = vunpack.c.h.b16 %v1364
    %v1982 = vunpack.c.l.b16 %v1365
    %v1983 = vunpack.c.h.b16 %v1365
    %v1984 = vunpack.c.l.b16 %v1366
    %v1985 = vunpack.c.h.b16 %v1366
    %v1986 = vunpack.c.l.b16 %v1367
    %v1987 = vunpack.c.h.b16 %v1367
    %v1988 = vunpack.c.l.b16 %v1368
    %v1989 = vunpack.c.h.b16 %v1368
    %v1990 = vunpack.c.l.b16 %v1369
    %v1991 = vunpack.c.h.b16 %v1369
    %v1992 = vunpack.c.l.b16 %v1370
    %v1993 = vunpack.c.h.b16 %v1370
    %v1994 = vunpack.c.l.b16 %v1371
    %v1995 = vunpack.c.h.b16 %v1371
    %v1996 = vunpack.c.l.b16 %v1372
    %v1997 = vunpack.c.h.b16 %v1372
    %v1998 = vunpack.c.l.b16 %v1373
    %v1999 = vunpack.c.h.b16 %v1373
    %v2000 = vunpack.c.l.b16 %v1374
    %v2001 = vunpack.c.h.b16 %v1374
    %v2002 = vunpack.c.l.b16 %v1375
    %v2003 = vunpack.c.h.b16 %v1375
    %v2004 = vunpack.c.l.b16 %v1376
    %v2005 = vunpack.c.h.b16 %v1376
    %v2006 = vunpack.c.l.b16 %v1377
    %v2007 = vunpack.c.h.b16 %v1377
    %v2008 = vunpack.c.l.b16 %v1378
    %v2009 = vunpack.c.h.b16 %v1378
    %v2010 = vunpack.c.l.b16 %v1379
    %v2011 = vunpack.c.h.b16 %v1379
    %v2012 = vunpack.c.l.b16 %v1380
    %v2013 = vunpack.c.h.b16 %v1380
    %v2014 = vunpack.c.l.b16 %v1381
    %v2015 = vunpack.c.h.b16 %v1381
    %v2016 = vunpack.c.l.b16 %v1382
    %v2017 = vunpack.c.h.b16 %v1382
    %v2018 = vunpack.c.l.b16 %v1383
    %v2019 = vunpack.c.h.b16 %v1383
    %v2020 = vunpack.c.l.b16 %v1384
    %v2021 = vunpack.c.h.b16 %v1384
    %v2022 = vunpack.c.l.b16 %v1385
    %v2023 = vunpack.c.h.b16 %v1385
    %v2024 = vunpack.c.l.b16 %v1386
    %v2025 = vunpack.c.h.b16 %v1386
    %v2026 = vunpack.c.l.b16 %v1387
    %v2027 = vunpack.c.h.b16 %v1387
    %v2028 = vunpack.c.l.b16 %v1388
    %v2029 = vunpack.c.h.b16 %v1388
    %v2030 = vunpack.c.l.b16 %v1389
    %v2031 = vunpack.c.h.b16 %v1389
    %v2032 = vunpack.c.l.b16 %v1390
    %v2033 = vunpack.c.h.b16 %v1390
    %v2034 = vunpack.c.l.b16 %v1391
    %v2035 = vunpack.c.h.b16 %v1391
    %v2036 = vunpack.c.l.b16 %v1392
    %v2037 = vunpack.c.h.b16 %v1392
    %v2038 = vunpack.c.l.b16 %v1393
    %v2039 = vunpack.c.h.b16 %v1393
    %v2040 = vunpack.c.l.b16 %v1394
    %v2041 = vunpack.c.h.b16 %v1394
    %v2042 = vunpack.c.l.b16 %v1395
    %v2043 = vunpack.c.h.b16 %v1395
    %v2044 = vunpack.c.l.b16 %v1396
    %v2045 = vunpack.c.h.b16 %v1396
    %v2046 = vunpack.c.l.b16 %v1397
    %v2047 = vunpack.c.h.b16 %v1397
    %v2048 = vunpack.c.l.b16 %v1398
    %v2049 = vunpack.c.h.b16 %v1398
    %v2050 = vunpack.c.l.b16 %v1399
    %v2051 = vunpack.c.h.b16 %v1399
    %v2052 = vunpack.c.l.b16 %v1400
    %v2053 = vunpack.c.h.b16 %v1400
    %v2054 = vunpack.c.l.b16 %v1401
    %v2055 = vunpack.c.h.b16 %v1401
    %v2056 = vunpack.c.l.b16 %v1402
    %v2057 = vunpack.c.h.b16 %v1402
    %v2058 = vunpack.c.l.b16 %v1403
    %v2059 = vunpack.c.h.b16 %v1403
    %v2060 = vunpack.c.l.b16 %v1404
    %v2061 = vunpack.c.h.b16 %v1404
    %v2062 = vunpack.c.l.b16 %v1405
    %v2063 = vunpack.c.h.b16 %v1405
    %v2064 = vunpack.c.l.b16 %v1406
    %v2065 = vunpack.c.h.b16 %v1406
    %v2066 = vunpack.c.l.b16 %v1407
    %v2067 = vunpack.c.h.b16 %v1407
    %v2068 = vunpack.c.l.b16 %v1408
    %v2069 = vunpack.c.h.b16 %v1408
    %v2070 = vunpack.c.l.b16 %v1409
    %v2071 = vunpack.c.h.b16 %v1409
    %v2072 = vunpack.c.l.b16 %v1410
    %v2073 = vunpack.c.h.b16 %v1410
    %v2074 = vunpack.c.l.b16 %v1411
    %v2075 = vunpack.c.h.b16 %v1411
    %v2076 = vunpack.c.l.b16 %v1412
    %v2077 = vunpack.c.h.b16 %v1412
    %v2078 = vunpack.c.l.b16 %v1413
    %v2079 = vunpack.c.h.b16 %v1413
    %v2080 = vunpack.c.l.b16 %v1414
    %v2081 = vunpack.c.h.b16 %v1414
    %v2082 = vunpack.c.l.b16 %v1415
    %v2083 = vunpack.c.h.b16 %v1415
    %v2084 = vunpack.c.l.b16 %v1416
    %v2085 = vunpack.c.h.b16 %v1416
    %v2086 = vunpack.c.l.b16 %v1417
    %v2087 = vunpack.c.h.b16 %v1417
    %v2088 = vunpack.c.l.b16 %v1418
    %v2089 = vunpack.c.h.b16 %v1418
    %v2090 = vunpack.c.l.b16 %v1419
    %v2091 = vunpack.c.h.b16 %v1419
    %v2092 = vunpack.c.l.b16 %v1420
    %v2093 = vunpack.c.h.b16 %v1420
    %v2094 = vunpack.c.l.b16 %v1421
    %v2095 = vunpack.c.h.b16 %v1421
    %v2096 = vunpack.c.l.b16 %v1422
    %v2097 = vunpack.c.h.b16 %v1422
    %v2098 = vunpack.c.l.b16 %v1423
    %v2099 = vunpack.c.h.b16 %v1423
    %v2100 = vunpack.c.l.b16 %v1424
    %v2101 = vunpack.c.h.b16 %v1424
    %v2102 = vunpack.c.l.b16 %v1425
    %v2103 = vunpack.c.h.b16 %v1425
    %v2104 = vunpack.c.l.b16 %v1426
    %v2105 = vunpack.c.h.b16 %v1426
    %v2106 = vunpack.c.l.b16 %v1427
    %v2107 = vunpack.c.h.b16 %v1427
    %v2108 = vunpack.c.l.b16 %v1428
    %v2109 = vunpack.c.h.b16 %v1428
    %v2110 = vunpack.c.l.b16 %v1429
    %v2111 = vunpack.c.h.b16 %v1429
    %v2112 = vunpack.c.l.b16 %v1430
    %v2113 = vunpack.c.h.b16 %v1430
    %v2114 = vunpack.c.l.b16 %v1431
    %v2115 = vunpack.c.h.b16 %v1431
    %v2116 = vunpack.c.l.b16 %v1432
    %v2117 = vunpack.c.h.b16 %v1432
    %v2118 = vunpack.c.l.b16 %v1433
    %v2119 = vunpack.c.h.b16 %v1433
    %v2120 = vunpack.c.l.b16 %v1434
    %v2121 = vunpack.c.h.b16 %v1434
    %v2122 = vunpack.c.l.b16 %v1435
    %v2123 = vunpack.c.h.b16 %v1435
    %v2124 = vunpack.c.l.b16 %v1436
    %v2125 = vunpack.c.h.b16 %v1436
    %v2126 = vunpack.c.l.b16 %v1437
    %v2127 = vunpack.c.h.b16 %v1437
    %v2128 = vunpack.c.l.b16 %v1438
    %v2129 = vunpack.c.h.b16 %v1438
    %v2130 = vunpack.c.l.b16 %v1439
    %v2131 = vunpack.c.h.b16 %v1439
    %v2132 = vunpack.c.l.b16 %v1440
    %v2133 = vunpack.c.h.b16 %v1440
    %v2134 = vunpack.c.l.b16 %v1441
    %v2135 = vunpack.c.h.b16 %v1441
    %v2136 = vunpack.c.l.b16 %v1442
    %v2137 = vunpack.c.h.b16 %v1442
    %v2138 = vunpack.c.l.b16 %v1443
    %v2139 = vunpack.c.h.b16 %v1443
    %v2140 = vunpack.c.l.b16 %v1444
    %v2141 = vunpack.c.h.b16 %v1444
    %v2142 = vunpack.c.l.b16 %v1445
    %v2143 = vunpack.c.h.b16 %v1445
    %v2144 = vunpack.c.l.b16 %v1446
    %v2145 = vunpack.c.h.b16 %v1446
    %v2146 = vunpack.c.l.b16 %v1447
    %v2147 = vunpack.c.h.b16 %v1447
    %v2148 = vunpack.c.l.b16 %v1448
    %v2149 = vunpack.c.h.b16 %v1448
    %v2150 = vunpack.c.l.b16 %v1449
    %v2151 = vunpack.c.h.b16 %v1449
    %v2152 = vunpack.c.l.b16 %v1450
    %v2153 = vunpack.c.h.b16 %v1450
    %v2154 = vunpack.c.l.b16 %v1451
    %v2155 = vunpack.c.h.b16 %v1451
    %v2156 = vunpack.c.l.b16 %v1452
    %v2157 = vunpack.c.h.b16 %v1452
    %v2158 = vunpack.c.l.b16 %v1453
    %v2159 = vunpack.c.h.b16 %v1453
    %v2160 = vunpack.c.l.b16 %v1454
    %v2161 = vunpack.c.h.b16 %v1454
    %v2162 = vunpack.c.l.b16 %v1455
    %v2163 = vunpack.c.h.b16 %v1455
    %v2164 = vunpack.c.l.b16 %v1456
    %v2165 = vunpack.c.h.b16 %v1456
    %v2166 = vunpack.c.l.b16 %v1457
    %v2167 = vunpack.c.h.b16 %v1457
    %v2168 = vunpack.c.l.b16 %v1458
    %v2169 = vunpack.c.h.b16 %v1458
    %v2170 = vunpack.c.l.b16 %v1459
    %v2171 = vunpack.c.h.b16 %v1459
    %v2172 = vunpack.c.l.b16 %v1460
    %v2173 = vunpack.c.h.b16 %v1460
    %v2174 = vunpack.c.l.b16 %v1461
    %v2175 = vunpack.c.h.b16 %v1461
    %v2176 = vunpack.c.l.b16 %v1462
    %v2177 = vunpack.c.h.b16 %v1462
    %v2178 = vunpack.c.l.b16 %v1463
    %v2179 = vunpack.c.h.b16 %v1463
    %v2180 = vunpack.c.l.b16 %v1464
    %v2181 = vunpack.c.h.b16 %v1464
    %v2182 = vunpack.c.l.b16 %v1465
    %v2183 = vunpack.c.h.b16 %v1465
    %v2184 = vunpack.c.l.b16 %v1466
    %v2185 = vunpack.c.h.b16 %v1466
    %v2186 = vunpack.c.l.b16 %v1467
    %v2187 = vunpack.c.h.b16 %v1467
    %v2188 = vunpack.c.l.b16 %v1468
    %v2189 = vunpack.c.h.b16 %v1468
    %v2190 = vunpack.c.l.b16 %v1469
    %v2191 = vunpack.c.h.b16 %v1469
    %v2192 = vunpack.c.l.b16 %v1470
    %v2193 = vunpack.c.h.b16 %v1470
    %v2194 = vunpack.c.l.b16 %v1471
    %v2195 = vunpack.c.h.b16 %v1471
    %v2196 = vunpack.c.l.b16 %v1472
    %v2197 = vunpack.c.h.b16 %v1472
    %v2198 = vunpack.c.l.b16 %v1473
    %v2199 = vunpack.c.h.b16 %v1473
    %v2200 = vunpack.c.l.b16 %v1474
    %v2201 = vunpack.c.h.b16 %v1474
    %v2202 = vunpack.c.l.b16 %v1475
    %v2203 = vunpack.c.h.b16 %v1475
    %v2204 = vunpack.c.l.b16 %v1476
    %v2205 = vunpack.c.h.b16 %v1476
    %v2206 = vunpack.c.l.b16 %v1477
    %v2207 = vunpack.c.h.b16 %v1477
    %v2208 = vunpack.c.l.b16 %v1478
    %v2209 = vunpack.c.h.b16 %v1478
    %v2210 = vunpack.c.l.b16 %v1479
    %v2211 = vunpack.c.h.b16 %v1479
    %v2212 = vunpack.c.l.b16 %v1480
    %v2213 = vunpack.c.h.b16 %v1480
    %v2214 = vunpack.c.l.b16 %v1481
    %v2215 = vunpack.c.h.b16 %v1481
    %v2216 = vunpack.c.l.b16 %v1482
    %v2217 = vunpack.c.h.b16 %v1482
    %v2218 = vunpack.c.l.b16 %v1483
    %v2219 = vunpack.c.h.b16 %v1483
    %v2220 = vunpack.c.l.b16 %v1484
    %v2221 = vunpack.c.h.b16 %v1484
    %v2222 = vunpack.c.l.b16 %v1485
    %v2223 = vunpack.c.h.b16 %v1485
    %v2224 = vunpack.c.l.b16 %v1486
    %v2225 = vunpack.c.h.b16 %v1486
    %v2226 = vunpack.c.l.b16 %v1487
    %v2227 = vunpack.c.h.b16 %v1487
    %v2228 = vunpack.c.l.b16 %v1488
    %v2229 = vunpack.c.h.b16 %v1488
    %v2230 = vunpack.c.l.b16 %v1489
    %v2231 = vunpack.c.h.b16 %v1489
    %v2232 = vunpack.c.l.b16 %v1490
    %v2233 = vunpack.c.h.b16 %v1490
    %v2234 = vunpack.c.l.b16 %v1491
    %v2235 = vunpack.c.h.b16 %v1491
    %v2236 = vunpack.c.l.b16 %v1492
    %v2237 = vunpack.c.h.b16 %v1492
    %v2238 = vunpack.c.l.b16 %v1493
    %v2239 = vunpack.c.h.b16 %v1493
    %v2240 = vunpack.c.l.b16 %v1494
    %v2241 = vunpack.c.h.b16 %v1494
    %v2242 = vunpack.c.l.b16 %v1495
    %v2243 = vunpack.c.h.b16 %v1495
    %v2244 = vunpack.c.l.b16 %v1496
    %v2245 = vunpack.c.h.b16 %v1496
    %v2246 = vunpack.c.l.b16 %v1497
    %v2247 = vunpack.c.h.b16 %v1497
    %v2248 = vunpack.c.l.b16 %v1498
    %v2249 = vunpack.c.h.b16 %v1498
    %v2250 = vunpack.c.l.b16 %v1499
    %v2251 = vunpack.c.h.b16 %v1499
    %v2252 = vunpack.c.l.b16 %v1500
    %v2253 = vunpack.c.h.b16 %v1500
    %v2254 = vunpack.c.l.b16 %v1501
    %v2255 = vunpack.c.h.b16 %v1501
    %v2256 = vunpack.c.l.b16 %v1502
    %v2257 = vunpack.c.h.b16 %v1502
    %v2258 = vunpack.c.l.b16 %v1503
    %v2259 = vunpack.c.h.b16 %v1503
    %v2260 = vunpack.c.l.b16 %v1504
    %v2261 = vunpack.c.h.b16 %v1504
    %v2262 = vunpack.c.l.b16 %v1505
    %v2263 = vunpack.c.h.b16 %v1505
    %v2264 = vunpack.c.l.b16 %v1506
    %v2265 = vunpack.c.h.b16 %v1506
    %v2266 = vunpack.c.l.b16 %v1507
    %v2267 = vunpack.c.h.b16 %v1507
    %v2268 = vunpack.c.l.b16 %v1508
    %v2269 = vunpack.c.h.b16 %v1508
    %v2270 = vunpack.c.l.b16 %v1509
    %v2271 = vunpack.c.h.b16 %v1509
    %v2272 = vunpack.c.l.b16 %v1510
    %v2273 = vunpack.c.h.b16 %v1510
    %v2274 = vunpack.c.l.b16 %v1511
    %v2275 = vunpack.c.h.b16 %v1511
    %v2276 = vunpack.c.l.b16 %v1512
    %v2277 = vunpack.c.h.b16 %v1512
    %v2278 = vunpack.c.l.b16 %v1513
    %v2279 = vunpack.c.h.b16 %v1513
    %v2280 = vunpack.c.l.b16 %v1514
    %v2281 = vunpack.c.h.b16 %v1514
    %v2282 = vunpack.c.l.b16 %v1515
    %v2283 = vunpack.c.h.b16 %v1515
    %v2284 = vunpack.c.l.b16 %v1516
    %v2285 = vunpack.c.h.b16 %v1516
    %v2286 = vunpack.c.l.b16 %v1517
    %v2287 = vunpack.c.h.b16 %v1517
    %v2288 = vunpack.c.l.b16 %v1518
    %v2289 = vunpack.c.h.b16 %v1518
    %v2290 = vunpack.c.l.b16 %v1519
    %v2291 = vunpack.c.h.b16 %v1519
    %v2292 = vunpack.c.l.b16 %v1520
    %v2293 = vunpack.c.h.b16 %v1520
    %v2294 = vunpack.c.l.b16 %v1521
    %v2295 = vunpack.c.h.b16 %v1521
    %v2296 = vunpack.c.l.b16 %v1522
    %v2297 = vunpack.c.h.b16 %v1522
    %v2298 = vunpack.c.l.b16 %v1523
    %v2299 = vunpack.c.h.b16 %v1523
    %v2300 = vunpack.c.l.b16 %v1524
    %v2301 = vunpack.c.h.b16 %v1524
    %v2302 = vunpack.c.l.b16 %v1525
    %v2303 = vunpack.c.h.b16 %v1525
    %v2304 = vunpack.c.l.b16 %v1526
    %v2305 = vunpack.c.h.b16 %v1526
    %v2306 = vunpack.c.l.b16 %v1527
    %v2307 = vunpack.c.h.b16 %v1527
    %v2308 = vunpack.c.l.b16 %v1528
    %v2309 = vunpack.c.h.b16 %v1528
    %v2310 = vunpack.c.l.b16 %v1529
    %v2311 = vunpack.c.h.b16 %v1529
    %v2312 = vunpack.c.l.b16 %v1530
    %v2313 = vunpack.c.h.b16 %v1530
    %v2314 = vunpack.c.l.b16 %v1531
    %v2315 = vunpack.c.h.b16 %v1531
    %v2316 = vunpack.c.l.b16 %v1532
    %v2317 = vunpack.c.h.b16 %v1532
    %v2318 = vunpack.c.l.b16 %v1533
    %v2319 = vunpack.c.h.b16 %v1533
    %v2320 = vunpack.c.l.b16 %v1534
    %v2321 = vunpack.c.h.b16 %v1534
    %v2322 = vunpack.c.l.b16 %v1535
    %v2323 = vunpack.c.h.b16 %v1535
    %v2324 = vunpack.c.l.b16 %v1536
    %v2325 = vunpack.c.h.b16 %v1536
    %v2326 = vunpack.c.l.b16 %v1537
    %v2327 = vunpack.c.h.b16 %v1537
    %v2328 = vunpack.c.l.b16 %v1538
    %v2329 = vunpack.c.h.b16 %v1538
    %v2330 = vunpack.c.l.b16 %v1539
    %v2331 = vunpack.c.h.b16 %v1539
    %v2332 = vunpack.c.l.b16 %v1540
    %v2333 = vunpack.c.h.b16 %v1540
    %v2334 = vunpack.c.l.b16 %v1541
    %v2335 = vunpack.c.h.b16 %v1541
    %v2336 = vunpack.c.l.b16 %v1542
    %v2337 = vunpack.c.h.b16 %v1542
    %v2338 = vunpack.c.l.b16 %v1543
    %v2339 = vunpack.c.h.b16 %v1543
    %v2340 = vunpack.c.l.b16 %v1544
    %v2341 = vunpack.c.h.b16 %v1544
    %v2342 = vunpack.c.l.b16 %v1545
    %v2343 = vunpack.c.h.b16 %v1545
    %v2344 = vunpack.c.l.b16 %v1546
    %v2345 = vunpack.c.h.b16 %v1546
    %v2346 = vunpack.c.l.b16 %v1547
    %v2347 = vunpack.c.h.b16 %v1547
    %v2348 = vunpack.c.l.b16 %v1548
    %v2349 = vunpack.c.h.b16 %v1548
    %v2350 = vunpack.c.l.b16 %v1549
    %v2351 = vunpack.c.h.b16 %v1549
    %v2352 = vunpack.c.l.b16 %v1550
    %v2353 = vunpack.c.h.b16 %v1550
    %v2354 = vunpack.c.l.b16 %v1551
    %v2355 = vunpack.c.h.b16 %v1551
    %v2356 = vunpack.c.l.b16 %v1552
    %v2357 = vunpack.c.h.b16 %v1552
    %v2358 = vunpack.c.l.b16 %v1553
    %v2359 = vunpack.c.h.b16 %v1553
    %v2360 = vunpack.c.l.b16 %v1554
    %v2361 = vunpack.c.h.b16 %v1554
    %v2362 = vunpack.c.l.b16 %v1555
    %v2363 = vunpack.c.h.b16 %v1555
    %v2364 = vunpack.c.l.b16 %v1556
    %v2365 = vunpack.c.h.b16 %v1556
    %v2366 = vunpack.c.l.b16 %v1557
    %v2367 = vunpack.c.h.b16 %v1557
    %v2368 = vunpack.c.l.b16 %v1558
    %v2369 = vunpack.c.h.b16 %v1558
    %v2370 = vunpack.c.l.b16 %v1559
    %v2371 = vunpack.c.h.b16 %v1559
    %v2372 = vunpack.c.l.b16 %v1560
    %v2373 = vunpack.c.h.b16 %v1560
    %v2374 = vunpack.c.l.b16 %v1561
    %v2375 = vunpack.c.h.b16 %v1561
    %v2376 = vunpack.c.l.b16 %v1562
    %v2377 = vunpack.c.h.b16 %v1562
    %v2378 = vunpack.c.l.b16 %v1563
    %v2379 = vunpack.c.h.b16 %v1563
    %v2380 = vunpack.c.l.b16 %v1564
    %v2381 = vunpack.c.h.b16 %v1564
    %v2382 = vunpack.c.l.b16 %v1565
    %v2383 = vunpack.c.h.b16 %v1565
    %v2384 = vunpack.c.l.b16 %v1566
    %v2385 = vunpack.c.h.b16 %v1566
    %v2386 = vunpack.c.l.b16 %v1567
    %v2387 = vunpack.c.h.b16 %v1567
    %v2388 = vunpack.c.l.b16 %v1568
    %v2389 = vunpack.c.h.b16 %v1568
    %v2390 = vunpack.c.l.b16 %v1569
    %v2391 = vunpack.c.h.b16 %v1569
    %v2392 = vunpack.c.l.b16 %v1570
    %v2393 = vunpack.c.h.b16 %v1570
    %v2394 = vunpack.c.l.b16 %v1571
    %v2395 = vunpack.c.h.b16 %v1571
    %v2396 = vunpack.c.l.b16 %v1572
    %v2397 = vunpack.c.h.b16 %v1572
    %v2398 = vunpack.c.l.b16 %v1573
    %v2399 = vunpack.c.h.b16 %v1573
    %v2400 = vunpack.c.l.b16 %v1574
    %v2401 = vunpack.c.h.b16 %v1574
    %v2402 = vunpack.c.l.b16 %v1575
    %v2403 = vunpack.c.h.b16 %v1575
    %v2404 = vunpack.c.l.b16 %v1576
    %v2405 = vunpack.c.h.b16 %v1576
    %v2406 = vunpack.c.l.b16 %v1577
    %v2407 = vunpack.c.h.b16 %v1577
    %v2408 = vunpack.c.l.b16 %v1578
    %v2409 = vunpack.c.h.b16 %v1578
    %v2410 = vunpack.c.l.b16 %v1579
    %v2411 = vunpack.c.h.b16 %v1579
    %v2412 = vunpack.c.l.b16 %v1580
    %v2413 = vunpack.c.h.b16 %v1580
    %v2414 = vunpack.c.l.b16 %v1581
    %v2415 = vunpack.c.h.b16 %v1581
    %v2416 = vunpack.c.l.b16 %v1582
    %v2417 = vunpack.c.h.b16 %v1582
    %v2418 = vunpack.c.l.b16 %v1583
    %v2419 = vunpack.c.h.b16 %v1583
    %v2420 = vunpack.c.l.b16 %v1584
    %v2421 = vunpack.c.h.b16 %v1584
    %v2422 = vunpack.c.l.b16 %v1585
    %v2423 = vunpack.c.h.b16 %v1585
    %v2424 = vunpack.c.l.b16 %v1586
    %v2425 = vunpack.c.h.b16 %v1586
    %v2426 = vunpack.c.l.b16 %v1587
    %v2427 = vunpack.c.h.b16 %v1587
    %v2428 = vunpack.c.l.b16 %v1588
    %v2429 = vunpack.c.h.b16 %v1588
    %v2430 = vunpack.c.l.b16 %v1589
    %v2431 = vunpack.c.h.b16 %v1589
    %v2432 = vunpack.c.l.b16 %v1590
    %v2433 = vunpack.c.h.b16 %v1590
    %v2434 = vunpack.c.l.b16 %v1591
    %v2435 = vunpack.c.h.b16 %v1591
    %v2436 = vunpack.c.l.b16 %v1592
    %v2437 = vunpack.c.h.b16 %v1592
    %v2438 = vunpack.c.l.b16 %v1593
    %v2439 = vunpack.c.h.b16 %v1593
    %v2440 = vunpack.c.l.b16 %v1594
    %v2441 = vunpack.c.h.b16 %v1594
    %v2442 = vunpack.c.l.b16 %v1595
    %v2443 = vunpack.c.h.b16 %v1595
    %v2444 = vunpack.c.l.b16 %v1596
    %v2445 = vunpack.c.h.b16 %v1596
    %v2446 = vunpack.c.l.b16 %v1597
    %v2447 = vunpack.c.h.b16 %v1597
    %v2448 = vunpack.c.l.b16 %v1598
    %v2449 = vunpack.c.h.b16 %v1598
    %v2450 = vunpack.c.l.b16 %v1599
    %v2451 = vunpack.c.h.b16 %v1599
    %v2452 = vunpack.c.l.b16 %v1600
    %v2453 = vunpack.c.h.b16 %v1600
    %v2454 = vunpack.c.l.b16 %v1601
    %v2455 = vunpack.c.h.b16 %v1601
    %v2456 = vunpack.c.l.b16 %v1602
    %v2457 = vunpack.c.h.b16 %v1602
    %v2458 = vunpack.c.l.b16 %v1603
    %v2459 = vunpack.c.h.b16 %v1603
    %v2460 = vunpack.c.l.b16 %v1604
    %v2461 = vunpack.c.h.b16 %v1604
    %v2462 = vunpack.c.l.b16 %v1605
    %v2463 = vunpack.c.h.b16 %v1605
    %v2464 = vunpack.c.l.b16 %v1606
    %v2465 = vunpack.c.h.b16 %v1606
    %v2466 = vunpack.c.l.b16 %v1607
    %v2467 = vunpack.c.h.b16 %v1607
    %v2468 = vunpack.c.l.b16 %v1608
    %v2469 = vunpack.c.h.b16 %v1608
    %v2470 = vunpack.c.l.b16 %v1609
    %v2471 = vunpack.c.h.b16 %v1609
    %v2472 = vunpack.c.l.b16 %v1610
    %v2473 = vunpack.c.h.b16 %v1610
    %v2474 = vunpack.c.l.b16 %v1611
    %v2475 = vunpack.c.h.b16 %v1611
    %v2476 = vunpack.c.l.b16 %v1612
    %v2477 = vunpack.c.h.b16 %v1612
    %v2478 = vunpack.c.l.b16 %v1613
    %v2479 = vunpack.c.h.b16 %v1613
    %v2480 = vunpack.c.l.b16 %v1614
    %v2481 = vunpack.c.h.b16 %v1614
    %v2482 = vunpack.c.l.b16 %v1615
    %v2483 = vunpack.c.h.b16 %v1615
    %v2484 = vunpack.c.l.b16 %v1616
    %v2485 = vunpack.c.h.b16 %v1616
    %v2486 = vunpack.c.l.b16 %v1617
    %v2487 = vunpack.c.h.b16 %v1617
    %v2488 = vunpack.c.l.b16 %v1618
    %v2489 = vunpack.c.h.b16 %v1618
    %v2490 = vunpack.c.l.b16 %v1619
    %v2491 = vunpack.c.h.b16 %v1619
    %v2492 = vunpack.c.l.b16 %v1620
    %v2493 = vunpack.c.h.b16 %v1620
    %v2494 = vunpack.c.l.b16 %v1621
    %v2495 = vunpack.c.h.b16 %v1621
    %v2496 = vunpack.c.l.b16 %v1622
    %v2497 = vunpack.c.h.b16 %v1622
    %v2498 = vunpack.c.l.b16 %v1623
    %v2499 = vunpack.c.h.b16 %v1623
    %v2500 = vpack.c.b16 %v1926, %v1924
    %v2501 = vpack.c.b16 %v1927, %v1925
    %v2502 = vpack.c.b16 %v1930, %v1928
    %v2503 = vpack.c.b16 %v1931, %v1929
    %v2504 = vpack.c.b16 %v1934, %v1932
    %v2505 = vpack.c.b16 %v1935, %v1933
    %v2506 = vpack.c.b16 %v1938, %v1936
    %v2507 = vpack.c.b16 %v1939, %v1937
    %v2508 = vpack.c.b16 %v1942, %v1940
    %v2509 = vpack.c.b16 %v1943, %v1941
    %v2510 = vpack.c.b16 %v1946, %v1944
    %v2511 = vpack.c.b16 %v1947, %v1945
    %v2512 = vpack.c.b16 %v1950, %v1948
    %v2513 = vpack.c.b16 %v1951, %v1949
    %v2514 = vpack.c.b16 %v1954, %v1952
    %v2515 = vpack.c.b16 %v1955, %v1953
    %v2516 = vpack.c.b16 %v1958, %v1956
    %v2517 = vpack.c.b16 %v1959, %v1957
    %v2518 = vpack.c.b16 %v1962, %v1960
    %v2519 = vpack.c.b16 %v1963, %v1961
    %v2520 = vpack.c.b16 %v1966, %v1964
    %v2521 = vpack.c.b16 %v1967, %v1965
    %v2522 = vpack.c.b16 %v1970, %v1968
    %v2523 = vpack.c.b16 %v1971, %v1969
    %v2524 = vpack.c.b16 %v1974, %v1972
    %v2525 = vpack.c.b16 %v1975, %v1973
    %v2526 = vpack.c.b16 %v1978, %v1976
    %v2527 = vpack.c.b16 %v1979, %v1977
    %v2528 = vpack.c.b16 %v1982, %v1980
    %v2529 = vpack.c.b16 %v1983, %v1981
    %v2530 = vpack.c.b16 %v1986, %v1984
    %v2531 = vpack.c.b16 %v1987, %v1985
    %v2532 = vpack.c.b16 %v1990, %v1988
    %v2533 = vpack.c.b16 %v1991, %v1989
    %v2534 = vpack.c.b16 %v1994, %v1992
    %v2535 = vpack.c.b16 %v1995, %v1993
    %v2536 = vpack.c.b16 %v1998, %v1996
    %v2537 = vpack.c.b16 %v1999, %v1997
    %v2538 = vpack.c.b16 %v2002, %v2000
    %v2539 = vpack.c.b16 %v2003, %v2001
    %v2540 = vpack.c.b16 %v2006, %v2004
    %v2541 = vpack.c.b16 %v2007, %v2005
    %v2542 = vpack.c.b16 %v2010, %v2008
    %v2543 = vpack.c.b16 %v2011, %v2009
    %v2544 = vpack.c.b16 %v2014, %v2012
    %v2545 = vpack.c.b16 %v2015, %v2013
    %v2546 = vpack.c.b16 %v2018, %v2016
    %v2547 = vpack.c.b16 %v2019, %v2017
    %v2548 = vpack.c.b16 %v2022, %v2020
    %v2549 = vpack.c.b16 %v2023, %v2021
    %v2550 = vpack.c.b16 %v2026, %v2024
    %v2551 = vpack.c.b16 %v2027, %v2025
    %v2552 = vpack.c.b16 %v2030, %v2028
    %v2553 = vpack.c.b16 %v2031, %v2029
    %v2554 = vpack.c.b16 %v2034, %v2032
    %v2555 = vpack.c.b16 %v2035, %v2033
    %v2556 = vpack.c.b16 %v2038, %v2036
    %v2557 = vpack.c.b16 %v2039, %v2037
    %v2558 = vpack.c.b16 %v2042, %v2040
    %v2559 = vpack.c.b16 %v2043, %v2041
    %v2560 = vpack.c.b16 %v2046, %v2044
    %v2561 = vpack.c.b16 %v2047, %v2045
    %v2562 = vpack.c.b16 %v2050, %v2048
    %v2563 = vpack.c.b16 %v2051, %v2049
    %v2564 = vpack.c.b16 %v2054, %v2052
    %v2565 = vpack.c.b16 %v2055, %v2053
    %v2566 = vpack.c.b16 %v2058, %v2056
    %v2567 = vpack.c.b16 %v2059, %v2057
    %v2568 = vpack.c.b16 %v2062, %v2060
    %v2569 = vpack.c.b16 %v2063, %v2061
    %v2570 = vpack.c.b16 %v2066, %v2064
    %v2571 = vpack.c.b16 %v2067, %v2065
    %v2572 = vpack.c.b16 %v2070, %v2068
    %v2573 = vpack.c.b16 %v2071, %v2069
    %v2574 = vpack.c.b16 %v2074, %v2072
    %v2575 = vpack.c.b16 %v2075, %v2073
    %v2576 = vpack.c.b16 %v2078, %v2076
    %v2577 = vpack.c.b16 %v2079, %v2077
    %v2578 = vpack.c.b16 %v2082, %v2080
    %v2579 = vpack.c.b16 %v2083, %v2081
    %v2580 = vpack.c.b16 %v2086, %v2084
    %v2581 = vpack.c.b16 %v2087, %v2085
    %v2582 = vpack.c.b16 %v2090, %v2088
    %v2583 = vpack.c.b16 %v2091, %v2089
    %v2584 = vpack.c.b16 %v2094, %v2092
    %v2585 = vpack.c.b16 %v2095, %v2093
    %v2586 = vpack.c.b16 %v2098, %v2096
    %v2587 = vpack.c.b16 %v2099, %v2097
    %v2588 = vpack.c.b16 %v2102, %v2100
    %v2589 = vpack.c.b16 %v2103, %v2101
    %v2590 = vpack.c.b16 %v2106, %v2104
    %v2591 = vpack.c.b16 %v2107, %v2105
    %v2592 = vpack.c.b16 %v2110, %v2108
    %v2593 = vpack.c.b16 %v2111, %v2109
    %v2594 = vpack.c.b16 %v2114, %v2112
    %v2595 = vpack.c.b16 %v2115, %v2113
    %v2596 = vpack.c.b16 %v2118, %v2116
    %v2597 = vpack.c.b16 %v2119, %v2117
    %v2598 = vpack.c.b16 %v2122, %v2120
    %v2599 = vpack.c.b16 %v2123, %v2121
    %v2600 = vpack.c.b16 %v2126, %v2124
    %v2601 = vpack.c.b16 %v2127, %v2125
    %v2602 = vpack.c.b16 %v2130, %v2128
    %v2603 = vpack.c.b16 %v2131, %v2129
    %v2604 = vpack.c.b16 %v2134, %v2132
    %v2605 = vpack.c.b16 %v2135, %v2133
    %v2606 = vpack.c.b16 %v2138, %v2136
    %v2607 = vpack.c.b16 %v2139, %v2137
    %v2608 = vpack.c.b16 %v2142, %v2140
    %v2609 = vpack.c.b16 %v2143, %v2141
    %v2610 = vpack.c.b16 %v2146, %v2144
    %v2611 = vpack.c.b16 %v2147, %v2145
    %v2612 = vpack.c.b16 %v2150, %v2148
    %v2613 = vpack.c.b16 %v2151, %v2149
    %v2614 = vpack.c.b16 %v2154, %v2152
    %v2615 = vpack.c.b16 %v2155, %v2153
    %v2616 = vpack.c.b16 %v2158, %v2156
    %v2617 = vpack.c.b16 %v2159, %v2157
    %v2618 = vpack.c.b16 %v2162, %v2160
    %v2619 = vpack.c.b16 %v2163, %v2161
    %v2620 = vpack.c.b16 %v2166, %v2164
    %v2621 = vpack.c.b16 %v2167, %v2165
    %v2622 = vpack.c.b16 %v2170, %v2168
    %v2623 = vpack.c.b16 %v2171, %v2169
    %v2624 = vpack.c.b16 %v2174, %v2172
    %v2625 = vpack.c.b16 %v2175, %v2173
    %v2626 = vpack.c.b16 %v2178, %v2176
    %v2627 = vpack.c.b16 %v2179, %v2177
    %v2628 = vpack.c.b16 %v2182, %v2180
    %v2629 = vpack.c.b16 %v2183, %v2181
    %v2630 = vpack.c.b16 %v2186, %v2184
    %v2631 = vpack.c.b16 %v2187, %v2185
    %v2632 = vpack.c.b16 %v2190, %v2188
    %v2633 = vpack.c.b16 %v2191, %v2189
    %v2634 = vpack.c.b16 %v2194, %v2192
    %v2635 = vpack.c.b16 %v2195, %v2193
    %v2636 = vpack.c.b16 %v2198, %v2196
    %v2637 = vpack.c.b16 %v2199, %v2197
    %v2638 = vpack.c.b16 %v2202, %v2200
    %v2639 = vpack.c.b16 %v2203, %v2201
    %v2640 = vpack.c.b16 %v2206, %v2204
    %v2641 = vpack.c.b16 %v2207, %v2205
    %v2642 = vpack.c.b16 %v2210, %v2208
    %v2643 = vpack.c.b16 %v2211, %v2209
    %v2644 = vpack.c.b16 %v2214, %v2212
    %v2645 = vpack.c.b16 %v2215, %v2213
    %v2646 = vpack.c.b16 %v2218, %v2216
    %v2647 = vpack.c.b16 %v2219, %v2217
    %v2648 = vpack.c.b16 %v2222, %v2220
    %v2649 = vpack.c.b16 %v2223, %v2221
    %v2650 = vpack.c.b16 %v2226, %v2224
    %v2651 = vpack.c.b16 %v2227, %v2225
    %v2652 = vpack.c.b16 %v2230, %v2228
    %v2653 = vpack.c.b16 %v2231, %v2229
    %v2654 = vpack.c.b16 %v2234, %v2232
    %v2655 = vpack.c.b16 %v2235, %v2233
    %v2656 = vpack.c.b16 %v2238, %v2236
    %v2657 = vpack.c.b16 %v2239, %v2237
    %v2658 = vpack.c.b16 %v2242, %v2240
    %v2659 = vpack.c.b16 %v2243, %v2241
    %v2660 = vpack.c.b16 %v2246, %v2244
    %v2661 = vpack.c.b16 %v2247, %v2245
    %v2662 = vpack.c.b16 %v2250, %v2248
    %v2663 = vpack.c.b16 %v2251, %v2249
    %v2664 = vpack.c.b16 %v2254, %v2252
    %v2665 = vpack.c.b16 %v2255, %v2253
    %v2666 = vpack.c.b16 %v2258, %v2256
    %v2667 = vpack.c.b16 %v2259, %v2257
    %v2668 = vpack.c.b16 %v2262, %v2260
    %v2669 = vpack.c.b16 %v2263, %v2261
    %v2670 = vpack.c.b16 %v2266, %v2264
    %v2671 = vpack.c.b16 %v2267, %v2265
    %v2672 = vpack.c.b16 %v2270, %v2268
    %v2673 = vpack.c.b16 %v2271, %v2269
    %v2674 = vpack.c.b16 %v2274, %v2272
    %v2675 = vpack.c.b16 %v2275, %v2273
    %v2676 = vpack.c.b16 %v2278, %v2276
    %v2677 = vpack.c.b16 %v2279, %v2277
    %v2678 = vpack.c.b16 %v2282, %v2280
    %v2679 = vpack.c.b16 %v2283, %v2281
    %v2680 = vpack.c.b16 %v2286, %v2284
    %v2681 = vpack.c.b16 %v2287, %v2285
    %v2682 = vpack.c.b16 %v2290, %v2288
    %v2683 = vpack.c.b16 %v2291, %v2289
    %v2684 = vpack.c.b16 %v2294, %v2292
    %v2685 = vpack.c.b16 %v2295, %v2293
    %v2686 = vpack.c.b16 %v2298, %v2296
    %v2687 = vpack.c.b16 %v2299, %v2297
    %v2688 = vpack.c.b16 %v2302, %v2300
    %v2689 = vpack.c.b16 %v2303, %v2301
    %v2690 = vpack.c.b16 %v2306, %v2304
    %v2691 = vpack.c.b16 %v2307, %v2305
    %v2692 = vpack.c.b16 %v2310, %v2308
    %v2693 = vpack.c.b16 %v2311, %v2309
    %v2694 = vpack.c.b16 %v2314, %v2312
    %v2695 = vpack.c.b16 %v2315, %v2313
    %v2696 = vpack.c.b16 %v2318, %v2316
    %v2697 = vpack.c.b16 %v2319, %v2317
    %v2698 = vpack.c.b16 %v2322, %v2320
    %v2699 = vpack.c.b16 %v2323, %v2321
    %v2700 = vpack.c.b16 %v2326, %v2324
    %v2701 = vpack.c.b16 %v2327, %v2325
    %v2702 = vpack.c.b16 %v2330, %v2328
    %v2703 = vpack.c.b16 %v2331, %v2329
    %v2704 = vpack.c.b16 %v2334, %v2332
    %v2705 = vpack.c.b16 %v2335, %v2333
    %v2706 = vpack.c.b16 %v2338, %v2336
    %v2707 = vpack.c.b16 %v2339, %v2337
    %v2708 = vpack.c.b16 %v2342, %v2340
    %v2709 = vpack.c.b16 %v2343, %v2341
    %v2710 = vpack.c.b16 %v2346, %v2344
    %v2711 = vpack.c.b16 %v2347, %v2345
    %v2712 = vpack.c.b16 %v2350, %v2348
    %v2713 = vpack.c.b16 %v2351, %v2349
    %v2714 = vpack.c.b16 %v2354, %v2352
    %v2715 = vpack.c.b16 %v2355, %v2353
    %v2716 = vpack.c.b16 %v2358, %v2356
    %v2717 = vpack.c.b16 %v2359, %v2357
    %v2718 = vpack.c.b16 %v2362, %v2360
    %v2719 = vpack.c.b16 %v2363, %v2361
    %v2720 = vpack.c.b16 %v2366, %v2364
    %v2721 = vpack.c.b16 %v2367, %v2365
    %v2722 = vpack.c.b16 %v2370, %v2368
    %v2723 = vpack.c.b16 %v2371, %v2369
    %v2724 = vpack.c.b16 %v2374, %v2372
    %v2725 = vpack.c.b16 %v2375, %v2373
    %v2726 = vpack.c.b16 %v2378, %v2376
    %v2727 = vpack.c.b16 %v2379, %v2377
    %v2728 = vpack.c.b16 %v2382, %v2380
    %v2729 = vpack.c.b16 %v2383, %v2381
    %v2730 = vpack.c.b16 %v2386, %v2384
    %v2731 = vpack.c.b16 %v2387, %v2385
    %v2732 = vpack.c.b16 %v2390, %v2388
    %v2733 = vpack.c.b16 %v2391, %v2389
    %v2734 = vpack.c.b16 %v2394, %v2392
    %v2735 = vpack.c.b16 %v2395, %v2393
    %v2736 = vpack.c.b16 %v2398, %v2396
    %v2737 = vpack.c.b16 %v2399, %v2397
    %v2738 = vpack.c.b16 %v2402, %v2400
    %v2739 = vpack.c.b16 %v2403, %v2401
    %v2740 = vpack.c.b16 %v2406, %v2404
    %v2741 = vpack.c.b16 %v2407, %v2405
    %v2742 = vpack.c.b16 %v2410, %v2408
    %v2743 = vpack.c.b16 %v2411, %v2409
    %v2744 = vpack.c.b16 %v2414, %v2412
    %v2745 = vpack.c.b16 %v2415, %v2413
    %v2746 = vpack.c.b16 %v2418, %v2416
    %v2747 = vpack.c.b16 %v2419, %v2417
    %v2748 = vpack.c.b16 %v2422, %v2420
    %v2749 = vpack.c.b16 %v2423, %v2421
    %v2750 = vpack.c.b16 %v2426, %v2424
    %v2751 = vpack.c.b16 %v2427, %v2425
    %v2752 = vpack.c.b16 %v2430, %v2428
    %v2753 = vpack.c.b16 %v2431, %v2429
    %v2754 = vpack.c.b16 %v2434, %v2432
    %v2755 = vpack.c.b16 %v2435, %v2433
    %v2756 = vpack.c.b16 %v2438, %v2436
    %v2757 = vpack.c.b16 %v2439, %v2437
    %v2758 = vpack.c.b16 %v2442, %v2440
    %v2759 = vpack.c.b16 %v2443, %v2441
    %v2760 = vpack.c.b16 %v2446, %v2444
    %v2761 = vpack.c.b16 %v2447, %v2445
    %v2762 = vpack.c.b16 %v2450, %v2448
    %v2763 = vpack.c.b16 %v2451, %v2449
    %v2764 = vpack.c.b16 %v2454, %v2452
    %v2765 = vpack.c.b16 %v2455, %v2453
    %v2766 = vpack.c.b16 %v2458, %v2456
    %v2767 = vpack.c.b16 %v2459, %v2457
    %v2768 = vpack.c.b16 %v2462, %v2460
    %v2769 = vpack.c.b16 %v2463, %v2461
    %v2770 = vpack.c.b16 %v2466, %v2464
    %v2771 = vpack.c.b16 %v2467, %v2465
    %v2772 = vpack.c.b16 %v2470, %v2468
    %v2773 = vpack.c.b16 %v2471, %v2469
    %v2774 = vpack.c.b16 %v2474, %v2472
    %v2775 = vpack.c.b16 %v2475, %v2473
    %v2776 = vpack.c.b16 %v2478, %v2476
    %v2777 = vpack.c.b16 %v2479, %v2477
    %v2778 = vpack.c.b16 %v2482, %v2480
    %v2779 = vpack.c.b16 %v2483, %v2481
    %v2780 = vpack.c.b16 %v2486, %v2484
    %v2781 = vpack.c.b16 %v2487, %v2485
    %v2782 = vpack.c.b16 %v2490, %v2488
    %v2783 = vpack.c.b16 %v2491, %v2489
    %v2784 = vpack.c.b16 %v2494, %v2492
    %v2785 = vpack.c.b16 %v2495, %v2493
    %v2786 = vpack.c.b16 %v2498, %v2496
    %v2787 = vpack.c.b16 %v2499, %v2497
    %3076 = vmatprep.subr.bf16.mxu0 %v2501
    %3077 = vmatpush1.bf16.msra.mxu0 %v2500
    %3078 = vmatprep.subr.bf16.mxu0 %v2503
    %3079 = vmatpush1.bf16.msra.mxu0 %v2502
    %3080 = vmatprep.subr.bf16.mxu0 %v2505
    %3081 = vmatpush1.bf16.msra.mxu0 %v2504
    %3082 = vmatprep.subr.bf16.mxu0 %v2507
    %3083 = vmatpush1.bf16.msra.mxu0 %v2506
    %3084 = vmatprep.subr.bf16.mxu0 %v2509
    %3085 = vmatpush1.bf16.msra.mxu0 %v2508
    %3086 = vmatprep.subr.bf16.mxu0 %v2511
    %3087 = vmatpush1.bf16.msra.mxu0 %v2510
    %3088 = vmatprep.subr.bf16.mxu0 %v2513
    %3089 = vmatpush1.bf16.msra.mxu0 %v2512
    %3090 = vmatprep.subr.bf16.mxu0 %v2515
    %3091 = vmatpush1.bf16.msra.mxu0 %v2514
    %3092 = vmatprep.subr.bf16.mxu0 %v2517
    %3093 = vmatpush1.bf16.msra.mxu0 %v2516
    %3094 = vmatprep.subr.bf16.mxu0 %v2519
    %3095 = vmatpush1.bf16.msra.mxu0 %v2518
    %3096 = vmatprep.subr.bf16.mxu0 %v2521
    %3097 = vmatpush1.bf16.msra.mxu0 %v2520
    %3098 = vmatprep.subr.bf16.mxu0 %v2523
    %3099 = vmatpush1.bf16.msra.mxu0 %v2522
    %3100 = vmatprep.subr.bf16.mxu0 %v2525
    %3101 = vmatpush1.bf16.msra.mxu0 %v2524
    %3102 = vmatprep.subr.bf16.mxu0 %v2527
    %3103 = vmatpush1.bf16.msra.mxu0 %v2526
    %3104 = vmatprep.subr.bf16.mxu0 %v2529
    %3105 = vmatpush1.bf16.msra.mxu0 %v2528
    %3106 = vmatprep.subr.bf16.mxu0 %v2531
    %3107 = vmatpush1.bf16.msra.mxu0 %v2530
    %3108 = vmatprep.mubr.bf16.mxu0 %v1191
    %3109 = vmatmul.mubr.bf16.gmra.mrb[0].mxu0 %v1190
    %v3110 = vpop.f32.mrb[0].mxu0
    %v3111 = vadd.f32 %v1629, %v3110
    %v3112 = vpop.f32.mrb[0].mxu0
    %v3113 = vadd.f32 %v1633, %v3112
    %v3114 = vpop.f32.mrb[0].mxu0
    %v3115 = vadd.f32 %v1629, %v3114
    %v3116 = vpop.f32.mrb[0].mxu0
    %v3117 = vadd.f32 %v1633, %v3116
    %3118 = vmatprep.mubr.bf16.mxu0 %v1194
    %3119 = vmatmul.mubr.bf16.gmra.mrb[0].mxu0 %v1193
    %v3120 = vpop.f32.mrb[0].mxu0
    %v3121 = vadd.f32 %v1629, %v3120
    %v3122 = vpop.f32.mrb[0].mxu0
    %v3123 = vadd.f32 %v1633, %v3122
    %v3124 = vpop.f32.mrb[0].mxu0
    %v3125 = vpop.f32.mrb[0].mxu0
    %3126 = vdwg.mxu0
    %3127 = vmatprep.subr.bf16.mxu0 %v2533
    %3128 = vmatpush1.bf16.msra.mxu0 %v2532
    %3129 = vmatprep.subr.bf16.mxu0 %v2535
    %3130 = vmatpush1.bf16.msra.mxu0 %v2534
    %3131 = vmatprep.subr.bf16.mxu0 %v2537
    %3132 = vmatpush1.bf16.msra.mxu0 %v2536
    %3133 = vmatprep.subr.bf16.mxu0 %v2539
    %3134 = vmatpush1.bf16.msra.mxu0 %v2538
    %3135 = vmatprep.subr.bf16.mxu0 %v2541
    %3136 = vmatpush1.bf16.msra.mxu0 %v2540
    %3137 = vmatprep.subr.bf16.mxu0 %v2543
    %3138 = vmatpush1.bf16.msra.mxu0 %v2542
    %3139 = vmatprep.subr.bf16.mxu0 %v2545
    %3140 = vmatpush1.bf16.msra.mxu0 %v2544
    %3141 = vmatprep.subr.bf16.mxu0 %v2547
    %3142 = vmatpush1.bf16.msra.mxu0 %v2546
    %3143 = vmatprep.subr.bf16.mxu0 %v2549
    %3144 = vmatpush1.bf16.msra.mxu0 %v2548
    %3145 = vmatprep.subr.bf16.mxu0 %v2551
    %3146 = vmatpush1.bf16.msra.mxu0 %v2550
    %3147 = vmatprep.subr.bf16.mxu0 %v2553
    %3148 = vmatpush1.bf16.msra.mxu0 %v2552
    %3149 = vmatprep.subr.bf16.mxu0 %v2555
    %3150 = vmatpush1.bf16.msra.mxu0 %v2554
    %3151 = vmatprep.subr.bf16.mxu0 %v2557
    %3152 = vmatpush1.bf16.msra.mxu0 %v2556
    %3153 = vmatprep.subr.bf16.mxu0 %v2559
    %3154 = vmatpush1.bf16.msra.mxu0 %v2558
    %3155 = vmatprep.subr.bf16.mxu0 %v2561
    %3156 = vmatpush1.bf16.msra.mxu0 %v2560
    %3157 = vmatprep.subr.bf16.mxu0 %v2563
    %3158 = vmatpush1.bf16.msra.mxu0 %v2562
    %3159 = vmatprep.mubr.bf16.mxu0 %v1235
    %3160 = vmatmul.mubr.bf16.gmra.mrb[0].mxu0 %v1192
    %v3161 = vpop.f32.mrb[0].mxu0
    %v3162 = vadd.f32 %v3111, %v3161
    %v3163 = vpop.f32.mrb[0].mxu0
    %v3164 = vadd.f32 %v3113, %v3163
    %v3165 = vpop.f32.mrb[0].mxu0
    %v3166 = vadd.f32 %v3115, %v3165
    %v3167 = vpop.f32.mrb[0].mxu0
    %v3168 = vadd.f32 %v3117, %v3167
    %3169 = vmatprep.mubr.bf16.mxu0 %v1234
    %3170 = vmatmul.mubr.bf16.gmra.mrb[0].mxu0 %v1195
    %v3171 = vpop.f32.mrb[0].mxu0
    %v3172 = vadd.f32 %v3121, %v3171
    %v3173 = vpop.f32.mrb[0].mxu0
    %v3174 = vadd.f32 %v3123, %v3173
    %v3175 = vpop.f32.mrb[0].mxu0
    %v3176 = vpop.f32.mrb[0].mxu0
    %3177 = vdwg.mxu0
    %3178 = vmatprep.subr.bf16.mxu0 %v2565
    %3179 = vmatpush1.bf16.msra.mxu0 %v2564
    %3180 = vmatprep.subr.bf16.mxu0 %v2567
    %3181 = vmatpush1.bf16.msra.mxu0 %v2566
    %3182 = vmatprep.subr.bf16.mxu0 %v2569
    %3183 = vmatpush1.bf16.msra.mxu0 %v2568
    %3184 = vmatprep.subr.bf16.mxu0 %v2571
    %3185 = vmatpush1.bf16.msra.mxu0 %v2570
    %3186 = vmatprep.subr.bf16.mxu0 %v2573
    %3187 = vmatpush1.bf16.msra.mxu0 %v2572
    %3188 = vmatprep.subr.bf16.mxu0 %v2575
    %3189 = vmatpush1.bf16.msra.mxu0 %v2574
    %3190 = vmatprep.subr.bf16.mxu0 %v2577
    %3191 = vmatpush1.bf16.msra.mxu0 %v2576
    %3192 = vmatprep.subr.bf16.mxu0 %v2579
    %3193 = vmatpush1.bf16.msra.mxu0 %v2578
    %3194 = vmatprep.subr.bf16.mxu0 %v2581
    %3195 = vmatpush1.bf16.msra.mxu0 %v2580
    %3196 = vmatprep.subr.bf16.mxu0 %v2583
    %3197 = vmatpush1.bf16.msra.mxu0 %v2582
    %3198 = vmatprep.subr.bf16.mxu0 %v2585
    %3199 = vmatpush1.bf16.msra.mxu0 %v2584
    %3200 = vmatprep.subr.bf16.mxu0 %v2587
    %3201 = vmatpush1.bf16.msra.mxu0 %v2586
    %3202 = vmatprep.subr.bf16.mxu0 %v2589
    %3203 = vmatpush1.bf16.msra.mxu0 %v2588
    %3204 = vmatprep.subr.bf16.mxu0 %v2591
    %3205 = vmatpush1.bf16.msra.mxu0 %v2590
    %3206 = vmatprep.subr.bf16.mxu0 %v2593
    %3207 = vmatpush1.bf16.msra.mxu0 %v2592
    %3208 = vmatprep.subr.bf16.mxu0 %v2595
    %3209 = vmatpush1.bf16.msra.mxu0 %v2594
    %3210 = vmatprep.mubr.bf16.mxu0 %v1241
    %3211 = vmatmul.mubr.bf16.gmra.mrb[0].mxu0 %v1238
    %v3212 = vpop.f32.mrb[0].mxu0
    %v3213 = vadd.f32 %v3162, %v3212
    %v3214 = vpop.f32.mrb[0].mxu0
    %v3215 = vadd.f32 %v3164, %v3214
    %v3216 = vpop.f32.mrb[0].mxu0
    %v3217 = vadd.f32 %v3166, %v3216
    %v3218 = vpop.f32.mrb[0].mxu0
    %v3219 = vadd.f32 %v3168, %v3218
    %3220 = vmatprep.mubr.bf16.mxu0 %v1240
    %3221 = vmatmul.mubr.bf16.gmra.mrb[0].mxu0 %v1237
    %v3222 = vpop.f32.mrb[0].mxu0
    %v3223 = vadd.f32 %v3172, %v3222
    %v3224 = vpop.f32.mrb[0].mxu0
    %v3225 = vadd.f32 %v3174, %v3224
    %v3226 = vpop.f32.mrb[0].mxu0
    %v3227 = vpop.f32.mrb[0].mxu0
    %3228 = vdwg.mxu0
    %3229 = vmatprep.subr.bf16.mxu0 %v2597
    %3230 = vmatpush1.bf16.msra.mxu0 %v2596
    %3231 = vmatprep.subr.bf16.mxu0 %v2599
    %3232 = vmatpush1.bf16.msra.mxu0 %v2598
    %3233 = vmatprep.subr.bf16.mxu0 %v2601
    %3234 = vmatpush1.bf16.msra.mxu0 %v2600
    %3235 = vmatprep.subr.bf16.mxu0 %v2603
    %3236 = vmatpush1.bf16.msra.mxu0 %v2602
    %3237 = vmatprep.subr.bf16.mxu0 %v2605
    %3238 = vmatpush1.bf16.msra.mxu0 %v2604
    %3239 = vmatprep.subr.bf16.mxu0 %v2607
    %3240 = vmatpush1.bf16.msra.mxu0 %v2606
    %3241 = vmatprep.subr.bf16.mxu0 %v2609
    %3242 = vmatpush1.bf16.msra.mxu0 %v2608
    %3243 = vmatprep.subr.bf16.mxu0 %v2611
    %3244 = vmatpush1.bf16.msra.mxu0 %v2610
    %3245 = vmatprep.subr.bf16.mxu0 %v2613
    %3246 = vmatpush1.bf16.msra.mxu0 %v2612
    %3247 = vmatprep.subr.bf16.mxu0 %v2615
    %3248 = vmatpush1.bf16.msra.mxu0 %v2614
    %3249 = vmatprep.subr.bf16.mxu0 %v2617
    %3250 = vmatpush1.bf16.msra.mxu0 %v2616
    %3251 = vmatprep.subr.bf16.mxu0 %v2619
    %3252 = vmatpush1.bf16.msra.mxu0 %v2618
    %3253 = vmatprep.subr.bf16.mxu0 %v2621
    %3254 = vmatpush1.bf16.msra.mxu0 %v2620
    %3255 = vmatprep.subr.bf16.mxu0 %v2623
    %3256 = vmatpush1.bf16.msra.mxu0 %v2622
    %3257 = vmatprep.subr.bf16.mxu0 %v2625
    %3258 = vmatpush1.bf16.msra.mxu0 %v2624
    %3259 = vmatprep.subr.bf16.mxu0 %v2627
    %3260 = vmatpush1.bf16.msra.mxu0 %v2626
    %3261 = vmatprep.mubr.bf16.mxu0 %v1260
    %3262 = vmatmul.mubr.bf16.gmra.mrb[0].mxu0 %v1257
    %v3263 = vpop.f32.mrb[0].mxu0
    %v3264 = vadd.f32 %v3213, %v3263
    %v3265 = vpop.f32.mrb[0].mxu0
    %v3266 = vadd.f32 %v3215, %v3265
    %v3267 = vpop.f32.mrb[0].mxu0
    %v3268 = vadd.f32 %v3217, %v3267
    %v3269 = vpop.f32.mrb[0].mxu0
    %v3270 = vadd.f32 %v3219, %v3269
    %3271 = vmatprep.mubr.bf16.mxu0 %v1259
    %3272 = vmatmul.mubr.bf16.gmra.mrb[0].mxu0 %v1256
    %v3273 = vpop.f32.mrb[0].mxu0
    %v3274 = vadd.f32 %v3223, %v3273
    %v3275 = vpop.f32.mrb[0].mxu0
    %v3276 = vadd.f32 %v3225, %v3275
    %v3277 = vpop.f32.mrb[0].mxu0
    %v3278 = vpop.f32.mrb[0].mxu0
    %3279 = vdwg.mxu0
    %3280 = vmatprep.subr.bf16.mxu0 %v2629
    %3281 = vmatpush1.bf16.msra.mxu0 %v2628
    %3282 = vmatprep.subr.bf16.mxu0 %v2631
    %3283 = vmatpush1.bf16.msra.mxu0 %v2630
    %3284 = vmatprep.subr.bf16.mxu0 %v2633
    %3285 = vmatpush1.bf16.msra.mxu0 %v2632
    %3286 = vmatprep.subr.bf16.mxu0 %v2635
    %3287 = vmatpush1.bf16.msra.mxu0 %v2634
    %3288 = vmatprep.subr.bf16.mxu0 %v2637
    %3289 = vmatpush1.bf16.msra.mxu0 %v2636
    %3290 = vmatprep.subr.bf16.mxu0 %v2639
    %3291 = vmatpush1.bf16.msra.mxu0 %v2638
    %3292 = vmatprep.subr.bf16.mxu0 %v2641
    %3293 = vmatpush1.bf16.msra.mxu0 %v2640
    %3294 = vmatprep.subr.bf16.mxu0 %v2643
    %3295 = vmatpush1.bf16.msra.mxu0 %v2642
    %3296 = vmatprep.subr.bf16.mxu0 %v2645
    %3297 = vmatpush1.bf16.msra.mxu0 %v2644
    %3298 = vmatprep.subr.bf16.mxu0 %v2647
    %3299 = vmatpush1.bf16.msra.mxu0 %v2646
    %3300 = vmatprep.subr.bf16.mxu0 %v2649
    %3301 = vmatpush1.bf16.msra.mxu0 %v2648
    %3302 = vmatprep.subr.bf16.mxu0 %v2651
    %3303 = vmatpush1.bf16.msra.mxu0 %v2650
    %3304 = vmatprep.subr.bf16.mxu0 %v2653
    %3305 = vmatpush1.bf16.msra.mxu0 %v2652
    %3306 = vmatprep.subr.bf16.mxu0 %v2655
    %3307 = vmatpush1.bf16.msra.mxu0 %v2654
    %3308 = vmatprep.subr.bf16.mxu0 %v2657
    %3309 = vmatpush1.bf16.msra.mxu0 %v2656
    %3310 = vmatprep.subr.bf16.mxu0 %v2659
    %3311 = vmatpush1.bf16.msra.mxu0 %v2658
    %3312 = vmatprep.mubr.bf16.mxu0 %v1279
    %3313 = vmatmul.mubr.bf16.gmra.mrb[0].mxu0 %v1263
    %v3314 = vpop.f32.mrb[0].mxu0
    %v3315 = vadd.f32 %v3264, %v3314
    %v3316 = vpop.f32.mrb[0].mxu0
    %v3317 = vadd.f32 %v3266, %v3316
    %v3318 = vpop.f32.mrb[0].mxu0
    %v3319 = vadd.f32 %v3268, %v3318
    %v3320 = vpop.f32.mrb[0].mxu0
    %v3321 = vadd.f32 %v3270, %v3320
    %3322 = vmatprep.mubr.bf16.mxu0 %v1278
    %3323 = vmatmul.mubr.bf16.gmra.mrb[0].mxu0 %v1262
    %v3324 = vpop.f32.mrb[0].mxu0
    %v3325 = vadd.f32 %v3274, %v3324
    %v3326 = vpop.f32.mrb[0].mxu0
    %v3327 = vadd.f32 %v3276, %v3326
    %v3328 = vpop.f32.mrb[0].mxu0
    %v3329 = vpop.f32.mrb[0].mxu0
    %3330 = vdwg.mxu0
    %3331 = vmatprep.subr.bf16.mxu0 %v2661
    %3332 = vmatpush1.bf16.msra.mxu0 %v2660
    %3333 = vmatprep.subr.bf16.mxu0 %v2663
    %3334 = vmatpush1.bf16.msra.mxu0 %v2662
    %3335 = vmatprep.subr.bf16.mxu0 %v2665
    %3336 = vmatpush1.bf16.msra.mxu0 %v2664
    %3337 = vmatprep.subr.bf16.mxu0 %v2667
    %3338 = vmatpush1.bf16.msra.mxu0 %v2666
    %3339 = vmatprep.subr.bf16.mxu0 %v2669
    %3340 = vmatpush1.bf16.msra.mxu0 %v2668
    %3341 = vmatprep.subr.bf16.mxu0 %v2671
    %3342 = vmatpush1.bf16.msra.mxu0 %v2670
    %3343 = vmatprep.subr.bf16.mxu0 %v2673
    %3344 = vmatpush1.bf16.msra.mxu0 %v2672
    %3345 = vmatprep.subr.bf16.mxu0 %v2675
    %3346 = vmatpush1.bf16.msra.mxu0 %v2674
    %3347 = vmatprep.subr.bf16.mxu0 %v2677
    %3348 = vmatpush1.bf16.msra.mxu0 %v2676
    %3349 = vmatprep.subr.bf16.mxu0 %v2679
    %3350 = vmatpush1.bf16.msra.mxu0 %v2678
    %3351 = vmatprep.subr.bf16.mxu0 %v2681
    %3352 = vmatpush1.bf16.msra.mxu0 %v2680
    %3353 = vmatprep.subr.bf16.mxu0 %v2683
    %3354 = vmatpush1.bf16.msra.mxu0 %v2682
    %3355 = vmatprep.subr.bf16.mxu0 %v2685
    %3356 = vmatpush1.bf16.msra.mxu0 %v2684
    %3357 = vmatprep.subr.bf16.mxu0 %v2687
    %3358 = vmatpush1.bf16.msra.mxu0 %v2686
    %3359 = vmatprep.subr.bf16.mxu0 %v2689
    %3360 = vmatpush1.bf16.msra.mxu0 %v2688
    %3361 = vmatprep.subr.bf16.mxu0 %v2691
    %3362 = vmatpush1.bf16.msra.mxu0 %v2690
    %3363 = vmatprep.mubr.bf16.mxu0 %v1285
    %3364 = vmatmul.mubr.bf16.gmra.mrb[0].mxu0 %v1282
    %v3365 = vpop.f32.mrb[0].mxu0
    %v3366 = vadd.f32 %v3315, %v3365
    %v3367 = vpop.f32.mrb[0].mxu0
    %v3368 = vadd.f32 %v3317, %v3367
    %v3369 = vpop.f32.mrb[0].mxu0
    %v3370 = vadd.f32 %v3319, %v3369
    %v3371 = vpop.f32.mrb[0].mxu0
    %v3372 = vadd.f32 %v3321, %v3371
    %3373 = vmatprep.mubr.bf16.mxu0 %v1284
    %3374 = vmatmul.mubr.bf16.gmra.mrb[0].mxu0 %v1281
    %v3375 = vpop.f32.mrb[0].mxu0
    %v3376 = vadd.f32 %v3325, %v3375
    %v3377 = vpop.f32.mrb[0].mxu0
    %v3378 = vadd.f32 %v3327, %v3377
    %v3379 = vpop.f32.mrb[0].mxu0
    %v3380 = vpop.f32.mrb[0].mxu0
    %3381 = vdwg.mxu0
    %3382 = vmatprep.subr.bf16.mxu0 %v2693
    %3383 = vmatpush1.bf16.msra.mxu0 %v2692
    %3384 = vmatprep.subr.bf16.mxu0 %v2695
    %3385 = vmatpush1.bf16.msra.mxu0 %v2694
    %3386 = vmatprep.subr.bf16.mxu0 %v2697
    %3387 = vmatpush1.bf16.msra.mxu0 %v2696
    %3388 = vmatprep.subr.bf16.mxu0 %v2699
    %3389 = vmatpush1.bf16.msra.mxu0 %v2698
    %3390 = vmatprep.subr.bf16.mxu0 %v2701
    %3391 = vmatpush1.bf16.msra.mxu0 %v2700
    %3392 = vmatprep.subr.bf16.mxu0 %v2703
    %3393 = vmatpush1.bf16.msra.mxu0 %v2702
    %3394 = vmatprep.subr.bf16.mxu0 %v2705
    %3395 = vmatpush1.bf16.msra.mxu0 %v2704
    %3396 = vmatprep.subr.bf16.mxu0 %v2707
    %3397 = vmatpush1.bf16.msra.mxu0 %v2706
    %3398 = vmatprep.subr.bf16.mxu0 %v2709
    %3399 = vmatpush1.bf16.msra.mxu0 %v2708
    %3400 = vmatprep.subr.bf16.mxu0 %v2711
    %3401 = vmatpush1.bf16.msra.mxu0 %v2710
    %3402 = vmatprep.subr.bf16.mxu0 %v2713
    %3403 = vmatpush1.bf16.msra.mxu0 %v2712
    %3404 = vmatprep.subr.bf16.mxu0 %v2715
    %3405 = vmatpush1.bf16.msra.mxu0 %v2714
    %3406 = vmatprep.subr.bf16.mxu0 %v2717
    %3407 = vmatpush1.bf16.msra.mxu0 %v2716
    %3408 = vmatprep.subr.bf16.mxu0 %v2719
    %3409 = vmatpush1.bf16.msra.mxu0 %v2718
    %3410 = vmatprep.subr.bf16.mxu0 %v2721
    %3411 = vmatpush1.bf16.msra.mxu0 %v2720
    %3412 = vmatprep.subr.bf16.mxu0 %v2723
    %3413 = vmatpush1.bf16.msra.mxu0 %v2722
    %3414 = vmatprep.mubr.bf16.mxu0 %v1304
    %3415 = vmatmul.mubr.bf16.gmra.mrb[0].mxu0 %v1301
    %v3416 = vpop.f32.mrb[0].mxu0
    %v3417 = vadd.f32 %v3366, %v3416
    %v3418 = vpop.f32.mrb[0].mxu0
    %v3419 = vadd.f32 %v3368, %v3418
    %v3420 = vpop.f32.mrb[0].mxu0
    %v3421 = vadd.f32 %v3370, %v3420
    %v3422 = vpop.f32.mrb[0].mxu0
    %v3423 = vadd.f32 %v3372, %v3422
    %3424 = vmatprep.mubr.bf16.mxu0 %v1303
    %3425 = vmatmul.mubr.bf16.gmra.mrb[0].mxu0 %v1300
    %v3426 = vpop.f32.mrb[0].mxu0
    %v3427 = vadd.f32 %v3376, %v3426
    %v3428 = vpop.f32.mrb[0].mxu0
    %v3429 = vadd.f32 %v3378, %v3428
    %v3430 = vpop.f32.mrb[0].mxu0
    %v3431 = vpop.f32.mrb[0].mxu0
    %3432 = vdwg.mxu0
    %3433 = vmatprep.subr.bf16.mxu0 %v2725
    %3434 = vmatpush1.bf16.msra.mxu0 %v2724
    %3435 = vmatprep.subr.bf16.mxu0 %v2727
    %3436 = vmatpush1.bf16.msra.mxu0 %v2726
    %3437 = vmatprep.subr.bf16.mxu0 %v2729
    %3438 = vmatpush1.bf16.msra.mxu0 %v2728
    %3439 = vmatprep.subr.bf16.mxu0 %v2731
    %3440 = vmatpush1.bf16.msra.mxu0 %v2730
    %3441 = vmatprep.subr.bf16.mxu0 %v2733
    %3442 = vmatpush1.bf16.msra.mxu0 %v2732
    %3443 = vmatprep.subr.bf16.mxu0 %v2735
    %3444 = vmatpush1.bf16.msra.mxu0 %v2734
    %3445 = vmatprep.subr.bf16.mxu0 %v2737
    %3446 = vmatpush1.bf16.msra.mxu0 %v2736
    %3447 = vmatprep.subr.bf16.mxu0 %v2739
    %3448 = vmatpush1.bf16.msra.mxu0 %v2738
    %3449 = vmatprep.subr.bf16.mxu0 %v2741
    %3450 = vmatpush1.bf16.msra.mxu0 %v2740
    %3451 = vmatprep.subr.bf16.mxu0 %v2743
    %3452 = vmatpush1.bf16.msra.mxu0 %v2742
    %3453 = vmatprep.subr.bf16.mxu0 %v2745
    %3454 = vmatpush1.bf16.msra.mxu0 %v2744
    %3455 = vmatprep.subr.bf16.mxu0 %v2747
    %3456 = vmatpush1.bf16.msra.mxu0 %v2746
    %3457 = vmatprep.subr.bf16.mxu0 %v2749
    %3458 = vmatpush1.bf16.msra.mxu0 %v2748
    %3459 = vmatprep.subr.bf16.mxu0 %v2751
    %3460 = vmatpush1.bf16.msra.mxu0 %v2750
    %3461 = vmatprep.subr.bf16.mxu0 %v2753
    %3462 = vmatpush1.bf16.msra.mxu0 %v2752
    %3463 = vmatprep.subr.bf16.mxu0 %v2755
    %3464 = vmatpush1.bf16.msra.mxu0 %v2754
    %3465 = vmatprep.mubr.bf16.mxu0 %v1323
    %3466 = vmatmul.mubr.bf16.gmra.mrb[0].mxu0 %v1307
    %v3467 = vpop.f32.mrb[0].mxu0
    %v3468 = vadd.f32 %v3417, %v3467
    %v3469 = vpop.f32.mrb[0].mxu0
    %v3470 = vadd.f32 %v3419, %v3469
    %v3471 = vpop.f32.mrb[0].mxu0
    %v3472 = vadd.f32 %v3421, %v3471
    %v3473 = vpop.f32.mrb[0].mxu0
    %v3474 = vadd.f32 %v3423, %v3473
    %3475 = vmatprep.mubr.bf16.mxu0 %v1322
    %3476 = vmatmul.mubr.bf16.gmra.mrb[0].mxu0 %v1306
    %v3477 = vpop.f32.mrb[0].mxu0
    %v3478 = vadd.f32 %v3427, %v3477
    %v3479 = vpop.f32.mrb[0].mxu0
    %v3480 = vadd.f32 %v3429, %v3479
    %v3481 = vpop.f32.mrb[0].mxu0
    %v3482 = vpop.f32.mrb[0].mxu0
    %3483 = vdwg.mxu0
    %3484 = vmatprep.subr.bf16.mxu0 %v2757
    %3485 = vmatpush1.bf16.msra.mxu0 %v2756
    %3486 = vmatprep.subr.bf16.mxu0 %v2759
    %3487 = vmatpush1.bf16.msra.mxu0 %v2758
    %3488 = vmatprep.subr.bf16.mxu0 %v2761
    %3489 = vmatpush1.bf16.msra.mxu0 %v2760
    %3490 = vmatprep.subr.bf16.mxu0 %v2763
    %3491 = vmatpush1.bf16.msra.mxu0 %v2762
    %3492 = vmatprep.subr.bf16.mxu0 %v2765
    %3493 = vmatpush1.bf16.msra.mxu0 %v2764
    %3494 = vmatprep.subr.bf16.mxu0 %v2767
    %3495 = vmatpush1.bf16.msra.mxu0 %v2766
    %3496 = vmatprep.subr.bf16.mxu0 %v2769
    %3497 = vmatpush1.bf16.msra.mxu0 %v2768
    %3498 = vmatprep.subr.bf16.mxu0 %v2771
    %3499 = vmatpush1.bf16.msra.mxu0 %v2770
    %3500 = vmatprep.subr.bf16.mxu0 %v2773
    %3501 = vmatpush1.bf16.msra.mxu0 %v2772
    %3502 = vmatprep.subr.bf16.mxu0 %v2775
    %3503 = vmatpush1.bf16.msra.mxu0 %v2774
    %3504 = vmatprep.subr.bf16.mxu0 %v2777
    %3505 = vmatpush1.bf16.msra.mxu0 %v2776
    %3506 = vmatprep.subr.bf16.mxu0 %v2779
    %3507 = vmatpush1.bf16.msra.mxu0 %v2778
    %3508 = vmatprep.subr.bf16.mxu0 %v2781
    %3509 = vmatpush1.bf16.msra.mxu0 %v2780
    %3510 = vmatprep.subr.bf16.mxu0 %v2783
    %3511 = vmatpush1.bf16.msra.mxu0 %v2782
    %3512 = vmatprep.subr.bf16.mxu0 %v2785
    %3513 = vmatpush1.bf16.msra.mxu0 %v2784
    %3514 = vmatprep.subr.bf16.mxu0 %v2787
    %3515 = vmatpush1.bf16.msra.mxu0 %v2786
    %3516 = vmatprep.mubr.bf16.mxu0 %v1329
    %3517 = vmatmul.mubr.bf16.gmra.mrb[0].mxu0 %v1326
    %v3518 = vpop.f32.mrb[0].mxu0
    %v3519 = vadd.f32 %v3468, %v3518
    %v3520 = vpop.f32.mrb[0].mxu0
    %v3521 = vadd.f32 %v3470, %v3520
    %v3522 = vpop.f32.mrb[0].mxu0
    %v3523 = vadd.f32 %v3472, %v3522
    %v3524 = vpop.f32.mrb[0].mxu0
    %v3525 = vadd.f32 %v3474, %v3524
    %3526 = vmatprep.mubr.bf16.mxu0 %v1328
    %3527 = vmatmul.mubr.bf16.gmra.mrb[0].mxu0 %v1325
    %v3528 = vpop.f32.mrb[0].mxu0
    %v3529 = vadd.f32 %v3478, %v3528
    %v3530 = vpop.f32.mrb[0].mxu0
    %v3531 = vadd.f32 %v3480, %v3530
    %v3532 = vpop.f32.mrb[0].mxu0
    %v3533 = vpop.f32.mrb[0].mxu0
    %3534 = vdwg.mxu0
    %v3535 = vadd.f32 %v3519, %v3523
    %vm3536 = vcmask 1045504
    %v3537 = vsel %vm3536, %v3529, 0.0
    %v3538 = vadd.f32 %v3535, %v3537
    %v3539 = vrot.slane %v3538, 4
    %v3540 = vadd.f32 %v3538, %v3539
    %v3541 = vrot.slane %v3540, 2
    %v3542 = vadd.f32 %v3540, %v3541
    %v3543 = vrot.slane %v3542, 1
    %v3544 = vadd.f32 %v3542, %v3543
    %v3545 = vadd.f32 %v3521, %v3525
    %v3546 = vsel %vm3536, %v3531, 0.0
    %v3547 = vadd.f32 %v3545, %v3546
    %v3548 = vrot.slane %v3547, 4
    %v3549 = vadd.f32 %v3547, %v3548
    %v3550 = vrot.slane %v3549, 2
    %v3551 = vadd.f32 %v3549, %v3550
    %v3552 = vrot.slane %v3551, 1
    %v3553 = vadd.f32 %v3551, %v3552
    %v3554 = vrcp.pop 22.0
    %v3555 = vmul.f32 %v3544, %v3554
    %v3556 = vmul.f32 %v3553, %v3554
    %v3557 = vsub.f32 %v3519, %v3555
    %v3558 = vsub.f32 %v3521, %v3556
    %v3559 = vsub.f32 %v3523, %v3555
    %v3560 = vsub.f32 %v3525, %v3556
    %v3561 = vsub.f32 %v3529, %v3555
    %v3562 = vsub.f32 %v3531, %v3556
    %v3563 = vmul.f32 %v3557, %v3557
    %v3564 = vmul.f32 %v3558, %v3558
    %v3565 = vmul.f32 %v3559, %v3559
    %v3566 = vmul.f32 %v3560, %v3560
    %v3567 = vmul.f32 %v3561, %v3561
    %v3568 = vmul.f32 %v3562, %v3562
    %v3569 = vadd.f32 %v3563, %v3565
    %v3570 = vsel %vm3536, %v3567, 0.0
    %v3571 = vadd.f32 %v3569, %v3570
    %v3572 = vrot.slane %v3571, 4
    %v3573 = vadd.f32 %v3571, %v3572
    %v3574 = vrot.slane %v3573, 2
    %v3575 = vadd.f32 %v3573, %v3574
    %v3576 = vrot.slane %v3575, 1
    %v3577 = vadd.f32 %v3575, %v3576
    %v3578 = vadd.f32 %v3564, %v3566
    %v3579 = vsel %vm3536, %v3568, 0.0
    %v3580 = vadd.f32 %v3578, %v3579
    %v3581 = vrot.slane %v3580, 4
    %v3582 = vadd.f32 %v3580, %v3581
    %v3583 = vrot.slane %v3582, 2
    %v3584 = vadd.f32 %v3582, %v3583
    %v3585 = vrot.slane %v3584, 1
    %v3586 = vadd.f32 %v3584, %v3585
    %v3587 = vmul.f32 %v3577, %v3554
    %v3588 = vmul.f32 %v3586, %v3554
    %v3589 = vadd.f32 %v3587, 1e-05
    %v3590 = vadd.f32 %v3588, 1e-05
    %v3591 = vrsqrt.pop %v3589
    %v3592 = vrsqrt.pop %v3590
    %v3593 = vmul.f32 %v3557, %v3591
    %v3594 = vmul.f32 %v3558, %v3592
    %v3595 = vmul.f32 %v3559, %v3591
    %v3596 = vmul.f32 %v3560, %v3592
    %v3597 = vmul.f32 %v3561, %v3591
    %v3598 = vmul.f32 %v3562, %v3592
    %v3599 = vld [vmem:[#allocation16] sm:$0x3]
    %v3601 = vlaneseq
    %v3602 = vshrl.u32 %v3601, 7
    %v3603 = vsub.s32 0, %v3602
    %v3604 = vrot.slane %v3599, %v3603
    %v3605 = vlaneseq
    %v3606 = vshrl.u32 %v3605, 7
    %v3607 = vsub.s32 1, %v3606
    %v3608 = vrot.slane %v3599, %v3607
    %v3611 = vmul.f32 %v3593, %v3604
    %v3612 = vmul.f32 %v3594, %v3608
    %v3613 = vmul.f32 %v3595, %v3604
    %v3614 = vmul.f32 %v3596, %v3608
    %v3615 = vmul.f32 %v3597, %v3604
    %v3616 = vmul.f32 %v3598, %v3608
    %v3617 = vld [vmem:[#allocation18] sm:$0x3]
    %v3619 = vlaneseq
    %v3620 = vshrl.u32 %v3619, 7
    %v3621 = vsub.s32 0, %v3620
    %v3622 = vrot.slane %v3617, %v3621
    %v3623 = vlaneseq
    %v3624 = vshrl.u32 %v3623, 7
    %v3625 = vsub.s32 1, %v3624
    %v3626 = vrot.slane %v3617, %v3625
    %v3629 = vadd.f32 %v3611, %v3622
    %v3630 = vadd.f32 %v3612, %v3626
    %v3631 = vadd.f32 %v3613, %v3622
    %v3632 = vadd.f32 %v3614, %v3626
    %v3633 = vadd.f32 %v3615, %v3622
    %v3634 = vadd.f32 %v3616, %v3626
    %v3635 = vmax.f32 %v3629, 0.0
    %v3636 = vmax.f32 %v3630, 0.0
    %v3637 = vmax.f32 %v3631, 0.0
    %v3638 = vmax.f32 %v3632, 0.0
    %v3639 = vmax.f32 %v3633, 0.0
    %v3640 = vmax.f32 %v3634, 0.0
    %v3641 = vpack.c.bf16 %v3637, %v3635
    %v3642 = vpack.c.bf16 %v3638, %v3636
    %v3643 = vpack.c.bf16 %v3639, %v3639
    %v3644 = vpack.c.bf16 %v3640, %v3640
    %v3649 = vunpack.c.l.b16 %v3641
    %v3650 = vunpack.c.l.b16 %v3642
    %v3651 = vunpack.c.h.b16 %v3641
    %v3652 = vunpack.c.h.b16 %v3642
    %v3653 = vunpack.c.l.b16 %v3643
    %v3654 = vunpack.c.l.b16 %v3644
    %v3655 = vpack.c.b16 %v3650, %v3649
    %v3656 = vpack.c.b16 %v3652, %v3651
    %v3657 = vpack.c.b16 %v3654, %v3653
    %3661 = vst [vmem:[#allocation3 + $0x8] sm:$0xff] %v3655
    %3662 = vst [vmem:[#allocation3 + $0x10] sm:$0xff] %v3656
    %3663 = vst [vmem:[#allocation3 + $0x18] sm:$0x77] %v3657
    %v3664 = vld [vmem:[#allocation3] sm:$0xff]
    %v3665 = vld [vmem:[#allocation3 + $0x8] sm:$0xff]
    %v3666 = vld [vmem:[#allocation3 + $0x10] sm:$0xff]
    %v3667 = vld [vmem:[#allocation3 + $0x18] sm:$0x77]
    %v3668 = vld [vmem:[#allocation3] sm:$0xee]
    %v3669 = vld [vmem:[#allocation3 + $0x18] sm:$0xff]
    %v3670 = vld [vmem:[#allocation3] sm:$0xcc]
    %v3671 = vld [vmem:[#allocation3 + $0x20] sm:$0x11]
    %v3672 = vld [vmem:[#allocation3] sm:$0x88]
    %v3673 = vld [vmem:[#allocation3 + $0x20] sm:$0x33]
    %v3674 = vld [vmem:[#allocation3 + $0x20] sm:$0x77]
    %v3679 = vunpack.c.l.b16 %v3664
    %v3680 = vunpack.c.h.b16 %v3664
    %v3681 = vunpack.c.l.b16 %v3665
    %v3682 = vunpack.c.h.b16 %v3665
    %v3683 = vunpack.c.l.b16 %v3666
    %v3684 = vunpack.c.h.b16 %v3666
    %v3685 = vunpack.c.l.b16 %v3667
    %v3686 = vunpack.c.h.b16 %v3667
    %v3687 = vpack.c.b16 %v3681, %v3679
    %v3688 = vpack.c.b16 %v3682, %v3680
    %v3689 = vpack.c.b16 %v3685, %v3683
    %v3690 = vpack.c.b16 %v3686, %v3684
    %v3697 = vunpack.c.l.b16 %v3668
    %v3698 = vunpack.c.h.b16 %v3668
    %v3699 = vunpack.c.l.b16 %v3669
    %v3700 = vunpack.c.h.b16 %v3669
    %v3701 = vpack.c.b16 %v3681, %v3697
    %v3702 = vpack.c.b16 %v3682, %v3698
    %v3703 = vpack.c.b16 %v3699, %v3683
    %v3704 = vpack.c.b16 %v3700, %v3684
    %v3705 = vrot.slane %v3701, 1
    %v3706 = vrot.slane %v3703, 1
    %v3707 = vsel %vm1232, %v3705, %v3706
    %v3708 = vrot.slane %v3702, 1
    %v3709 = vrot.slane %v3704, 1
    %v3710 = vsel %vm1232, %v3708, %v3709
    %v3717 = vunpack.c.l.b16 %v3670
    %v3718 = vunpack.c.h.b16 %v3670
    %v3719 = vunpack.c.l.b16 %v3671
    %v3720 = vunpack.c.h.b16 %v3671
    %v3721 = vpack.c.b16 %v3681, %v3717
    %v3722 = vpack.c.b16 %v3682, %v3718
    %v3723 = vpack.c.b16 %v3719, %v3719
    %v3724 = vpack.c.b16 %v3720, %v3720
    %v3725 = vrot.slane %v3721, 2
    %v3726 = vrot.slane %v3703, 2
    %v3727 = vsel %vm1254, %v3725, %v3726
    %v3728 = vrot.slane %v3722, 2
    %v3729 = vrot.slane %v3704, 2
    %v3730 = vsel %vm1254, %v3728, %v3729
    %v3731 = vrot.slane %v3723, 2
    %v3732 = vsel %vm1254, %v3726, %v3731
    %v3733 = vrot.slane %v3724, 2
    %v3734 = vsel %vm1254, %v3729, %v3733
    %v3741 = vunpack.c.l.b16 %v3672
    %v3742 = vunpack.c.h.b16 %v3672
    %v3743 = vunpack.c.l.b16 %v3673
    %v3744 = vunpack.c.h.b16 %v3673
    %v3745 = vpack.c.b16 %v3681, %v3741
    %v3746 = vpack.c.b16 %v3682, %v3742
    %v3747 = vpack.c.b16 %v3743, %v3743
    %v3748 = vpack.c.b16 %v3744, %v3744
    %v3749 = vrot.slane %v3745, 3
    %v3750 = vrot.slane %v3703, 3
    %v3751 = vsel %vm1276, %v3749, %v3750
    %v3752 = vrot.slane %v3746, 3
    %v3753 = vrot.slane %v3704, 3
    %v3754 = vsel %vm1276, %v3752, %v3753
    %v3755 = vrot.slane %v3747, 3
    %v3756 = vsel %vm1276, %v3750, %v3755
    %v3757 = vrot.slane %v3748, 3
    %v3758 = vsel %vm1276, %v3753, %v3757
    %v3764 = vunpack.c.l.b16 %v3674
    %v3765 = vunpack.c.h.b16 %v3674
    %v3766 = vpack.c.b16 %v3683, %v3681
    %v3767 = vpack.c.b16 %v3684, %v3682
    %v3768 = vpack.c.b16 %v3764, %v3699
    %v3769 = vpack.c.b16 %v3765, %v3700
    %v3774 = vld [vmem:[#allocation19] sm:$0xff]
    %v3775 = vld [vmem:[#allocation19 + $0x8] sm:$0xff]
    %v3776 = vld [vmem:[#allocation19 + $0x10] sm:$0xff]
    %v3777 = vld [vmem:[#allocation19 + $0x18] sm:$0xff]
    %v3778 = vld [vmem:[#allocation19 + $0x20] sm:$0xff]
    %v3779 = vld [vmem:[#allocation19 + $0x28] sm:$0xff]
    %v3780 = vld [vmem:[#allocation19 + $0x30] sm:$0xff]
    %v3781 = vld [vmem:[#allocation19 + $0x38] sm:$0xff]
    %v3782 = vld [vmem:[#allocation19 + $0x40] sm:$0xff]
    %v3783 = vld [vmem:[#allocation19 + $0x48] sm:$0xff]
    %v3784 = vld [vmem:[#allocation19 + $0x50] sm:$0xff]
    %v3785 = vld [vmem:[#allocation19 + $0x58] sm:$0xff]
    %v3786 = vld [vmem:[#allocation19 + $0x60] sm:$0xff]
    %v3787 = vld [vmem:[#allocation19 + $0x68] sm:$0xff]
    %v3788 = vld [vmem:[#allocation19 + $0x70] sm:$0xff]
    %v3789 = vld [vmem:[#allocation19 + $0x78] sm:$0xff]
    %v3790 = vld [vmem:[#allocation19 + $0x80] sm:$0xff]
    %v3791 = vld [vmem:[#allocation19 + $0x88] sm:$0xff]
    %v3792 = vld [vmem:[#allocation19 + $0x90] sm:$0xff]
    %v3793 = vld [vmem:[#allocation19 + $0x98] sm:$0xff]
    %v3794 = vld [vmem:[#allocation19 + $0xa0] sm:$0xff]
    %v3795 = vld [vmem:[#allocation19 + $0xa8] sm:$0xff]
    %v3796 = vld [vmem:[#allocation19 + $0xb0] sm:$0xff]
    %v3797 = vld [vmem:[#allocation19 + $0xb8] sm:$0xff]
    %v3798 = vld [vmem:[#allocation19 + $0xc0] sm:$0xff]
    %v3799 = vld [vmem:[#allocation19 + $0xc8] sm:$0xff]
    %v3800 = vld [vmem:[#allocation19 + $0xd0] sm:$0xff]
    %v3801 = vld [vmem:[#allocation19 + $0xd8] sm:$0xff]
    %v3802 = vld [vmem:[#allocation19 + $0xe0] sm:$0xff]
    %v3803 = vld [vmem:[#allocation19 + $0xe8] sm:$0xff]
    %v3804 = vld [vmem:[#allocation19 + $0xf0] sm:$0xff]
    %v3805 = vld [vmem:[#allocation19 + $0xf8] sm:$0xff]
    %v3806 = vld [vmem:[#allocation19 + $0x100] sm:$0xff]
    %v3807 = vld [vmem:[#allocation19 + $0x108] sm:$0xff]
    %v3808 = vld [vmem:[#allocation19 + $0x110] sm:$0xff]
    %v3809 = vld [vmem:[#allocation19 + $0x118] sm:$0xff]
    %v3810 = vld [vmem:[#allocation19 + $0x120] sm:$0xff]
    %v3811 = vld [vmem:[#allocation19 + $0x128] sm:$0xff]
    %v3812 = vld [vmem:[#allocation19 + $0x130] sm:$0xff]
    %v3813 = vld [vmem:[#allocation19 + $0x138] sm:$0xff]
    %v3814 = vld [vmem:[#allocation19 + $0x140] sm:$0xff]
    %v3815 = vld [vmem:[#allocation19 + $0x148] sm:$0xff]
    %v3816 = vld [vmem:[#allocation19 + $0x150] sm:$0xff]
    %v3817 = vld [vmem:[#allocation19 + $0x158] sm:$0xff]
    %v3818 = vld [vmem:[#allocation19 + $0x160] sm:$0xff]
    %v3819 = vld [vmem:[#allocation19 + $0x168] sm:$0xff]
    %v3820 = vld [vmem:[#allocation19 + $0x170] sm:$0xff]
    %v3821 = vld [vmem:[#allocation19 + $0x178] sm:$0xff]
    %v3822 = vld [vmem:[#allocation19 + $0x180] sm:$0xff]
    %v3823 = vld [vmem:[#allocation19 + $0x188] sm:$0xff]
    %v3824 = vld [vmem:[#allocation19 + $0x190] sm:$0xff]
    %v3825 = vld [vmem:[#allocation19 + $0x198] sm:$0xff]
    %v3826 = vld [vmem:[#allocation19 + $0x1a0] sm:$0xff]
    %v3827 = vld [vmem:[#allocation19 + $0x1a8] sm:$0xff]
    %v3828 = vld [vmem:[#allocation19 + $0x1b0] sm:$0xff]
    %v3829 = vld [vmem:[#allocation19 + $0x1b8] sm:$0xff]
    %v3830 = vld [vmem:[#allocation19 + $0x1c0] sm:$0xff]
    %v3831 = vld [vmem:[#allocation19 + $0x1c8] sm:$0xff]
    %v3832 = vld [vmem:[#allocation19 + $0x1d0] sm:$0xff]
    %v3833 = vld [vmem:[#allocation19 + $0x1d8] sm:$0xff]
    %v3834 = vld [vmem:[#allocation19 + $0x1e0] sm:$0xff]
    %v3835 = vld [vmem:[#allocation19 + $0x1e8] sm:$0xff]
    %v3836 = vld [vmem:[#allocation19 + $0x1f0] sm:$0xff]
    %v3837 = vld [vmem:[#allocation19 + $0x1f8] sm:$0xff]
    %v3838 = vld [vmem:[#allocation19 + $0x200] sm:$0xff]
    %v3839 = vld [vmem:[#allocation19 + $0x208] sm:$0xff]
    %v3840 = vld [vmem:[#allocation19 + $0x210] sm:$0xff]
    %v3841 = vld [vmem:[#allocation19 + $0x218] sm:$0xff]
    %v3842 = vld [vmem:[#allocation19 + $0x220] sm:$0xff]
    %v3843 = vld [vmem:[#allocation19 + $0x228] sm:$0xff]
    %v3844 = vld [vmem:[#allocation19 + $0x230] sm:$0xff]
    %v3845 = vld [vmem:[#allocation19 + $0x238] sm:$0xff]
    %v3846 = vld [vmem:[#allocation19 + $0x240] sm:$0xff]
    %v3847 = vld [vmem:[#allocation19 + $0x248] sm:$0xff]
    %v3848 = vld [vmem:[#allocation19 + $0x250] sm:$0xff]
    %v3849 = vld [vmem:[#allocation19 + $0x258] sm:$0xff]
    %v3850 = vld [vmem:[#allocation19 + $0x260] sm:$0xff]
    %v3851 = vld [vmem:[#allocation19 + $0x268] sm:$0xff]
    %v3852 = vld [vmem:[#allocation19 + $0x270] sm:$0xff]
    %v3853 = vld [vmem:[#allocation19 + $0x278] sm:$0xff]
    %v3854 = vld [vmem:[#allocation19 + $0x280] sm:$0xff]
    %v3855 = vld [vmem:[#allocation19 + $0x288] sm:$0xff]
    %v3856 = vld [vmem:[#allocation19 + $0x290] sm:$0xff]
    %v3857 = vld [vmem:[#allocation19 + $0x298] sm:$0xff]
    %v3858 = vld [vmem:[#allocation19 + $0x2a0] sm:$0xff]
    %v3859 = vld [vmem:[#allocation19 + $0x2a8] sm:$0xff]
    %v3860 = vld [vmem:[#allocation19 + $0x2b0] sm:$0xff]
    %v3861 = vld [vmem:[#allocation19 + $0x2b8] sm:$0xff]
    %v3862 = vld [vmem:[#allocation19 + $0x2c0] sm:$0xff]
    %v3863 = vld [vmem:[#allocation19 + $0x2c8] sm:$0xff]
    %v3864 = vld [vmem:[#allocation19 + $0x2d0] sm:$0xff]
    %v3865 = vld [vmem:[#allocation19 + $0x2d8] sm:$0xff]
    %v3866 = vld [vmem:[#allocation19 + $0x2e0] sm:$0xff]
    %v3867 = vld [vmem:[#allocation19 + $0x2e8] sm:$0xff]
    %v3868 = vld [vmem:[#allocation19 + $0x2f0] sm:$0xff]
    %v3869 = vld [vmem:[#allocation19 + $0x2f8] sm:$0xff]
    %v3870 = vld [vmem:[#allocation19 + $0x300] sm:$0xff]
    %v3871 = vld [vmem:[#allocation19 + $0x308] sm:$0xff]
    %v3872 = vld [vmem:[#allocation19 + $0x310] sm:$0xff]
    %v3873 = vld [vmem:[#allocation19 + $0x318] sm:$0xff]
    %v3874 = vld [vmem:[#allocation19 + $0x320] sm:$0xff]
    %v3875 = vld [vmem:[#allocation19 + $0x328] sm:$0xff]
    %v3876 = vld [vmem:[#allocation19 + $0x330] sm:$0xff]
    %v3877 = vld [vmem:[#allocation19 + $0x338] sm:$0xff]
    %v3878 = vld [vmem:[#allocation19 + $0x340] sm:$0xff]
    %v3879 = vld [vmem:[#allocation19 + $0x348] sm:$0xff]
    %v3880 = vld [vmem:[#allocation19 + $0x350] sm:$0xff]
    %v3881 = vld [vmem:[#allocation19 + $0x358] sm:$0xff]
    %v3882 = vld [vmem:[#allocation19 + $0x360] sm:$0xff]
    %v3883 = vld [vmem:[#allocation19 + $0x368] sm:$0xff]
    %v3884 = vld [vmem:[#allocation19 + $0x370] sm:$0xff]
    %v3885 = vld [vmem:[#allocation19 + $0x378] sm:$0xff]
    %v3886 = vld [vmem:[#allocation19 + $0x380] sm:$0xff]
    %v3887 = vld [vmem:[#allocation19 + $0x388] sm:$0xff]
    %v3888 = vld [vmem:[#allocation19 + $0x390] sm:$0xff]
    %v3889 = vld [vmem:[#allocation19 + $0x398] sm:$0xff]
    %v3890 = vld [vmem:[#allocation19 + $0x3a0] sm:$0xff]
    %v3891 = vld [vmem:[#allocation19 + $0x3a8] sm:$0xff]
    %v3892 = vld [vmem:[#allocation19 + $0x3b0] sm:$0xff]
    %v3893 = vld [vmem:[#allocation19 + $0x3b8] sm:$0xff]
    %v3894 = vld [vmem:[#allocation19 + $0x3c0] sm:$0xff]
    %v3895 = vld [vmem:[#allocation19 + $0x3c8] sm:$0xff]
    %v3896 = vld [vmem:[#allocation19 + $0x3d0] sm:$0xff]
    %v3897 = vld [vmem:[#allocation19 + $0x3d8] sm:$0xff]
    %v3898 = vld [vmem:[#allocation19 + $0x3e0] sm:$0xff]
    %v3899 = vld [vmem:[#allocation19 + $0x3e8] sm:$0xff]
    %v3900 = vld [vmem:[#allocation19 + $0x3f0] sm:$0xff]
    %v3901 = vld [vmem:[#allocation19 + $0x3f8] sm:$0xff]
    %v3902 = vld [vmem:[#allocation19 + $0x400] sm:$0xff]
    %v3903 = vld [vmem:[#allocation19 + $0x408] sm:$0xff]
    %v3904 = vld [vmem:[#allocation19 + $0x410] sm:$0xff]
    %v3905 = vld [vmem:[#allocation19 + $0x418] sm:$0xff]
    %v3906 = vld [vmem:[#allocation19 + $0x420] sm:$0xff]
    %v3907 = vld [vmem:[#allocation19 + $0x428] sm:$0xff]
    %v3908 = vld [vmem:[#allocation19 + $0x430] sm:$0xff]
    %v3909 = vld [vmem:[#allocation19 + $0x438] sm:$0xff]
    %v3910 = vld [vmem:[#allocation19 + $0x440] sm:$0xff]
    %v3911 = vld [vmem:[#allocation19 + $0x448] sm:$0xff]
    %v3912 = vld [vmem:[#allocation19 + $0x450] sm:$0xff]
    %v3913 = vld [vmem:[#allocation19 + $0x458] sm:$0xff]
    %v3914 = vld [vmem:[#allocation19 + $0x460] sm:$0xff]
    %v3915 = vld [vmem:[#allocation19 + $0x468] sm:$0xff]
    %v3916 = vld [vmem:[#allocation19 + $0x470] sm:$0xff]
    %v3917 = vld [vmem:[#allocation19 + $0x478] sm:$0xff]
    %v3918 = vld [vmem:[#allocation19 + $0x480] sm:$0xff]
    %v3919 = vld [vmem:[#allocation19 + $0x488] sm:$0xff]
    %v3920 = vld [vmem:[#allocation19 + $0x490] sm:$0xff]
    %v3921 = vld [vmem:[#allocation19 + $0x498] sm:$0xff]
    %v3922 = vld [vmem:[#allocation19 + $0x4a0] sm:$0xff]
    %v3923 = vld [vmem:[#allocation19 + $0x4a8] sm:$0xff]
    %v3924 = vld [vmem:[#allocation19 + $0x4b0] sm:$0xff]
    %v3925 = vld [vmem:[#allocation19 + $0x4b8] sm:$0xff]
    %v3926 = vld [vmem:[#allocation19 + $0x4c0] sm:$0xff]
    %v3927 = vld [vmem:[#allocation19 + $0x4c8] sm:$0xff]
    %v3928 = vld [vmem:[#allocation19 + $0x4d0] sm:$0xff]
    %v3929 = vld [vmem:[#allocation19 + $0x4d8] sm:$0xff]
    %v3930 = vld [vmem:[#allocation19 + $0x4e0] sm:$0xff]
    %v3931 = vld [vmem:[#allocation19 + $0x4e8] sm:$0xff]
    %v3932 = vld [vmem:[#allocation19 + $0x4f0] sm:$0xff]
    %v3933 = vld [vmem:[#allocation19 + $0x4f8] sm:$0xff]
    %v3934 = vld [vmem:[#allocation21] sm:$0x3]
    %v3936 = vlaneseq
    %v3937 = vshrl.u32 %v3936, 7
    %v3938 = vsub.s32 0, %v3937
    %v3939 = vrot.slane %v3934, %v3938
    %v3940 = vlaneseq
    %v3941 = vshrl.u32 %v3940, 7
    %v3942 = vsub.s32 1, %v3941
    %v3943 = vrot.slane %v3934, %v3942
    %v4106 = vunpack.c.l.b16 %v3774
    %v4107 = vunpack.c.h.b16 %v3774
    %v4108 = vunpack.c.l.b16 %v3775
    %v4109 = vunpack.c.h.b16 %v3775
    %v4110 = vunpack.c.l.b16 %v3776
    %v4111 = vunpack.c.h.b16 %v3776
    %v4112 = vunpack.c.l.b16 %v3777
    %v4113 = vunpack.c.h.b16 %v3777
    %v4114 = vunpack.c.l.b16 %v3778
    %v4115 = vunpack.c.h.b16 %v3778
    %v4116 = vunpack.c.l.b16 %v3779
    %v4117 = vunpack.c.h.b16 %v3779
    %v4118 = vunpack.c.l.b16 %v3780
    %v4119 = vunpack.c.h.b16 %v3780
    %v4120 = vunpack.c.l.b16 %v3781
    %v4121 = vunpack.c.h.b16 %v3781
    %v4122 = vunpack.c.l.b16 %v3782
    %v4123 = vunpack.c.h.b16 %v3782
    %v4124 = vunpack.c.l.b16 %v3783
    %v4125 = vunpack.c.h.b16 %v3783
    %v4126 = vunpack.c.l.b16 %v3784
    %v4127 = vunpack.c.h.b16 %v3784
    %v4128 = vunpack.c.l.b16 %v3785
    %v4129 = vunpack.c.h.b16 %v3785
    %v4130 = vunpack.c.l.b16 %v3786
    %v4131 = vunpack.c.h.b16 %v3786
    %v4132 = vunpack.c.l.b16 %v3787
    %v4133 = vunpack.c.h.b16 %v3787
    %v4134 = vunpack.c.l.b16 %v3788
    %v4135 = vunpack.c.h.b16 %v3788
    %v4136 = vunpack.c.l.b16 %v3789
    %v4137 = vunpack.c.h.b16 %v3789
    %v4138 = vunpack.c.l.b16 %v3790
    %v4139 = vunpack.c.h.b16 %v3790
    %v4140 = vunpack.c.l.b16 %v3791
    %v4141 = vunpack.c.h.b16 %v3791
    %v4142 = vunpack.c.l.b16 %v3792
    %v4143 = vunpack.c.h.b16 %v3792
    %v4144 = vunpack.c.l.b16 %v3793
    %v4145 = vunpack.c.h.b16 %v3793
    %v4146 = vunpack.c.l.b16 %v3794
    %v4147 = vunpack.c.h.b16 %v3794
    %v4148 = vunpack.c.l.b16 %v3795
    %v4149 = vunpack.c.h.b16 %v3795
    %v4150 = vunpack.c.l.b16 %v3796
    %v4151 = vunpack.c.h.b16 %v3796
    %v4152 = vunpack.c.l.b16 %v3797
    %v4153 = vunpack.c.h.b16 %v3797
    %v4154 = vunpack.c.l.b16 %v3798
    %v4155 = vunpack.c.h.b16 %v3798
    %v4156 = vunpack.c.l.b16 %v3799
    %v4157 = vunpack.c.h.b16 %v3799
    %v4158 = vunpack.c.l.b16 %v3800
    %v4159 = vunpack.c.h.b16 %v3800
    %v4160 = vunpack.c.l.b16 %v3801
    %v4161 = vunpack.c.h.b16 %v3801
    %v4162 = vunpack.c.l.b16 %v3802
    %v4163 = vunpack.c.h.b16 %v3802
    %v4164 = vunpack.c.l.b16 %v3803
    %v4165 = vunpack.c.h.b16 %v3803
    %v4166 = vunpack.c.l.b16 %v3804
    %v4167 = vunpack.c.h.b16 %v3804
    %v4168 = vunpack.c.l.b16 %v3805
    %v4169 = vunpack.c.h.b16 %v3805
    %v4170 = vunpack.c.l.b16 %v3806
    %v4171 = vunpack.c.h.b16 %v3806
    %v4172 = vunpack.c.l.b16 %v3807
    %v4173 = vunpack.c.h.b16 %v3807
    %v4174 = vunpack.c.l.b16 %v3808
    %v4175 = vunpack.c.h.b16 %v3808
    %v4176 = vunpack.c.l.b16 %v3809
    %v4177 = vunpack.c.h.b16 %v3809
    %v4178 = vunpack.c.l.b16 %v3810
    %v4179 = vunpack.c.h.b16 %v3810
    %v4180 = vunpack.c.l.b16 %v3811
    %v4181 = vunpack.c.h.b16 %v3811
    %v4182 = vunpack.c.l.b16 %v3812
    %v4183 = vunpack.c.h.b16 %v3812
    %v4184 = vunpack.c.l.b16 %v3813
    %v4185 = vunpack.c.h.b16 %v3813
    %v4186 = vunpack.c.l.b16 %v3814
    %v4187 = vunpack.c.h.b16 %v3814
    %v4188 = vunpack.c.l.b16 %v3815
    %v4189 = vunpack.c.h.b16 %v3815
    %v4190 = vunpack.c.l.b16 %v3816
    %v4191 = vunpack.c.h.b16 %v3816
    %v4192 = vunpack.c.l.b16 %v3817
    %v4193 = vunpack.c.h.b16 %v3817
    %v4194 = vunpack.c.l.b16 %v3818
    %v4195 = vunpack.c.h.b16 %v3818
    %v4196 = vunpack.c.l.b16 %v3819
    %v4197 = vunpack.c.h.b16 %v3819
    %v4198 = vunpack.c.l.b16 %v3820
    %v4199 = vunpack.c.h.b16 %v3820
    %v4200 = vunpack.c.l.b16 %v3821
    %v4201 = vunpack.c.h.b16 %v3821
    %v4202 = vunpack.c.l.b16 %v3822
    %v4203 = vunpack.c.h.b16 %v3822
    %v4204 = vunpack.c.l.b16 %v3823
    %v4205 = vunpack.c.h.b16 %v3823
    %v4206 = vunpack.c.l.b16 %v3824
    %v4207 = vunpack.c.h.b16 %v3824
    %v4208 = vunpack.c.l.b16 %v3825
    %v4209 = vunpack.c.h.b16 %v3825
    %v4210 = vunpack.c.l.b16 %v3826
    %v4211 = vunpack.c.h.b16 %v3826
    %v4212 = vunpack.c.l.b16 %v3827
    %v4213 = vunpack.c.h.b16 %v3827
    %v4214 = vunpack.c.l.b16 %v3828
    %v4215 = vunpack.c.h.b16 %v3828
    %v4216 = vunpack.c.l.b16 %v3829
    %v4217 = vunpack.c.h.b16 %v3829
    %v4218 = vunpack.c.l.b16 %v3830
    %v4219 = vunpack.c.h.b16 %v3830
    %v4220 = vunpack.c.l.b16 %v3831
    %v4221 = vunpack.c.h.b16 %v3831
    %v4222 = vunpack.c.l.b16 %v3832
    %v4223 = vunpack.c.h.b16 %v3832
    %v4224 = vunpack.c.l.b16 %v3833
    %v4225 = vunpack.c.h.b16 %v3833
    %v4226 = vunpack.c.l.b16 %v3834
    %v4227 = vunpack.c.h.b16 %v3834
    %v4228 = vunpack.c.l.b16 %v3835
    %v4229 = vunpack.c.h.b16 %v3835
    %v4230 = vunpack.c.l.b16 %v3836
    %v4231 = vunpack.c.h.b16 %v3836
    %v4232 = vunpack.c.l.b16 %v3837
    %v4233 = vunpack.c.h.b16 %v3837
    %v4234 = vunpack.c.l.b16 %v3838
    %v4235 = vunpack.c.h.b16 %v3838
    %v4236 = vunpack.c.l.b16 %v3839
    %v4237 = vunpack.c.h.b16 %v3839
    %v4238 = vunpack.c.l.b16 %v3840
    %v4239 = vunpack.c.h.b16 %v3840
    %v4240 = vunpack.c.l.b16 %v3841
    %v4241 = vunpack.c.h.b16 %v3841
    %v4242 = vunpack.c.l.b16 %v3842
    %v4243 = vunpack.c.h.b16 %v3842
    %v4244 = vunpack.c.l.b16 %v3843
    %v4245 = vunpack.c.h.b16 %v3843
    %v4246 = vunpack.c.l.b16 %v3844
    %v4247 = vunpack.c.h.b16 %v3844
    %v4248 = vunpack.c.l.b16 %v3845
    %v4249 = vunpack.c.h.b16 %v3845
    %v4250 = vunpack.c.l.b16 %v3846
    %v4251 = vunpack.c.h.b16 %v3846
    %v4252 = vunpack.c.l.b16 %v3847
    %v4253 = vunpack.c.h.b16 %v3847
    %v4254 = vunpack.c.l.b16 %v3848
    %v4255 = vunpack.c.h.b16 %v3848
    %v4256 = vunpack.c.l.b16 %v3849
    %v4257 = vunpack.c.h.b16 %v3849
    %v4258 = vunpack.c.l.b16 %v3850
    %v4259 = vunpack.c.h.b16 %v3850
    %v4260 = vunpack.c.l.b16 %v3851
    %v4261 = vunpack.c.h.b16 %v3851
    %v4262 = vunpack.c.l.b16 %v3852
    %v4263 = vunpack.c.h.b16 %v3852
    %v4264 = vunpack.c.l.b16 %v3853
    %v4265 = vunpack.c.h.b16 %v3853
    %v4266 = vunpack.c.l.b16 %v3854
    %v4267 = vunpack.c.h.b16 %v3854
    %v4268 = vunpack.c.l.b16 %v3855
    %v4269 = vunpack.c.h.b16 %v3855
    %v4270 = vunpack.c.l.b16 %v3856
    %v4271 = vunpack.c.h.b16 %v3856
    %v4272 = vunpack.c.l.b16 %v3857
    %v4273 = vunpack.c.h.b16 %v3857
    %v4274 = vunpack.c.l.b16 %v3858
    %v4275 = vunpack.c.h.b16 %v3858
    %v4276 = vunpack.c.l.b16 %v3859
    %v4277 = vunpack.c.h.b16 %v3859
    %v4278 = vunpack.c.l.b16 %v3860
    %v4279 = vunpack.c.h.b16 %v3860
    %v4280 = vunpack.c.l.b16 %v3861
    %v4281 = vunpack.c.h.b16 %v3861
    %v4282 = vunpack.c.l.b16 %v3862
    %v4283 = vunpack.c.h.b16 %v3862
    %v4284 = vunpack.c.l.b16 %v3863
    %v4285 = vunpack.c.h.b16 %v3863
    %v4286 = vunpack.c.l.b16 %v3864
    %v4287 = vunpack.c.h.b16 %v3864
    %v4288 = vunpack.c.l.b16 %v3865
    %v4289 = vunpack.c.h.b16 %v3865
    %v4290 = vunpack.c.l.b16 %v3866
    %v4291 = vunpack.c.h.b16 %v3866
    %v4292 = vunpack.c.l.b16 %v3867
    %v4293 = vunpack.c.h.b16 %v3867
    %v4294 = vunpack.c.l.b16 %v3868
    %v4295 = vunpack.c.h.b16 %v3868
    %v4296 = vunpack.c.l.b16 %v3869
    %v4297 = vunpack.c.h.b16 %v3869
    %v4298 = vunpack.c.l.b16 %v3870
    %v4299 = vunpack.c.h.b16 %v3870
    %v4300 = vunpack.c.l.b16 %v3871
    %v4301 = vunpack.c.h.b16 %v3871
    %v4302 = vunpack.c.l.b16 %v3872
    %v4303 = vunpack.c.h.b16 %v3872
    %v4304 = vunpack.c.l.b16 %v3873
    %v4305 = vunpack.c.h.b16 %v3873
    %v4306 = vunpack.c.l.b16 %v3874
    %v4307 = vunpack.c.h.b16 %v3874
    %v4308 = vunpack.c.l.b16 %v3875
    %v4309 = vunpack.c.h.b16 %v3875
    %v4310 = vunpack.c.l.b16 %v3876
    %v4311 = vunpack.c.h.b16 %v3876
    %v4312 = vunpack.c.l.b16 %v3877
    %v4313 = vunpack.c.h.b16 %v3877
    %v4314 = vunpack.c.l.b16 %v3878
    %v4315 = vunpack.c.h.b16 %v3878
    %v4316 = vunpack.c.l.b16 %v3879
    %v4317 = vunpack.c.h.b16 %v3879
    %v4318 = vunpack.c.l.b16 %v3880
    %v4319 = vunpack.c.h.b16 %v3880
    %v4320 = vunpack.c.l.b16 %v3881
    %v4321 = vunpack.c.h.b16 %v3881
    %v4322 = vunpack.c.l.b16 %v3882
    %v4323 = vunpack.c.h.b16 %v3882
    %v4324 = vunpack.c.l.b16 %v3883
    %v4325 = vunpack.c.h.b16 %v3883
    %v4326 = vunpack.c.l.b16 %v3884
    %v4327 = vunpack.c.h.b16 %v3884
    %v4328 = vunpack.c.l.b16 %v3885
    %v4329 = vunpack.c.h.b16 %v3885
    %v4330 = vunpack.c.l.b16 %v3886
    %v4331 = vunpack.c.h.b16 %v3886
    %v4332 = vunpack.c.l.b16 %v3887
    %v4333 = vunpack.c.h.b16 %v3887
    %v4334 = vunpack.c.l.b16 %v3888
    %v4335 = vunpack.c.h.b16 %v3888
    %v4336 = vunpack.c.l.b16 %v3889
    %v4337 = vunpack.c.h.b16 %v3889
    %v4338 = vunpack.c.l.b16 %v3890
    %v4339 = vunpack.c.h.b16 %v3890
    %v4340 = vunpack.c.l.b16 %v3891
    %v4341 = vunpack.c.h.b16 %v3891
    %v4342 = vunpack.c.l.b16 %v3892
    %v4343 = vunpack.c.h.b16 %v3892
    %v4344 = vunpack.c.l.b16 %v3893
    %v4345 = vunpack.c.h.b16 %v3893
    %v4346 = vunpack.c.l.b16 %v3894
    %v4347 = vunpack.c.h.b16 %v3894
    %v4348 = vunpack.c.l.b16 %v3895
    %v4349 = vunpack.c.h.b16 %v3895
    %v4350 = vunpack.c.l.b16 %v3896
    %v4351 = vunpack.c.h.b16 %v3896
    %v4352 = vunpack.c.l.b16 %v3897
    %v4353 = vunpack.c.h.b16 %v3897
    %v4354 = vunpack.c.l.b16 %v3898
    %v4355 = vunpack.c.h.b16 %v3898
    %v4356 = vunpack.c.l.b16 %v3899
    %v4357 = vunpack.c.h.b16 %v3899
    %v4358 = vunpack.c.l.b16 %v3900
    %v4359 = vunpack.c.h.b16 %v3900
    %v4360 = vunpack.c.l.b16 %v3901
    %v4361 = vunpack.c.h.b16 %v3901
    %v4362 = vunpack.c.l.b16 %v3902
    %v4363 = vunpack.c.h.b16 %v3902
    %v4364 = vunpack.c.l.b16 %v3903
    %v4365 = vunpack.c.h.b16 %v3903
    %v4366 = vunpack.c.l.b16 %v3904
    %v4367 = vunpack.c.h.b16 %v3904
    %v4368 = vunpack.c.l.b16 %v3905
    %v4369 = vunpack.c.h.b16 %v3905
    %v4370 = vunpack.c.l.b16 %v3906
    %v4371 = vunpack.c.h.b16 %v3906
    %v4372 = vunpack.c.l.b16 %v3907
    %v4373 = vunpack.c.h.b16 %v3907
    %v4374 = vunpack.c.l.b16 %v3908
    %v4375 = vunpack.c.h.b16 %v3908
    %v4376 = vunpack.c.l.b16 %v3909
    %v4377 = vunpack.c.h.b16 %v3909
    %v4378 = vunpack.c.l.b16 %v3910
    %v4379 = vunpack.c.h.b16 %v3910
    %v4380 = vunpack.c.l.b16 %v3911
    %v4381 = vunpack.c.h.b16 %v3911
    %v4382 = vunpack.c.l.b16 %v3912
    %v4383 = vunpack.c.h.b16 %v3912
    %v4384 = vunpack.c.l.b16 %v3913
    %v4385 = vunpack.c.h.b16 %v3913
    %v4386 = vunpack.c.l.b16 %v3914
    %v4387 = vunpack.c.h.b16 %v3914
    %v4388 = vunpack.c.l.b16 %v3915
    %v4389 = vunpack.c.h.b16 %v3915
    %v4390 = vunpack.c.l.b16 %v3916
    %v4391 = vunpack.c.h.b16 %v3916
    %v4392 = vunpack.c.l.b16 %v3917
    %v4393 = vunpack.c.h.b16 %v3917
    %v4394 = vunpack.c.l.b16 %v3918
    %v4395 = vunpack.c.h.b16 %v3918
    %v4396 = vunpack.c.l.b16 %v3919
    %v4397 = vunpack.c.h.b16 %v3919
    %v4398 = vunpack.c.l.b16 %v3920
    %v4399 = vunpack.c.h.b16 %v3920
    %v4400 = vunpack.c.l.b16 %v3921
    %v4401 = vunpack.c.h.b16 %v3921
    %v4402 = vunpack.c.l.b16 %v3922
    %v4403 = vunpack.c.h.b16 %v3922
    %v4404 = vunpack.c.l.b16 %v3923
    %v4405 = vunpack.c.h.b16 %v3923
    %v4406 = vunpack.c.l.b16 %v3924
    %v4407 = vunpack.c.h.b16 %v3924
    %v4408 = vunpack.c.l.b16 %v3925
    %v4409 = vunpack.c.h.b16 %v3925
    %v4410 = vunpack.c.l.b16 %v3926
    %v4411 = vunpack.c.h.b16 %v3926
    %v4412 = vunpack.c.l.b16 %v3927
    %v4413 = vunpack.c.h.b16 %v3927
    %v4414 = vunpack.c.l.b16 %v3928
    %v4415 = vunpack.c.h.b16 %v3928
    %v4416 = vunpack.c.l.b16 %v3929
    %v4417 = vunpack.c.h.b16 %v3929
    %v4418 = vunpack.c.l.b16 %v3930
    %v4419 = vunpack.c.h.b16 %v3930
    %v4420 = vunpack.c.l.b16 %v3931
    %v4421 = vunpack.c.h.b16 %v3931
    %v4422 = vunpack.c.l.b16 %v3932
    %v4423 = vunpack.c.h.b16 %v3932
    %v4424 = vunpack.c.l.b16 %v3933
    %v4425 = vunpack.c.h.b16 %v3933
    %v4426 = vpack.c.b16 %v4108, %v4106
    %v4427 = vpack.c.b16 %v4109, %v4107
    %v4428 = vpack.c.b16 %v4112, %v4110
    %v4429 = vpack.c.b16 %v4113, %v4111
    %v4430 = vpack.c.b16 %v4116, %v4114
    %v4431 = vpack.c.b16 %v4117, %v4115
    %v4432 = vpack.c.b16 %v4120, %v4118
    %v4433 = vpack.c.b16 %v4121, %v4119
    %v4434 = vpack.c.b16 %v4124, %v4122
    %v4435 = vpack.c.b16 %v4125, %v4123
    %v4436 = vpack.c.b16 %v4128, %v4126
    %v4437 = vpack.c.b16 %v4129, %v4127
    %v4438 = vpack.c.b16 %v4132, %v4130
    %v4439 = vpack.c.b16 %v4133, %v4131
    %v4440 = vpack.c.b16 %v4136, %v4134
    %v4441 = vpack.c.b16 %v4137, %v4135
    %v4442 = vpack.c.b16 %v4140, %v4138
    %v4443 = vpack.c.b16 %v4141, %v4139
    %v4444 = vpack.c.b16 %v4144, %v4142
    %v4445 = vpack.c.b16 %v4145, %v4143
    %v4446 = vpack.c.b16 %v4148, %v4146
    %v4447 = vpack.c.b16 %v4149, %v4147
    %v4448 = vpack.c.b16 %v4152, %v4150
    %v4449 = vpack.c.b16 %v4153, %v4151
    %v4450 = vpack.c.b16 %v4156, %v4154
    %v4451 = vpack.c.b16 %v4157, %v4155
    %v4452 = vpack.c.b16 %v4160, %v4158
    %v4453 = vpack.c.b16 %v4161, %v4159
    %v4454 = vpack.c.b16 %v4164, %v4162
    %v4455 = vpack.c.b16 %v4165, %v4163
    %v4456 = vpack.c.b16 %v4168, %v4166
    %v4457 = vpack.c.b16 %v4169, %v4167
    %v4458 = vpack.c.b16 %v4172, %v4170
    %v4459 = vpack.c.b16 %v4173, %v4171
    %v4460 = vpack.c.b16 %v4176, %v4174
    %v4461 = vpack.c.b16 %v4177, %v4175
    %v4462 = vpack.c.b16 %v4180, %v4178
    %v4463 = vpack.c.b16 %v4181, %v4179
    %v4464 = vpack.c.b16 %v4184, %v4182
    %v4465 = vpack.c.b16 %v4185, %v4183
    %v4466 = vpack.c.b16 %v4188, %v4186
    %v4467 = vpack.c.b16 %v4189, %v4187
    %v4468 = vpack.c.b16 %v4192, %v4190
    %v4469 = vpack.c.b16 %v4193, %v4191
    %v4470 = vpack.c.b16 %v4196, %v4194
    %v4471 = vpack.c.b16 %v4197, %v4195
    %v4472 = vpack.c.b16 %v4200, %v4198
    %v4473 = vpack.c.b16 %v4201, %v4199
    %v4474 = vpack.c.b16 %v4204, %v4202
    %v4475 = vpack.c.b16 %v4205, %v4203
    %v4476 = vpack.c.b16 %v4208, %v4206
    %v4477 = vpack.c.b16 %v4209, %v4207
    %v4478 = vpack.c.b16 %v4212, %v4210
    %v4479 = vpack.c.b16 %v4213, %v4211
    %v4480 = vpack.c.b16 %v4216, %v4214
    %v4481 = vpack.c.b16 %v4217, %v4215
    %v4482 = vpack.c.b16 %v4220, %v4218
    %v4483 = vpack.c.b16 %v4221, %v4219
    %v4484 = vpack.c.b16 %v4224, %v4222
    %v4485 = vpack.c.b16 %v4225, %v4223
    %v4486 = vpack.c.b16 %v4228, %v4226
    %v4487 = vpack.c.b16 %v4229, %v4227
    %v4488 = vpack.c.b16 %v4232, %v4230
    %v4489 = vpack.c.b16 %v4233, %v4231
    %v4490 = vpack.c.b16 %v4236, %v4234
    %v4491 = vpack.c.b16 %v4237, %v4235
    %v4492 = vpack.c.b16 %v4240, %v4238
    %v4493 = vpack.c.b16 %v4241, %v4239
    %v4494 = vpack.c.b16 %v4244, %v4242
    %v4495 = vpack.c.b16 %v4245, %v4243
    %v4496 = vpack.c.b16 %v4248, %v4246
    %v4497 = vpack.c.b16 %v4249, %v4247
    %v4498 = vpack.c.b16 %v4252, %v4250
    %v4499 = vpack.c.b16 %v4253, %v4251
    %v4500 = vpack.c.b16 %v4256, %v4254
    %v4501 = vpack.c.b16 %v4257, %v4255
    %v4502 = vpack.c.b16 %v4260, %v4258
    %v4503 = vpack.c.b16 %v4261, %v4259
    %v4504 = vpack.c.b16 %v4264, %v4262
    %v4505 = vpack.c.b16 %v4265, %v4263
    %v4506 = vpack.c.b16 %v4268, %v4266
    %v4507 = vpack.c.b16 %v4269, %v4267
    %v4508 = vpack.c.b16 %v4272, %v4270
    %v4509 = vpack.c.b16 %v4273, %v4271
    %v4510 = vpack.c.b16 %v4276, %v4274
    %v4511 = vpack.c.b16 %v4277, %v4275
    %v4512 = vpack.c.b16 %v4280, %v4278
    %v4513 = vpack.c.b16 %v4281, %v4279
    %v4514 = vpack.c.b16 %v4284, %v4282
    %v4515 = vpack.c.b16 %v4285, %v4283
    %v4516 = vpack.c.b16 %v4288, %v4286
    %v4517 = vpack.c.b16 %v4289, %v4287
    %v4518 = vpack.c.b16 %v4292, %v4290
    %v4519 = vpack.c.b16 %v4293, %v4291
    %v4520 = vpack.c.b16 %v4296, %v4294
    %v4521 = vpack.c.b16 %v4297, %v4295
    %v4522 = vpack.c.b16 %v4300, %v4298
    %v4523 = vpack.c.b16 %v4301, %v4299
    %v4524 = vpack.c.b16 %v4304, %v4302
    %v4525 = vpack.c.b16 %v4305, %v4303
    %v4526 = vpack.c.b16 %v4308, %v4306
    %v4527 = vpack.c.b16 %v4309, %v4307
    %v4528 = vpack.c.b16 %v4312, %v4310
    %v4529 = vpack.c.b16 %v4313, %v4311
    %v4530 = vpack.c.b16 %v4316, %v4314
    %v4531 = vpack.c.b16 %v4317, %v4315
    %v4532 = vpack.c.b16 %v4320, %v4318
    %v4533 = vpack.c.b16 %v4321, %v4319
    %v4534 = vpack.c.b16 %v4324, %v4322
    %v4535 = vpack.c.b16 %v4325, %v4323
    %v4536 = vpack.c.b16 %v4328, %v4326
    %v4537 = vpack.c.b16 %v4329, %v4327
    %v4538 = vpack.c.b16 %v4332, %v4330
    %v4539 = vpack.c.b16 %v4333, %v4331
    %v4540 = vpack.c.b16 %v4336, %v4334
    %v4541 = vpack.c.b16 %v4337, %v4335
    %v4542 = vpack.c.b16 %v4340, %v4338
    %v4543 = vpack.c.b16 %v4341, %v4339
    %v4544 = vpack.c.b16 %v4344, %v4342
    %v4545 = vpack.c.b16 %v4345, %v4343
    %v4546 = vpack.c.b16 %v4348, %v4346
    %v4547 = vpack.c.b16 %v4349, %v4347
    %v4548 = vpack.c.b16 %v4352, %v4350
    %v4549 = vpack.c.b16 %v4353, %v4351
    %v4550 = vpack.c.b16 %v4356, %v4354
    %v4551 = vpack.c.b16 %v4357, %v4355
    %v4552 = vpack.c.b16 %v4360, %v4358
    %v4553 = vpack.c.b16 %v4361, %v4359
    %v4554 = vpack.c.b16 %v4364, %v4362
    %v4555 = vpack.c.b16 %v4365, %v4363
    %v4556 = vpack.c.b16 %v4368, %v4366
    %v4557 = vpack.c.b16 %v4369, %v4367
    %v4558 = vpack.c.b16 %v4372, %v4370
    %v4559 = vpack.c.b16 %v4373, %v4371
    %v4560 = vpack.c.b16 %v4376, %v4374
    %v4561 = vpack.c.b16 %v4377, %v4375
    %v4562 = vpack.c.b16 %v4380, %v4378
    %v4563 = vpack.c.b16 %v4381, %v4379
    %v4564 = vpack.c.b16 %v4384, %v4382
    %v4565 = vpack.c.b16 %v4385, %v4383
    %v4566 = vpack.c.b16 %v4388, %v4386
    %v4567 = vpack.c.b16 %v4389, %v4387
    %v4568 = vpack.c.b16 %v4392, %v4390
    %v4569 = vpack.c.b16 %v4393, %v4391
    %v4570 = vpack.c.b16 %v4396, %v4394
    %v4571 = vpack.c.b16 %v4397, %v4395
    %v4572 = vpack.c.b16 %v4400, %v4398
    %v4573 = vpack.c.b16 %v4401, %v4399
    %v4574 = vpack.c.b16 %v4404, %v4402
    %v4575 = vpack.c.b16 %v4405, %v4403
    %v4576 = vpack.c.b16 %v4408, %v4406
    %v4577 = vpack.c.b16 %v4409, %v4407
    %v4578 = vpack.c.b16 %v4412, %v4410
    %v4579 = vpack.c.b16 %v4413, %v4411
    %v4580 = vpack.c.b16 %v4416, %v4414
    %v4581 = vpack.c.b16 %v4417, %v4415
    %v4582 = vpack.c.b16 %v4420, %v4418
    %v4583 = vpack.c.b16 %v4421, %v4419
    %v4584 = vpack.c.b16 %v4424, %v4422
    %v4585 = vpack.c.b16 %v4425, %v4423
    %4746 = vmatprep.subr.bf16.mxu0 %v4427
    %4747 = vmatpush1.bf16.msra.mxu0 %v4426
    %4748 = vmatprep.subr.bf16.mxu0 %v4429
    %4749 = vmatpush1.bf16.msra.mxu0 %v4428
    %4750 = vmatprep.subr.bf16.mxu0 %v4431
    %4751 = vmatpush1.bf16.msra.mxu0 %v4430
    %4752 = vmatprep.subr.bf16.mxu0 %v4433
    %4753 = vmatpush1.bf16.msra.mxu0 %v4432
    %4754 = vmatprep.subr.bf16.mxu0 %v4435
    %4755 = vmatpush1.bf16.msra.mxu0 %v4434
    %4756 = vmatprep.subr.bf16.mxu0 %v4437
    %4757 = vmatpush1.bf16.msra.mxu0 %v4436
    %4758 = vmatprep.subr.bf16.mxu0 %v4439
    %4759 = vmatpush1.bf16.msra.mxu0 %v4438
    %4760 = vmatprep.subr.bf16.mxu0 %v4441
    %4761 = vmatpush1.bf16.msra.mxu0 %v4440
    %4762 = vmatprep.subr.bf16.mxu0 %v4443
    %4763 = vmatpush1.bf16.msra.mxu0 %v4442
    %4764 = vmatprep.subr.bf16.mxu0 %v4445
    %4765 = vmatpush1.bf16.msra.mxu0 %v4444
    %4766 = vmatprep.subr.bf16.mxu0 %v4447
    %4767 = vmatpush1.bf16.msra.mxu0 %v4446
    %4768 = vmatprep.subr.bf16.mxu0 %v4449
    %4769 = vmatpush1.bf16.msra.mxu0 %v4448
    %4770 = vmatprep.subr.bf16.mxu0 %v4451
    %4771 = vmatpush1.bf16.msra.mxu0 %v4450
    %4772 = vmatprep.subr.bf16.mxu0 %v4453
    %4773 = vmatpush1.bf16.msra.mxu0 %v4452
    %4774 = vmatprep.subr.bf16.mxu0 %v4455
    %4775 = vmatpush1.bf16.msra.mxu0 %v4454
    %4776 = vmatprep.subr.bf16.mxu0 %v4457
    %4777 = vmatpush1.bf16.msra.mxu0 %v4456
    %4778 = vmatprep.mubr.bf16.mxu0 %v3688
    %4779 = vmatmul.mubr.bf16.gmra.mrb[0].mxu0 %v3687
    %v4780 = vpop.f32.mrb[0].mxu0
    %v4781 = vadd.f32 %v3939, %v4780
    %v4782 = vpop.f32.mrb[0].mxu0
    %v4783 = vadd.f32 %v3943, %v4782
    %v4784 = vpop.f32.mrb[0].mxu0
    %v4785 = vadd.f32 %v3939, %v4784
    %v4786 = vpop.f32.mrb[0].mxu0
    %v4787 = vadd.f32 %v3943, %v4786
    %4788 = vmatprep.mubr.bf16.mxu0 %v3690
    %4789 = vmatmul.mubr.bf16.gmra.mrb[0].mxu0 %v3689
    %v4790 = vpop.f32.mrb[0].mxu0
    %v4791 = vadd.f32 %v3939, %v4790
    %v4792 = vpop.f32.mrb[0].mxu0
    %v4793 = vadd.f32 %v3943, %v4792
    %v4794 = vpop.f32.mrb[0].mxu0
    %v4795 = vadd.f32 %v3939, %v4794
    %v4796 = vpop.f32.mrb[0].mxu0
    %v4797 = vadd.f32 %v3943, %v4796
    %4798 = vdwg.mxu0
    %4799 = vmatprep.subr.bf16.mxu0 %v4459
    %4800 = vmatpush1.bf16.msra.mxu0 %v4458
    %4801 = vmatprep.subr.bf16.mxu0 %v4461
    %4802 = vmatpush1.bf16.msra.mxu0 %v4460
    %4803 = vmatprep.subr.bf16.mxu0 %v4463
    %4804 = vmatpush1.bf16.msra.mxu0 %v4462
    %4805 = vmatprep.subr.bf16.mxu0 %v4465
    %4806 = vmatpush1.bf16.msra.mxu0 %v4464
    %4807 = vmatprep.subr.bf16.mxu0 %v4467
    %4808 = vmatpush1.bf16.msra.mxu0 %v4466
    %4809 = vmatprep.subr.bf16.mxu0 %v4469
    %4810 = vmatpush1.bf16.msra.mxu0 %v4468
    %4811 = vmatprep.subr.bf16.mxu0 %v4471
    %4812 = vmatpush1.bf16.msra.mxu0 %v4470
    %4813 = vmatprep.subr.bf16.mxu0 %v4473
    %4814 = vmatpush1.bf16.msra.mxu0 %v4472
    %4815 = vmatprep.subr.bf16.mxu0 %v4475
    %4816 = vmatpush1.bf16.msra.mxu0 %v4474
    %4817 = vmatprep.subr.bf16.mxu0 %v4477
    %4818 = vmatpush1.bf16.msra.mxu0 %v4476
    %4819 = vmatprep.subr.bf16.mxu0 %v4479
    %4820 = vmatpush1.bf16.msra.mxu0 %v4478
    %4821 = vmatprep.subr.bf16.mxu0 %v4481
    %4822 = vmatpush1.bf16.msra.mxu0 %v4480
    %4823 = vmatprep.subr.bf16.mxu0 %v4483
    %4824 = vmatpush1.bf16.msra.mxu0 %v4482
    %4825 = vmatprep.subr.bf16.mxu0 %v4485
    %4826 = vmatpush1.bf16.msra.mxu0 %v4484
    %4827 = vmatprep.subr.bf16.mxu0 %v4487
    %4828 = vmatpush1.bf16.msra.mxu0 %v4486
    %4829 = vmatprep.subr.bf16.mxu0 %v4489
    %4830 = vmatpush1.bf16.msra.mxu0 %v4488
    %4831 = vmatprep.mubr.bf16.mxu0 %v3710
    %4832 = vmatmul.mubr.bf16.gmra.mrb[0].mxu0 %v3707
    %v4833 = vpop.f32.mrb[0].mxu0
    %v4834 = vadd.f32 %v4781, %v4833
    %v4835 = vpop.f32.mrb[0].mxu0
    %v4836 = vadd.f32 %v4783, %v4835
    %v4837 = vpop.f32.mrb[0].mxu0
    %v4838 = vadd.f32 %v4785, %v4837
    %v4839 = vpop.f32.mrb[0].mxu0
    %v4840 = vadd.f32 %v4787, %v4839
    %4841 = vmatprep.mubr.bf16.mxu0 %v3709
    %4842 = vmatmul.mubr.bf16.gmra.mrb[0].mxu0 %v3706
    %v4843 = vpop.f32.mrb[0].mxu0
    %v4844 = vadd.f32 %v4791, %v4843
    %v4845 = vpop.f32.mrb[0].mxu0
    %v4846 = vadd.f32 %v4793, %v4845
    %v4847 = vpop.f32.mrb[0].mxu0
    %v4848 = vadd.f32 %v4795, %v4847
    %v4849 = vpop.f32.mrb[0].mxu0
    %v4850 = vadd.f32 %v4797, %v4849
    %4851 = vdwg.mxu0
    %4852 = vmatprep.subr.bf16.mxu0 %v4491
    %4853 = vmatpush1.bf16.msra.mxu0 %v4490
    %4854 = vmatprep.subr.bf16.mxu0 %v4493
    %4855 = vmatpush1.bf16.msra.mxu0 %v4492
    %4856 = vmatprep.subr.bf16.mxu0 %v4495
    %4857 = vmatpush1.bf16.msra.mxu0 %v4494
    %4858 = vmatprep.subr.bf16.mxu0 %v4497
    %4859 = vmatpush1.bf16.msra.mxu0 %v4496
    %4860 = vmatprep.subr.bf16.mxu0 %v4499
    %4861 = vmatpush1.bf16.msra.mxu0 %v4498
    %4862 = vmatprep.subr.bf16.mxu0 %v4501
    %4863 = vmatpush1.bf16.msra.mxu0 %v4500
    %4864 = vmatprep.subr.bf16.mxu0 %v4503
    %4865 = vmatpush1.bf16.msra.mxu0 %v4502
    %4866 = vmatprep.subr.bf16.mxu0 %v4505
    %4867 = vmatpush1.bf16.msra.mxu0 %v4504
    %4868 = vmatprep.subr.bf16.mxu0 %v4507
    %4869 = vmatpush1.bf16.msra.mxu0 %v4506
    %4870 = vmatprep.subr.bf16.mxu0 %v4509
    %4871 = vmatpush1.bf16.msra.mxu0 %v4508
    %4872 = vmatprep.subr.bf16.mxu0 %v4511
    %4873 = vmatpush1.bf16.msra.mxu0 %v4510
    %4874 = vmatprep.subr.bf16.mxu0 %v4513
    %4875 = vmatpush1.bf16.msra.mxu0 %v4512
    %4876 = vmatprep.subr.bf16.mxu0 %v4515
    %4877 = vmatpush1.bf16.msra.mxu0 %v4514
    %4878 = vmatprep.subr.bf16.mxu0 %v4517
    %4879 = vmatpush1.bf16.msra.mxu0 %v4516
    %4880 = vmatprep.subr.bf16.mxu0 %v4519
    %4881 = vmatpush1.bf16.msra.mxu0 %v4518
    %4882 = vmatprep.subr.bf16.mxu0 %v4521
    %4883 = vmatpush1.bf16.msra.mxu0 %v4520
    %4884 = vmatprep.mubr.bf16.mxu0 %v3730
    %4885 = vmatmul.mubr.bf16.gmra.mrb[0].mxu0 %v3727
    %v4886 = vpop.f32.mrb[0].mxu0
    %v4887 = vadd.f32 %v4834, %v4886
    %v4888 = vpop.f32.mrb[0].mxu0
    %v4889 = vadd.f32 %v4836, %v4888
    %v4890 = vpop.f32.mrb[0].mxu0
    %v4891 = vadd.f32 %v4838, %v4890
    %v4892 = vpop.f32.mrb[0].mxu0
    %v4893 = vadd.f32 %v4840, %v4892
    %4894 = vmatprep.mubr.bf16.mxu0 %v3734
    %4895 = vmatmul.mubr.bf16.gmra.mrb[0].mxu0 %v3732
    %v4896 = vpop.f32.mrb[0].mxu0
    %v4897 = vadd.f32 %v4844, %v4896
    %v4898 = vpop.f32.mrb[0].mxu0
    %v4899 = vadd.f32 %v4846, %v4898
    %v4900 = vpop.f32.mrb[0].mxu0
    %v4901 = vadd.f32 %v4848, %v4900
    %v4902 = vpop.f32.mrb[0].mxu0
    %v4903 = vadd.f32 %v4850, %v4902
    %4904 = vdwg.mxu0
    %4905 = vmatprep.subr.bf16.mxu0 %v4523
    %4906 = vmatpush1.bf16.msra.mxu0 %v4522
    %4907 = vmatprep.subr.bf16.mxu0 %v4525
    %4908 = vmatpush1.bf16.msra.mxu0 %v4524
    %4909 = vmatprep.subr.bf16.mxu0 %v4527
    %4910 = vmatpush1.bf16.msra.mxu0 %v4526
    %4911 = vmatprep.subr.bf16.mxu0 %v4529
    %4912 = vmatpush1.bf16.msra.mxu0 %v4528
    %4913 = vmatprep.subr.bf16.mxu0 %v4531
    %4914 = vmatpush1.bf16.msra.mxu0 %v4530
    %4915 = vmatprep.subr.bf16.mxu0 %v4533
    %4916 = vmatpush1.bf16.msra.mxu0 %v4532
    %4917 = vmatprep.subr.bf16.mxu0 %v4535
    %4918 = vmatpush1.bf16.msra.mxu0 %v4534
    %4919 = vmatprep.subr.bf16.mxu0 %v4537
    %4920 = vmatpush1.bf16.msra.mxu0 %v4536
    %4921 = vmatprep.subr.bf16.mxu0 %v4539
    %4922 = vmatpush1.bf16.msra.mxu0 %v4538
    %4923 = vmatprep.subr.bf16.mxu0 %v4541
    %4924 = vmatpush1.bf16.msra.mxu0 %v4540
    %4925 = vmatprep.subr.bf16.mxu0 %v4543
    %4926 = vmatpush1.bf16.msra.mxu0 %v4542
    %4927 = vmatprep.subr.bf16.mxu0 %v4545
    %4928 = vmatpush1.bf16.msra.mxu0 %v4544
    %4929 = vmatprep.subr.bf16.mxu0 %v4547
    %4930 = vmatpush1.bf16.msra.mxu0 %v4546
    %4931 = vmatprep.subr.bf16.mxu0 %v4549
    %4932 = vmatpush1.bf16.msra.mxu0 %v4548
    %4933 = vmatprep.subr.bf16.mxu0 %v4551
    %4934 = vmatpush1.bf16.msra.mxu0 %v4550
    %4935 = vmatprep.subr.bf16.mxu0 %v4553
    %4936 = vmatpush1.bf16.msra.mxu0 %v4552
    %4937 = vmatprep.mubr.bf16.mxu0 %v3754
    %4938 = vmatmul.mubr.bf16.gmra.mrb[0].mxu0 %v3751
    %v4939 = vpop.f32.mrb[0].mxu0
    %v4940 = vadd.f32 %v4887, %v4939
    %v4941 = vpop.f32.mrb[0].mxu0
    %v4942 = vadd.f32 %v4889, %v4941
    %v4943 = vpop.f32.mrb[0].mxu0
    %v4944 = vadd.f32 %v4891, %v4943
    %v4945 = vpop.f32.mrb[0].mxu0
    %v4946 = vadd.f32 %v4893, %v4945
    %4947 = vmatprep.mubr.bf16.mxu0 %v3758
    %4948 = vmatmul.mubr.bf16.gmra.mrb[0].mxu0 %v3756
    %v4949 = vpop.f32.mrb[0].mxu0
    %v4950 = vadd.f32 %v4897, %v4949
    %v4951 = vpop.f32.mrb[0].mxu0
    %v4952 = vadd.f32 %v4899, %v4951
    %v4953 = vpop.f32.mrb[0].mxu0
    %v4954 = vadd.f32 %v4901, %v4953
    %v4955 = vpop.f32.mrb[0].mxu0
    %v4956 = vadd.f32 %v4903, %v4955
    %4957 = vdwg.mxu0
    %4958 = vmatprep.subr.bf16.mxu0 %v4555
    %4959 = vmatpush1.bf16.msra.mxu0 %v4554
    %4960 = vmatprep.subr.bf16.mxu0 %v4557
    %4961 = vmatpush1.bf16.msra.mxu0 %v4556
    %4962 = vmatprep.subr.bf16.mxu0 %v4559
    %4963 = vmatpush1.bf16.msra.mxu0 %v4558
    %4964 = vmatprep.subr.bf16.mxu0 %v4561
    %4965 = vmatpush1.bf16.msra.mxu0 %v4560
    %4966 = vmatprep.subr.bf16.mxu0 %v4563
    %4967 = vmatpush1.bf16.msra.mxu0 %v4562
    %4968 = vmatprep.subr.bf16.mxu0 %v4565
    %4969 = vmatpush1.bf16.msra.mxu0 %v4564
    %4970 = vmatprep.subr.bf16.mxu0 %v4567
    %4971 = vmatpush1.bf16.msra.mxu0 %v4566
    %4972 = vmatprep.subr.bf16.mxu0 %v4569
    %4973 = vmatpush1.bf16.msra.mxu0 %v4568
    %4974 = vmatprep.subr.bf16.mxu0 %v4571
    %4975 = vmatpush1.bf16.msra.mxu0 %v4570
    %4976 = vmatprep.subr.bf16.mxu0 %v4573
    %4977 = vmatpush1.bf16.msra.mxu0 %v4572
    %4978 = vmatprep.subr.bf16.mxu0 %v4575
    %4979 = vmatpush1.bf16.msra.mxu0 %v4574
    %4980 = vmatprep.subr.bf16.mxu0 %v4577
    %4981 = vmatpush1.bf16.msra.mxu0 %v4576
    %4982 = vmatprep.subr.bf16.mxu0 %v4579
    %4983 = vmatpush1.bf16.msra.mxu0 %v4578
    %4984 = vmatprep.subr.bf16.mxu0 %v4581
    %4985 = vmatpush1.bf16.msra.mxu0 %v4580
    %4986 = vmatprep.subr.bf16.mxu0 %v4583
    %4987 = vmatpush1.bf16.msra.mxu0 %v4582
    %4988 = vmatprep.subr.bf16.mxu0 %v4585
    %4989 = vmatpush1.bf16.msra.mxu0 %v4584
    %4990 = vmatprep.mubr.bf16.mxu0 %v3767
    %4991 = vmatmul.mubr.bf16.gmra.mrb[0].mxu0 %v3766
    %v4992 = vpop.f32.mrb[0].mxu0
    %v4993 = vadd.f32 %v4940, %v4992
    %v4994 = vpop.f32.mrb[0].mxu0
    %v4995 = vadd.f32 %v4942, %v4994
    %v4996 = vpop.f32.mrb[0].mxu0
    %v4997 = vadd.f32 %v4944, %v4996
    %v4998 = vpop.f32.mrb[0].mxu0
    %v4999 = vadd.f32 %v4946, %v4998
    %5000 = vmatprep.mubr.bf16.mxu0 %v3769
    %5001 = vmatmul.mubr.bf16.gmra.mrb[0].mxu0 %v3768
    %v5002 = vpop.f32.mrb[0].mxu0
    %v5003 = vadd.f32 %v4950, %v5002
    %v5004 = vpop.f32.mrb[0].mxu0
    %v5005 = vadd.f32 %v4952, %v5004
    %v5006 = vpop.f32.mrb[0].mxu0
    %v5007 = vadd.f32 %v4954, %v5006
    %v5008 = vpop.f32.mrb[0].mxu0
    %v5009 = vadd.f32 %v4956, %v5008
    %5010 = vdwg.mxu0
    %v5011 = vadd.f32 %v4993, %v4997
    %v5012 = vadd.f32 %v5011, %v5003
    %v5013 = vsel %vm3536, %v5007, 0.0
    %v5014 = vadd.f32 %v5012, %v5013
    %v5015 = vrot.slane %v5014, 4
    %v5016 = vadd.f32 %v5014, %v5015
    %v5017 = vrot.slane %v5016, 2
    %v5018 = vadd.f32 %v5016, %v5017
    %v5019 = vrot.slane %v5018, 1
    %v5020 = vadd.f32 %v5018, %v5019
    %v5021 = vadd.f32 %v4995, %v4999
    %v5022 = vadd.f32 %v5021, %v5005
    %v5023 = vsel %vm3536, %v5009, 0.0
    %v5024 = vadd.f32 %v5022, %v5023
    %v5025 = vrot.slane %v5024, 4
    %v5026 = vadd.f32 %v5024, %v5025
    %v5027 = vrot.slane %v5026, 2
    %v5028 = vadd.f32 %v5026, %v5027
    %v5029 = vrot.slane %v5028, 1
    %v5030 = vadd.f32 %v5028, %v5029
    %v5031 = vrcp.pop 30.0
    %v5032 = vmul.f32 %v5020, %v5031
    %v5033 = vmul.f32 %v5030, %v5031
    %v5034 = vsub.f32 %v4993, %v5032
    %v5035 = vsub.f32 %v4995, %v5033
    %v5036 = vsub.f32 %v4997, %v5032
    %v5037 = vsub.f32 %v4999, %v5033
    %v5038 = vsub.f32 %v5003, %v5032
    %v5039 = vsub.f32 %v5005, %v5033
    %v5040 = vsub.f32 %v5007, %v5032
    %v5041 = vsub.f32 %v5009, %v5033
    %v5042 = vmul.f32 %v5034, %v5034
    %v5043 = vmul.f32 %v5035, %v5035
    %v5044 = vmul.f32 %v5036, %v5036
    %v5045 = vmul.f32 %v5037, %v5037
    %v5046 = vmul.f32 %v5038, %v5038
    %v5047 = vmul.f32 %v5039, %v5039
    %v5048 = vmul.f32 %v5040, %v5040
    %v5049 = vmul.f32 %v5041, %v5041
    %v5050 = vadd.f32 %v5042, %v5044
    %v5051 = vadd.f32 %v5050, %v5046
    %v5052 = vsel %vm3536, %v5048, 0.0
    %v5053 = vadd.f32 %v5051, %v5052
    %v5054 = vrot.slane %v5053, 4
    %v5055 = vadd.f32 %v5053, %v5054
    %v5056 = vrot.slane %v5055, 2
    %v5057 = vadd.f32 %v5055, %v5056
    %v5058 = vrot.slane %v5057, 1
    %v5059 = vadd.f32 %v5057, %v5058
    %v5060 = vadd.f32 %v5043, %v5045
    %v5061 = vadd.f32 %v5060, %v5047
    %v5062 = vsel %vm3536, %v5049, 0.0
    %v5063 = vadd.f32 %v5061, %v5062
    %v5064 = vrot.slane %v5063, 4
    %v5065 = vadd.f32 %v5063, %v5064
    %v5066 = vrot.slane %v5065, 2
    %v5067 = vadd.f32 %v5065, %v5066
    %v5068 = vrot.slane %v5067, 1
    %v5069 = vadd.f32 %v5067, %v5068
    %v5070 = vmul.f32 %v5059, %v5031
    %v5071 = vmul.f32 %v5069, %v5031
    %v5072 = vadd.f32 %v5070, 1e-05
    %v5073 = vadd.f32 %v5071, 1e-05
    %v5074 = vrsqrt.pop %v5072
    %v5075 = vrsqrt.pop %v5073
    %v5076 = vmul.f32 %v5034, %v5074
    %v5077 = vmul.f32 %v5035, %v5075
    %v5078 = vmul.f32 %v5036, %v5074
    %v5079 = vmul.f32 %v5037, %v5075
    %v5080 = vmul.f32 %v5038, %v5074
    %v5081 = vmul.f32 %v5039, %v5075
    %v5082 = vmul.f32 %v5040, %v5074
    %v5083 = vmul.f32 %v5041, %v5075
    %v5084 = vld [vmem:[#allocation22] sm:$0x3]
    %v5086 = vlaneseq
    %v5087 = vshrl.u32 %v5086, 7
    %v5088 = vsub.s32 0, %v5087
    %v5089 = vrot.slane %v5084, %v5088
    %v5090 = vlaneseq
    %v5091 = vshrl.u32 %v5090, 7
    %v5092 = vsub.s32 1, %v5091
    %v5093 = vrot.slane %v5084, %v5092
    %v5096 = vmul.f32 %v5076, %v5089
    %v5097 = vmul.f32 %v5077, %v5093
    %v5098 = vmul.f32 %v5078, %v5089
    %v5099 = vmul.f32 %v5079, %v5093
    %v5100 = vmul.f32 %v5080, %v5089
    %v5101 = vmul.f32 %v5081, %v5093
    %v5102 = vmul.f32 %v5082, %v5089
    %v5103 = vmul.f32 %v5083, %v5093
    %v5104 = vld [vmem:[#allocation24] sm:$0x3]
    %v5106 = vlaneseq
    %v5107 = vshrl.u32 %v5106, 7
    %v5108 = vsub.s32 0, %v5107
    %v5109 = vrot.slane %v5104, %v5108
    %v5110 = vlaneseq
    %v5111 = vshrl.u32 %v5110, 7
    %v5112 = vsub.s32 1, %v5111
    %v5113 = vrot.slane %v5104, %v5112
    %v5116 = vadd.f32 %v5096, %v5109
    %v5117 = vadd.f32 %v5097, %v5113
    %v5118 = vadd.f32 %v5098, %v5109
    %v5119 = vadd.f32 %v5099, %v5113
    %v5120 = vadd.f32 %v5100, %v5109
    %v5121 = vadd.f32 %v5101, %v5113
    %v5122 = vadd.f32 %v5102, %v5109
    %v5123 = vadd.f32 %v5103, %v5113
    %v5124 = vmax.f32 %v5116, 0.0
    %v5125 = vmax.f32 %v5117, 0.0
    %v5126 = vmax.f32 %v5118, 0.0
    %v5127 = vmax.f32 %v5119, 0.0
    %v5128 = vmax.f32 %v5120, 0.0
    %v5129 = vmax.f32 %v5121, 0.0
    %v5130 = vmax.f32 %v5122, 0.0
    %v5131 = vmax.f32 %v5123, 0.0
    %v5132 = vpack.c.bf16 %v5126, %v5124
    %v5133 = vpack.c.bf16 %v5127, %v5125
    %v5134 = vpack.c.bf16 %v5130, %v5128
    %v5135 = vpack.c.bf16 %v5131, %v5129
    %v5140 = vunpack.c.l.b16 %v5132
    %v5141 = vunpack.c.l.b16 %v5133
    %v5142 = vunpack.c.h.b16 %v5132
    %v5143 = vunpack.c.h.b16 %v5133
    %v5144 = vunpack.c.l.b16 %v5134
    %v5145 = vunpack.c.l.b16 %v5135
    %v5146 = vunpack.c.h.b16 %v5134
    %v5147 = vunpack.c.h.b16 %v5135
    %v5148 = vpack.c.b16 %v5141, %v5140
    %v5149 = vpack.c.b16 %v5143, %v5142
    %v5150 = vpack.c.b16 %v5145, %v5144
    %v5151 = vpack.c.b16 %v5147, %v5146
    %vm5152 = vcmask 1040384
    %vm5153 = vcmask 1044484
    %vm5154 = vmor %vm5152, %vm5153
    %v5155 = vrot.slane %v5148, 7
    %v5156 = vrot.slane %v5155, 4
    %v5157 = vrot.slane %v5149, 7
    %v5158 = vsel %vm5154, %v5156, %v5157
    %v5159 = vrot.slane %v5157, 4
    %v5160 = vrot.slane %v5150, 7
    %v5161 = vsel %vm5154, %v5159, %v5160
    %v5162 = vrot.slane %v5160, 4
    %v5163 = vrot.slane %v5151, 7
    %v5164 = vsel %vm5154, %v5162, %v5163
    %5169 = vst [vmem:[#allocation4 + $0x8] sm:$0xee] %v5155
    %5170 = vst [vmem:[#allocation4 + $0x10] sm:$0xff] %v5158
    %5171 = vst [vmem:[#allocation4 + $0x18] sm:$0xff] %v5161
    %5172 = vst [vmem:[#allocation4 + $0x20] sm:$0xff] %v5164
    %v5173 = vld [vmem:[#allocation4] sm:$0xff]
    %v5174 = vld [vmem:[#allocation4 + $0x8] sm:$0xff]
    %v5175 = vld [vmem:[#allocation4 + $0x10] sm:$0xff]
    %v5176 = vld [vmem:[#allocation4 + $0x18] sm:$0xff]
    %v5177 = vld [vmem:[#allocation4 + $0x20] sm:$0xff]
    %v5178 = vld [vmem:[#allocation4] sm:$0xee]
    %v5179 = vld [vmem:[#allocation4 + $0x28] sm:$0x11]
    %v5180 = vld [vmem:[#allocation4] sm:$0xcc]
    %v5181 = vld [vmem:[#allocation4 + $0x28] sm:$0x33]
    %v5182 = vld [vmem:[#allocation4] sm:$0x88]
    %v5183 = vld [vmem:[#allocation4 + $0x28] sm:$0x77]
    %v5184 = vld [vmem:[#allocation4 + $0x28] sm:$0xff]
    %v5185 = vld [vmem:[#allocation4 + $0x8] sm:$0xee]
    %v5186 = vld [vmem:[#allocation4 + $0x30] sm:$0x11]
    %v5192 = vunpack.c.l.b16 %v5173
    %v5193 = vunpack.c.h.b16 %v5173
    %v5194 = vunpack.c.l.b16 %v5174
    %v5195 = vunpack.c.h.b16 %v5174
    %v5196 = vunpack.c.l.b16 %v5175
    %v5197 = vunpack.c.h.b16 %v5175
    %v5198 = vunpack.c.l.b16 %v5176
    %v5199 = vunpack.c.h.b16 %v5176
    %v5200 = vunpack.c.l.b16 %v5177
    %v5201 = vunpack.c.h.b16 %v5177
    %v5202 = vpack.c.b16 %v5194, %v5192
    %v5203 = vpack.c.b16 %v5195, %v5193
    %v5204 = vpack.c.b16 %v5198, %v5196
    %v5205 = vpack.c.b16 %v5199, %v5197
    %v5206 = vpack.c.b16 %v5200, %v5200
    %v5207 = vpack.c.b16 %v5201, %v5201
    %v5216 = vunpack.c.l.b16 %v5178
    %v5217 = vunpack.c.h.b16 %v5178
    %v5218 = vunpack.c.l.b16 %v5179
    %v5219 = vunpack.c.h.b16 %v5179
    %v5220 = vpack.c.b16 %v5194, %v5216
    %v5221 = vpack.c.b16 %v5195, %v5217
    %v5222 = vpack.c.b16 %v5218, %v5200
    %v5223 = vpack.c.b16 %v5219, %v5201
    %v5224 = vrot.slane %v5220, 1
    %v5225 = vrot.slane %v5204, 1
    %v5226 = vsel %vm1232, %v5224, %v5225
    %v5227 = vrot.slane %v5221, 1
    %v5228 = vrot.slane %v5205, 1
    %v5229 = vsel %vm1232, %v5227, %v5228
    %v5230 = vrot.slane %v5222, 1
    %v5231 = vsel %vm1232, %v5225, %v5230
    %v5232 = vrot.slane %v5223, 1
    %v5233 = vsel %vm1232, %v5228, %v5232
    %v5242 = vunpack.c.l.b16 %v5180
    %v5243 = vunpack.c.h.b16 %v5180
    %v5244 = vunpack.c.l.b16 %v5181
    %v5245 = vunpack.c.h.b16 %v5181
    %v5246 = vpack.c.b16 %v5194, %v5242
    %v5247 = vpack.c.b16 %v5195, %v5243
    %v5248 = vpack.c.b16 %v5244, %v5200
    %v5249 = vpack.c.b16 %v5245, %v5201
    %v5250 = vrot.slane %v5246, 2
    %v5251 = vrot.slane %v5204, 2
    %v5252 = vsel %vm1254, %v5250, %v5251
    %v5253 = vrot.slane %v5247, 2
    %v5254 = vrot.slane %v5205, 2
    %v5255 = vsel %vm1254, %v5253, %v5254
    %v5256 = vrot.slane %v5248, 2
    %v5257 = vsel %vm1254, %v5251, %v5256
    %v5258 = vrot.slane %v5249, 2
    %v5259 = vsel %vm1254, %v5254, %v5258
    %v5268 = vunpack.c.l.b16 %v5182
    %v5269 = vunpack.c.h.b16 %v5182
    %v5270 = vunpack.c.l.b16 %v5183
    %v5271 = vunpack.c.h.b16 %v5183
    %v5272 = vpack.c.b16 %v5194, %v5268
    %v5273 = vpack.c.b16 %v5195, %v5269
    %v5274 = vpack.c.b16 %v5270, %v5200
    %v5275 = vpack.c.b16 %v5271, %v5201
    %v5276 = vrot.slane %v5272, 3
    %v5277 = vrot.slane %v5204, 3
    %v5278 = vsel %vm1276, %v5276, %v5277
    %v5279 = vrot.slane %v5273, 3
    %v5280 = vrot.slane %v5205, 3
    %v5281 = vsel %vm1276, %v5279, %v5280
    %v5282 = vrot.slane %v5274, 3
    %v5283 = vsel %vm1276, %v5277, %v5282
    %v5284 = vrot.slane %v5275, 3
    %v5285 = vsel %vm1276, %v5280, %v5284
    %v5293 = vunpack.c.l.b16 %v5184
    %v5294 = vunpack.c.h.b16 %v5184
    %v5295 = vpack.c.b16 %v5196, %v5194
    %v5296 = vpack.c.b16 %v5197, %v5195
    %v5297 = vpack.c.b16 %v5200, %v5198
    %v5298 = vpack.c.b16 %v5201, %v5199
    %v5299 = vpack.c.b16 %v5293, %v5293
    %v5300 = vpack.c.b16 %v5294, %v5294
    %v5309 = vunpack.c.l.b16 %v5185
    %v5310 = vunpack.c.h.b16 %v5185
    %v5311 = vunpack.c.l.b16 %v5186
    %v5312 = vunpack.c.h.b16 %v5186
    %v5313 = vpack.c.b16 %v5196, %v5309
    %v5314 = vpack.c.b16 %v5197, %v5310
    %v5315 = vpack.c.b16 %v5311, %v5293
    %v5316 = vpack.c.b16 %v5312, %v5294
    %v5317 = vrot.slane %v5313, 1
    %v5318 = vrot.slane %v5297, 1
    %v5319 = vsel %vm1232, %v5317, %v5318
    %v5320 = vrot.slane %v5314, 1
    %v5321 = vrot.slane %v5298, 1
    %v5322 = vsel %vm1232, %v5320, %v5321
    %v5323 = vrot.slane %v5315, 1
    %v5324 = vsel %vm1232, %v5318, %v5323
    %v5325 = vrot.slane %v5316, 1
    %v5326 = vsel %vm1232, %v5321, %v5325
    %v5333 = vld [vmem:[#allocation25] sm:$0xf]
    %v5334 = vld [vmem:[#allocation25 + $0x4] sm:$0xf]
    %v5335 = vld [vmem:[#allocation25 + $0x8] sm:$0xf]
    %v5336 = vld [vmem:[#allocation25 + $0xc] sm:$0xf]
    %v5337 = vld [vmem:[#allocation25 + $0x10] sm:$0xf]
    %v5338 = vld [vmem:[#allocation25 + $0x14] sm:$0xf]
    %v5339 = vld [vmem:[#allocation25 + $0x18] sm:$0xf]
    %v5340 = vld [vmem:[#allocation25 + $0x1c] sm:$0xf]
    %v5341 = vld [vmem:[#allocation25 + $0x20] sm:$0xf]
    %v5342 = vld [vmem:[#allocation25 + $0x24] sm:$0xf]
    %v5343 = vld [vmem:[#allocation25 + $0x28] sm:$0xf]
    %v5344 = vld [vmem:[#allocation25 + $0x2c] sm:$0xf]
    %v5345 = vld [vmem:[#allocation25 + $0x30] sm:$0xf]
    %v5346 = vld [vmem:[#allocation25 + $0x34] sm:$0xf]
    %v5347 = vld [vmem:[#allocation25 + $0x38] sm:$0xf]
    %v5348 = vld [vmem:[#allocation25 + $0x3c] sm:$0xf]
    %v5349 = vld [vmem:[#allocation25 + $0x40] sm:$0xf]
    %v5350 = vld [vmem:[#allocation25 + $0x44] sm:$0xf]
    %v5351 = vld [vmem:[#allocation25 + $0x48] sm:$0xf]
    %v5352 = vld [vmem:[#allocation25 + $0x4c] sm:$0xf]
    %v5353 = vld [vmem:[#allocation25 + $0x50] sm:$0xf]
    %v5354 = vld [vmem:[#allocation25 + $0x54] sm:$0xf]
    %v5355 = vld [vmem:[#allocation25 + $0x58] sm:$0xf]
    %v5356 = vld [vmem:[#allocation25 + $0x5c] sm:$0xf]
    %v5357 = vld [vmem:[#allocation25 + $0x60] sm:$0xf]
    %v5358 = vld [vmem:[#allocation25 + $0x64] sm:$0xf]
    %v5359 = vld [vmem:[#allocation25 + $0x68] sm:$0xf]
    %v5360 = vld [vmem:[#allocation25 + $0x6c] sm:$0xf]
    %v5361 = vld [vmem:[#allocation25 + $0x70] sm:$0xf]
    %v5362 = vld [vmem:[#allocation25 + $0x74] sm:$0xf]
    %v5363 = vld [vmem:[#allocation25 + $0x78] sm:$0xf]
    %v5364 = vld [vmem:[#allocation25 + $0x7c] sm:$0xf]
    %v5365 = vld [vmem:[#allocation25 + $0x80] sm:$0xf]
    %v5366 = vld [vmem:[#allocation25 + $0x84] sm:$0xf]
    %v5367 = vld [vmem:[#allocation25 + $0x88] sm:$0xf]
    %v5368 = vld [vmem:[#allocation25 + $0x8c] sm:$0xf]
    %v5369 = vld [vmem:[#allocation25 + $0x90] sm:$0xf]
    %v5370 = vld [vmem:[#allocation25 + $0x94] sm:$0xf]
    %v5371 = vld [vmem:[#allocation25 + $0x98] sm:$0xf]
    %v5372 = vld [vmem:[#allocation25 + $0x9c] sm:$0xf]
    %v5373 = vld [vmem:[#allocation25 + $0xa0] sm:$0xf]
    %v5374 = vld [vmem:[#allocation25 + $0xa4] sm:$0xf]
    %v5375 = vld [vmem:[#allocation25 + $0xa8] sm:$0xf]
    %v5376 = vld [vmem:[#allocation25 + $0xac] sm:$0xf]
    %v5377 = vld [vmem:[#allocation25 + $0xb0] sm:$0xf]
    %v5378 = vld [vmem:[#allocation25 + $0xb4] sm:$0xf]
    %v5379 = vld [vmem:[#allocation25 + $0xb8] sm:$0xf]
    %v5380 = vld [vmem:[#allocation25 + $0xbc] sm:$0xf]
    %v5381 = vld [vmem:[#allocation25 + $0xc0] sm:$0xf]
    %v5382 = vld [vmem:[#allocation25 + $0xc4] sm:$0xf]
    %v5383 = vld [vmem:[#allocation25 + $0xc8] sm:$0xf]
    %v5384 = vld [vmem:[#allocation25 + $0xcc] sm:$0xf]
    %v5385 = vld [vmem:[#allocation25 + $0xd0] sm:$0xf]
    %v5386 = vld [vmem:[#allocation25 + $0xd4] sm:$0xf]
    %v5387 = vld [vmem:[#allocation25 + $0xd8] sm:$0xf]
    %v5388 = vld [vmem:[#allocation25 + $0xdc] sm:$0xf]
    %v5389 = vld [vmem:[#allocation25 + $0xe0] sm:$0xf]
    %v5390 = vld [vmem:[#allocation25 + $0xe4] sm:$0xf]
    %v5391 = vld [vmem:[#allocation25 + $0xe8] sm:$0xf]
    %v5392 = vld [vmem:[#allocation25 + $0xec] sm:$0xf]
    %v5393 = vld [vmem:[#allocation25 + $0xf0] sm:$0xf]
    %v5394 = vld [vmem:[#allocation25 + $0xf4] sm:$0xf]
    %v5395 = vld [vmem:[#allocation25 + $0xf8] sm:$0xf]
    %v5396 = vld [vmem:[#allocation25 + $0xfc] sm:$0xf]
    %v5397 = vld [vmem:[#allocation25 + $0x100] sm:$0xf]
    %v5398 = vld [vmem:[#allocation25 + $0x104] sm:$0xf]
    %v5399 = vld [vmem:[#allocation25 + $0x108] sm:$0xf]
    %v5400 = vld [vmem:[#allocation25 + $0x10c] sm:$0xf]
    %v5401 = vld [vmem:[#allocation25 + $0x110] sm:$0xf]
    %v5402 = vld [vmem:[#allocation25 + $0x114] sm:$0xf]
    %v5403 = vld [vmem:[#allocation25 + $0x118] sm:$0xf]
    %v5404 = vld [vmem:[#allocation25 + $0x11c] sm:$0xf]
    %v5405 = vld [vmem:[#allocation25 + $0x120] sm:$0xf]
    %v5406 = vld [vmem:[#allocation25 + $0x124] sm:$0xf]
    %v5407 = vld [vmem:[#allocation25 + $0x128] sm:$0xf]
    %v5408 = vld [vmem:[#allocation25 + $0x12c] sm:$0xf]
    %v5409 = vld [vmem:[#allocation25 + $0x130] sm:$0xf]
    %v5410 = vld [vmem:[#allocation25 + $0x134] sm:$0xf]
    %v5411 = vld [vmem:[#allocation25 + $0x138] sm:$0xf]
    %v5412 = vld [vmem:[#allocation25 + $0x13c] sm:$0xf]
    %v5413 = vld [vmem:[#allocation25 + $0x140] sm:$0xf]
    %v5414 = vld [vmem:[#allocation25 + $0x144] sm:$0xf]
    %v5415 = vld [vmem:[#allocation25 + $0x148] sm:$0xf]
    %v5416 = vld [vmem:[#allocation25 + $0x14c] sm:$0xf]
    %v5417 = vld [vmem:[#allocation25 + $0x150] sm:$0xf]
    %v5418 = vld [vmem:[#allocation25 + $0x154] sm:$0xf]
    %v5419 = vld [vmem:[#allocation25 + $0x158] sm:$0xf]
    %v5420 = vld [vmem:[#allocation25 + $0x15c] sm:$0xf]
    %v5421 = vld [vmem:[#allocation25 + $0x160] sm:$0xf]
    %v5422 = vld [vmem:[#allocation25 + $0x164] sm:$0xf]
    %v5423 = vld [vmem:[#allocation25 + $0x168] sm:$0xf]
    %v5424 = vld [vmem:[#allocation25 + $0x16c] sm:$0xf]
    %v5425 = vld [vmem:[#allocation25 + $0x170] sm:$0xf]
    %v5426 = vld [vmem:[#allocation25 + $0x174] sm:$0xf]
    %v5427 = vld [vmem:[#allocation25 + $0x178] sm:$0xf]
    %v5428 = vld [vmem:[#allocation25 + $0x17c] sm:$0xf]
    %v5429 = vld [vmem:[#allocation25 + $0x180] sm:$0xf]
    %v5430 = vld [vmem:[#allocation25 + $0x184] sm:$0xf]
    %v5431 = vld [vmem:[#allocation25 + $0x188] sm:$0xf]
    %v5432 = vld [vmem:[#allocation25 + $0x18c] sm:$0xf]
    %v5433 = vld [vmem:[#allocation25 + $0x190] sm:$0xf]
    %v5434 = vld [vmem:[#allocation25 + $0x194] sm:$0xf]
    %v5435 = vld [vmem:[#allocation25 + $0x198] sm:$0xf]
    %v5436 = vld [vmem:[#allocation25 + $0x19c] sm:$0xf]
    %v5437 = vld [vmem:[#allocation25 + $0x1a0] sm:$0xf]
    %v5438 = vld [vmem:[#allocation25 + $0x1a4] sm:$0xf]
    %v5439 = vld [vmem:[#allocation25 + $0x1a8] sm:$0xf]
    %v5440 = vld [vmem:[#allocation25 + $0x1ac] sm:$0xf]
    %v5441 = vld [vmem:[#allocation25 + $0x1b0] sm:$0xf]
    %v5442 = vld [vmem:[#allocation25 + $0x1b4] sm:$0xf]
    %v5443 = vld [vmem:[#allocation25 + $0x1b8] sm:$0xf]
    %v5444 = vld [vmem:[#allocation25 + $0x1bc] sm:$0xf]
    %v5445 = vld [vmem:[#allocation25 + $0x1c0] sm:$0xf]
    %v5446 = vld [vmem:[#allocation25 + $0x1c4] sm:$0xf]
    %v5447 = vld [vmem:[#allocation25 + $0x1c8] sm:$0xf]
    %v5448 = vld [vmem:[#allocation25 + $0x1cc] sm:$0xf]
    %v5449 = vld [vmem:[#allocation25 + $0x1d0] sm:$0xf]
    %v5450 = vld [vmem:[#allocation25 + $0x1d4] sm:$0xf]
    %v5451 = vld [vmem:[#allocation25 + $0x1d8] sm:$0xf]
    %v5452 = vld [vmem:[#allocation25 + $0x1dc] sm:$0xf]
    %v5453 = vld [vmem:[#allocation25 + $0x1e0] sm:$0xf]
    %v5454 = vld [vmem:[#allocation25 + $0x1e4] sm:$0xf]
    %v5455 = vld [vmem:[#allocation25 + $0x1e8] sm:$0xf]
    %v5456 = vld [vmem:[#allocation25 + $0x1ec] sm:$0xf]
    %v5457 = vld [vmem:[#allocation25 + $0x1f0] sm:$0xf]
    %v5458 = vld [vmem:[#allocation25 + $0x1f4] sm:$0xf]
    %v5459 = vld [vmem:[#allocation25 + $0x1f8] sm:$0xf]
    %v5460 = vld [vmem:[#allocation25 + $0x1fc] sm:$0xf]
    %v5461 = vld [vmem:[#allocation25 + $0x200] sm:$0xf]
    %v5462 = vld [vmem:[#allocation25 + $0x204] sm:$0xf]
    %v5463 = vld [vmem:[#allocation25 + $0x208] sm:$0xf]
    %v5464 = vld [vmem:[#allocation25 + $0x20c] sm:$0xf]
    %v5465 = vld [vmem:[#allocation25 + $0x210] sm:$0xf]
    %v5466 = vld [vmem:[#allocation25 + $0x214] sm:$0xf]
    %v5467 = vld [vmem:[#allocation25 + $0x218] sm:$0xf]
    %v5468 = vld [vmem:[#allocation25 + $0x21c] sm:$0xf]
    %v5469 = vld [vmem:[#allocation25 + $0x220] sm:$0xf]
    %v5470 = vld [vmem:[#allocation25 + $0x224] sm:$0xf]
    %v5471 = vld [vmem:[#allocation25 + $0x228] sm:$0xf]
    %v5472 = vld [vmem:[#allocation25 + $0x22c] sm:$0xf]
    %v5473 = vld [vmem:[#allocation25 + $0x230] sm:$0xf]
    %v5474 = vld [vmem:[#allocation25 + $0x234] sm:$0xf]
    %v5475 = vld [vmem:[#allocation25 + $0x238] sm:$0xf]
    %v5476 = vld [vmem:[#allocation25 + $0x23c] sm:$0xf]
    %v5477 = vld [vmem:[#allocation25 + $0x240] sm:$0xf]
    %v5478 = vld [vmem:[#allocation25 + $0x244] sm:$0xf]
    %v5479 = vld [vmem:[#allocation25 + $0x248] sm:$0xf]
    %v5480 = vld [vmem:[#allocation25 + $0x24c] sm:$0xf]
    %v5481 = vld [vmem:[#allocation25 + $0x250] sm:$0xf]
    %v5482 = vld [vmem:[#allocation25 + $0x254] sm:$0xf]
    %v5483 = vld [vmem:[#allocation25 + $0x258] sm:$0xf]
    %v5484 = vld [vmem:[#allocation25 + $0x25c] sm:$0xf]
    %v5485 = vld [vmem:[#allocation25 + $0x260] sm:$0xf]
    %v5486 = vld [vmem:[#allocation25 + $0x264] sm:$0xf]
    %v5487 = vld [vmem:[#allocation25 + $0x268] sm:$0xf]
    %v5488 = vld [vmem:[#allocation25 + $0x26c] sm:$0xf]
    %v5489 = vld [vmem:[#allocation25 + $0x270] sm:$0xf]
    %v5490 = vld [vmem:[#allocation25 + $0x274] sm:$0xf]
    %v5491 = vld [vmem:[#allocation25 + $0x278] sm:$0xf]
    %v5492 = vld [vmem:[#allocation25 + $0x27c] sm:$0xf]
    %v5493 = vld [vmem:[#allocation25 + $0x280] sm:$0xf]
    %v5494 = vld [vmem:[#allocation25 + $0x284] sm:$0xf]
    %v5495 = vld [vmem:[#allocation25 + $0x288] sm:$0xf]
    %v5496 = vld [vmem:[#allocation25 + $0x28c] sm:$0xf]
    %v5497 = vld [vmem:[#allocation25 + $0x290] sm:$0xf]
    %v5498 = vld [vmem:[#allocation25 + $0x294] sm:$0xf]
    %v5499 = vld [vmem:[#allocation25 + $0x298] sm:$0xf]
    %v5500 = vld [vmem:[#allocation25 + $0x29c] sm:$0xf]
    %v5501 = vld [vmem:[#allocation25 + $0x2a0] sm:$0xf]
    %v5502 = vld [vmem:[#allocation25 + $0x2a4] sm:$0xf]
    %v5503 = vld [vmem:[#allocation25 + $0x2a8] sm:$0xf]
    %v5504 = vld [vmem:[#allocation25 + $0x2ac] sm:$0xf]
    %v5505 = vld [vmem:[#allocation25 + $0x2b0] sm:$0xf]
    %v5506 = vld [vmem:[#allocation25 + $0x2b4] sm:$0xf]
    %v5507 = vld [vmem:[#allocation25 + $0x2b8] sm:$0xf]
    %v5508 = vld [vmem:[#allocation25 + $0x2bc] sm:$0xf]
    %v5509 = vld [vmem:[#allocation25 + $0x2c0] sm:$0xf]
    %v5510 = vld [vmem:[#allocation25 + $0x2c4] sm:$0xf]
    %v5511 = vld [vmem:[#allocation25 + $0x2c8] sm:$0xf]
    %v5512 = vld [vmem:[#allocation25 + $0x2cc] sm:$0xf]
    %v5513 = vld [vmem:[#allocation25 + $0x2d0] sm:$0xf]
    %v5514 = vld [vmem:[#allocation25 + $0x2d4] sm:$0xf]
    %v5515 = vld [vmem:[#allocation25 + $0x2d8] sm:$0xf]
    %v5516 = vld [vmem:[#allocation25 + $0x2dc] sm:$0xf]
    %v5517 = vld [vmem:[#allocation25 + $0x2e0] sm:$0xf]
    %v5518 = vld [vmem:[#allocation25 + $0x2e4] sm:$0xf]
    %v5519 = vld [vmem:[#allocation25 + $0x2e8] sm:$0xf]
    %v5520 = vld [vmem:[#allocation25 + $0x2ec] sm:$0xf]
    %v5521 = vld [vmem:[#allocation25 + $0x2f0] sm:$0xf]
    %v5522 = vld [vmem:[#allocation25 + $0x2f4] sm:$0xf]
    %v5523 = vld [vmem:[#allocation25 + $0x2f8] sm:$0xf]
    %v5524 = vld [vmem:[#allocation25 + $0x2fc] sm:$0xf]
    %v5525 = vld [vmem:[#allocation27] sm:$0x1]
    %v5527 = vlaneseq
    %v5528 = vshrl.u32 %v5527, 7
    %v5529 = vsub.s32 0, %v5528
    %v5530 = vrot.slane %v5525, %v5529
    %v5724 = vunpack.c.l.b16 %v5333
    %v5725 = vunpack.c.l.b16 %v5334
    %v5726 = vunpack.c.l.b16 %v5335
    %v5727 = vunpack.c.l.b16 %v5336
    %v5728 = vunpack.c.l.b16 %v5337
    %v5729 = vunpack.c.l.b16 %v5338
    %v5730 = vunpack.c.l.b16 %v5339
    %v5731 = vunpack.c.l.b16 %v5340
    %v5732 = vunpack.c.l.b16 %v5341
    %v5733 = vunpack.c.l.b16 %v5342
    %v5734 = vunpack.c.l.b16 %v5343
    %v5735 = vunpack.c.l.b16 %v5344
    %v5736 = vunpack.c.l.b16 %v5345
    %v5737 = vunpack.c.l.b16 %v5346
    %v5738 = vunpack.c.l.b16 %v5347
    %v5739 = vunpack.c.l.b16 %v5348
    %v5740 = vunpack.c.l.b16 %v5349
    %v5741 = vunpack.c.l.b16 %v5350
    %v5742 = vunpack.c.l.b16 %v5351
    %v5743 = vunpack.c.l.b16 %v5352
    %v5744 = vunpack.c.l.b16 %v5353
    %v5745 = vunpack.c.l.b16 %v5354
    %v5746 = vunpack.c.l.b16 %v5355
    %v5747 = vunpack.c.l.b16 %v5356
    %v5748 = vunpack.c.l.b16 %v5357
    %v5749 = vunpack.c.l.b16 %v5358
    %v5750 = vunpack.c.l.b16 %v5359
    %v5751 = vunpack.c.l.b16 %v5360
    %v5752 = vunpack.c.l.b16 %v5361
    %v5753 = vunpack.c.l.b16 %v5362
    %v5754 = vunpack.c.l.b16 %v5363
    %v5755 = vunpack.c.l.b16 %v5364
    %v5756 = vunpack.c.l.b16 %v5365
    %v5757 = vunpack.c.l.b16 %v5366
    %v5758 = vunpack.c.l.b16 %v5367
    %v5759 = vunpack.c.l.b16 %v5368
    %v5760 = vunpack.c.l.b16 %v5369
    %v5761 = vunpack.c.l.b16 %v5370
    %v5762 = vunpack.c.l.b16 %v5371
    %v5763 = vunpack.c.l.b16 %v5372
    %v5764 = vunpack.c.l.b16 %v5373
    %v5765 = vunpack.c.l.b16 %v5374
    %v5766 = vunpack.c.l.b16 %v5375
    %v5767 = vunpack.c.l.b16 %v5376
    %v5768 = vunpack.c.l.b16 %v5377
    %v5769 = vunpack.c.l.b16 %v5378
    %v5770 = vunpack.c.l.b16 %v5379
    %v5771 = vunpack.c.l.b16 %v5380
    %v5772 = vunpack.c.l.b16 %v5381
    %v5773 = vunpack.c.l.b16 %v5382
    %v5774 = vunpack.c.l.b16 %v5383
    %v5775 = vunpack.c.l.b16 %v5384
    %v5776 = vunpack.c.l.b16 %v5385
    %v5777 = vunpack.c.l.b16 %v5386
    %v5778 = vunpack.c.l.b16 %v5387
    %v5779 = vunpack.c.l.b16 %v5388
    %v5780 = vunpack.c.l.b16 %v5389
    %v5781 = vunpack.c.l.b16 %v5390
    %v5782 = vunpack.c.l.b16 %v5391
    %v5783 = vunpack.c.l.b16 %v5392
    %v5784 = vunpack.c.l.b16 %v5393
    %v5785 = vunpack.c.l.b16 %v5394
    %v5786 = vunpack.c.l.b16 %v5395
    %v5787 = vunpack.c.l.b16 %v5396
    %v5788 = vunpack.c.l.b16 %v5397
    %v5789 = vunpack.c.l.b16 %v5398
    %v5790 = vunpack.c.l.b16 %v5399
    %v5791 = vunpack.c.l.b16 %v5400
    %v5792 = vunpack.c.l.b16 %v5401
    %v5793 = vunpack.c.l.b16 %v5402
    %v5794 = vunpack.c.l.b16 %v5403
    %v5795 = vunpack.c.l.b16 %v5404
    %v5796 = vunpack.c.l.b16 %v5405
    %v5797 = vunpack.c.l.b16 %v5406
    %v5798 = vunpack.c.l.b16 %v5407
    %v5799 = vunpack.c.l.b16 %v5408
    %v5800 = vunpack.c.l.b16 %v5409
    %v5801 = vunpack.c.l.b16 %v5410
    %v5802 = vunpack.c.l.b16 %v5411
    %v5803 = vunpack.c.l.b16 %v5412
    %v5804 = vunpack.c.l.b16 %v5413
    %v5805 = vunpack.c.l.b16 %v5414
    %v5806 = vunpack.c.l.b16 %v5415
    %v5807 = vunpack.c.l.b16 %v5416
    %v5808 = vunpack.c.l.b16 %v5417
    %v5809 = vunpack.c.l.b16 %v5418
    %v5810 = vunpack.c.l.b16 %v5419
    %v5811 = vunpack.c.l.b16 %v5420
    %v5812 = vunpack.c.l.b16 %v5421
    %v5813 = vunpack.c.l.b16 %v5422
    %v5814 = vunpack.c.l.b16 %v5423
    %v5815 = vunpack.c.l.b16 %v5424
    %v5816 = vunpack.c.l.b16 %v5425
    %v5817 = vunpack.c.l.b16 %v5426
    %v5818 = vunpack.c.l.b16 %v5427
    %v5819 = vunpack.c.l.b16 %v5428
    %v5820 = vunpack.c.l.b16 %v5429
    %v5821 = vunpack.c.l.b16 %v5430
    %v5822 = vunpack.c.l.b16 %v5431
    %v5823 = vunpack.c.l.b16 %v5432
    %v5824 = vunpack.c.l.b16 %v5433
    %v5825 = vunpack.c.l.b16 %v5434
    %v5826 = vunpack.c.l.b16 %v5435
    %v5827 = vunpack.c.l.b16 %v5436
    %v5828 = vunpack.c.l.b16 %v5437
    %v5829 = vunpack.c.l.b16 %v5438
    %v5830 = vunpack.c.l.b16 %v5439
    %v5831 = vunpack.c.l.b16 %v5440
    %v5832 = vunpack.c.l.b16 %v5441
    %v5833 = vunpack.c.l.b16 %v5442
    %v5834 = vunpack.c.l.b16 %v5443
    %v5835 = vunpack.c.l.b16 %v5444
    %v5836 = vunpack.c.l.b16 %v5445
    %v5837 = vunpack.c.l.b16 %v5446
    %v5838 = vunpack.c.l.b16 %v5447
    %v5839 = vunpack.c.l.b16 %v5448
    %v5840 = vunpack.c.l.b16 %v5449
    %v5841 = vunpack.c.l.b16 %v5450
    %v5842 = vunpack.c.l.b16 %v5451
    %v5843 = vunpack.c.l.b16 %v5452
    %v5844 = vunpack.c.l.b16 %v5453
    %v5845 = vunpack.c.l.b16 %v5454
    %v5846 = vunpack.c.l.b16 %v5455
    %v5847 = vunpack.c.l.b16 %v5456
    %v5848 = vunpack.c.l.b16 %v5457
    %v5849 = vunpack.c.l.b16 %v5458
    %v5850 = vunpack.c.l.b16 %v5459
    %v5851 = vunpack.c.l.b16 %v5460
    %v5852 = vunpack.c.l.b16 %v5461
    %v5853 = vunpack.c.l.b16 %v5462
    %v5854 = vunpack.c.l.b16 %v5463
    %v5855 = vunpack.c.l.b16 %v5464
    %v5856 = vunpack.c.l.b16 %v5465
    %v5857 = vunpack.c.l.b16 %v5466
    %v5858 = vunpack.c.l.b16 %v5467
    %v5859 = vunpack.c.l.b16 %v5468
    %v5860 = vunpack.c.l.b16 %v5469
    %v5861 = vunpack.c.l.b16 %v5470
    %v5862 = vunpack.c.l.b16 %v5471
    %v5863 = vunpack.c.l.b16 %v5472
    %v5864 = vunpack.c.l.b16 %v5473
    %v5865 = vunpack.c.l.b16 %v5474
    %v5866 = vunpack.c.l.b16 %v5475
    %v5867 = vunpack.c.l.b16 %v5476
    %v5868 = vunpack.c.l.b16 %v5477
    %v5869 = vunpack.c.l.b16 %v5478
    %v5870 = vunpack.c.l.b16 %v5479
    %v5871 = vunpack.c.l.b16 %v5480
    %v5872 = vunpack.c.l.b16 %v5481
    %v5873 = vunpack.c.l.b16 %v5482
    %v5874 = vunpack.c.l.b16 %v5483
    %v5875 = vunpack.c.l.b16 %v5484
    %v5876 = vunpack.c.l.b16 %v5485
    %v5877 = vunpack.c.l.b16 %v5486
    %v5878 = vunpack.c.l.b16 %v5487
    %v5879 = vunpack.c.l.b16 %v5488
    %v5880 = vunpack.c.l.b16 %v5489
    %v5881 = vunpack.c.l.b16 %v5490
    %v5882 = vunpack.c.l.b16 %v5491
    %v5883 = vunpack.c.l.b16 %v5492
    %v5884 = vunpack.c.l.b16 %v5493
    %v5885 = vunpack.c.l.b16 %v5494
    %v5886 = vunpack.c.l.b16 %v5495
    %v5887 = vunpack.c.l.b16 %v5496
    %v5888 = vunpack.c.l.b16 %v5497
    %v5889 = vunpack.c.l.b16 %v5498
    %v5890 = vunpack.c.l.b16 %v5499
    %v5891 = vunpack.c.l.b16 %v5500
    %v5892 = vunpack.c.l.b16 %v5501
    %v5893 = vunpack.c.l.b16 %v5502
    %v5894 = vunpack.c.l.b16 %v5503
    %v5895 = vunpack.c.l.b16 %v5504
    %v5896 = vunpack.c.l.b16 %v5505
    %v5897 = vunpack.c.l.b16 %v5506
    %v5898 = vunpack.c.l.b16 %v5507
    %v5899 = vunpack.c.l.b16 %v5508
    %v5900 = vunpack.c.l.b16 %v5509
    %v5901 = vunpack.c.l.b16 %v5510
    %v5902 = vunpack.c.l.b16 %v5511
    %v5903 = vunpack.c.l.b16 %v5512
    %v5904 = vunpack.c.l.b16 %v5513
    %v5905 = vunpack.c.l.b16 %v5514
    %v5906 = vunpack.c.l.b16 %v5515
    %v5907 = vunpack.c.l.b16 %v5516
    %v5908 = vunpack.c.l.b16 %v5517
    %v5909 = vunpack.c.l.b16 %v5518
    %v5910 = vunpack.c.l.b16 %v5519
    %v5911 = vunpack.c.l.b16 %v5520
    %v5912 = vunpack.c.l.b16 %v5521
    %v5913 = vunpack.c.l.b16 %v5522
    %v5914 = vunpack.c.l.b16 %v5523
    %v5915 = vunpack.c.l.b16 %v5524
    %v5916 = vpack.c.b16 %v5725, %v5724
    %v5917 = vpack.c.b16 %v5727, %v5726
    %v5918 = vpack.c.b16 %v5729, %v5728
    %v5919 = vpack.c.b16 %v5731, %v5730
    %v5920 = vpack.c.b16 %v5733, %v5732
    %v5921 = vpack.c.b16 %v5735, %v5734
    %v5922 = vpack.c.b16 %v5737, %v5736
    %v5923 = vpack.c.b16 %v5739, %v5738
    %v5924 = vpack.c.b16 %v5741, %v5740
    %v5925 = vpack.c.b16 %v5743, %v5742
    %v5926 = vpack.c.b16 %v5745, %v5744
    %v5927 = vpack.c.b16 %v5747, %v5746
    %v5928 = vpack.c.b16 %v5749, %v5748
    %v5929 = vpack.c.b16 %v5751, %v5750
    %v5930 = vpack.c.b16 %v5753, %v5752
    %v5931 = vpack.c.b16 %v5755, %v5754
    %v5932 = vpack.c.b16 %v5757, %v5756
    %v5933 = vpack.c.b16 %v5759, %v5758
    %v5934 = vpack.c.b16 %v5761, %v5760
    %v5935 = vpack.c.b16 %v5763, %v5762
    %v5936 = vpack.c.b16 %v5765, %v5764
    %v5937 = vpack.c.b16 %v5767, %v5766
    %v5938 = vpack.c.b16 %v5769, %v5768
    %v5939 = vpack.c.b16 %v5771, %v5770
    %v5940 = vpack.c.b16 %v5773, %v5772
    %v5941 = vpack.c.b16 %v5775, %v5774
    %v5942 = vpack.c.b16 %v5777, %v5776
    %v5943 = vpack.c.b16 %v5779, %v5778
    %v5944 = vpack.c.b16 %v5781, %v5780
    %v5945 = vpack.c.b16 %v5783, %v5782
    %v5946 = vpack.c.b16 %v5785, %v5784
    %v5947 = vpack.c.b16 %v5787, %v5786
    %v5948 = vpack.c.b16 %v5789, %v5788
    %v5949 = vpack.c.b16 %v5791, %v5790
    %v5950 = vpack.c.b16 %v5793, %v5792
    %v5951 = vpack.c.b16 %v5795, %v5794
    %v5952 = vpack.c.b16 %v5797, %v5796
    %v5953 = vpack.c.b16 %v5799, %v5798
    %v5954 = vpack.c.b16 %v5801, %v5800
    %v5955 = vpack.c.b16 %v5803, %v5802
    %v5956 = vpack.c.b16 %v5805, %v5804
    %v5957 = vpack.c.b16 %v5807, %v5806
    %v5958 = vpack.c.b16 %v5809, %v5808
    %v5959 = vpack.c.b16 %v5811, %v5810
    %v5960 = vpack.c.b16 %v5813, %v5812
    %v5961 = vpack.c.b16 %v5815, %v5814
    %v5962 = vpack.c.b16 %v5817, %v5816
    %v5963 = vpack.c.b16 %v5819, %v5818
    %v5964 = vpack.c.b16 %v5821, %v5820
    %v5965 = vpack.c.b16 %v5823, %v5822
    %v5966 = vpack.c.b16 %v5825, %v5824
    %v5967 = vpack.c.b16 %v5827, %v5826
    %v5968 = vpack.c.b16 %v5829, %v5828
    %v5969 = vpack.c.b16 %v5831, %v5830
    %v5970 = vpack.c.b16 %v5833, %v5832
    %v5971 = vpack.c.b16 %v5835, %v5834
    %v5972 = vpack.c.b16 %v5837, %v5836
    %v5973 = vpack.c.b16 %v5839, %v5838
    %v5974 = vpack.c.b16 %v5841, %v5840
    %v5975 = vpack.c.b16 %v5843, %v5842
    %v5976 = vpack.c.b16 %v5845, %v5844
    %v5977 = vpack.c.b16 %v5847, %v5846
    %v5978 = vpack.c.b16 %v5849, %v5848
    %v5979 = vpack.c.b16 %v5851, %v5850
    %v5980 = vpack.c.b16 %v5853, %v5852
    %v5981 = vpack.c.b16 %v5855, %v5854
    %v5982 = vpack.c.b16 %v5857, %v5856
    %v5983 = vpack.c.b16 %v5859, %v5858
    %v5984 = vpack.c.b16 %v5861, %v5860
    %v5985 = vpack.c.b16 %v5863, %v5862
    %v5986 = vpack.c.b16 %v5865, %v5864
    %v5987 = vpack.c.b16 %v5867, %v5866
    %v5988 = vpack.c.b16 %v5869, %v5868
    %v5989 = vpack.c.b16 %v5871, %v5870
    %v5990 = vpack.c.b16 %v5873, %v5872
    %v5991 = vpack.c.b16 %v5875, %v5874
    %v5992 = vpack.c.b16 %v5877, %v5876
    %v5993 = vpack.c.b16 %v5879, %v5878
    %v5994 = vpack.c.b16 %v5881, %v5880
    %v5995 = vpack.c.b16 %v5883, %v5882
    %v5996 = vpack.c.b16 %v5885, %v5884
    %v5997 = vpack.c.b16 %v5887, %v5886
    %v5998 = vpack.c.b16 %v5889, %v5888
    %v5999 = vpack.c.b16 %v5891, %v5890
    %v6000 = vpack.c.b16 %v5893, %v5892
    %v6001 = vpack.c.b16 %v5895, %v5894
    %v6002 = vpack.c.b16 %v5897, %v5896
    %v6003 = vpack.c.b16 %v5899, %v5898
    %v6004 = vpack.c.b16 %v5901, %v5900
    %v6005 = vpack.c.b16 %v5903, %v5902
    %v6006 = vpack.c.b16 %v5905, %v5904
    %v6007 = vpack.c.b16 %v5907, %v5906
    %v6008 = vpack.c.b16 %v5909, %v5908
    %v6009 = vpack.c.b16 %v5911, %v5910
    %v6010 = vpack.c.b16 %v5913, %v5912
    %v6011 = vpack.c.b16 %v5915, %v5914
    %6108 = vmatprep.subr.bf16.mxu0 0
    %6109 = vmatpush1.bf16.msra.mxu0 %v5916
    %6110 = vmatprep.subr.bf16.mxu0 0
    %6111 = vmatpush1.bf16.msra.mxu0 %v5917
    %6112 = vmatprep.subr.bf16.mxu0 0
    %6113 = vmatpush1.bf16.msra.mxu0 %v5918
    %6114 = vmatprep.subr.bf16.mxu0 0
    %6115 = vmatpush1.bf16.msra.mxu0 %v5919
    %6116 = vmatprep.subr.bf16.mxu0 0
    %6117 = vmatpush1.bf16.msra.mxu0 %v5920
    %6118 = vmatprep.subr.bf16.mxu0 0
    %6119 = vmatpush1.bf16.msra.mxu0 %v5921
    %6120 = vmatprep.subr.bf16.mxu0 0
    %6121 = vmatpush1.bf16.msra.mxu0 %v5922
    %6122 = vmatprep.subr.bf16.mxu0 0
    %6123 = vmatpush1.bf16.msra.mxu0 %v5923
    %6124 = vmatprep.subr.bf16.mxu0 0
    %6125 = vmatpush1.bf16.msra.mxu0 %v5924
    %6126 = vmatprep.subr.bf16.mxu0 0
    %6127 = vmatpush1.bf16.msra.mxu0 %v5925
    %6128 = vmatprep.subr.bf16.mxu0 0
    %6129 = vmatpush1.bf16.msra.mxu0 %v5926
    %6130 = vmatprep.subr.bf16.mxu0 0
    %6131 = vmatpush1.bf16.msra.mxu0 %v5927
    %6132 = vmatprep.subr.bf16.mxu0 0
    %6133 = vmatpush1.bf16.msra.mxu0 %v5928
    %6134 = vmatprep.subr.bf16.mxu0 0
    %6135 = vmatpush1.bf16.msra.mxu0 %v5929
    %6136 = vmatprep.subr.bf16.mxu0 0
    %6137 = vmatpush1.bf16.msra.mxu0 %v5930
    %6138 = vmatprep.subr.bf16.mxu0 0
    %6139 = vmatpush1.bf16.msra.mxu0 %v5931
    %6140 = vmatprep.mubr.bf16.mxu0 %v5203
    %6141 = vmatmul.mubr.bf16.gmra.mrb[0].mxu0 %v5202
    %v6142 = vpop.f32.mrb[0].mxu0
    %v6143 = vadd.f32 %v5530, %v6142
    %v6144 = vpop.f32.mrb[0].mxu0
    %v6145 = vpop.f32.mrb[0].mxu0
    %v6146 = vadd.f32 %v5530, %v6145
    %v6147 = vpop.f32.mrb[0].mxu0
    %6148 = vmatprep.mubr.bf16.mxu0 %v5205
    %6149 = vmatmul.mubr.bf16.gmra.mrb[0].mxu0 %v5204
    %v6150 = vpop.f32.mrb[0].mxu0
    %v6151 = vadd.f32 %v5530, %v6150
    %v6152 = vpop.f32.mrb[0].mxu0
    %v6153 = vpop.f32.mrb[0].mxu0
    %v6154 = vadd.f32 %v5530, %v6153
    %v6155 = vpop.f32.mrb[0].mxu0
    %6156 = vmatprep.mubr.bf16.mxu0 %v5207
    %6157 = vmatmul.mubr.bf16.gmra.mrb[0].mxu0 %v5206
    %v6158 = vpop.f32.mrb[0].mxu0
    %v6159 = vadd.f32 %v5530, %v6158
    %v6160 = vpop.f32.mrb[0].mxu0
    %v6161 = vpop.f32.mrb[0].mxu0
    %v6162 = vpop.f32.mrb[0].mxu0
    %6163 = vdwg.mxu0
    %6164 = vmatprep.subr.bf16.mxu0 0
    %6165 = vmatpush1.bf16.msra.mxu0 %v5932
    %6166 = vmatprep.subr.bf16.mxu0 0
    %6167 = vmatpush1.bf16.msra.mxu0 %v5933
    %6168 = vmatprep.subr.bf16.mxu0 0
    %6169 = vmatpush1.bf16.msra.mxu0 %v5934
    %6170 = vmatprep.subr.bf16.mxu0 0
    %6171 = vmatpush1.bf16.msra.mxu0 %v5935
    %6172 = vmatprep.subr.bf16.mxu0 0
    %6173 = vmatpush1.bf16.msra.mxu0 %v5936
    %6174 = vmatprep.subr.bf16.mxu0 0
    %6175 = vmatpush1.bf16.msra.mxu0 %v5937
    %6176 = vmatprep.subr.bf16.mxu0 0
    %6177 = vmatpush1.bf16.msra.mxu0 %v5938
    %6178 = vmatprep.subr.bf16.mxu0 0
    %6179 = vmatpush1.bf16.msra.mxu0 %v5939
    %6180 = vmatprep.subr.bf16.mxu0 0
    %6181 = vmatpush1.bf16.msra.mxu0 %v5940
    %6182 = vmatprep.subr.bf16.mxu0 0
    %6183 = vmatpush1.bf16.msra.mxu0 %v5941
    %6184 = vmatprep.subr.bf16.mxu0 0
    %6185 = vmatpush1.bf16.msra.mxu0 %v5942
    %6186 = vmatprep.subr.bf16.mxu0 0
    %6187 = vmatpush1.bf16.msra.mxu0 %v5943
    %6188 = vmatprep.subr.bf16.mxu0 0
    %6189 = vmatpush1.bf16.msra.mxu0 %v5944
    %6190 = vmatprep.subr.bf16.mxu0 0
    %6191 = vmatpush1.bf16.msra.mxu0 %v5945
    %6192 = vmatprep.subr.bf16.mxu0 0
    %6193 = vmatpush1.bf16.msra.mxu0 %v5946
    %6194 = vmatprep.subr.bf16.mxu0 0
    %6195 = vmatpush1.bf16.msra.mxu0 %v5947
    %6196 = vmatprep.mubr.bf16.mxu0 %v5229
    %6197 = vmatmul.mubr.bf16.gmra.mrb[0].mxu0 %v5226
    %v6198 = vpop.f32.mrb[0].mxu0
    %v6199 = vadd.f32 %v6143, %v6198
    %v6200 = vpop.f32.mrb[0].mxu0
    %v6201 = vpop.f32.mrb[0].mxu0
    %v6202 = vadd.f32 %v6146, %v6201
    %v6203 = vpop.f32.mrb[0].mxu0
    %6204 = vmatprep.mubr.bf16.mxu0 %v5233
    %6205 = vmatmul.mubr.bf16.gmra.mrb[0].mxu0 %v5231
    %v6206 = vpop.f32.mrb[0].mxu0
    %v6207 = vadd.f32 %v6151, %v6206
    %v6208 = vpop.f32.mrb[0].mxu0
    %v6209 = vpop.f32.mrb[0].mxu0
    %v6210 = vadd.f32 %v6154, %v6209
    %v6211 = vpop.f32.mrb[0].mxu0
    %6212 = vmatprep.mubr.bf16.mxu0 %v5232
    %6213 = vmatmul.mubr.bf16.gmra.mrb[0].mxu0 %v5230
    %v6214 = vpop.f32.mrb[0].mxu0
    %v6215 = vadd.f32 %v6159, %v6214
    %v6216 = vpop.f32.mrb[0].mxu0
    %v6217 = vpop.f32.mrb[0].mxu0
    %v6218 = vpop.f32.mrb[0].mxu0
    %6219 = vdwg.mxu0
    %6220 = vmatprep.subr.bf16.mxu0 0
    %6221 = vmatpush1.bf16.msra.mxu0 %v5948
    %6222 = vmatprep.subr.bf16.mxu0 0
    %6223 = vmatpush1.bf16.msra.mxu0 %v5949
    %6224 = vmatprep.subr.bf16.mxu0 0
    %6225 = vmatpush1.bf16.msra.mxu0 %v5950
    %6226 = vmatprep.subr.bf16.mxu0 0
    %6227 = vmatpush1.bf16.msra.mxu0 %v5951
    %6228 = vmatprep.subr.bf16.mxu0 0
    %6229 = vmatpush1.bf16.msra.mxu0 %v5952
    %6230 = vmatprep.subr.bf16.mxu0 0
    %6231 = vmatpush1.bf16.msra.mxu0 %v5953
    %6232 = vmatprep.subr.bf16.mxu0 0
    %6233 = vmatpush1.bf16.msra.mxu0 %v5954
    %6234 = vmatprep.subr.bf16.mxu0 0
    %6235 = vmatpush1.bf16.msra.mxu0 %v5955
    %6236 = vmatprep.subr.bf16.mxu0 0
    %6237 = vmatpush1.bf16.msra.mxu0 %v5956
    %6238 = vmatprep.subr.bf16.mxu0 0
    %6239 = vmatpush1.bf16.msra.mxu0 %v5957
    %6240 = vmatprep.subr.bf16.mxu0 0
    %6241 = vmatpush1.bf16.msra.mxu0 %v5958
    %6242 = vmatprep.subr.bf16.mxu0 0
    %6243 = vmatpush1.bf16.msra.mxu0 %v5959
    %6244 = vmatprep.subr.bf16.mxu0 0
    %6245 = vmatpush1.bf16.msra.mxu0 %v5960
    %6246 = vmatprep.subr.bf16.mxu0 0
    %6247 = vmatpush1.bf16.msra.mxu0 %v5961
    %6248 = vmatprep.subr.bf16.mxu0 0
    %6249 = vmatpush1.bf16.msra.mxu0 %v5962
    %6250 = vmatprep.subr.bf16.mxu0 0
    %6251 = vmatpush1.bf16.msra.mxu0 %v5963
    %6252 = vmatprep.mubr.bf16.mxu0 %v5255
    %6253 = vmatmul.mubr.bf16.gmra.mrb[0].mxu0 %v5252
    %v6254 = vpop.f32.mrb[0].mxu0
    %v6255 = vadd.f32 %v6199, %v6254
    %v6256 = vpop.f32.mrb[0].mxu0
    %v6257 = vpop.f32.mrb[0].mxu0
    %v6258 = vadd.f32 %v6202, %v6257
    %v6259 = vpop.f32.mrb[0].mxu0
    %6260 = vmatprep.mubr.bf16.mxu0 %v5259
    %6261 = vmatmul.mubr.bf16.gmra.mrb[0].mxu0 %v5257
    %v6262 = vpop.f32.mrb[0].mxu0
    %v6263 = vadd.f32 %v6207, %v6262
    %v6264 = vpop.f32.mrb[0].mxu0
    %v6265 = vpop.f32.mrb[0].mxu0
    %v6266 = vadd.f32 %v6210, %v6265
    %v6267 = vpop.f32.mrb[0].mxu0
    %6268 = vmatprep.mubr.bf16.mxu0 %v5258
    %6269 = vmatmul.mubr.bf16.gmra.mrb[0].mxu0 %v5256
    %v6270 = vpop.f32.mrb[0].mxu0
    %v6271 = vadd.f32 %v6215, %v6270
    %v6272 = vpop.f32.mrb[0].mxu0
    %v6273 = vpop.f32.mrb[0].mxu0
    %v6274 = vpop.f32.mrb[0].mxu0
    %6275 = vdwg.mxu0
    %6276 = vmatprep.subr.bf16.mxu0 0
    %6277 = vmatpush1.bf16.msra.mxu0 %v5964
    %6278 = vmatprep.subr.bf16.mxu0 0
    %6279 = vmatpush1.bf16.msra.mxu0 %v5965
    %6280 = vmatprep.subr.bf16.mxu0 0
    %6281 = vmatpush1.bf16.msra.mxu0 %v5966
    %6282 = vmatprep.subr.bf16.mxu0 0
    %6283 = vmatpush1.bf16.msra.mxu0 %v5967
    %6284 = vmatprep.subr.bf16.mxu0 0
    %6285 = vmatpush1.bf16.msra.mxu0 %v5968
    %6286 = vmatprep.subr.bf16.mxu0 0
    %6287 = vmatpush1.bf16.msra.mxu0 %v5969
    %6288 = vmatprep.subr.bf16.mxu0 0
    %6289 = vmatpush1.bf16.msra.mxu0 %v5970
    %6290 = vmatprep.subr.bf16.mxu0 0
    %6291 = vmatpush1.bf16.msra.mxu0 %v5971
    %6292 = vmatprep.subr.bf16.mxu0 0
    %6293 = vmatpush1.bf16.msra.mxu0 %v5972
    %6294 = vmatprep.subr.bf16.mxu0 0
    %6295 = vmatpush1.bf16.msra.mxu0 %v5973
    %6296 = vmatprep.subr.bf16.mxu0 0
    %6297 = vmatpush1.bf16.msra.mxu0 %v5974
    %6298 = vmatprep.subr.bf16.mxu0 0
    %6299 = vmatpush1.bf16.msra.mxu0 %v5975
    %6300 = vmatprep.subr.bf16.mxu0 0
    %6301 = vmatpush1.bf16.msra.mxu0 %v5976
    %6302 = vmatprep.subr.bf16.mxu0 0
    %6303 = vmatpush1.bf16.msra.mxu0 %v5977
    %6304 = vmatprep.subr.bf16.mxu0 0
    %6305 = vmatpush1.bf16.msra.mxu0 %v5978
    %6306 = vmatprep.subr.bf16.mxu0 0
    %6307 = vmatpush1.bf16.msra.mxu0 %v5979
    %6308 = vmatprep.mubr.bf16.mxu0 %v5281
    %6309 = vmatmul.mubr.bf16.gmra.mrb[0].mxu0 %v5278
    %v6310 = vpop.f32.mrb[0].mxu0
    %v6311 = vadd.f32 %v6255, %v6310
    %v6312 = vpop.f32.mrb[0].mxu0
    %v6313 = vpop.f32.mrb[0].mxu0
    %v6314 = vadd.f32 %v6258, %v6313
    %v6315 = vpop.f32.mrb[0].mxu0
    %6316 = vmatprep.mubr.bf16.mxu0 %v5285
    %6317 = vmatmul.mubr.bf16.gmra.mrb[0].mxu0 %v5283
    %v6318 = vpop.f32.mrb[0].mxu0
    %v6319 = vadd.f32 %v6263, %v6318
    %v6320 = vpop.f32.mrb[0].mxu0
    %v6321 = vpop.f32.mrb[0].mxu0
    %v6322 = vadd.f32 %v6266, %v6321
    %v6323 = vpop.f32.mrb[0].mxu0
    %6324 = vmatprep.mubr.bf16.mxu0 %v5284
    %6325 = vmatmul.mubr.bf16.gmra.mrb[0].mxu0 %v5282
    %v6326 = vpop.f32.mrb[0].mxu0
    %v6327 = vadd.f32 %v6271, %v6326
    %v6328 = vpop.f32.mrb[0].mxu0
    %v6329 = vpop.f32.mrb[0].mxu0
    %v6330 = vpop.f32.mrb[0].mxu0
    %6331 = vdwg.mxu0
    %6332 = vmatprep.subr.bf16.mxu0 0
    %6333 = vmatpush1.bf16.msra.mxu0 %v5980
    %6334 = vmatprep.subr.bf16.mxu0 0
    %6335 = vmatpush1.bf16.msra.mxu0 %v5981
    %6336 = vmatprep.subr.bf16.mxu0 0
    %6337 = vmatpush1.bf16.msra.mxu0 %v5982
    %6338 = vmatprep.subr.bf16.mxu0 0
    %6339 = vmatpush1.bf16.msra.mxu0 %v5983
    %6340 = vmatprep.subr.bf16.mxu0 0
    %6341 = vmatpush1.bf16.msra.mxu0 %v5984
    %6342 = vmatprep.subr.bf16.mxu0 0
    %6343 = vmatpush1.bf16.msra.mxu0 %v5985
    %6344 = vmatprep.subr.bf16.mxu0 0
    %6345 = vmatpush1.bf16.msra.mxu0 %v5986
    %6346 = vmatprep.subr.bf16.mxu0 0
    %6347 = vmatpush1.bf16.msra.mxu0 %v5987
    %6348 = vmatprep.subr.bf16.mxu0 0
    %6349 = vmatpush1.bf16.msra.mxu0 %v5988
    %6350 = vmatprep.subr.bf16.mxu0 0
    %6351 = vmatpush1.bf16.msra.mxu0 %v5989
    %6352 = vmatprep.subr.bf16.mxu0 0
    %6353 = vmatpush1.bf16.msra.mxu0 %v5990
    %6354 = vmatprep.subr.bf16.mxu0 0
    %6355 = vmatpush1.bf16.msra.mxu0 %v5991
    %6356 = vmatprep.subr.bf16.mxu0 0
    %6357 = vmatpush1.bf16.msra.mxu0 %v5992
    %6358 = vmatprep.subr.bf16.mxu0 0
    %6359 = vmatpush1.bf16.msra.mxu0 %v5993
    %6360 = vmatprep.subr.bf16.mxu0 0
    %6361 = vmatpush1.bf16.msra.mxu0 %v5994
    %6362 = vmatprep.subr.bf16.mxu0 0
    %6363 = vmatpush1.bf16.msra.mxu0 %v5995
    %6364 = vmatprep.mubr.bf16.mxu0 %v5296
    %6365 = vmatmul.mubr.bf16.gmra.mrb[0].mxu0 %v5295
    %v6366 = vpop.f32.mrb[0].mxu0
    %v6367 = vadd.f32 %v6311, %v6366
    %v6368 = vpop.f32.mrb[0].mxu0
    %v6369 = vpop.f32.mrb[0].mxu0
    %v6370 = vadd.f32 %v6314, %v6369
    %v6371 = vpop.f32.mrb[0].mxu0
    %6372 = vmatprep.mubr.bf16.mxu0 %v5298
    %6373 = vmatmul.mubr.bf16.gmra.mrb[0].mxu0 %v5297
    %v6374 = vpop.f32.mrb[0].mxu0
    %v6375 = vadd.f32 %v6319, %v6374
    %v6376 = vpop.f32.mrb[0].mxu0
    %v6377 = vpop.f32.mrb[0].mxu0
    %v6378 = vadd.f32 %v6322, %v6377
    %v6379 = vpop.f32.mrb[0].mxu0
    %6380 = vmatprep.mubr.bf16.mxu0 %v5300
    %6381 = vmatmul.mubr.bf16.gmra.mrb[0].mxu0 %v5299
    %v6382 = vpop.f32.mrb[0].mxu0
    %v6383 = vadd.f32 %v6327, %v6382
    %v6384 = vpop.f32.mrb[0].mxu0
    %v6385 = vpop.f32.mrb[0].mxu0
    %v6386 = vpop.f32.mrb[0].mxu0
    %6387 = vdwg.mxu0
    %6388 = vmatprep.subr.bf16.mxu0 0
    %6389 = vmatpush1.bf16.msra.mxu0 %v5996
    %6390 = vmatprep.subr.bf16.mxu0 0
    %6391 = vmatpush1.bf16.msra.mxu0 %v5997
    %6392 = vmatprep.subr.bf16.mxu0 0
    %6393 = vmatpush1.bf16.msra.mxu0 %v5998
    %6394 = vmatprep.subr.bf16.mxu0 0
    %6395 = vmatpush1.bf16.msra.mxu0 %v5999
    %6396 = vmatprep.subr.bf16.mxu0 0
    %6397 = vmatpush1.bf16.msra.mxu0 %v6000
    %6398 = vmatprep.subr.bf16.mxu0 0
    %6399 = vmatpush1.bf16.msra.mxu0 %v6001
    %6400 = vmatprep.subr.bf16.mxu0 0
    %6401 = vmatpush1.bf16.msra.mxu0 %v6002
    %6402 = vmatprep.subr.bf16.mxu0 0
    %6403 = vmatpush1.bf16.msra.mxu0 %v6003
    %6404 = vmatprep.subr.bf16.mxu0 0
    %6405 = vmatpush1.bf16.msra.mxu0 %v6004
    %6406 = vmatprep.subr.bf16.mxu0 0
    %6407 = vmatpush1.bf16.msra.mxu0 %v6005
    %6408 = vmatprep.subr.bf16.mxu0 0
    %6409 = vmatpush1.bf16.msra.mxu0 %v6006
    %6410 = vmatprep.subr.bf16.mxu0 0
    %6411 = vmatpush1.bf16.msra.mxu0 %v6007
    %6412 = vmatprep.subr.bf16.mxu0 0
    %6413 = vmatpush1.bf16.msra.mxu0 %v6008
    %6414 = vmatprep.subr.bf16.mxu0 0
    %6415 = vmatpush1.bf16.msra.mxu0 %v6009
    %6416 = vmatprep.subr.bf16.mxu0 0
    %6417 = vmatpush1.bf16.msra.mxu0 %v6010
    %6418 = vmatprep.subr.bf16.mxu0 0
    %6419 = vmatpush1.bf16.msra.mxu0 %v6011
    %6420 = vmatprep.mubr.bf16.mxu0 %v5322
    %6421 = vmatmul.mubr.bf16.gmra.mrb[0].mxu0 %v5319
    %v6422 = vpop.f32.mrb[0].mxu0
    %v6423 = vadd.f32 %v6367, %v6422
    %v6424 = vpop.f32.mrb[0].mxu0
    %v6425 = vpop.f32.mrb[0].mxu0
    %v6426 = vadd.f32 %v6370, %v6425
    %v6427 = vpop.f32.mrb[0].mxu0
    %6428 = vmatprep.mubr.bf16.mxu0 %v5326
    %6429 = vmatmul.mubr.bf16.gmra.mrb[0].mxu0 %v5324
    %v6430 = vpop.f32.mrb[0].mxu0
    %v6431 = vadd.f32 %v6375, %v6430
    %v6432 = vpop.f32.mrb[0].mxu0
    %v6433 = vpop.f32.mrb[0].mxu0
    %v6434 = vadd.f32 %v6378, %v6433
    %v6435 = vpop.f32.mrb[0].mxu0
    %6436 = vmatprep.mubr.bf16.mxu0 %v5325
    %6437 = vmatmul.mubr.bf16.gmra.mrb[0].mxu0 %v5323
    %v6438 = vpop.f32.mrb[0].mxu0
    %v6439 = vadd.f32 %v6383, %v6438
    %v6440 = vpop.f32.mrb[0].mxu0
    %v6441 = vpop.f32.mrb[0].mxu0
    %v6442 = vpop.f32.mrb[0].mxu0
    %6443 = vdwg.mxu0
    %v6444 = vadd.f32 %v6423, %v6426
    %v6445 = vadd.f32 %v6444, %v6431
    %v6446 = vadd.f32 %v6445, %v6434
    %v6447 = vadd.f32 %v6446, %v6439
    %v6448 = vrot.slane %v6447, 4
    %v6449 = vadd.f32 %v6447, %v6448
    %v6450 = vrot.slane %v6449, 2
    %v6451 = vadd.f32 %v6449, %v6450
    %v6452 = vrot.slane %v6451, 1
    %v6453 = vadd.f32 %v6451, %v6452
    %v6454 = vrcp.pop 40.0
    %v6455 = vmul.f32 %v6453, %v6454
    %v6456 = vsub.f32 %v6423, %v6455
    %v6457 = vsub.f32 %v6426, %v6455
    %v6458 = vsub.f32 %v6431, %v6455
    %v6459 = vsub.f32 %v6434, %v6455
    %v6460 = vsub.f32 %v6439, %v6455
    %v6461 = vmul.f32 %v6456, %v6456
    %v6462 = vmul.f32 %v6457, %v6457
    %v6463 = vmul.f32 %v6458, %v6458
    %v6464 = vmul.f32 %v6459, %v6459
    %v6465 = vmul.f32 %v6460, %v6460
    %v6466 = vadd.f32 %v6461, %v6462
    %v6467 = vadd.f32 %v6466, %v6463
    %v6468 = vadd.f32 %v6467, %v6464
    %v6469 = vadd.f32 %v6468, %v6465
    %v6470 = vrot.slane %v6469, 4
    %v6471 = vadd.f32 %v6469, %v6470
    %v6472 = vrot.slane %v6471, 2
    %v6473 = vadd.f32 %v6471, %v6472
    %v6474 = vrot.slane %v6473, 1
    %v6475 = vadd.f32 %v6473, %v6474
    %v6476 = vmul.f32 %v6475, %v6454
    %v6477 = vadd.f32 %v6476, 1e-05
    %v6478 = vrsqrt.pop %v6477
    %v6479 = vmul.f32 %v6456, %v6478
    %v6480 = vmul.f32 %v6457, %v6478
    %v6481 = vmul.f32 %v6458, %v6478
    %v6482 = vmul.f32 %v6459, %v6478
    %v6483 = vmul.f32 %v6460, %v6478
    %v6484 = vld [vmem:[#allocation28] sm:$0x1]
    %v6486 = vlaneseq
    %v6487 = vshrl.u32 %v6486, 7
    %v6488 = vsub.s32 0, %v6487
    %v6489 = vrot.slane %v6484, %v6488
    %v6491 = vmul.f32 %v6479, %v6489
    %v6492 = vmul.f32 %v6480, %v6489
    %v6493 = vmul.f32 %v6481, %v6489
    %v6494 = vmul.f32 %v6482, %v6489
    %v6495 = vmul.f32 %v6483, %v6489
    %v6496 = vld [vmem:[#allocation30] sm:$0x1]
    %v6498 = vlaneseq
    %v6499 = vshrl.u32 %v6498, 7
    %v6500 = vsub.s32 0, %v6499
    %v6501 = vrot.slane %v6496, %v6500
    %v6503 = vadd.f32 %v6491, %v6501
    %v6504 = vadd.f32 %v6492, %v6501
    %v6505 = vadd.f32 %v6493, %v6501
    %v6506 = vadd.f32 %v6494, %v6501
    %v6507 = vadd.f32 %v6495, %v6501
    %v6508 = vmax.f32 %v6503, 0.0
    %v6509 = vmax.f32 %v6504, 0.0
    %v6510 = vmax.f32 %v6505, 0.0
    %v6511 = vmax.f32 %v6506, 0.0
    %v6512 = vmax.f32 %v6507, 0.0
    %v6513 = vpack.c.bf16 %v6509, %v6508
    %v6514 = vpack.c.bf16 %v6511, %v6510
    %v6515 = vpack.c.bf16 %v6512, %v6512
    %v6519 = vunpack.c.l.b16 %v6513
    %v6520 = vunpack.c.h.b16 %v6513
    %v6521 = vunpack.c.l.b16 %v6514
    %v6522 = vunpack.c.h.b16 %v6514
    %v6523 = vunpack.c.l.b16 %v6515
    %v6524 = vpack.c.b16 %v6519, %v6519
    %v6525 = vpack.c.b16 %v6520, %v6520
    %v6526 = vpack.c.b16 %v6521, %v6521
    %v6527 = vpack.c.b16 %v6522, %v6522
    %v6528 = vpack.c.b16 %v6523, %v6523
    %6534 = vst [vmem:[#allocation5 + $0x4] sm:$0xf] %v6524
    %6535 = vst [vmem:[#allocation5 + $0x8] sm:$0xf] %v6525
    %6536 = vst [vmem:[#allocation5 + $0xc] sm:$0xf] %v6526
    %6537 = vst [vmem:[#allocation5 + $0x10] sm:$0xf] %v6527
    %6538 = vst [vmem:[#allocation5 + $0x14] sm:$0xf] %v6528
    %v6539 = vld [vmem:[#allocation5] sm:$0xf]
    %v6540 = vld [vmem:[#allocation5 + $0x4] sm:$0xf]
    %v6541 = vld [vmem:[#allocation5 + $0x8] sm:$0xf]
    %v6542 = vld [vmem:[#allocation5 + $0xc] sm:$0xf]
    %v6543 = vld [vmem:[#allocation5 + $0x10] sm:$0xf]
    %v6544 = vld [vmem:[#allocation5] sm:$0xe]
    %v6545 = vld [vmem:[#allocation5 + $0x14] sm:$0x1]
    %v6546 = vld [vmem:[#allocation5] sm:$0xc]
    %v6547 = vld [vmem:[#allocation5 + $0x14] sm:$0x3]
    %v6548 = vld [vmem:[#allocation5] sm:$0x8]
    %v6549 = vld [vmem:[#allocation5 + $0x14] sm:$0x7]
    %v6550 = vld [vmem:[#allocation5 + $0x14] sm:$0xf]
    %v6551 = vld [vmem:[#allocation5 + $0x4] sm:$0xe]
    %v6552 = vld [vmem:[#allocation5 + $0x18] sm:$0x1]
    %v6553 = vld [vmem:[#allocation5 + $0x4] sm:$0xc]
    %v6554 = vld [vmem:[#allocation5 + $0x18] sm:$0x3]
    %v6555 = vld [vmem:[#allocation5 + $0x4] sm:$0x8]
    %v6556 = vld [vmem:[#allocation5 + $0x18] sm:$0x7]
    %v6562 = vunpack.c.l.b16 %v6539
    %v6563 = vunpack.c.l.b16 %v6540
    %v6564 = vunpack.c.l.b16 %v6541
    %v6565 = vunpack.c.l.b16 %v6542
    %v6566 = vunpack.c.l.b16 %v6543
    %v6567 = vpack.c.b16 %v6563, %v6562
    %v6568 = vpack.c.b16 %v6565, %v6564
    %v6569 = vpack.c.b16 %v6566, %v6566
    %v6575 = vunpack.c.l.b16 %v6544
    %v6576 = vunpack.c.l.b16 %v6545
    %v6577 = vpack.c.b16 %v6563, %v6575
    %v6578 = vpack.c.b16 %v6576, %v6566
    %v6579 = vrot.slane %v6577, 1
    %v6580 = vrot.slane %v6568, 1
    %v6581 = vsel %vm1232, %v6579, %v6580
    %v6582 = vrot.slane %v6578, 1
    %v6583 = vsel %vm1232, %v6580, %v6582
    %v6589 = vunpack.c.l.b16 %v6546
    %v6590 = vunpack.c.l.b16 %v6547
    %v6591 = vpack.c.b16 %v6563, %v6589
    %v6592 = vpack.c.b16 %v6590, %v6566
    %v6593 = vrot.slane %v6591, 2
    %v6594 = vrot.slane %v6568, 2
    %v6595 = vsel %vm1254, %v6593, %v6594
    %v6596 = vrot.slane %v6592, 2
    %v6597 = vsel %vm1254, %v6594, %v6596
    %v6603 = vunpack.c.l.b16 %v6548
    %v6604 = vunpack.c.l.b16 %v6549
    %v6605 = vpack.c.b16 %v6563, %v6603
    %v6606 = vpack.c.b16 %v6604, %v6566
    %v6607 = vrot.slane %v6605, 3
    %v6608 = vrot.slane %v6568, 3
    %v6609 = vsel %vm1276, %v6607, %v6608
    %v6610 = vrot.slane %v6606, 3
    %v6611 = vsel %vm1276, %v6608, %v6610
    %v6616 = vunpack.c.l.b16 %v6550
    %v6617 = vpack.c.b16 %v6564, %v6563
    %v6618 = vpack.c.b16 %v6566, %v6565
    %v6619 = vpack.c.b16 %v6616, %v6616
    %v6625 = vunpack.c.l.b16 %v6551
    %v6626 = vunpack.c.l.b16 %v6552
    %v6627 = vpack.c.b16 %v6564, %v6625
    %v6628 = vpack.c.b16 %v6626, %v6616
    %v6629 = vrot.slane %v6627, 1
    %v6630 = vrot.slane %v6618, 1
    %v6631 = vsel %vm1232, %v6629, %v6630
    %v6632 = vrot.slane %v6628, 1
    %v6633 = vsel %vm1232, %v6630, %v6632
    %v6639 = vunpack.c.l.b16 %v6553
    %v6640 = vunpack.c.l.b16 %v6554
    %v6641 = vpack.c.b16 %v6564, %v6639
    %v6642 = vpack.c.b16 %v6640, %v6616
    %v6643 = vrot.slane %v6641, 2
    %v6644 = vrot.slane %v6618, 2
    %v6645 = vsel %vm1254, %v6643, %v6644
    %v6646 = vrot.slane %v6642, 2
    %v6647 = vsel %vm1254, %v6644, %v6646
    %v6653 = vunpack.c.l.b16 %v6555
    %v6654 = vunpack.c.l.b16 %v6556
    %v6655 = vpack.c.b16 %v6564, %v6653
    %v6656 = vpack.c.b16 %v6654, %v6616
    %v6657 = vrot.slane %v6655, 3
    %v6658 = vrot.slane %v6618, 3
    %v6659 = vsel %vm1276, %v6657, %v6658
    %v6660 = vrot.slane %v6656, 3
    %v6661 = vsel %vm1276, %v6658, %v6660
    %v6665 = vld [vmem:[#allocation31] sm:$0xf]
    %v6666 = vld [vmem:[#allocation31 + $0x4] sm:$0xf]
    %v6667 = vld [vmem:[#allocation31 + $0x8] sm:$0xf]
    %v6668 = vld [vmem:[#allocation31 + $0xc] sm:$0xf]
    %v6669 = vld [vmem:[#allocation31 + $0x10] sm:$0xf]
    %v6670 = vld [vmem:[#allocation31 + $0x14] sm:$0xf]
    %v6671 = vld [vmem:[#allocation31 + $0x18] sm:$0xf]
    %v6672 = vld [vmem:[#allocation31 + $0x1c] sm:$0xf]
    %v6673 = vld [vmem:[#allocation31 + $0x20] sm:$0xf]
    %v6674 = vld [vmem:[#allocation31 + $0x24] sm:$0xf]
    %v6675 = vld [vmem:[#allocation31 + $0x28] sm:$0xf]
    %v6676 = vld [vmem:[#allocation31 + $0x2c] sm:$0xf]
    %v6677 = vld [vmem:[#allocation31 + $0x30] sm:$0xf]
    %v6678 = vld [vmem:[#allocation31 + $0x34] sm:$0xf]
    %v6679 = vld [vmem:[#allocation31 + $0x38] sm:$0xf]
    %v6680 = vld [vmem:[#allocation31 + $0x3c] sm:$0xf]
    %v6681 = vld [vmem:[#allocation31 + $0x40] sm:$0xf]
    %v6682 = vld [vmem:[#allocation31 + $0x44] sm:$0xf]
    %v6683 = vld [vmem:[#allocation31 + $0x48] sm:$0xf]
    %v6684 = vld [vmem:[#allocation31 + $0x4c] sm:$0xf]
    %v6685 = vld [vmem:[#allocation31 + $0x50] sm:$0xf]
    %v6686 = vld [vmem:[#allocation31 + $0x54] sm:$0xf]
    %v6687 = vld [vmem:[#allocation31 + $0x58] sm:$0xf]
    %v6688 = vld [vmem:[#allocation31 + $0x5c] sm:$0xf]
    %v6689 = vld [vmem:[#allocation31 + $0x60] sm:$0xf]
    %v6690 = vld [vmem:[#allocation31 + $0x64] sm:$0xf]
    %v6691 = vld [vmem:[#allocation31 + $0x68] sm:$0xf]
    %v6692 = vld [vmem:[#allocation31 + $0x6c] sm:$0xf]
    %v6693 = vld [vmem:[#allocation31 + $0x70] sm:$0xf]
    %v6694 = vld [vmem:[#allocation31 + $0x74] sm:$0xf]
    %v6695 = vld [vmem:[#allocation31 + $0x78] sm:$0xf]
    %v6696 = vld [vmem:[#allocation31 + $0x7c] sm:$0xf]
    %v6697 = vld [vmem:[#allocation31 + $0x80] sm:$0xf]
    %v6698 = vld [vmem:[#allocation31 + $0x84] sm:$0xf]
    %v6699 = vld [vmem:[#allocation31 + $0x88] sm:$0xf]
    %v6700 = vld [vmem:[#allocation31 + $0x8c] sm:$0xf]
    %v6701 = vld [vmem:[#allocation31 + $0x90] sm:$0xf]
    %v6702 = vld [vmem:[#allocation31 + $0x94] sm:$0xf]
    %v6703 = vld [vmem:[#allocation31 + $0x98] sm:$0xf]
    %v6704 = vld [vmem:[#allocation31 + $0x9c] sm:$0xf]
    %v6705 = vld [vmem:[#allocation31 + $0xa0] sm:$0xf]
    %v6706 = vld [vmem:[#allocation31 + $0xa4] sm:$0xf]
    %v6707 = vld [vmem:[#allocation31 + $0xa8] sm:$0xf]
    %v6708 = vld [vmem:[#allocation31 + $0xac] sm:$0xf]
    %v6709 = vld [vmem:[#allocation31 + $0xb0] sm:$0xf]
    %v6710 = vld [vmem:[#allocation31 + $0xb4] sm:$0xf]
    %v6711 = vld [vmem:[#allocation31 + $0xb8] sm:$0xf]
    %v6712 = vld [vmem:[#allocation31 + $0xbc] sm:$0xf]
    %v6713 = vld [vmem:[#allocation31 + $0xc0] sm:$0xf]
    %v6714 = vld [vmem:[#allocation31 + $0xc4] sm:$0xf]
    %v6715 = vld [vmem:[#allocation31 + $0xc8] sm:$0xf]
    %v6716 = vld [vmem:[#allocation31 + $0xcc] sm:$0xf]
    %v6717 = vld [vmem:[#allocation31 + $0xd0] sm:$0xf]
    %v6718 = vld [vmem:[#allocation31 + $0xd4] sm:$0xf]
    %v6719 = vld [vmem:[#allocation31 + $0xd8] sm:$0xf]
    %v6720 = vld [vmem:[#allocation31 + $0xdc] sm:$0xf]
    %v6721 = vld [vmem:[#allocation31 + $0xe0] sm:$0xf]
    %v6722 = vld [vmem:[#allocation31 + $0xe4] sm:$0xf]
    %v6723 = vld [vmem:[#allocation31 + $0xe8] sm:$0xf]
    %v6724 = vld [vmem:[#allocation31 + $0xec] sm:$0xf]
    %v6725 = vld [vmem:[#allocation31 + $0xf0] sm:$0xf]
    %v6726 = vld [vmem:[#allocation31 + $0xf4] sm:$0xf]
    %v6727 = vld [vmem:[#allocation31 + $0xf8] sm:$0xf]
    %v6728 = vld [vmem:[#allocation31 + $0xfc] sm:$0xf]
    %v6729 = vld [vmem:[#allocation31 + $0x100] sm:$0xf]
    %v6730 = vld [vmem:[#allocation31 + $0x104] sm:$0xf]
    %v6731 = vld [vmem:[#allocation31 + $0x108] sm:$0xf]
    %v6732 = vld [vmem:[#allocation31 + $0x10c] sm:$0xf]
    %v6733 = vld [vmem:[#allocation31 + $0x110] sm:$0xf]
    %v6734 = vld [vmem:[#allocation31 + $0x114] sm:$0xf]
    %v6735 = vld [vmem:[#allocation31 + $0x118] sm:$0xf]
    %v6736 = vld [vmem:[#allocation31 + $0x11c] sm:$0xf]
    %v6737 = vld [vmem:[#allocation31 + $0x120] sm:$0xf]
    %v6738 = vld [vmem:[#allocation31 + $0x124] sm:$0xf]
    %v6739 = vld [vmem:[#allocation31 + $0x128] sm:$0xf]
    %v6740 = vld [vmem:[#allocation31 + $0x12c] sm:$0xf]
    %v6741 = vld [vmem:[#allocation31 + $0x130] sm:$0xf]
    %v6742 = vld [vmem:[#allocation31 + $0x134] sm:$0xf]
    %v6743 = vld [vmem:[#allocation31 + $0x138] sm:$0xf]
    %v6744 = vld [vmem:[#allocation31 + $0x13c] sm:$0xf]
    %v6745 = vld [vmem:[#allocation31 + $0x140] sm:$0xf]
    %v6746 = vld [vmem:[#allocation31 + $0x144] sm:$0xf]
    %v6747 = vld [vmem:[#allocation31 + $0x148] sm:$0xf]
    %v6748 = vld [vmem:[#allocation31 + $0x14c] sm:$0xf]
    %v6749 = vld [vmem:[#allocation31 + $0x150] sm:$0xf]
    %v6750 = vld [vmem:[#allocation31 + $0x154] sm:$0xf]
    %v6751 = vld [vmem:[#allocation31 + $0x158] sm:$0xf]
    %v6752 = vld [vmem:[#allocation31 + $0x15c] sm:$0xf]
    %v6753 = vld [vmem:[#allocation31 + $0x160] sm:$0xf]
    %v6754 = vld [vmem:[#allocation31 + $0x164] sm:$0xf]
    %v6755 = vld [vmem:[#allocation31 + $0x168] sm:$0xf]
    %v6756 = vld [vmem:[#allocation31 + $0x16c] sm:$0xf]
    %v6757 = vld [vmem:[#allocation31 + $0x170] sm:$0xf]
    %v6758 = vld [vmem:[#allocation31 + $0x174] sm:$0xf]
    %v6759 = vld [vmem:[#allocation31 + $0x178] sm:$0xf]
    %v6760 = vld [vmem:[#allocation31 + $0x17c] sm:$0xf]
    %v6761 = vld [vmem:[#allocation31 + $0x180] sm:$0xf]
    %v6762 = vld [vmem:[#allocation31 + $0x184] sm:$0xf]
    %v6763 = vld [vmem:[#allocation31 + $0x188] sm:$0xf]
    %v6764 = vld [vmem:[#allocation31 + $0x18c] sm:$0xf]
    %v6765 = vld [vmem:[#allocation31 + $0x190] sm:$0xf]
    %v6766 = vld [vmem:[#allocation31 + $0x194] sm:$0xf]
    %v6767 = vld [vmem:[#allocation31 + $0x198] sm:$0xf]
    %v6768 = vld [vmem:[#allocation31 + $0x19c] sm:$0xf]
    %v6769 = vld [vmem:[#allocation31 + $0x1a0] sm:$0xf]
    %v6770 = vld [vmem:[#allocation31 + $0x1a4] sm:$0xf]
    %v6771 = vld [vmem:[#allocation31 + $0x1a8] sm:$0xf]
    %v6772 = vld [vmem:[#allocation31 + $0x1ac] sm:$0xf]
    %v6773 = vld [vmem:[#allocation31 + $0x1b0] sm:$0xf]
    %v6774 = vld [vmem:[#allocation31 + $0x1b4] sm:$0xf]
    %v6775 = vld [vmem:[#allocation31 + $0x1b8] sm:$0xf]
    %v6776 = vld [vmem:[#allocation31 + $0x1bc] sm:$0xf]
    %v6777 = vld [vmem:[#allocation31 + $0x1c0] sm:$0xf]
    %v6778 = vld [vmem:[#allocation31 + $0x1c4] sm:$0xf]
    %v6779 = vld [vmem:[#allocation31 + $0x1c8] sm:$0xf]
    %v6780 = vld [vmem:[#allocation31 + $0x1cc] sm:$0xf]
    %v6781 = vld [vmem:[#allocation31 + $0x1d0] sm:$0xf]
    %v6782 = vld [vmem:[#allocation31 + $0x1d4] sm:$0xf]
    %v6783 = vld [vmem:[#allocation31 + $0x1d8] sm:$0xf]
    %v6784 = vld [vmem:[#allocation31 + $0x1dc] sm:$0xf]
    %v6785 = vld [vmem:[#allocation31 + $0x1e0] sm:$0xf]
    %v6786 = vld [vmem:[#allocation31 + $0x1e4] sm:$0xf]
    %v6787 = vld [vmem:[#allocation31 + $0x1e8] sm:$0xf]
    %v6788 = vld [vmem:[#allocation31 + $0x1ec] sm:$0xf]
    %v6789 = vld [vmem:[#allocation31 + $0x1f0] sm:$0xf]
    %v6790 = vld [vmem:[#allocation31 + $0x1f4] sm:$0xf]
    %v6791 = vld [vmem:[#allocation31 + $0x1f8] sm:$0xf]
    %v6792 = vld [vmem:[#allocation31 + $0x1fc] sm:$0xf]
    %v6793 = vld [vmem:[#allocation33] sm:$0x1]
    %v6795 = vlaneseq
    %v6796 = vshrl.u32 %v6795, 7
    %v6797 = vsub.s32 0, %v6796
    %v6798 = vrot.slane %v6793, %v6797
    %v6928 = vunpack.c.l.b16 %v6665
    %v6929 = vunpack.c.l.b16 %v6666
    %v6930 = vunpack.c.l.b16 %v6667
    %v6931 = vunpack.c.l.b16 %v6668
    %v6932 = vunpack.c.l.b16 %v6669
    %v6933 = vunpack.c.l.b16 %v6670
    %v6934 = vunpack.c.l.b16 %v6671
    %v6935 = vunpack.c.l.b16 %v6672
    %v6936 = vunpack.c.l.b16 %v6673
    %v6937 = vunpack.c.l.b16 %v6674
    %v6938 = vunpack.c.l.b16 %v6675
    %v6939 = vunpack.c.l.b16 %v6676
    %v6940 = vunpack.c.l.b16 %v6677
    %v6941 = vunpack.c.l.b16 %v6678
    %v6942 = vunpack.c.l.b16 %v6679
    %v6943 = vunpack.c.l.b16 %v6680
    %v6944 = vunpack.c.l.b16 %v6681
    %v6945 = vunpack.c.l.b16 %v6682
    %v6946 = vunpack.c.l.b16 %v6683
    %v6947 = vunpack.c.l.b16 %v6684
    %v6948 = vunpack.c.l.b16 %v6685
    %v6949 = vunpack.c.l.b16 %v6686
    %v6950 = vunpack.c.l.b16 %v6687
    %v6951 = vunpack.c.l.b16 %v6688
    %v6952 = vunpack.c.l.b16 %v6689
    %v6953 = vunpack.c.l.b16 %v6690
    %v6954 = vunpack.c.l.b16 %v6691
    %v6955 = vunpack.c.l.b16 %v6692
    %v6956 = vunpack.c.l.b16 %v6693
    %v6957 = vunpack.c.l.b16 %v6694
    %v6958 = vunpack.c.l.b16 %v6695
    %v6959 = vunpack.c.l.b16 %v6696
    %v6960 = vunpack.c.l.b16 %v6697
    %v6961 = vunpack.c.l.b16 %v6698
    %v6962 = vunpack.c.l.b16 %v6699
    %v6963 = vunpack.c.l.b16 %v6700
    %v6964 = vunpack.c.l.b16 %v6701
    %v6965 = vunpack.c.l.b16 %v6702
    %v6966 = vunpack.c.l.b16 %v6703
    %v6967 = vunpack.c.l.b16 %v6704
    %v6968 = vunpack.c.l.b16 %v6705
    %v6969 = vunpack.c.l.b16 %v6706
    %v6970 = vunpack.c.l.b16 %v6707
    %v6971 = vunpack.c.l.b16 %v6708
    %v6972 = vunpack.c.l.b16 %v6709
    %v6973 = vunpack.c.l.b16 %v6710
    %v6974 = vunpack.c.l.b16 %v6711
    %v6975 = vunpack.c.l.b16 %v6712
    %v6976 = vunpack.c.l.b16 %v6713
    %v6977 = vunpack.c.l.b16 %v6714
    %v6978 = vunpack.c.l.b16 %v6715
    %v6979 = vunpack.c.l.b16 %v6716
    %v6980 = vunpack.c.l.b16 %v6717
    %v6981 = vunpack.c.l.b16 %v6718
    %v6982 = vunpack.c.l.b16 %v6719
    %v6983 = vunpack.c.l.b16 %v6720
    %v6984 = vunpack.c.l.b16 %v6721
    %v6985 = vunpack.c.l.b16 %v6722
    %v6986 = vunpack.c.l.b16 %v6723
    %v6987 = vunpack.c.l.b16 %v6724
    %v6988 = vunpack.c.l.b16 %v6725
    %v6989 = vunpack.c.l.b16 %v6726
    %v6990 = vunpack.c.l.b16 %v6727
    %v6991 = vunpack.c.l.b16 %v6728
    %v6992 = vunpack.c.l.b16 %v6729
    %v6993 = vunpack.c.l.b16 %v6730
    %v6994 = vunpack.c.l.b16 %v6731
    %v6995 = vunpack.c.l.b16 %v6732
    %v6996 = vunpack.c.l.b16 %v6733
    %v6997 = vunpack.c.l.b16 %v6734
    %v6998 = vunpack.c.l.b16 %v6735
    %v6999 = vunpack.c.l.b16 %v6736
    %v7000 = vunpack.c.l.b16 %v6737
    %v7001 = vunpack.c.l.b16 %v6738
    %v7002 = vunpack.c.l.b16 %v6739
    %v7003 = vunpack.c.l.b16 %v6740
    %v7004 = vunpack.c.l.b16 %v6741
    %v7005 = vunpack.c.l.b16 %v6742
    %v7006 = vunpack.c.l.b16 %v6743
    %v7007 = vunpack.c.l.b16 %v6744
    %v7008 = vunpack.c.l.b16 %v6745
    %v7009 = vunpack.c.l.b16 %v6746
    %v7010 = vunpack.c.l.b16 %v6747
    %v7011 = vunpack.c.l.b16 %v6748
    %v7012 = vunpack.c.l.b16 %v6749
    %v7013 = vunpack.c.l.b16 %v6750
    %v7014 = vunpack.c.l.b16 %v6751
    %v7015 = vunpack.c.l.b16 %v6752
    %v7016 = vunpack.c.l.b16 %v6753
    %v7017 = vunpack.c.l.b16 %v6754
    %v7018 = vunpack.c.l.b16 %v6755
    %v7019 = vunpack.c.l.b16 %v6756
    %v7020 = vunpack.c.l.b16 %v6757
    %v7021 = vunpack.c.l.b16 %v6758
    %v7022 = vunpack.c.l.b16 %v6759
    %v7023 = vunpack.c.l.b16 %v6760
    %v7024 = vunpack.c.l.b16 %v6761
    %v7025 = vunpack.c.l.b16 %v6762
    %v7026 = vunpack.c.l.b16 %v6763
    %v7027 = vunpack.c.l.b16 %v6764
    %v7028 = vunpack.c.l.b16 %v6765
    %v7029 = vunpack.c.l.b16 %v6766
    %v7030 = vunpack.c.l.b16 %v6767
    %v7031 = vunpack.c.l.b16 %v6768
    %v7032 = vunpack.c.l.b16 %v6769
    %v7033 = vunpack.c.l.b16 %v6770
    %v7034 = vunpack.c.l.b16 %v6771
    %v7035 = vunpack.c.l.b16 %v6772
    %v7036 = vunpack.c.l.b16 %v6773
    %v7037 = vunpack.c.l.b16 %v6774
    %v7038 = vunpack.c.l.b16 %v6775
    %v7039 = vunpack.c.l.b16 %v6776
    %v7040 = vunpack.c.l.b16 %v6777
    %v7041 = vunpack.c.l.b16 %v6778
    %v7042 = vunpack.c.l.b16 %v6779
    %v7043 = vunpack.c.l.b16 %v6780
    %v7044 = vunpack.c.l.b16 %v6781
    %v7045 = vunpack.c.l.b16 %v6782
    %v7046 = vunpack.c.l.b16 %v6783
    %v7047 = vunpack.c.l.b16 %v6784
    %v7048 = vunpack.c.l.b16 %v6785
    %v7049 = vunpack.c.l.b16 %v6786
    %v7050 = vunpack.c.l.b16 %v6787
    %v7051 = vunpack.c.l.b16 %v6788
    %v7052 = vunpack.c.l.b16 %v6789
    %v7053 = vunpack.c.l.b16 %v6790
    %v7054 = vunpack.c.l.b16 %v6791
    %v7055 = vunpack.c.l.b16 %v6792
    %v7056 = vpack.c.b16 %v6929, %v6928
    %v7057 = vpack.c.b16 %v6931, %v6930
    %v7058 = vpack.c.b16 %v6933, %v6932
    %v7059 = vpack.c.b16 %v6935, %v6934
    %v7060 = vpack.c.b16 %v6937, %v6936
    %v7061 = vpack.c.b16 %v6939, %v6938
    %v7062 = vpack.c.b16 %v6941, %v6940
    %v7063 = vpack.c.b16 %v6943, %v6942
    %v7064 = vpack.c.b16 %v6945, %v6944
    %v7065 = vpack.c.b16 %v6947, %v6946
    %v7066 = vpack.c.b16 %v6949, %v6948
    %v7067 = vpack.c.b16 %v6951, %v6950
    %v7068 = vpack.c.b16 %v6953, %v6952
    %v7069 = vpack.c.b16 %v6955, %v6954
    %v7070 = vpack.c.b16 %v6957, %v6956
    %v7071 = vpack.c.b16 %v6959, %v6958
    %v7072 = vpack.c.b16 %v6961, %v6960
    %v7073 = vpack.c.b16 %v6963, %v6962
    %v7074 = vpack.c.b16 %v6965, %v6964
    %v7075 = vpack.c.b16 %v6967, %v6966
    %v7076 = vpack.c.b16 %v6969, %v6968
    %v7077 = vpack.c.b16 %v6971, %v6970
    %v7078 = vpack.c.b16 %v6973, %v6972
    %v7079 = vpack.c.b16 %v6975, %v6974
    %v7080 = vpack.c.b16 %v6977, %v6976
    %v7081 = vpack.c.b16 %v6979, %v6978
    %v7082 = vpack.c.b16 %v6981, %v6980
    %v7083 = vpack.c.b16 %v6983, %v6982
    %v7084 = vpack.c.b16 %v6985, %v6984
    %v7085 = vpack.c.b16 %v6987, %v6986
    %v7086 = vpack.c.b16 %v6989, %v6988
    %v7087 = vpack.c.b16 %v6991, %v6990
    %v7088 = vpack.c.b16 %v6993, %v6992
    %v7089 = vpack.c.b16 %v6995, %v6994
    %v7090 = vpack.c.b16 %v6997, %v6996
    %v7091 = vpack.c.b16 %v6999, %v6998
    %v7092 = vpack.c.b16 %v7001, %v7000
    %v7093 = vpack.c.b16 %v7003, %v7002
    %v7094 = vpack.c.b16 %v7005, %v7004
    %v7095 = vpack.c.b16 %v7007, %v7006
    %v7096 = vpack.c.b16 %v7009, %v7008
    %v7097 = vpack.c.b16 %v7011, %v7010
    %v7098 = vpack.c.b16 %v7013, %v7012
    %v7099 = vpack.c.b16 %v7015, %v7014
    %v7100 = vpack.c.b16 %v7017, %v7016
    %v7101 = vpack.c.b16 %v7019, %v7018
    %v7102 = vpack.c.b16 %v7021, %v7020
    %v7103 = vpack.c.b16 %v7023, %v7022
    %v7104 = vpack.c.b16 %v7025, %v7024
    %v7105 = vpack.c.b16 %v7027, %v7026
    %v7106 = vpack.c.b16 %v7029, %v7028
    %v7107 = vpack.c.b16 %v7031, %v7030
    %v7108 = vpack.c.b16 %v7033, %v7032
    %v7109 = vpack.c.b16 %v7035, %v7034
    %v7110 = vpack.c.b16 %v7037, %v7036
    %v7111 = vpack.c.b16 %v7039, %v7038
    %v7112 = vpack.c.b16 %v7041, %v7040
    %v7113 = vpack.c.b16 %v7043, %v7042
    %v7114 = vpack.c.b16 %v7045, %v7044
    %v7115 = vpack.c.b16 %v7047, %v7046
    %v7116 = vpack.c.b16 %v7049, %v7048
    %v7117 = vpack.c.b16 %v7051, %v7050
    %v7118 = vpack.c.b16 %v7053, %v7052
    %v7119 = vpack.c.b16 %v7055, %v7054
    %7184 = vmatprep.subr.bf16.mxu0 0
    %7185 = vmatpush1.bf16.msra.mxu0 %v7056
    %7186 = vmatprep.subr.bf16.mxu0 0
    %7187 = vmatpush1.bf16.msra.mxu0 %v7057
    %7188 = vmatprep.subr.bf16.mxu0 0
    %7189 = vmatpush1.bf16.msra.mxu0 %v7058
    %7190 = vmatprep.subr.bf16.mxu0 0
    %7191 = vmatpush1.bf16.msra.mxu0 %v7059
    %7192 = vmatprep.subr.bf16.mxu0 0
    %7193 = vmatpush1.bf16.msra.mxu0 %v7060
    %7194 = vmatprep.subr.bf16.mxu0 0
    %7195 = vmatpush1.bf16.msra.mxu0 %v7061
    %7196 = vmatprep.subr.bf16.mxu0 0
    %7197 = vmatpush1.bf16.msra.mxu0 %v7062
    %7198 = vmatprep.subr.bf16.mxu0 0
    %7199 = vmatpush1.bf16.msra.mxu0 %v7063
    %7200 = vmatprep.subr.bf16.mxu0 0
    %7201 = vmatpush1.bf16.msra.mxu0 %v7064
    %7202 = vmatprep.subr.bf16.mxu0 0
    %7203 = vmatpush1.bf16.msra.mxu0 %v7065
    %7204 = vmatprep.subr.bf16.mxu0 0
    %7205 = vmatpush1.bf16.msra.mxu0 %v7066
    %7206 = vmatprep.subr.bf16.mxu0 0
    %7207 = vmatpush1.bf16.msra.mxu0 %v7067
    %7208 = vmatprep.subr.bf16.mxu0 0
    %7209 = vmatpush1.bf16.msra.mxu0 %v7068
    %7210 = vmatprep.subr.bf16.mxu0 0
    %7211 = vmatpush1.bf16.msra.mxu0 %v7069
    %7212 = vmatprep.subr.bf16.mxu0 0
    %7213 = vmatpush1.bf16.msra.mxu0 %v7070
    %7214 = vmatprep.subr.bf16.mxu0 0
    %7215 = vmatpush1.bf16.msra.mxu0 %v7071
    %7216 = vmatprep.mubr.bf16.mxu0 %v6581
    %7217 = vmatmul.mubr.bf16.gmra.mrb[0].mxu0 %v6567
    %v7218 = vpop.f32.mrb[0].mxu0
    %v7219 = vadd.f32 %v6798, %v7218
    %v7220 = vpop.f32.mrb[0].mxu0
    %v7221 = vpop.f32.mrb[0].mxu0
    %v7222 = vadd.f32 %v6798, %v7221
    %v7223 = vpop.f32.mrb[0].mxu0
    %7224 = vmatprep.mubr.bf16.mxu0 %v6583
    %7225 = vmatmul.mubr.bf16.gmra.mrb[0].mxu0 %v6568
    %v7226 = vpop.f32.mrb[0].mxu0
    %v7227 = vadd.f32 %v6798, %v7226
    %v7228 = vpop.f32.mrb[0].mxu0
    %v7229 = vpop.f32.mrb[0].mxu0
    %v7230 = vadd.f32 %v6798, %v7229
    %v7231 = vpop.f32.mrb[0].mxu0
    %7232 = vmatprep.mubr.bf16.mxu0 %v6582
    %7233 = vmatmul.mubr.bf16.gmra.mrb[0].mxu0 %v6569
    %v7234 = vpop.f32.mrb[0].mxu0
    %v7235 = vadd.f32 %v6798, %v7234
    %v7236 = vpop.f32.mrb[0].mxu0
    %v7237 = vpop.f32.mrb[0].mxu0
    %v7238 = vpop.f32.mrb[0].mxu0
    %7239 = vdwg.mxu0
    %7240 = vmatprep.subr.bf16.mxu0 0
    %7241 = vmatpush1.bf16.msra.mxu0 %v7072
    %7242 = vmatprep.subr.bf16.mxu0 0
    %7243 = vmatpush1.bf16.msra.mxu0 %v7073
    %7244 = vmatprep.subr.bf16.mxu0 0
    %7245 = vmatpush1.bf16.msra.mxu0 %v7074
    %7246 = vmatprep.subr.bf16.mxu0 0
    %7247 = vmatpush1.bf16.msra.mxu0 %v7075
    %7248 = vmatprep.subr.bf16.mxu0 0
    %7249 = vmatpush1.bf16.msra.mxu0 %v7076
    %7250 = vmatprep.subr.bf16.mxu0 0
    %7251 = vmatpush1.bf16.msra.mxu0 %v7077
    %7252 = vmatprep.subr.bf16.mxu0 0
    %7253 = vmatpush1.bf16.msra.mxu0 %v7078
    %7254 = vmatprep.subr.bf16.mxu0 0
    %7255 = vmatpush1.bf16.msra.mxu0 %v7079
    %7256 = vmatprep.subr.bf16.mxu0 0
    %7257 = vmatpush1.bf16.msra.mxu0 %v7080
    %7258 = vmatprep.subr.bf16.mxu0 0
    %7259 = vmatpush1.bf16.msra.mxu0 %v7081
    %7260 = vmatprep.subr.bf16.mxu0 0
    %7261 = vmatpush1.bf16.msra.mxu0 %v7082
    %7262 = vmatprep.subr.bf16.mxu0 0
    %7263 = vmatpush1.bf16.msra.mxu0 %v7083
    %7264 = vmatprep.subr.bf16.mxu0 0
    %7265 = vmatpush1.bf16.msra.mxu0 %v7084
    %7266 = vmatprep.subr.bf16.mxu0 0
    %7267 = vmatpush1.bf16.msra.mxu0 %v7085
    %7268 = vmatprep.subr.bf16.mxu0 0
    %7269 = vmatpush1.bf16.msra.mxu0 %v7086
    %7270 = vmatprep.subr.bf16.mxu0 0
    %7271 = vmatpush1.bf16.msra.mxu0 %v7087
    %7272 = vmatprep.mubr.bf16.mxu0 %v6609
    %7273 = vmatmul.mubr.bf16.gmra.mrb[0].mxu0 %v6595
    %v7274 = vpop.f32.mrb[0].mxu0
    %v7275 = vadd.f32 %v7219, %v7274
    %v7276 = vpop.f32.mrb[0].mxu0
    %v7277 = vpop.f32.mrb[0].mxu0
    %v7278 = vadd.f32 %v7222, %v7277
    %v7279 = vpop.f32.mrb[0].mxu0
    %7280 = vmatprep.mubr.bf16.mxu0 %v6611
    %7281 = vmatmul.mubr.bf16.gmra.mrb[0].mxu0 %v6597
    %v7282 = vpop.f32.mrb[0].mxu0
    %v7283 = vadd.f32 %v7227, %v7282
    %v7284 = vpop.f32.mrb[0].mxu0
    %v7285 = vpop.f32.mrb[0].mxu0
    %v7286 = vadd.f32 %v7230, %v7285
    %v7287 = vpop.f32.mrb[0].mxu0
    %7288 = vmatprep.mubr.bf16.mxu0 %v6610
    %7289 = vmatmul.mubr.bf16.gmra.mrb[0].mxu0 %v6596
    %v7290 = vpop.f32.mrb[0].mxu0
    %v7291 = vadd.f32 %v7235, %v7290
    %v7292 = vpop.f32.mrb[0].mxu0
    %v7293 = vpop.f32.mrb[0].mxu0
    %v7294 = vpop.f32.mrb[0].mxu0
    %7295 = vdwg.mxu0
    %7296 = vmatprep.subr.bf16.mxu0 0
    %7297 = vmatpush1.bf16.msra.mxu0 %v7088
    %7298 = vmatprep.subr.bf16.mxu0 0
    %7299 = vmatpush1.bf16.msra.mxu0 %v7089
    %7300 = vmatprep.subr.bf16.mxu0 0
    %7301 = vmatpush1.bf16.msra.mxu0 %v7090
    %7302 = vmatprep.subr.bf16.mxu0 0
    %7303 = vmatpush1.bf16.msra.mxu0 %v7091
    %7304 = vmatprep.subr.bf16.mxu0 0
    %7305 = vmatpush1.bf16.msra.mxu0 %v7092
    %7306 = vmatprep.subr.bf16.mxu0 0
    %7307 = vmatpush1.bf16.msra.mxu0 %v7093
    %7308 = vmatprep.subr.bf16.mxu0 0
    %7309 = vmatpush1.bf16.msra.mxu0 %v7094
    %7310 = vmatprep.subr.bf16.mxu0 0
    %7311 = vmatpush1.bf16.msra.mxu0 %v7095
    %7312 = vmatprep.subr.bf16.mxu0 0
    %7313 = vmatpush1.bf16.msra.mxu0 %v7096
    %7314 = vmatprep.subr.bf16.mxu0 0
    %7315 = vmatpush1.bf16.msra.mxu0 %v7097
    %7316 = vmatprep.subr.bf16.mxu0 0
    %7317 = vmatpush1.bf16.msra.mxu0 %v7098
    %7318 = vmatprep.subr.bf16.mxu0 0
    %7319 = vmatpush1.bf16.msra.mxu0 %v7099
    %7320 = vmatprep.subr.bf16.mxu0 0
    %7321 = vmatpush1.bf16.msra.mxu0 %v7100
    %7322 = vmatprep.subr.bf16.mxu0 0
    %7323 = vmatpush1.bf16.msra.mxu0 %v7101
    %7324 = vmatprep.subr.bf16.mxu0 0
    %7325 = vmatpush1.bf16.msra.mxu0 %v7102
    %7326 = vmatprep.subr.bf16.mxu0 0
    %7327 = vmatpush1.bf16.msra.mxu0 %v7103
    %7328 = vmatprep.mubr.bf16.mxu0 %v6631
    %7329 = vmatmul.mubr.bf16.gmra.mrb[0].mxu0 %v6617
    %v7330 = vpop.f32.mrb[0].mxu0
    %v7331 = vadd.f32 %v7275, %v7330
    %v7332 = vpop.f32.mrb[0].mxu0
    %v7333 = vpop.f32.mrb[0].mxu0
    %v7334 = vadd.f32 %v7278, %v7333
    %v7335 = vpop.f32.mrb[0].mxu0
    %7336 = vmatprep.mubr.bf16.mxu0 %v6633
    %7337 = vmatmul.mubr.bf16.gmra.mrb[0].mxu0 %v6618
    %v7338 = vpop.f32.mrb[0].mxu0
    %v7339 = vadd.f32 %v7283, %v7338
    %v7340 = vpop.f32.mrb[0].mxu0
    %v7341 = vpop.f32.mrb[0].mxu0
    %v7342 = vadd.f32 %v7286, %v7341
    %v7343 = vpop.f32.mrb[0].mxu0
    %7344 = vmatprep.mubr.bf16.mxu0 %v6632
    %7345 = vmatmul.mubr.bf16.gmra.mrb[0].mxu0 %v6619
    %v7346 = vpop.f32.mrb[0].mxu0
    %v7347 = vadd.f32 %v7291, %v7346
    %v7348 = vpop.f32.mrb[0].mxu0
    %v7349 = vpop.f32.mrb[0].mxu0
    %v7350 = vpop.f32.mrb[0].mxu0
    %7351 = vdwg.mxu0
    %7352 = vmatprep.subr.bf16.mxu0 0
    %7353 = vmatpush1.bf16.msra.mxu0 %v7104
    %7354 = vmatprep.subr.bf16.mxu0 0
    %7355 = vmatpush1.bf16.msra.mxu0 %v7105
    %7356 = vmatprep.subr.bf16.mxu0 0
    %7357 = vmatpush1.bf16.msra.mxu0 %v7106
    %7358 = vmatprep.subr.bf16.mxu0 0
    %7359 = vmatpush1.bf16.msra.mxu0 %v7107
    %7360 = vmatprep.subr.bf16.mxu0 0
    %7361 = vmatpush1.bf16.msra.mxu0 %v7108
    %7362 = vmatprep.subr.bf16.mxu0 0
    %7363 = vmatpush1.bf16.msra.mxu0 %v7109
    %7364 = vmatprep.subr.bf16.mxu0 0
    %7365 = vmatpush1.bf16.msra.mxu0 %v7110
    %7366 = vmatprep.subr.bf16.mxu0 0
    %7367 = vmatpush1.bf16.msra.mxu0 %v7111
    %7368 = vmatprep.subr.bf16.mxu0 0
    %7369 = vmatpush1.bf16.msra.mxu0 %v7112
    %7370 = vmatprep.subr.bf16.mxu0 0
    %7371 = vmatpush1.bf16.msra.mxu0 %v7113
    %7372 = vmatprep.subr.bf16.mxu0 0
    %7373 = vmatpush1.bf16.msra.mxu0 %v7114
    %7374 = vmatprep.subr.bf16.mxu0 0
    %7375 = vmatpush1.bf16.msra.mxu0 %v7115
    %7376 = vmatprep.subr.bf16.mxu0 0
    %7377 = vmatpush1.bf16.msra.mxu0 %v7116
    %7378 = vmatprep.subr.bf16.mxu0 0
    %7379 = vmatpush1.bf16.msra.mxu0 %v7117
    %7380 = vmatprep.subr.bf16.mxu0 0
    %7381 = vmatpush1.bf16.msra.mxu0 %v7118
    %7382 = vmatprep.subr.bf16.mxu0 0
    %7383 = vmatpush1.bf16.msra.mxu0 %v7119
    %7384 = vmatprep.mubr.bf16.mxu0 %v6659
    %7385 = vmatmul.mubr.bf16.gmra.mrb[0].mxu0 %v6645
    %v7386 = vpop.f32.mrb[0].mxu0
    %v7387 = vadd.f32 %v7331, %v7386
    %v7388 = vpop.f32.mrb[0].mxu0
    %v7389 = vpop.f32.mrb[0].mxu0
    %v7390 = vadd.f32 %v7334, %v7389
    %v7391 = vpop.f32.mrb[0].mxu0
    %7392 = vmatprep.mubr.bf16.mxu0 %v6661
    %7393 = vmatmul.mubr.bf16.gmra.mrb[0].mxu0 %v6647
    %v7394 = vpop.f32.mrb[0].mxu0
    %v7395 = vadd.f32 %v7339, %v7394
    %v7396 = vpop.f32.mrb[0].mxu0
    %v7397 = vpop.f32.mrb[0].mxu0
    %v7398 = vadd.f32 %v7342, %v7397
    %v7399 = vpop.f32.mrb[0].mxu0
    %7400 = vmatprep.mubr.bf16.mxu0 %v6660
    %7401 = vmatmul.mubr.bf16.gmra.mrb[0].mxu0 %v6646
    %v7402 = vpop.f32.mrb[0].mxu0
    %v7403 = vadd.f32 %v7347, %v7402
    %v7404 = vpop.f32.mrb[0].mxu0
    %v7405 = vpop.f32.mrb[0].mxu0
    %v7406 = vpop.f32.mrb[0].mxu0
    %7407 = vdwg.mxu0
    %v7408 = vadd.f32 %v7387, %v7390
    %v7409 = vadd.f32 %v7408, %v7395
    %v7410 = vadd.f32 %v7409, %v7398
    %v7411 = vadd.f32 %v7410, %v7403
    %v7412 = vrot.slane %v7411, 4
    %v7413 = vadd.f32 %v7411, %v7412
    %v7414 = vrot.slane %v7413, 2
    %v7415 = vadd.f32 %v7413, %v7414
    %v7416 = vrot.slane %v7415, 1
    %v7417 = vadd.f32 %v7415, %v7416
    %v7418 = vmul.f32 %v7417, %v6454
    %v7419 = vsub.f32 %v7387, %v7418
    %v7420 = vsub.f32 %v7390, %v7418
    %v7421 = vsub.f32 %v7395, %v7418
    %v7422 = vsub.f32 %v7398, %v7418
    %v7423 = vsub.f32 %v7403, %v7418
    %v7424 = vmul.f32 %v7419, %v7419
    %v7425 = vmul.f32 %v7420, %v7420
    %v7426 = vmul.f32 %v7421, %v7421
    %v7427 = vmul.f32 %v7422, %v7422
    %v7428 = vmul.f32 %v7423, %v7423
    %v7429 = vadd.f32 %v7424, %v7425
    %v7430 = vadd.f32 %v7429, %v7426
    %v7431 = vadd.f32 %v7430, %v7427
    %v7432 = vadd.f32 %v7431, %v7428
    %v7433 = vrot.slane %v7432, 4
    %v7434 = vadd.f32 %v7432, %v7433
    %v7435 = vrot.slane %v7434, 2
    %v7436 = vadd.f32 %v7434, %v7435
    %v7437 = vrot.slane %v7436, 1
    %v7438 = vadd.f32 %v7436, %v7437
    %v7439 = vmul.f32 %v7438, %v6454
    %v7440 = vadd.f32 %v7439, 1e-05
    %v7441 = vrsqrt.pop %v7440
    %v7442 = vmul.f32 %v7419, %v7441
    %v7443 = vmul.f32 %v7420, %v7441
    %v7444 = vmul.f32 %v7421, %v7441
    %v7445 = vmul.f32 %v7422, %v7441
    %v7446 = vmul.f32 %v7423, %v7441
    %v7447 = vld [vmem:[#allocation34] sm:$0x1]
    %v7449 = vlaneseq
    %v7450 = vshrl.u32 %v7449, 7
    %v7451 = vsub.s32 0, %v7450
    %v7452 = vrot.slane %v7447, %v7451
    %v7454 = vmul.f32 %v7442, %v7452
    %v7455 = vmul.f32 %v7443, %v7452
    %v7456 = vmul.f32 %v7444, %v7452
    %v7457 = vmul.f32 %v7445, %v7452
    %v7458 = vmul.f32 %v7446, %v7452
    %v7459 = vld [vmem:[#allocation36] sm:$0x1]
    %v7461 = vlaneseq
    %v7462 = vshrl.u32 %v7461, 7
    %v7463 = vsub.s32 0, %v7462
    %v7464 = vrot.slane %v7459, %v7463
    %v7466 = vadd.f32 %v7454, %v7464
    %v7467 = vadd.f32 %v7455, %v7464
    %v7468 = vadd.f32 %v7456, %v7464
    %v7469 = vadd.f32 %v7457, %v7464
    %v7470 = vadd.f32 %v7458, %v7464
    %v7471 = vmax.f32 %v7466, 0.0
    %v7472 = vmax.f32 %v7467, 0.0
    %v7473 = vmax.f32 %v7468, 0.0
    %v7474 = vmax.f32 %v7469, 0.0
    %v7475 = vmax.f32 %v7470, 0.0
    %v7476 = vpack.c.bf16 %v7472, %v7471
    %v7477 = vpack.c.bf16 %v7474, %v7473
    %v7478 = vpack.c.bf16 %v7475, %v7475
    %v7482 = vunpack.c.l.b16 %v7476
    %v7483 = vunpack.c.h.b16 %v7476
    %v7484 = vunpack.c.l.b16 %v7477
    %v7485 = vunpack.c.h.b16 %v7477
    %v7486 = vunpack.c.l.b16 %v7478
    %v7487 = vpack.c.b16 %v7482, %v7482
    %v7488 = vpack.c.b16 %v7483, %v7483
    %v7489 = vpack.c.b16 %v7484, %v7484
    %v7490 = vpack.c.b16 %v7485, %v7485
    %v7491 = vpack.c.b16 %v7486, %v7486
    %7497 = vst [vmem:[#allocation6 + $0x4] sm:$0xf] %v7487
    %7498 = vst [vmem:[#allocation6 + $0x8] sm:$0xf] %v7488
    %7499 = vst [vmem:[#allocation6 + $0xc] sm:$0xf] %v7489
    %7500 = vst [vmem:[#allocation6 + $0x10] sm:$0xf] %v7490
    %7501 = vst [vmem:[#allocation6 + $0x14] sm:$0xf] %v7491
    %v7502 = vld [vmem:[#allocation6] sm:$0xf]
    %v7503 = vld [vmem:[#allocation6 + $0x4] sm:$0xf]
    %v7504 = vld [vmem:[#allocation6 + $0x8] sm:$0xf]
    %v7505 = vld [vmem:[#allocation6 + $0xc] sm:$0xf]
    %v7506 = vld [vmem:[#allocation6 + $0x10] sm:$0xf]
    %v7507 = vld [vmem:[#allocation6] sm:$0xe]
    %v7508 = vld [vmem:[#allocation6 + $0x14] sm:$0x1]
    %v7509 = vld [vmem:[#allocation6] sm:$0xc]
    %v7510 = vld [vmem:[#allocation6 + $0x14] sm:$0x3]
    %v7511 = vld [vmem:[#allocation6] sm:$0x8]
    %v7512 = vld [vmem:[#allocation6 + $0x14] sm:$0x7]
    %v7513 = vld [vmem:[#allocation6 + $0x14] sm:$0xf]
    %v7514 = vld [vmem:[#allocation6 + $0x4] sm:$0xe]
    %v7515 = vld [vmem:[#allocation6 + $0x18] sm:$0x1]
    %v7516 = vld [vmem:[#allocation6 + $0x4] sm:$0xc]
    %v7517 = vld [vmem:[#allocation6 + $0x18] sm:$0x3]
    %v7518 = vld [vmem:[#allocation6 + $0x4] sm:$0x8]
    %v7519 = vld [vmem:[#allocation6 + $0x18] sm:$0x7]
    %v7525 = vunpack.c.l.b16 %v7502
    %v7526 = vunpack.c.l.b16 %v7503
    %v7527 = vunpack.c.l.b16 %v7504
    %v7528 = vunpack.c.l.b16 %v7505
    %v7529 = vunpack.c.l.b16 %v7506
    %v7530 = vpack.c.b16 %v7526, %v7525
    %v7531 = vpack.c.b16 %v7528, %v7527
    %v7532 = vpack.c.b16 %v7529, %v7529
    %v7538 = vunpack.c.l.b16 %v7507
    %v7539 = vunpack.c.l.b16 %v7508
    %v7540 = vpack.c.b16 %v7526, %v7538
    %v7541 = vpack.c.b16 %v7539, %v7529
    %v7542 = vrot.slane %v7540, 1
    %v7543 = vrot.slane %v7531, 1
    %v7544 = vsel %vm1232, %v7542, %v7543
    %v7545 = vrot.slane %v7541, 1
    %v7546 = vsel %vm1232, %v7543, %v7545
    %v7552 = vunpack.c.l.b16 %v7509
    %v7553 = vunpack.c.l.b16 %v7510
    %v7554 = vpack.c.b16 %v7526, %v7552
    %v7555 = vpack.c.b16 %v7553, %v7529
    %v7556 = vrot.slane %v7554, 2
    %v7557 = vrot.slane %v7531, 2
    %v7558 = vsel %vm1254, %v7556, %v7557
    %v7559 = vrot.slane %v7555, 2
    %v7560 = vsel %vm1254, %v7557, %v7559
    %v7566 = vunpack.c.l.b16 %v7511
    %v7567 = vunpack.c.l.b16 %v7512
    %v7568 = vpack.c.b16 %v7526, %v7566
    %v7569 = vpack.c.b16 %v7567, %v7529
    %v7570 = vrot.slane %v7568, 3
    %v7571 = vrot.slane %v7531, 3
    %v7572 = vsel %vm1276, %v7570, %v7571
    %v7573 = vrot.slane %v7569, 3
    %v7574 = vsel %vm1276, %v7571, %v7573
    %v7579 = vunpack.c.l.b16 %v7513
    %v7580 = vpack.c.b16 %v7527, %v7526
    %v7581 = vpack.c.b16 %v7529, %v7528
    %v7582 = vpack.c.b16 %v7579, %v7579
    %v7588 = vunpack.c.l.b16 %v7514
    %v7589 = vunpack.c.l.b16 %v7515
    %v7590 = vpack.c.b16 %v7527, %v7588
    %v7591 = vpack.c.b16 %v7589, %v7579
    %v7592 = vrot.slane %v7590, 1
    %v7593 = vrot.slane %v7581, 1
    %v7594 = vsel %vm1232, %v7592, %v7593
    %v7595 = vrot.slane %v7591, 1
    %v7596 = vsel %vm1232, %v7593, %v7595
    %v7602 = vunpack.c.l.b16 %v7516
    %v7603 = vunpack.c.l.b16 %v7517
    %v7604 = vpack.c.b16 %v7527, %v7602
    %v7605 = vpack.c.b16 %v7603, %v7579
    %v7606 = vrot.slane %v7604, 2
    %v7607 = vrot.slane %v7581, 2
    %v7608 = vsel %vm1254, %v7606, %v7607
    %v7609 = vrot.slane %v7605, 2
    %v7610 = vsel %vm1254, %v7607, %v7609
    %v7616 = vunpack.c.l.b16 %v7518
    %v7617 = vunpack.c.l.b16 %v7519
    %v7618 = vpack.c.b16 %v7527, %v7616
    %v7619 = vpack.c.b16 %v7617, %v7579
    %v7620 = vrot.slane %v7618, 3
    %v7621 = vrot.slane %v7581, 3
    %v7622 = vsel %vm1276, %v7620, %v7621
    %v7623 = vrot.slane %v7619, 3
    %v7624 = vsel %vm1276, %v7621, %v7623
    %v7628 = vld [vmem:[#allocation37] sm:$0xf]
    %v7629 = vld [vmem:[#allocation37 + $0x4] sm:$0xf]
    %v7630 = vld [vmem:[#allocation37 + $0x8] sm:$0xf]
    %v7631 = vld [vmem:[#allocation37 + $0xc] sm:$0xf]
    %v7632 = vld [vmem:[#allocation37 + $0x10] sm:$0xf]
    %v7633 = vld [vmem:[#allocation37 + $0x14] sm:$0xf]
    %v7634 = vld [vmem:[#allocation37 + $0x18] sm:$0xf]
    %v7635 = vld [vmem:[#allocation37 + $0x1c] sm:$0xf]
    %v7636 = vld [vmem:[#allocation37 + $0x20] sm:$0xf]
    %v7637 = vld [vmem:[#allocation37 + $0x24] sm:$0xf]
    %v7638 = vld [vmem:[#allocation37 + $0x28] sm:$0xf]
    %v7639 = vld [vmem:[#allocation37 + $0x2c] sm:$0xf]
    %v7640 = vld [vmem:[#allocation37 + $0x30] sm:$0xf]
    %v7641 = vld [vmem:[#allocation37 + $0x34] sm:$0xf]
    %v7642 = vld [vmem:[#allocation37 + $0x38] sm:$0xf]
    %v7643 = vld [vmem:[#allocation37 + $0x3c] sm:$0xf]
    %v7644 = vld [vmem:[#allocation37 + $0x40] sm:$0xf]
    %v7645 = vld [vmem:[#allocation37 + $0x44] sm:$0xf]
    %v7646 = vld [vmem:[#allocation37 + $0x48] sm:$0xf]
    %v7647 = vld [vmem:[#allocation37 + $0x4c] sm:$0xf]
    %v7648 = vld [vmem:[#allocation37 + $0x50] sm:$0xf]
    %v7649 = vld [vmem:[#allocation37 + $0x54] sm:$0xf]
    %v7650 = vld [vmem:[#allocation37 + $0x58] sm:$0xf]
    %v7651 = vld [vmem:[#allocation37 + $0x5c] sm:$0xf]
    %v7652 = vld [vmem:[#allocation37 + $0x60] sm:$0xf]
    %v7653 = vld [vmem:[#allocation37 + $0x64] sm:$0xf]
    %v7654 = vld [vmem:[#allocation37 + $0x68] sm:$0xf]
    %v7655 = vld [vmem:[#allocation37 + $0x6c] sm:$0xf]
    %v7656 = vld [vmem:[#allocation37 + $0x70] sm:$0xf]
    %v7657 = vld [vmem:[#allocation37 + $0x74] sm:$0xf]
    %v7658 = vld [vmem:[#allocation37 + $0x78] sm:$0xf]
    %v7659 = vld [vmem:[#allocation37 + $0x7c] sm:$0xf]
    %v7660 = vld [vmem:[#allocation37 + $0x80] sm:$0xf]
    %v7661 = vld [vmem:[#allocation37 + $0x84] sm:$0xf]
    %v7662 = vld [vmem:[#allocation37 + $0x88] sm:$0xf]
    %v7663 = vld [vmem:[#allocation37 + $0x8c] sm:$0xf]
    %v7664 = vld [vmem:[#allocation37 + $0x90] sm:$0xf]
    %v7665 = vld [vmem:[#allocation37 + $0x94] sm:$0xf]
    %v7666 = vld [vmem:[#allocation37 + $0x98] sm:$0xf]
    %v7667 = vld [vmem:[#allocation37 + $0x9c] sm:$0xf]
    %v7668 = vld [vmem:[#allocation37 + $0xa0] sm:$0xf]
    %v7669 = vld [vmem:[#allocation37 + $0xa4] sm:$0xf]
    %v7670 = vld [vmem:[#allocation37 + $0xa8] sm:$0xf]
    %v7671 = vld [vmem:[#allocation37 + $0xac] sm:$0xf]
    %v7672 = vld [vmem:[#allocation37 + $0xb0] sm:$0xf]
    %v7673 = vld [vmem:[#allocation37 + $0xb4] sm:$0xf]
    %v7674 = vld [vmem:[#allocation37 + $0xb8] sm:$0xf]
    %v7675 = vld [vmem:[#allocation37 + $0xbc] sm:$0xf]
    %v7676 = vld [vmem:[#allocation37 + $0xc0] sm:$0xf]
    %v7677 = vld [vmem:[#allocation37 + $0xc4] sm:$0xf]
    %v7678 = vld [vmem:[#allocation37 + $0xc8] sm:$0xf]
    %v7679 = vld [vmem:[#allocation37 + $0xcc] sm:$0xf]
    %v7680 = vld [vmem:[#allocation37 + $0xd0] sm:$0xf]
    %v7681 = vld [vmem:[#allocation37 + $0xd4] sm:$0xf]
    %v7682 = vld [vmem:[#allocation37 + $0xd8] sm:$0xf]
    %v7683 = vld [vmem:[#allocation37 + $0xdc] sm:$0xf]
    %v7684 = vld [vmem:[#allocation37 + $0xe0] sm:$0xf]
    %v7685 = vld [vmem:[#allocation37 + $0xe4] sm:$0xf]
    %v7686 = vld [vmem:[#allocation37 + $0xe8] sm:$0xf]
    %v7687 = vld [vmem:[#allocation37 + $0xec] sm:$0xf]
    %v7688 = vld [vmem:[#allocation37 + $0xf0] sm:$0xf]
    %v7689 = vld [vmem:[#allocation37 + $0xf4] sm:$0xf]
    %v7690 = vld [vmem:[#allocation37 + $0xf8] sm:$0xf]
    %v7691 = vld [vmem:[#allocation37 + $0xfc] sm:$0xf]
    %v7692 = vld [vmem:[#allocation37 + $0x100] sm:$0xf]
    %v7693 = vld [vmem:[#allocation37 + $0x104] sm:$0xf]
    %v7694 = vld [vmem:[#allocation37 + $0x108] sm:$0xf]
    %v7695 = vld [vmem:[#allocation37 + $0x10c] sm:$0xf]
    %v7696 = vld [vmem:[#allocation37 + $0x110] sm:$0xf]
    %v7697 = vld [vmem:[#allocation37 + $0x114] sm:$0xf]
    %v7698 = vld [vmem:[#allocation37 + $0x118] sm:$0xf]
    %v7699 = vld [vmem:[#allocation37 + $0x11c] sm:$0xf]
    %v7700 = vld [vmem:[#allocation37 + $0x120] sm:$0xf]
    %v7701 = vld [vmem:[#allocation37 + $0x124] sm:$0xf]
    %v7702 = vld [vmem:[#allocation37 + $0x128] sm:$0xf]
    %v7703 = vld [vmem:[#allocation37 + $0x12c] sm:$0xf]
    %v7704 = vld [vmem:[#allocation37 + $0x130] sm:$0xf]
    %v7705 = vld [vmem:[#allocation37 + $0x134] sm:$0xf]
    %v7706 = vld [vmem:[#allocation37 + $0x138] sm:$0xf]
    %v7707 = vld [vmem:[#allocation37 + $0x13c] sm:$0xf]
    %v7708 = vld [vmem:[#allocation37 + $0x140] sm:$0xf]
    %v7709 = vld [vmem:[#allocation37 + $0x144] sm:$0xf]
    %v7710 = vld [vmem:[#allocation37 + $0x148] sm:$0xf]
    %v7711 = vld [vmem:[#allocation37 + $0x14c] sm:$0xf]
    %v7712 = vld [vmem:[#allocation37 + $0x150] sm:$0xf]
    %v7713 = vld [vmem:[#allocation37 + $0x154] sm:$0xf]
    %v7714 = vld [vmem:[#allocation37 + $0x158] sm:$0xf]
    %v7715 = vld [vmem:[#allocation37 + $0x15c] sm:$0xf]
    %v7716 = vld [vmem:[#allocation37 + $0x160] sm:$0xf]
    %v7717 = vld [vmem:[#allocation37 + $0x164] sm:$0xf]
    %v7718 = vld [vmem:[#allocation37 + $0x168] sm:$0xf]
    %v7719 = vld [vmem:[#allocation37 + $0x16c] sm:$0xf]
    %v7720 = vld [vmem:[#allocation37 + $0x170] sm:$0xf]
    %v7721 = vld [vmem:[#allocation37 + $0x174] sm:$0xf]
    %v7722 = vld [vmem:[#allocation37 + $0x178] sm:$0xf]
    %v7723 = vld [vmem:[#allocation37 + $0x17c] sm:$0xf]
    %v7724 = vld [vmem:[#allocation37 + $0x180] sm:$0xf]
    %v7725 = vld [vmem:[#allocation37 + $0x184] sm:$0xf]
    %v7726 = vld [vmem:[#allocation37 + $0x188] sm:$0xf]
    %v7727 = vld [vmem:[#allocation37 + $0x18c] sm:$0xf]
    %v7728 = vld [vmem:[#allocation37 + $0x190] sm:$0xf]
    %v7729 = vld [vmem:[#allocation37 + $0x194] sm:$0xf]
    %v7730 = vld [vmem:[#allocation37 + $0x198] sm:$0xf]
    %v7731 = vld [vmem:[#allocation37 + $0x19c] sm:$0xf]
    %v7732 = vld [vmem:[#allocation37 + $0x1a0] sm:$0xf]
    %v7733 = vld [vmem:[#allocation37 + $0x1a4] sm:$0xf]
    %v7734 = vld [vmem:[#allocation37 + $0x1a8] sm:$0xf]
    %v7735 = vld [vmem:[#allocation37 + $0x1ac] sm:$0xf]
    %v7736 = vld [vmem:[#allocation37 + $0x1b0] sm:$0xf]
    %v7737 = vld [vmem:[#allocation37 + $0x1b4] sm:$0xf]
    %v7738 = vld [vmem:[#allocation37 + $0x1b8] sm:$0xf]
    %v7739 = vld [vmem:[#allocation37 + $0x1bc] sm:$0xf]
    %v7740 = vld [vmem:[#allocation37 + $0x1c0] sm:$0xf]
    %v7741 = vld [vmem:[#allocation37 + $0x1c4] sm:$0xf]
    %v7742 = vld [vmem:[#allocation37 + $0x1c8] sm:$0xf]
    %v7743 = vld [vmem:[#allocation37 + $0x1cc] sm:$0xf]
    %v7744 = vld [vmem:[#allocation37 + $0x1d0] sm:$0xf]
    %v7745 = vld [vmem:[#allocation37 + $0x1d4] sm:$0xf]
    %v7746 = vld [vmem:[#allocation37 + $0x1d8] sm:$0xf]
    %v7747 = vld [vmem:[#allocation37 + $0x1dc] sm:$0xf]
    %v7748 = vld [vmem:[#allocation37 + $0x1e0] sm:$0xf]
    %v7749 = vld [vmem:[#allocation37 + $0x1e4] sm:$0xf]
    %v7750 = vld [vmem:[#allocation37 + $0x1e8] sm:$0xf]
    %v7751 = vld [vmem:[#allocation37 + $0x1ec] sm:$0xf]
    %v7752 = vld [vmem:[#allocation37 + $0x1f0] sm:$0xf]
    %v7753 = vld [vmem:[#allocation37 + $0x1f4] sm:$0xf]
    %v7754 = vld [vmem:[#allocation37 + $0x1f8] sm:$0xf]
    %v7755 = vld [vmem:[#allocation37 + $0x1fc] sm:$0xf]
    %v7756 = vld [vmem:[#allocation39] sm:$0x1]
    %v7758 = vlaneseq
    %v7759 = vshrl.u32 %v7758, 7
    %v7760 = vsub.s32 0, %v7759
    %v7761 = vrot.slane %v7756, %v7760
    %v7891 = vunpack.c.l.b16 %v7628
    %v7892 = vunpack.c.l.b16 %v7629
    %v7893 = vunpack.c.l.b16 %v7630
    %v7894 = vunpack.c.l.b16 %v7631
    %v7895 = vunpack.c.l.b16 %v7632
    %v7896 = vunpack.c.l.b16 %v7633
    %v7897 = vunpack.c.l.b16 %v7634
    %v7898 = vunpack.c.l.b16 %v7635
    %v7899 = vunpack.c.l.b16 %v7636
    %v7900 = vunpack.c.l.b16 %v7637
    %v7901 = vunpack.c.l.b16 %v7638
    %v7902 = vunpack.c.l.b16 %v7639
    %v7903 = vunpack.c.l.b16 %v7640
    %v7904 = vunpack.c.l.b16 %v7641
    %v7905 = vunpack.c.l.b16 %v7642
    %v7906 = vunpack.c.l.b16 %v7643
    %v7907 = vunpack.c.l.b16 %v7644
    %v7908 = vunpack.c.l.b16 %v7645
    %v7909 = vunpack.c.l.b16 %v7646
    %v7910 = vunpack.c.l.b16 %v7647
    %v7911 = vunpack.c.l.b16 %v7648
    %v7912 = vunpack.c.l.b16 %v7649
    %v7913 = vunpack.c.l.b16 %v7650
    %v7914 = vunpack.c.l.b16 %v7651
    %v7915 = vunpack.c.l.b16 %v7652
    %v7916 = vunpack.c.l.b16 %v7653
    %v7917 = vunpack.c.l.b16 %v7654
    %v7918 = vunpack.c.l.b16 %v7655
    %v7919 = vunpack.c.l.b16 %v7656
    %v7920 = vunpack.c.l.b16 %v7657
    %v7921 = vunpack.c.l.b16 %v7658
    %v7922 = vunpack.c.l.b16 %v7659
    %v7923 = vunpack.c.l.b16 %v7660
    %v7924 = vunpack.c.l.b16 %v7661
    %v7925 = vunpack.c.l.b16 %v7662
    %v7926 = vunpack.c.l.b16 %v7663
    %v7927 = vunpack.c.l.b16 %v7664
    %v7928 = vunpack.c.l.b16 %v7665
    %v7929 = vunpack.c.l.b16 %v7666
    %v7930 = vunpack.c.l.b16 %v7667
    %v7931 = vunpack.c.l.b16 %v7668
    %v7932 = vunpack.c.l.b16 %v7669
    %v7933 = vunpack.c.l.b16 %v7670
    %v7934 = vunpack.c.l.b16 %v7671
    %v7935 = vunpack.c.l.b16 %v7672
    %v7936 = vunpack.c.l.b16 %v7673
    %v7937 = vunpack.c.l.b16 %v7674
    %v7938 = vunpack.c.l.b16 %v7675
    %v7939 = vunpack.c.l.b16 %v7676
    %v7940 = vunpack.c.l.b16 %v7677
    %v7941 = vunpack.c.l.b16 %v7678
    %v7942 = vunpack.c.l.b16 %v7679
    %v7943 = vunpack.c.l.b16 %v7680
    %v7944 = vunpack.c.l.b16 %v7681
    %v7945 = vunpack.c.l.b16 %v7682
    %v7946 = vunpack.c.l.b16 %v7683
    %v7947 = vunpack.c.l.b16 %v7684
    %v7948 = vunpack.c.l.b16 %v7685
    %v7949 = vunpack.c.l.b16 %v7686
    %v7950 = vunpack.c.l.b16 %v7687
    %v7951 = vunpack.c.l.b16 %v7688
    %v7952 = vunpack.c.l.b16 %v7689
    %v7953 = vunpack.c.l.b16 %v7690
    %v7954 = vunpack.c.l.b16 %v7691
    %v7955 = vunpack.c.l.b16 %v7692
    %v7956 = vunpack.c.l.b16 %v7693
    %v7957 = vunpack.c.l.b16 %v7694
    %v7958 = vunpack.c.l.b16 %v7695
    %v7959 = vunpack.c.l.b16 %v7696
    %v7960 = vunpack.c.l.b16 %v7697
    %v7961 = vunpack.c.l.b16 %v7698
    %v7962 = vunpack.c.l.b16 %v7699
    %v7963 = vunpack.c.l.b16 %v7700
    %v7964 = vunpack.c.l.b16 %v7701
    %v7965 = vunpack.c.l.b16 %v7702
    %v7966 = vunpack.c.l.b16 %v7703
    %v7967 = vunpack.c.l.b16 %v7704
    %v7968 = vunpack.c.l.b16 %v7705
    %v7969 = vunpack.c.l.b16 %v7706
    %v7970 = vunpack.c.l.b16 %v7707
    %v7971 = vunpack.c.l.b16 %v7708
    %v7972 = vunpack.c.l.b16 %v7709
    %v7973 = vunpack.c.l.b16 %v7710
    %v7974 = vunpack.c.l.b16 %v7711
    %v7975 = vunpack.c.l.b16 %v7712
    %v7976 = vunpack.c.l.b16 %v7713
    %v7977 = vunpack.c.l.b16 %v7714
    %v7978 = vunpack.c.l.b16 %v7715
    %v7979 = vunpack.c.l.b16 %v7716
    %v7980 = vunpack.c.l.b16 %v7717
    %v7981 = vunpack.c.l.b16 %v7718
    %v7982 = vunpack.c.l.b16 %v7719
    %v7983 = vunpack.c.l.b16 %v7720
    %v7984 = vunpack.c.l.b16 %v7721
    %v7985 = vunpack.c.l.b16 %v7722
    %v7986 = vunpack.c.l.b16 %v7723
    %v7987 = vunpack.c.l.b16 %v7724
    %v7988 = vunpack.c.l.b16 %v7725
    %v7989 = vunpack.c.l.b16 %v7726
    %v7990 = vunpack.c.l.b16 %v7727
    %v7991 = vunpack.c.l.b16 %v7728
    %v7992 = vunpack.c.l.b16 %v7729
    %v7993 = vunpack.c.l.b16 %v7730
    %v7994 = vunpack.c.l.b16 %v7731
    %v7995 = vunpack.c.l.b16 %v7732
    %v7996 = vunpack.c.l.b16 %v7733
    %v7997 = vunpack.c.l.b16 %v7734
    %v7998 = vunpack.c.l.b16 %v7735
    %v7999 = vunpack.c.l.b16 %v7736
    %v8000 = vunpack.c.l.b16 %v7737
    %v8001 = vunpack.c.l.b16 %v7738
    %v8002 = vunpack.c.l.b16 %v7739
    %v8003 = vunpack.c.l.b16 %v7740
    %v8004 = vunpack.c.l.b16 %v7741
    %v8005 = vunpack.c.l.b16 %v7742
    %v8006 = vunpack.c.l.b16 %v7743
    %v8007 = vunpack.c.l.b16 %v7744
    %v8008 = vunpack.c.l.b16 %v7745
    %v8009 = vunpack.c.l.b16 %v7746
    %v8010 = vunpack.c.l.b16 %v7747
    %v8011 = vunpack.c.l.b16 %v7748
    %v8012 = vunpack.c.l.b16 %v7749
    %v8013 = vunpack.c.l.b16 %v7750
    %v8014 = vunpack.c.l.b16 %v7751
    %v8015 = vunpack.c.l.b16 %v7752
    %v8016 = vunpack.c.l.b16 %v7753
    %v8017 = vunpack.c.l.b16 %v7754
    %v8018 = vunpack.c.l.b16 %v7755
    %v8019 = vpack.c.b16 %v7892, %v7891
    %v8020 = vpack.c.b16 %v7894, %v7893
    %v8021 = vpack.c.b16 %v7896, %v7895
    %v8022 = vpack.c.b16 %v7898, %v7897
    %v8023 = vpack.c.b16 %v7900, %v7899
    %v8024 = vpack.c.b16 %v7902, %v7901
    %v8025 = vpack.c.b16 %v7904, %v7903
    %v8026 = vpack.c.b16 %v7906, %v7905
    %v8027 = vpack.c.b16 %v7908, %v7907
    %v8028 = vpack.c.b16 %v7910, %v7909
    %v8029 = vpack.c.b16 %v7912, %v7911
    %v8030 = vpack.c.b16 %v7914, %v7913
    %v8031 = vpack.c.b16 %v7916, %v7915
    %v8032 = vpack.c.b16 %v7918, %v7917
    %v8033 = vpack.c.b16 %v7920, %v7919
    %v8034 = vpack.c.b16 %v7922, %v7921
    %v8035 = vpack.c.b16 %v7924, %v7923
    %v8036 = vpack.c.b16 %v7926, %v7925
    %v8037 = vpack.c.b16 %v7928, %v7927
    %v8038 = vpack.c.b16 %v7930, %v7929
    %v8039 = vpack.c.b16 %v7932, %v7931
    %v8040 = vpack.c.b16 %v7934, %v7933
    %v8041 = vpack.c.b16 %v7936, %v7935
    %v8042 = vpack.c.b16 %v7938, %v7937
    %v8043 = vpack.c.b16 %v7940, %v7939
    %v8044 = vpack.c.b16 %v7942, %v7941
    %v8045 = vpack.c.b16 %v7944, %v7943
    %v8046 = vpack.c.b16 %v7946, %v7945
    %v8047 = vpack.c.b16 %v7948, %v7947
    %v8048 = vpack.c.b16 %v7950, %v7949
    %v8049 = vpack.c.b16 %v7952, %v7951
    %v8050 = vpack.c.b16 %v7954, %v7953
    %v8051 = vpack.c.b16 %v7956, %v7955
    %v8052 = vpack.c.b16 %v7958, %v7957
    %v8053 = vpack.c.b16 %v7960, %v7959
    %v8054 = vpack.c.b16 %v7962, %v7961
    %v8055 = vpack.c.b16 %v7964, %v7963
    %v8056 = vpack.c.b16 %v7966, %v7965
    %v8057 = vpack.c.b16 %v7968, %v7967
    %v8058 = vpack.c.b16 %v7970, %v7969
    %v8059 = vpack.c.b16 %v7972, %v7971
    %v8060 = vpack.c.b16 %v7974, %v7973
    %v8061 = vpack.c.b16 %v7976, %v7975
    %v8062 = vpack.c.b16 %v7978, %v7977
    %v8063 = vpack.c.b16 %v7980, %v7979
    %v8064 = vpack.c.b16 %v7982, %v7981
    %v8065 = vpack.c.b16 %v7984, %v7983
    %v8066 = vpack.c.b16 %v7986, %v7985
    %v8067 = vpack.c.b16 %v7988, %v7987
    %v8068 = vpack.c.b16 %v7990, %v7989
    %v8069 = vpack.c.b16 %v7992, %v7991
    %v8070 = vpack.c.b16 %v7994, %v7993
    %v8071 = vpack.c.b16 %v7996, %v7995
    %v8072 = vpack.c.b16 %v7998, %v7997
    %v8073 = vpack.c.b16 %v8000, %v7999
    %v8074 = vpack.c.b16 %v8002, %v8001
    %v8075 = vpack.c.b16 %v8004, %v8003
    %v8076 = vpack.c.b16 %v8006, %v8005
    %v8077 = vpack.c.b16 %v8008, %v8007
    %v8078 = vpack.c.b16 %v8010, %v8009
    %v8079 = vpack.c.b16 %v8012, %v8011
    %v8080 = vpack.c.b16 %v8014, %v8013
    %v8081 = vpack.c.b16 %v8016, %v8015
    %v8082 = vpack.c.b16 %v8018, %v8017
    %8147 = vmatprep.subr.bf16.mxu0 0
    %8148 = vmatpush1.bf16.msra.mxu0 %v8019
    %8149 = vmatprep.subr.bf16.mxu0 0
    %8150 = vmatpush1.bf16.msra.mxu0 %v8020
    %8151 = vmatprep.subr.bf16.mxu0 0
    %8152 = vmatpush1.bf16.msra.mxu0 %v8021
    %8153 = vmatprep.subr.bf16.mxu0 0
    %8154 = vmatpush1.bf16.msra.mxu0 %v8022
    %8155 = vmatprep.subr.bf16.mxu0 0
    %8156 = vmatpush1.bf16.msra.mxu0 %v8023
    %8157 = vmatprep.subr.bf16.mxu0 0
    %8158 = vmatpush1.bf16.msra.mxu0 %v8024
    %8159 = vmatprep.subr.bf16.mxu0 0
    %8160 = vmatpush1.bf16.msra.mxu0 %v8025
    %8161 = vmatprep.subr.bf16.mxu0 0
    %8162 = vmatpush1.bf16.msra.mxu0 %v8026
    %8163 = vmatprep.subr.bf16.mxu0 0
    %8164 = vmatpush1.bf16.msra.mxu0 %v8027
    %8165 = vmatprep.subr.bf16.mxu0 0
    %8166 = vmatpush1.bf16.msra.mxu0 %v8028
    %8167 = vmatprep.subr.bf16.mxu0 0
    %8168 = vmatpush1.bf16.msra.mxu0 %v8029
    %8169 = vmatprep.subr.bf16.mxu0 0
    %8170 = vmatpush1.bf16.msra.mxu0 %v8030
    %8171 = vmatprep.subr.bf16.mxu0 0
    %8172 = vmatpush1.bf16.msra.mxu0 %v8031
    %8173 = vmatprep.subr.bf16.mxu0 0
    %8174 = vmatpush1.bf16.msra.mxu0 %v8032
    %8175 = vmatprep.subr.bf16.mxu0 0
    %8176 = vmatpush1.bf16.msra.mxu0 %v8033
    %8177 = vmatprep.subr.bf16.mxu0 0
    %8178 = vmatpush1.bf16.msra.mxu0 %v8034
    %8179 = vmatprep.mubr.bf16.mxu0 %v7544
    %8180 = vmatmul.mubr.bf16.gmra.mrb[0].mxu0 %v7530
    %v8181 = vpop.f32.mrb[0].mxu0
    %v8182 = vadd.f32 %v7761, %v8181
    %v8183 = vpop.f32.mrb[0].mxu0
    %v8184 = vpop.f32.mrb[0].mxu0
    %v8185 = vadd.f32 %v7761, %v8184
    %v8186 = vpop.f32.mrb[0].mxu0
    %8187 = vmatprep.mubr.bf16.mxu0 %v7546
    %8188 = vmatmul.mubr.bf16.gmra.mrb[0].mxu0 %v7531
    %v8189 = vpop.f32.mrb[0].mxu0
    %v8190 = vadd.f32 %v7761, %v8189
    %v8191 = vpop.f32.mrb[0].mxu0
    %v8192 = vpop.f32.mrb[0].mxu0
    %v8193 = vadd.f32 %v7761, %v8192
    %v8194 = vpop.f32.mrb[0].mxu0
    %8195 = vmatprep.mubr.bf16.mxu0 %v7545
    %8196 = vmatmul.mubr.bf16.gmra.mrb[0].mxu0 %v7532
    %v8197 = vpop.f32.mrb[0].mxu0
    %v8198 = vadd.f32 %v7761, %v8197
    %v8199 = vpop.f32.mrb[0].mxu0
    %v8200 = vpop.f32.mrb[0].mxu0
    %v8201 = vpop.f32.mrb[0].mxu0
    %8202 = vdwg.mxu0
    %8203 = vmatprep.subr.bf16.mxu0 0
    %8204 = vmatpush1.bf16.msra.mxu0 %v8035
    %8205 = vmatprep.subr.bf16.mxu0 0
    %8206 = vmatpush1.bf16.msra.mxu0 %v8036
    %8207 = vmatprep.subr.bf16.mxu0 0
    %8208 = vmatpush1.bf16.msra.mxu0 %v8037
    %8209 = vmatprep.subr.bf16.mxu0 0
    %8210 = vmatpush1.bf16.msra.mxu0 %v8038
    %8211 = vmatprep.subr.bf16.mxu0 0
    %8212 = vmatpush1.bf16.msra.mxu0 %v8039
    %8213 = vmatprep.subr.bf16.mxu0 0
    %8214 = vmatpush1.bf16.msra.mxu0 %v8040
    %8215 = vmatprep.subr.bf16.mxu0 0
    %8216 = vmatpush1.bf16.msra.mxu0 %v8041
    %8217 = vmatprep.subr.bf16.mxu0 0
    %8218 = vmatpush1.bf16.msra.mxu0 %v8042
    %8219 = vmatprep.subr.bf16.mxu0 0
    %8220 = vmatpush1.bf16.msra.mxu0 %v8043
    %8221 = vmatprep.subr.bf16.mxu0 0
    %8222 = vmatpush1.bf16.msra.mxu0 %v8044
    %8223 = vmatprep.subr.bf16.mxu0 0
    %8224 = vmatpush1.bf16.msra.mxu0 %v8045
    %8225 = vmatprep.subr.bf16.mxu0 0
    %8226 = vmatpush1.bf16.msra.mxu0 %v8046
    %8227 = vmatprep.subr.bf16.mxu0 0
    %8228 = vmatpush1.bf16.msra.mxu0 %v8047
    %8229 = vmatprep.subr.bf16.mxu0 0
    %8230 = vmatpush1.bf16.msra.mxu0 %v8048
    %8231 = vmatprep.subr.bf16.mxu0 0
    %8232 = vmatpush1.bf16.msra.mxu0 %v8049
    %8233 = vmatprep.subr.bf16.mxu0 0
    %8234 = vmatpush1.bf16.msra.mxu0 %v8050
    %8235 = vmatprep.mubr.bf16.mxu0 %v7572
    %8236 = vmatmul.mubr.bf16.gmra.mrb[0].mxu0 %v7558
    %v8237 = vpop.f32.mrb[0].mxu0
    %v8238 = vadd.f32 %v8182, %v8237
    %v8239 = vpop.f32.mrb[0].mxu0
    %v8240 = vpop.f32.mrb[0].mxu0
    %v8241 = vadd.f32 %v8185, %v8240
    %v8242 = vpop.f32.mrb[0].mxu0
    %8243 = vmatprep.mubr.bf16.mxu0 %v7574
    %8244 = vmatmul.mubr.bf16.gmra.mrb[0].mxu0 %v7560
    %v8245 = vpop.f32.mrb[0].mxu0
    %v8246 = vadd.f32 %v8190, %v8245
    %v8247 = vpop.f32.mrb[0].mxu0
    %v8248 = vpop.f32.mrb[0].mxu0
    %v8249 = vadd.f32 %v8193, %v8248
    %v8250 = vpop.f32.mrb[0].mxu0
    %8251 = vmatprep.mubr.bf16.mxu0 %v7573
    %8252 = vmatmul.mubr.bf16.gmra.mrb[0].mxu0 %v7559
    %v8253 = vpop.f32.mrb[0].mxu0
    %v8254 = vadd.f32 %v8198, %v8253
    %v8255 = vpop.f32.mrb[0].mxu0
    %v8256 = vpop.f32.mrb[0].mxu0
    %v8257 = vpop.f32.mrb[0].mxu0
    %8258 = vdwg.mxu0
    %8259 = vmatprep.subr.bf16.mxu0 0
    %8260 = vmatpush1.bf16.msra.mxu0 %v8051
    %8261 = vmatprep.subr.bf16.mxu0 0
    %8262 = vmatpush1.bf16.msra.mxu0 %v8052
    %8263 = vmatprep.subr.bf16.mxu0 0
    %8264 = vmatpush1.bf16.msra.mxu0 %v8053
    %8265 = vmatprep.subr.bf16.mxu0 0
    %8266 = vmatpush1.bf16.msra.mxu0 %v8054
    %8267 = vmatprep.subr.bf16.mxu0 0
    %8268 = vmatpush1.bf16.msra.mxu0 %v8055
    %8269 = vmatprep.subr.bf16.mxu0 0
    %8270 = vmatpush1.bf16.msra.mxu0 %v8056
    %8271 = vmatprep.subr.bf16.mxu0 0
    %8272 = vmatpush1.bf16.msra.mxu0 %v8057
    %8273 = vmatprep.subr.bf16.mxu0 0
    %8274 = vmatpush1.bf16.msra.mxu0 %v8058
    %8275 = vmatprep.subr.bf16.mxu0 0
    %8276 = vmatpush1.bf16.msra.mxu0 %v8059
    %8277 = vmatprep.subr.bf16.mxu0 0
    %8278 = vmatpush1.bf16.msra.mxu0 %v8060
    %8279 = vmatprep.subr.bf16.mxu0 0
    %8280 = vmatpush1.bf16.msra.mxu0 %v8061
    %8281 = vmatprep.subr.bf16.mxu0 0
    %8282 = vmatpush1.bf16.msra.mxu0 %v8062
    %8283 = vmatprep.subr.bf16.mxu0 0
    %8284 = vmatpush1.bf16.msra.mxu0 %v8063
    %8285 = vmatprep.subr.bf16.mxu0 0
    %8286 = vmatpush1.bf16.msra.mxu0 %v8064
    %8287 = vmatprep.subr.bf16.mxu0 0
    %8288 = vmatpush1.bf16.msra.mxu0 %v8065
    %8289 = vmatprep.subr.bf16.mxu0 0
    %8290 = vmatpush1.bf16.msra.mxu0 %v8066
    %8291 = vmatprep.mubr.bf16.mxu0 %v7594
    %8292 = vmatmul.mubr.bf16.gmra.mrb[0].mxu0 %v7580
    %v8293 = vpop.f32.mrb[0].mxu0
    %v8294 = vadd.f32 %v8238, %v8293
    %v8295 = vpop.f32.mrb[0].mxu0
    %v8296 = vpop.f32.mrb[0].mxu0
    %v8297 = vadd.f32 %v8241, %v8296
    %v8298 = vpop.f32.mrb[0].mxu0
    %8299 = vmatprep.mubr.bf16.mxu0 %v7596
    %8300 = vmatmul.mubr.bf16.gmra.mrb[0].mxu0 %v7581
    %v8301 = vpop.f32.mrb[0].mxu0
    %v8302 = vadd.f32 %v8246, %v8301
    %v8303 = vpop.f32.mrb[0].mxu0
    %v8304 = vpop.f32.mrb[0].mxu0
    %v8305 = vadd.f32 %v8249, %v8304
    %v8306 = vpop.f32.mrb[0].mxu0
    %8307 = vmatprep.mubr.bf16.mxu0 %v7595
    %8308 = vmatmul.mubr.bf16.gmra.mrb[0].mxu0 %v7582
    %v8309 = vpop.f32.mrb[0].mxu0
    %v8310 = vadd.f32 %v8254, %v8309
    %v8311 = vpop.f32.mrb[0].mxu0
    %v8312 = vpop.f32.mrb[0].mxu0
    %v8313 = vpop.f32.mrb[0].mxu0
    %8314 = vdwg.mxu0
    %8315 = vmatprep.subr.bf16.mxu0 0
    %8316 = vmatpush1.bf16.msra.mxu0 %v8067
    %8317 = vmatprep.subr.bf16.mxu0 0
    %8318 = vmatpush1.bf16.msra.mxu0 %v8068
    %8319 = vmatprep.subr.bf16.mxu0 0
    %8320 = vmatpush1.bf16.msra.mxu0 %v8069
    %8321 = vmatprep.subr.bf16.mxu0 0
    %8322 = vmatpush1.bf16.msra.mxu0 %v8070
    %8323 = vmatprep.subr.bf16.mxu0 0
    %8324 = vmatpush1.bf16.msra.mxu0 %v8071
    %8325 = vmatprep.subr.bf16.mxu0 0
    %8326 = vmatpush1.bf16.msra.mxu0 %v8072
    %8327 = vmatprep.subr.bf16.mxu0 0
    %8328 = vmatpush1.bf16.msra.mxu0 %v8073
    %8329 = vmatprep.subr.bf16.mxu0 0
    %8330 = vmatpush1.bf16.msra.mxu0 %v8074
    %8331 = vmatprep.subr.bf16.mxu0 0
    %8332 = vmatpush1.bf16.msra.mxu0 %v8075
    %8333 = vmatprep.subr.bf16.mxu0 0
    %8334 = vmatpush1.bf16.msra.mxu0 %v8076
    %8335 = vmatprep.subr.bf16.mxu0 0
    %8336 = vmatpush1.bf16.msra.mxu0 %v8077
    %8337 = vmatprep.subr.bf16.mxu0 0
    %8338 = vmatpush1.bf16.msra.mxu0 %v8078
    %8339 = vmatprep.subr.bf16.mxu0 0
    %8340 = vmatpush1.bf16.msra.mxu0 %v8079
    %8341 = vmatprep.subr.bf16.mxu0 0
    %8342 = vmatpush1.bf16.msra.mxu0 %v8080
    %8343 = vmatprep.subr.bf16.mxu0 0
    %8344 = vmatpush1.bf16.msra.mxu0 %v8081
    %8345 = vmatprep.subr.bf16.mxu0 0
    %8346 = vmatpush1.bf16.msra.mxu0 %v8082
    %8347 = vmatprep.mubr.bf16.mxu0 %v7622
    %8348 = vmatmul.mubr.bf16.gmra.mrb[0].mxu0 %v7608
    %v8349 = vpop.f32.mrb[0].mxu0
    %v8350 = vadd.f32 %v8294, %v8349
    %v8351 = vpop.f32.mrb[0].mxu0
    %v8352 = vpop.f32.mrb[0].mxu0
    %v8353 = vadd.f32 %v8297, %v8352
    %v8354 = vpop.f32.mrb[0].mxu0
    %8355 = vmatprep.mubr.bf16.mxu0 %v7624
    %8356 = vmatmul.mubr.bf16.gmra.mrb[0].mxu0 %v7610
    %v8357 = vpop.f32.mrb[0].mxu0
    %v8358 = vadd.f32 %v8302, %v8357
    %v8359 = vpop.f32.mrb[0].mxu0
    %v8360 = vpop.f32.mrb[0].mxu0
    %v8361 = vadd.f32 %v8305, %v8360
    %v8362 = vpop.f32.mrb[0].mxu0
    %8363 = vmatprep.mubr.bf16.mxu0 %v7623
    %8364 = vmatmul.mubr.bf16.gmra.mrb[0].mxu0 %v7609
    %v8365 = vpop.f32.mrb[0].mxu0
    %v8366 = vadd.f32 %v8310, %v8365
    %v8367 = vpop.f32.mrb[0].mxu0
    %v8368 = vpop.f32.mrb[0].mxu0
    %v8369 = vpop.f32.mrb[0].mxu0
    %8370 = vdwg.mxu0
    %v8371 = vadd.f32 %v8350, %v8353
    %v8372 = vadd.f32 %v8371, %v8358
    %v8373 = vadd.f32 %v8372, %v8361
    %v8374 = vadd.f32 %v8373, %v8366
    %v8375 = vrot.slane %v8374, 4
    %v8376 = vadd.f32 %v8374, %v8375
    %v8377 = vrot.slane %v8376, 2
    %v8378 = vadd.f32 %v8376, %v8377
    %v8379 = vrot.slane %v8378, 1
    %v8380 = vadd.f32 %v8378, %v8379
    %v8381 = vmul.f32 %v8380, %v6454
    %v8382 = vsub.f32 %v8350, %v8381
    %v8383 = vsub.f32 %v8353, %v8381
    %v8384 = vsub.f32 %v8358, %v8381
    %v8385 = vsub.f32 %v8361, %v8381
    %v8386 = vsub.f32 %v8366, %v8381
    %v8387 = vmul.f32 %v8382, %v8382
    %v8388 = vmul.f32 %v8383, %v8383
    %v8389 = vmul.f32 %v8384, %v8384
    %v8390 = vmul.f32 %v8385, %v8385
    %v8391 = vmul.f32 %v8386, %v8386
    %v8392 = vadd.f32 %v8387, %v8388
    %v8393 = vadd.f32 %v8392, %v8389
    %v8394 = vadd.f32 %v8393, %v8390
    %v8395 = vadd.f32 %v8394, %v8391
    %v8396 = vrot.slane %v8395, 4
    %v8397 = vadd.f32 %v8395, %v8396
    %v8398 = vrot.slane %v8397, 2
    %v8399 = vadd.f32 %v8397, %v8398
    %v8400 = vrot.slane %v8399, 1
    %v8401 = vadd.f32 %v8399, %v8400
    %v8402 = vmul.f32 %v8401, %v6454
    %v8403 = vadd.f32 %v8402, 1e-05
    %v8404 = vrsqrt.pop %v8403
    %v8405 = vmul.f32 %v8382, %v8404
    %v8406 = vmul.f32 %v8383, %v8404
    %v8407 = vmul.f32 %v8384, %v8404
    %v8408 = vmul.f32 %v8385, %v8404
    %v8409 = vmul.f32 %v8386, %v8404
    %v8410 = vld [vmem:[#allocation40] sm:$0x1]
    %v8412 = vlaneseq
    %v8413 = vshrl.u32 %v8412, 7
    %v8414 = vsub.s32 0, %v8413
    %v8415 = vrot.slane %v8410, %v8414
    %v8417 = vmul.f32 %v8405, %v8415
    %v8418 = vmul.f32 %v8406, %v8415
    %v8419 = vmul.f32 %v8407, %v8415
    %v8420 = vmul.f32 %v8408, %v8415
    %v8421 = vmul.f32 %v8409, %v8415
    %v8422 = vld [vmem:[#allocation42] sm:$0x1]
    %v8424 = vlaneseq
    %v8425 = vshrl.u32 %v8424, 7
    %v8426 = vsub.s32 0, %v8425
    %v8427 = vrot.slane %v8422, %v8426
    %v8429 = vadd.f32 %v8417, %v8427
    %v8430 = vadd.f32 %v8418, %v8427
    %v8431 = vadd.f32 %v8419, %v8427
    %v8432 = vadd.f32 %v8420, %v8427
    %v8433 = vadd.f32 %v8421, %v8427
    %v8434 = vmax.f32 %v8429, 0.0
    %v8435 = vmax.f32 %v8430, 0.0
    %v8436 = vmax.f32 %v8431, 0.0
    %v8437 = vmax.f32 %v8432, 0.0
    %v8438 = vmax.f32 %v8433, 0.0
    %v8439 = vpack.c.bf16 %v8435, %v8434
    %v8440 = vpack.c.bf16 %v8437, %v8436
    %v8441 = vpack.c.bf16 %v8438, %v8438
    %v8445 = vunpack.c.l.b16 %v8439
    %v8446 = vunpack.c.h.b16 %v8439
    %v8447 = vunpack.c.l.b16 %v8440
    %v8448 = vunpack.c.h.b16 %v8440
    %v8449 = vunpack.c.l.b16 %v8441
    %v8450 = vpack.c.b16 %v8445, %v8445
    %v8451 = vpack.c.b16 %v8446, %v8446
    %v8452 = vpack.c.b16 %v8447, %v8447
    %v8453 = vpack.c.b16 %v8448, %v8448
    %v8454 = vpack.c.b16 %v8449, %v8449
    %8460 = vst [vmem:[#allocation7 + $0x4] sm:$0xf] %v8450
    %8461 = vst [vmem:[#allocation7 + $0x8] sm:$0xf] %v8451
    %8462 = vst [vmem:[#allocation7 + $0xc] sm:$0xf] %v8452
    %8463 = vst [vmem:[#allocation7 + $0x10] sm:$0xf] %v8453
    %8464 = vst [vmem:[#allocation7 + $0x14] sm:$0xf] %v8454
    %v8465 = vld [vmem:[#allocation7] sm:$0xf]
    %v8466 = vld [vmem:[#allocation7 + $0x4] sm:$0xf]
    %v8467 = vld [vmem:[#allocation7 + $0x8] sm:$0xf]
    %v8468 = vld [vmem:[#allocation7 + $0xc] sm:$0xf]
    %v8469 = vld [vmem:[#allocation7 + $0x10] sm:$0xf]
    %v8470 = vld [vmem:[#allocation7] sm:$0xe]
    %v8471 = vld [vmem:[#allocation7 + $0x14] sm:$0x1]
    %v8472 = vld [vmem:[#allocation7] sm:$0xc]
    %v8473 = vld [vmem:[#allocation7 + $0x14] sm:$0x3]
    %v8474 = vld [vmem:[#allocation7] sm:$0x8]
    %v8475 = vld [vmem:[#allocation7 + $0x14] sm:$0x7]
    %v8476 = vld [vmem:[#allocation7 + $0x14] sm:$0xf]
    %v8477 = vld [vmem:[#allocation7 + $0x4] sm:$0xe]
    %v8478 = vld [vmem:[#allocation7 + $0x18] sm:$0x1]
    %v8479 = vld [vmem:[#allocation7 + $0x4] sm:$0xc]
    %v8480 = vld [vmem:[#allocation7 + $0x18] sm:$0x3]
    %v8481 = vld [vmem:[#allocation7 + $0x4] sm:$0x8]
    %v8482 = vld [vmem:[#allocation7 + $0x18] sm:$0x7]
    %v8488 = vunpack.c.l.b16 %v8465
    %v8489 = vunpack.c.l.b16 %v8466
    %v8490 = vunpack.c.l.b16 %v8467
    %v8491 = vunpack.c.l.b16 %v8468
    %v8492 = vunpack.c.l.b16 %v8469
    %v8493 = vpack.c.b16 %v8489, %v8488
    %v8494 = vpack.c.b16 %v8491, %v8490
    %v8495 = vpack.c.b16 %v8492, %v8492
    %v8501 = vunpack.c.l.b16 %v8470
    %v8502 = vunpack.c.l.b16 %v8471
    %v8503 = vpack.c.b16 %v8489, %v8501
    %v8504 = vpack.c.b16 %v8502, %v8492
    %v8505 = vrot.slane %v8503, 1
    %v8506 = vrot.slane %v8494, 1
    %v8507 = vsel %vm1232, %v8505, %v8506
    %v8508 = vrot.slane %v8504, 1
    %v8509 = vsel %vm1232, %v8506, %v8508
    %v8515 = vunpack.c.l.b16 %v8472
    %v8516 = vunpack.c.l.b16 %v8473
    %v8517 = vpack.c.b16 %v8489, %v8515
    %v8518 = vpack.c.b16 %v8516, %v8492
    %v8519 = vrot.slane %v8517, 2
    %v8520 = vrot.slane %v8494, 2
    %v8521 = vsel %vm1254, %v8519, %v8520
    %v8522 = vrot.slane %v8518, 2
    %v8523 = vsel %vm1254, %v8520, %v8522
    %v8529 = vunpack.c.l.b16 %v8474
    %v8530 = vunpack.c.l.b16 %v8475
    %v8531 = vpack.c.b16 %v8489, %v8529
    %v8532 = vpack.c.b16 %v8530, %v8492
    %v8533 = vrot.slane %v8531, 3
    %v8534 = vrot.slane %v8494, 3
    %v8535 = vsel %vm1276, %v8533, %v8534
    %v8536 = vrot.slane %v8532, 3
    %v8537 = vsel %vm1276, %v8534, %v8536
    %v8542 = vunpack.c.l.b16 %v8476
    %v8543 = vpack.c.b16 %v8490, %v8489
    %v8544 = vpack.c.b16 %v8492, %v8491
    %v8545 = vpack.c.b16 %v8542, %v8542
    %v8551 = vunpack.c.l.b16 %v8477
    %v8552 = vunpack.c.l.b16 %v8478
    %v8553 = vpack.c.b16 %v8490, %v8551
    %v8554 = vpack.c.b16 %v8552, %v8542
    %v8555 = vrot.slane %v8553, 1
    %v8556 = vrot.slane %v8544, 1
    %v8557 = vsel %vm1232, %v8555, %v8556
    %v8558 = vrot.slane %v8554, 1
    %v8559 = vsel %vm1232, %v8556, %v8558
    %v8565 = vunpack.c.l.b16 %v8479
    %v8566 = vunpack.c.l.b16 %v8480
    %v8567 = vpack.c.b16 %v8490, %v8565
    %v8568 = vpack.c.b16 %v8566, %v8542
    %v8569 = vrot.slane %v8567, 2
    %v8570 = vrot.slane %v8544, 2
    %v8571 = vsel %vm1254, %v8569, %v8570
    %v8572 = vrot.slane %v8568, 2
    %v8573 = vsel %vm1254, %v8570, %v8572
    %v8579 = vunpack.c.l.b16 %v8481
    %v8580 = vunpack.c.l.b16 %v8482
    %v8581 = vpack.c.b16 %v8490, %v8579
    %v8582 = vpack.c.b16 %v8580, %v8542
    %v8583 = vrot.slane %v8581, 3
    %v8584 = vrot.slane %v8544, 3
    %v8585 = vsel %vm1276, %v8583, %v8584
    %v8586 = vrot.slane %v8582, 3
    %v8587 = vsel %vm1276, %v8584, %v8586
    %v8591 = vld [vmem:[#allocation43] sm:$0xf]
    %v8592 = vld [vmem:[#allocation43 + $0x4] sm:$0xf]
    %v8593 = vld [vmem:[#allocation43 + $0x8] sm:$0xf]
    %v8594 = vld [vmem:[#allocation43 + $0xc] sm:$0xf]
    %v8595 = vld [vmem:[#allocation43 + $0x10] sm:$0xf]
    %v8596 = vld [vmem:[#allocation43 + $0x14] sm:$0xf]
    %v8597 = vld [vmem:[#allocation43 + $0x18] sm:$0xf]
    %v8598 = vld [vmem:[#allocation43 + $0x1c] sm:$0xf]
    %v8599 = vld [vmem:[#allocation43 + $0x20] sm:$0xf]
    %v8600 = vld [vmem:[#allocation43 + $0x24] sm:$0xf]
    %v8601 = vld [vmem:[#allocation43 + $0x28] sm:$0xf]
    %v8602 = vld [vmem:[#allocation43 + $0x2c] sm:$0xf]
    %v8603 = vld [vmem:[#allocation43 + $0x30] sm:$0xf]
    %v8604 = vld [vmem:[#allocation43 + $0x34] sm:$0xf]
    %v8605 = vld [vmem:[#allocation43 + $0x38] sm:$0xf]
    %v8606 = vld [vmem:[#allocation43 + $0x3c] sm:$0xf]
    %v8607 = vld [vmem:[#allocation43 + $0x40] sm:$0xf]
    %v8608 = vld [vmem:[#allocation43 + $0x44] sm:$0xf]
    %v8609 = vld [vmem:[#allocation43 + $0x48] sm:$0xf]
    %v8610 = vld [vmem:[#allocation43 + $0x4c] sm:$0xf]
    %v8611 = vld [vmem:[#allocation43 + $0x50] sm:$0xf]
    %v8612 = vld [vmem:[#allocation43 + $0x54] sm:$0xf]
    %v8613 = vld [vmem:[#allocation43 + $0x58] sm:$0xf]
    %v8614 = vld [vmem:[#allocation43 + $0x5c] sm:$0xf]
    %v8615 = vld [vmem:[#allocation43 + $0x60] sm:$0xf]
    %v8616 = vld [vmem:[#allocation43 + $0x64] sm:$0xf]
    %v8617 = vld [vmem:[#allocation43 + $0x68] sm:$0xf]
    %v8618 = vld [vmem:[#allocation43 + $0x6c] sm:$0xf]
    %v8619 = vld [vmem:[#allocation43 + $0x70] sm:$0xf]
    %v8620 = vld [vmem:[#allocation43 + $0x74] sm:$0xf]
    %v8621 = vld [vmem:[#allocation43 + $0x78] sm:$0xf]
    %v8622 = vld [vmem:[#allocation43 + $0x7c] sm:$0xf]
    %v8623 = vld [vmem:[#allocation43 + $0x80] sm:$0xf]
    %v8624 = vld [vmem:[#allocation43 + $0x84] sm:$0xf]
    %v8625 = vld [vmem:[#allocation43 + $0x88] sm:$0xf]
    %v8626 = vld [vmem:[#allocation43 + $0x8c] sm:$0xf]
    %v8627 = vld [vmem:[#allocation43 + $0x90] sm:$0xf]
    %v8628 = vld [vmem:[#allocation43 + $0x94] sm:$0xf]
    %v8629 = vld [vmem:[#allocation43 + $0x98] sm:$0xf]
    %v8630 = vld [vmem:[#allocation43 + $0x9c] sm:$0xf]
    %v8631 = vld [vmem:[#allocation43 + $0xa0] sm:$0xf]
    %v8632 = vld [vmem:[#allocation43 + $0xa4] sm:$0xf]
    %v8633 = vld [vmem:[#allocation43 + $0xa8] sm:$0xf]
    %v8634 = vld [vmem:[#allocation43 + $0xac] sm:$0xf]
    %v8635 = vld [vmem:[#allocation43 + $0xb0] sm:$0xf]
    %v8636 = vld [vmem:[#allocation43 + $0xb4] sm:$0xf]
    %v8637 = vld [vmem:[#allocation43 + $0xb8] sm:$0xf]
    %v8638 = vld [vmem:[#allocation43 + $0xbc] sm:$0xf]
    %v8639 = vld [vmem:[#allocation43 + $0xc0] sm:$0xf]
    %v8640 = vld [vmem:[#allocation43 + $0xc4] sm:$0xf]
    %v8641 = vld [vmem:[#allocation43 + $0xc8] sm:$0xf]
    %v8642 = vld [vmem:[#allocation43 + $0xcc] sm:$0xf]
    %v8643 = vld [vmem:[#allocation43 + $0xd0] sm:$0xf]
    %v8644 = vld [vmem:[#allocation43 + $0xd4] sm:$0xf]
    %v8645 = vld [vmem:[#allocation43 + $0xd8] sm:$0xf]
    %v8646 = vld [vmem:[#allocation43 + $0xdc] sm:$0xf]
    %v8647 = vld [vmem:[#allocation43 + $0xe0] sm:$0xf]
    %v8648 = vld [vmem:[#allocation43 + $0xe4] sm:$0xf]
    %v8649 = vld [vmem:[#allocation43 + $0xe8] sm:$0xf]
    %v8650 = vld [vmem:[#allocation43 + $0xec] sm:$0xf]
    %v8651 = vld [vmem:[#allocation43 + $0xf0] sm:$0xf]
    %v8652 = vld [vmem:[#allocation43 + $0xf4] sm:$0xf]
    %v8653 = vld [vmem:[#allocation43 + $0xf8] sm:$0xf]
    %v8654 = vld [vmem:[#allocation43 + $0xfc] sm:$0xf]
    %v8655 = vld [vmem:[#allocation43 + $0x100] sm:$0xf]
    %v8656 = vld [vmem:[#allocation43 + $0x104] sm:$0xf]
    %v8657 = vld [vmem:[#allocation43 + $0x108] sm:$0xf]
    %v8658 = vld [vmem:[#allocation43 + $0x10c] sm:$0xf]
    %v8659 = vld [vmem:[#allocation43 + $0x110] sm:$0xf]
    %v8660 = vld [vmem:[#allocation43 + $0x114] sm:$0xf]
    %v8661 = vld [vmem:[#allocation43 + $0x118] sm:$0xf]
    %v8662 = vld [vmem:[#allocation43 + $0x11c] sm:$0xf]
    %v8663 = vld [vmem:[#allocation43 + $0x120] sm:$0xf]
    %v8664 = vld [vmem:[#allocation43 + $0x124] sm:$0xf]
    %v8665 = vld [vmem:[#allocation43 + $0x128] sm:$0xf]
    %v8666 = vld [vmem:[#allocation43 + $0x12c] sm:$0xf]
    %v8667 = vld [vmem:[#allocation43 + $0x130] sm:$0xf]
    %v8668 = vld [vmem:[#allocation43 + $0x134] sm:$0xf]
    %v8669 = vld [vmem:[#allocation43 + $0x138] sm:$0xf]
    %v8670 = vld [vmem:[#allocation43 + $0x13c] sm:$0xf]
    %v8671 = vld [vmem:[#allocation43 + $0x140] sm:$0xf]
    %v8672 = vld [vmem:[#allocation43 + $0x144] sm:$0xf]
    %v8673 = vld [vmem:[#allocation43 + $0x148] sm:$0xf]
    %v8674 = vld [vmem:[#allocation43 + $0x14c] sm:$0xf]
    %v8675 = vld [vmem:[#allocation43 + $0x150] sm:$0xf]
    %v8676 = vld [vmem:[#allocation43 + $0x154] sm:$0xf]
    %v8677 = vld [vmem:[#allocation43 + $0x158] sm:$0xf]
    %v8678 = vld [vmem:[#allocation43 + $0x15c] sm:$0xf]
    %v8679 = vld [vmem:[#allocation43 + $0x160] sm:$0xf]
    %v8680 = vld [vmem:[#allocation43 + $0x164] sm:$0xf]
    %v8681 = vld [vmem:[#allocation43 + $0x168] sm:$0xf]
    %v8682 = vld [vmem:[#allocation43 + $0x16c] sm:$0xf]
    %v8683 = vld [vmem:[#allocation43 + $0x170] sm:$0xf]
    %v8684 = vld [vmem:[#allocation43 + $0x174] sm:$0xf]
    %v8685 = vld [vmem:[#allocation43 + $0x178] sm:$0xf]
    %v8686 = vld [vmem:[#allocation43 + $0x17c] sm:$0xf]
    %v8687 = vld [vmem:[#allocation43 + $0x180] sm:$0xf]
    %v8688 = vld [vmem:[#allocation43 + $0x184] sm:$0xf]
    %v8689 = vld [vmem:[#allocation43 + $0x188] sm:$0xf]
    %v8690 = vld [vmem:[#allocation43 + $0x18c] sm:$0xf]
    %v8691 = vld [vmem:[#allocation43 + $0x190] sm:$0xf]
    %v8692 = vld [vmem:[#allocation43 + $0x194] sm:$0xf]
    %v8693 = vld [vmem:[#allocation43 + $0x198] sm:$0xf]
    %v8694 = vld [vmem:[#allocation43 + $0x19c] sm:$0xf]
    %v8695 = vld [vmem:[#allocation43 + $0x1a0] sm:$0xf]
    %v8696 = vld [vmem:[#allocation43 + $0x1a4] sm:$0xf]
    %v8697 = vld [vmem:[#allocation43 + $0x1a8] sm:$0xf]
    %v8698 = vld [vmem:[#allocation43 + $0x1ac] sm:$0xf]
    %v8699 = vld [vmem:[#allocation43 + $0x1b0] sm:$0xf]
    %v8700 = vld [vmem:[#allocation43 + $0x1b4] sm:$0xf]
    %v8701 = vld [vmem:[#allocation43 + $0x1b8] sm:$0xf]
    %v8702 = vld [vmem:[#allocation43 + $0x1bc] sm:$0xf]
    %v8703 = vld [vmem:[#allocation43 + $0x1c0] sm:$0xf]
    %v8704 = vld [vmem:[#allocation43 + $0x1c4] sm:$0xf]
    %v8705 = vld [vmem:[#allocation43 + $0x1c8] sm:$0xf]
    %v8706 = vld [vmem:[#allocation43 + $0x1cc] sm:$0xf]
    %v8707 = vld [vmem:[#allocation43 + $0x1d0] sm:$0xf]
    %v8708 = vld [vmem:[#allocation43 + $0x1d4] sm:$0xf]
    %v8709 = vld [vmem:[#allocation43 + $0x1d8] sm:$0xf]
    %v8710 = vld [vmem:[#allocation43 + $0x1dc] sm:$0xf]
    %v8711 = vld [vmem:[#allocation43 + $0x1e0] sm:$0xf]
    %v8712 = vld [vmem:[#allocation43 + $0x1e4] sm:$0xf]
    %v8713 = vld [vmem:[#allocation43 + $0x1e8] sm:$0xf]
    %v8714 = vld [vmem:[#allocation43 + $0x1ec] sm:$0xf]
    %v8715 = vld [vmem:[#allocation43 + $0x1f0] sm:$0xf]
    %v8716 = vld [vmem:[#allocation43 + $0x1f4] sm:$0xf]
    %v8717 = vld [vmem:[#allocation43 + $0x1f8] sm:$0xf]
    %v8718 = vld [vmem:[#allocation43 + $0x1fc] sm:$0xf]
    %v8719 = vld [vmem:[#allocation45] sm:$0x1]
    %v8721 = vlaneseq
    %v8722 = vshrl.u32 %v8721, 7
    %v8723 = vsub.s32 0, %v8722
    %v8724 = vrot.slane %v8719, %v8723
    %v8854 = vunpack.c.l.b16 %v8591
    %v8855 = vunpack.c.l.b16 %v8592
    %v8856 = vunpack.c.l.b16 %v8593
    %v8857 = vunpack.c.l.b16 %v8594
    %v8858 = vunpack.c.l.b16 %v8595
    %v8859 = vunpack.c.l.b16 %v8596
    %v8860 = vunpack.c.l.b16 %v8597
    %v8861 = vunpack.c.l.b16 %v8598
    %v8862 = vunpack.c.l.b16 %v8599
    %v8863 = vunpack.c.l.b16 %v8600
    %v8864 = vunpack.c.l.b16 %v8601
    %v8865 = vunpack.c.l.b16 %v8602
    %v8866 = vunpack.c.l.b16 %v8603
    %v8867 = vunpack.c.l.b16 %v8604
    %v8868 = vunpack.c.l.b16 %v8605
    %v8869 = vunpack.c.l.b16 %v8606
    %v8870 = vunpack.c.l.b16 %v8607
    %v8871 = vunpack.c.l.b16 %v8608
    %v8872 = vunpack.c.l.b16 %v8609
    %v8873 = vunpack.c.l.b16 %v8610
    %v8874 = vunpack.c.l.b16 %v8611
    %v8875 = vunpack.c.l.b16 %v8612
    %v8876 = vunpack.c.l.b16 %v8613
    %v8877 = vunpack.c.l.b16 %v8614
    %v8878 = vunpack.c.l.b16 %v8615
    %v8879 = vunpack.c.l.b16 %v8616
    %v8880 = vunpack.c.l.b16 %v8617
    %v8881 = vunpack.c.l.b16 %v8618
    %v8882 = vunpack.c.l.b16 %v8619
    %v8883 = vunpack.c.l.b16 %v8620
    %v8884 = vunpack.c.l.b16 %v8621
    %v8885 = vunpack.c.l.b16 %v8622
    %v8886 = vunpack.c.l.b16 %v8623
    %v8887 = vunpack.c.l.b16 %v8624
    %v8888 = vunpack.c.l.b16 %v8625
    %v8889 = vunpack.c.l.b16 %v8626
    %v8890 = vunpack.c.l.b16 %v8627
    %v8891 = vunpack.c.l.b16 %v8628
    %v8892 = vunpack.c.l.b16 %v8629
    %v8893 = vunpack.c.l.b16 %v8630
    %v8894 = vunpack.c.l.b16 %v8631
    %v8895 = vunpack.c.l.b16 %v8632
    %v8896 = vunpack.c.l.b16 %v8633
    %v8897 = vunpack.c.l.b16 %v8634
    %v8898 = vunpack.c.l.b16 %v8635
    %v8899 = vunpack.c.l.b16 %v8636
    %v8900 = vunpack.c.l.b16 %v8637
    %v8901 = vunpack.c.l.b16 %v8638
    %v8902 = vunpack.c.l.b16 %v8639
    %v8903 = vunpack.c.l.b16 %v8640
    %v8904 = vunpack.c.l.b16 %v8641
    %v8905 = vunpack.c.l.b16 %v8642
    %v8906 = vunpack.c.l.b16 %v8643
    %v8907 = vunpack.c.l.b16 %v8644
    %v8908 = vunpack.c.l.b16 %v8645
    %v8909 = vunpack.c.l.b16 %v8646
    %v8910 = vunpack.c.l.b16 %v8647
    %v8911 = vunpack.c.l.b16 %v8648
    %v8912 = vunpack.c.l.b16 %v8649
    %v8913 = vunpack.c.l.b16 %v8650
    %v8914 = vunpack.c.l.b16 %v8651
    %v8915 = vunpack.c.l.b16 %v8652
    %v8916 = vunpack.c.l.b16 %v8653
    %v8917 = vunpack.c.l.b16 %v8654
    %v8918 = vunpack.c.l.b16 %v8655
    %v8919 = vunpack.c.l.b16 %v8656
    %v8920 = vunpack.c.l.b16 %v8657
    %v8921 = vunpack.c.l.b16 %v8658
    %v8922 = vunpack.c.l.b16 %v8659
    %v8923 = vunpack.c.l.b16 %v8660
    %v8924 = vunpack.c.l.b16 %v8661
    %v8925 = vunpack.c.l.b16 %v8662
    %v8926 = vunpack.c.l.b16 %v8663
    %v8927 = vunpack.c.l.b16 %v8664
    %v8928 = vunpack.c.l.b16 %v8665
    %v8929 = vunpack.c.l.b16 %v8666
    %v8930 = vunpack.c.l.b16 %v8667
    %v8931 = vunpack.c.l.b16 %v8668
    %v8932 = vunpack.c.l.b16 %v8669
    %v8933 = vunpack.c.l.b16 %v8670
    %v8934 = vunpack.c.l.b16 %v8671
    %v8935 = vunpack.c.l.b16 %v8672
    %v8936 = vunpack.c.l.b16 %v8673
    %v8937 = vunpack.c.l.b16 %v8674
    %v8938 = vunpack.c.l.b16 %v8675
    %v8939 = vunpack.c.l.b16 %v8676
    %v8940 = vunpack.c.l.b16 %v8677
    %v8941 = vunpack.c.l.b16 %v8678
    %v8942 = vunpack.c.l.b16 %v8679
    %v8943 = vunpack.c.l.b16 %v8680
    %v8944 = vunpack.c.l.b16 %v8681
    %v8945 = vunpack.c.l.b16 %v8682
    %v8946 = vunpack.c.l.b16 %v8683
    %v8947 = vunpack.c.l.b16 %v8684
    %v8948 = vunpack.c.l.b16 %v8685
    %v8949 = vunpack.c.l.b16 %v8686
    %v8950 = vunpack.c.l.b16 %v8687
    %v8951 = vunpack.c.l.b16 %v8688
    %v8952 = vunpack.c.l.b16 %v8689
    %v8953 = vunpack.c.l.b16 %v8690
    %v8954 = vunpack.c.l.b16 %v8691
    %v8955 = vunpack.c.l.b16 %v8692
    %v8956 = vunpack.c.l.b16 %v8693
    %v8957 = vunpack.c.l.b16 %v8694
    %v8958 = vunpack.c.l.b16 %v8695
    %v8959 = vunpack.c.l.b16 %v8696
    %v8960 = vunpack.c.l.b16 %v8697
    %v8961 = vunpack.c.l.b16 %v8698
    %v8962 = vunpack.c.l.b16 %v8699
    %v8963 = vunpack.c.l.b16 %v8700
    %v8964 = vunpack.c.l.b16 %v8701
    %v8965 = vunpack.c.l.b16 %v8702
    %v8966 = vunpack.c.l.b16 %v8703
    %v8967 = vunpack.c.l.b16 %v8704
    %v8968 = vunpack.c.l.b16 %v8705
    %v8969 = vunpack.c.l.b16 %v8706
    %v8970 = vunpack.c.l.b16 %v8707
    %v8971 = vunpack.c.l.b16 %v8708
    %v8972 = vunpack.c.l.b16 %v8709
    %v8973 = vunpack.c.l.b16 %v8710
    %v8974 = vunpack.c.l.b16 %v8711
    %v8975 = vunpack.c.l.b16 %v8712
    %v8976 = vunpack.c.l.b16 %v8713
    %v8977 = vunpack.c.l.b16 %v8714
    %v8978 = vunpack.c.l.b16 %v8715
    %v8979 = vunpack.c.l.b16 %v8716
    %v8980 = vunpack.c.l.b16 %v8717
    %v8981 = vunpack.c.l.b16 %v8718
    %v8982 = vpack.c.b16 %v8855, %v8854
    %v8983 = vpack.c.b16 %v8857, %v8856
    %v8984 = vpack.c.b16 %v8859, %v8858
    %v8985 = vpack.c.b16 %v8861, %v8860
    %v8986 = vpack.c.b16 %v8863, %v8862
    %v8987 = vpack.c.b16 %v8865, %v8864
    %v8988 = vpack.c.b16 %v8867, %v8866
    %v8989 = vpack.c.b16 %v8869, %v8868
    %v8990 = vpack.c.b16 %v8871, %v8870
    %v8991 = vpack.c.b16 %v8873, %v8872
    %v8992 = vpack.c.b16 %v8875, %v8874
    %v8993 = vpack.c.b16 %v8877, %v8876
    %v8994 = vpack.c.b16 %v8879, %v8878
    %v8995 = vpack.c.b16 %v8881, %v8880
    %v8996 = vpack.c.b16 %v8883, %v8882
    %v8997 = vpack.c.b16 %v8885, %v8884
    %v8998 = vpack.c.b16 %v8887, %v8886
    %v8999 = vpack.c.b16 %v8889, %v8888
    %v9000 = vpack.c.b16 %v8891, %v8890
    %v9001 = vpack.c.b16 %v8893, %v8892
    %v9002 = vpack.c.b16 %v8895, %v8894
    %v9003 = vpack.c.b16 %v8897, %v8896
    %v9004 = vpack.c.b16 %v8899, %v8898
    %v9005 = vpack.c.b16 %v8901, %v8900
    %v9006 = vpack.c.b16 %v8903, %v8902
    %v9007 = vpack.c.b16 %v8905, %v8904
    %v9008 = vpack.c.b16 %v8907, %v8906
    %v9009 = vpack.c.b16 %v8909, %v8908
    %v9010 = vpack.c.b16 %v8911, %v8910
    %v9011 = vpack.c.b16 %v8913, %v8912
    %v9012 = vpack.c.b16 %v8915, %v8914
    %v9013 = vpack.c.b16 %v8917, %v8916
    %v9014 = vpack.c.b16 %v8919, %v8918
    %v9015 = vpack.c.b16 %v8921, %v8920
    %v9016 = vpack.c.b16 %v8923, %v8922
    %v9017 = vpack.c.b16 %v8925, %v8924
    %v9018 = vpack.c.b16 %v8927, %v8926
    %v9019 = vpack.c.b16 %v8929, %v8928
    %v9020 = vpack.c.b16 %v8931, %v8930
    %v9021 = vpack.c.b16 %v8933, %v8932
    %v9022 = vpack.c.b16 %v8935, %v8934
    %v9023 = vpack.c.b16 %v8937, %v8936
    %v9024 = vpack.c.b16 %v8939, %v8938
    %v9025 = vpack.c.b16 %v8941, %v8940
    %v9026 = vpack.c.b16 %v8943, %v8942
    %v9027 = vpack.c.b16 %v8945, %v8944
    %v9028 = vpack.c.b16 %v8947, %v8946
    %v9029 = vpack.c.b16 %v8949, %v8948
    %v9030 = vpack.c.b16 %v8951, %v8950
    %v9031 = vpack.c.b16 %v8953, %v8952
    %v9032 = vpack.c.b16 %v8955, %v8954
    %v9033 = vpack.c.b16 %v8957, %v8956
    %v9034 = vpack.c.b16 %v8959, %v8958
    %v9035 = vpack.c.b16 %v8961, %v8960
    %v9036 = vpack.c.b16 %v8963, %v8962
    %v9037 = vpack.c.b16 %v8965, %v8964
    %v9038 = vpack.c.b16 %v8967, %v8966
    %v9039 = vpack.c.b16 %v8969, %v8968
    %v9040 = vpack.c.b16 %v8971, %v8970
    %v9041 = vpack.c.b16 %v8973, %v8972
    %v9042 = vpack.c.b16 %v8975, %v8974
    %v9043 = vpack.c.b16 %v8977, %v8976
    %v9044 = vpack.c.b16 %v8979, %v8978
    %v9045 = vpack.c.b16 %v8981, %v8980
    %9110 = vmatprep.subr.bf16.mxu0 0
    %9111 = vmatpush1.bf16.msra.mxu0 %v8982
    %9112 = vmatprep.subr.bf16.mxu0 0
    %9113 = vmatpush1.bf16.msra.mxu0 %v8983
    %9114 = vmatprep.subr.bf16.mxu0 0
    %9115 = vmatpush1.bf16.msra.mxu0 %v8984
    %9116 = vmatprep.subr.bf16.mxu0 0
    %9117 = vmatpush1.bf16.msra.mxu0 %v8985
    %9118 = vmatprep.subr.bf16.mxu0 0
    %9119 = vmatpush1.bf16.msra.mxu0 %v8986
    %9120 = vmatprep.subr.bf16.mxu0 0
    %9121 = vmatpush1.bf16.msra.mxu0 %v8987
    %9122 = vmatprep.subr.bf16.mxu0 0
    %9123 = vmatpush1.bf16.msra.mxu0 %v8988
    %9124 = vmatprep.subr.bf16.mxu0 0
    %9125 = vmatpush1.bf16.msra.mxu0 %v8989
    %9126 = vmatprep.subr.bf16.mxu0 0
    %9127 = vmatpush1.bf16.msra.mxu0 %v8990
    %9128 = vmatprep.subr.bf16.mxu0 0
    %9129 = vmatpush1.bf16.msra.mxu0 %v8991
    %9130 = vmatprep.subr.bf16.mxu0 0
    %9131 = vmatpush1.bf16.msra.mxu0 %v8992
    %9132 = vmatprep.subr.bf16.mxu0 0
    %9133 = vmatpush1.bf16.msra.mxu0 %v8993
    %9134 = vmatprep.subr.bf16.mxu0 0
    %9135 = vmatpush1.bf16.msra.mxu0 %v8994
    %9136 = vmatprep.subr.bf16.mxu0 0
    %9137 = vmatpush1.bf16.msra.mxu0 %v8995
    %9138 = vmatprep.subr.bf16.mxu0 0
    %9139 = vmatpush1.bf16.msra.mxu0 %v8996
    %9140 = vmatprep.subr.bf16.mxu0 0
    %9141 = vmatpush1.bf16.msra.mxu0 %v8997
    %9142 = vmatprep.mubr.bf16.mxu0 %v8507
    %9143 = vmatmul.mubr.bf16.gmra.mrb[0].mxu0 %v8493
    %v9144 = vpop.f32.mrb[0].mxu0
    %v9145 = vadd.f32 %v8724, %v9144
    %v9146 = vpop.f32.mrb[0].mxu0
    %v9147 = vpop.f32.mrb[0].mxu0
    %v9148 = vadd.f32 %v8724, %v9147
    %v9149 = vpop.f32.mrb[0].mxu0
    %9150 = vmatprep.mubr.bf16.mxu0 %v8509
    %9151 = vmatmul.mubr.bf16.gmra.mrb[0].mxu0 %v8494
    %v9152 = vpop.f32.mrb[0].mxu0
    %v9153 = vadd.f32 %v8724, %v9152
    %v9154 = vpop.f32.mrb[0].mxu0
    %v9155 = vpop.f32.mrb[0].mxu0
    %v9156 = vadd.f32 %v8724, %v9155
    %v9157 = vpop.f32.mrb[0].mxu0
    %9158 = vmatprep.mubr.bf16.mxu0 %v8508
    %9159 = vmatmul.mubr.bf16.gmra.mrb[0].mxu0 %v8495
    %v9160 = vpop.f32.mrb[0].mxu0
    %v9161 = vadd.f32 %v8724, %v9160
    %v9162 = vpop.f32.mrb[0].mxu0
    %v9163 = vpop.f32.mrb[0].mxu0
    %v9164 = vpop.f32.mrb[0].mxu0
    %9165 = vdwg.mxu0
    %9166 = vmatprep.subr.bf16.mxu0 0
    %9167 = vmatpush1.bf16.msra.mxu0 %v8998
    %9168 = vmatprep.subr.bf16.mxu0 0
    %9169 = vmatpush1.bf16.msra.mxu0 %v8999
    %9170 = vmatprep.subr.bf16.mxu0 0
    %9171 = vmatpush1.bf16.msra.mxu0 %v9000
    %9172 = vmatprep.subr.bf16.mxu0 0
    %9173 = vmatpush1.bf16.msra.mxu0 %v9001
    %9174 = vmatprep.subr.bf16.mxu0 0
    %9175 = vmatpush1.bf16.msra.mxu0 %v9002
    %9176 = vmatprep.subr.bf16.mxu0 0
    %9177 = vmatpush1.bf16.msra.mxu0 %v9003
    %9178 = vmatprep.subr.bf16.mxu0 0
    %9179 = vmatpush1.bf16.msra.mxu0 %v9004
    %9180 = vmatprep.subr.bf16.mxu0 0
    %9181 = vmatpush1.bf16.msra.mxu0 %v9005
    %9182 = vmatprep.subr.bf16.mxu0 0
    %9183 = vmatpush1.bf16.msra.mxu0 %v9006
    %9184 = vmatprep.subr.bf16.mxu0 0
    %9185 = vmatpush1.bf16.msra.mxu0 %v9007
    %9186 = vmatprep.subr.bf16.mxu0 0
    %9187 = vmatpush1.bf16.msra.mxu0 %v9008
    %9188 = vmatprep.subr.bf16.mxu0 0
    %9189 = vmatpush1.bf16.msra.mxu0 %v9009
    %9190 = vmatprep.subr.bf16.mxu0 0
    %9191 = vmatpush1.bf16.msra.mxu0 %v9010
    %9192 = vmatprep.subr.bf16.mxu0 0
    %9193 = vmatpush1.bf16.msra.mxu0 %v9011
    %9194 = vmatprep.subr.bf16.mxu0 0
    %9195 = vmatpush1.bf16.msra.mxu0 %v9012
    %9196 = vmatprep.subr.bf16.mxu0 0
    %9197 = vmatpush1.bf16.msra.mxu0 %v9013
    %9198 = vmatprep.mubr.bf16.mxu0 %v8535
    %9199 = vmatmul.mubr.bf16.gmra.mrb[0].mxu0 %v8521
    %v9200 = vpop.f32.mrb[0].mxu0
    %v9201 = vadd.f32 %v9145, %v9200
    %v9202 = vpop.f32.mrb[0].mxu0
    %v9203 = vpop.f32.mrb[0].mxu0
    %v9204 = vadd.f32 %v9148, %v9203
    %v9205 = vpop.f32.mrb[0].mxu0
    %9206 = vmatprep.mubr.bf16.mxu0 %v8537
    %9207 = vmatmul.mubr.bf16.gmra.mrb[0].mxu0 %v8523
    %v9208 = vpop.f32.mrb[0].mxu0
    %v9209 = vadd.f32 %v9153, %v9208
    %v9210 = vpop.f32.mrb[0].mxu0
    %v9211 = vpop.f32.mrb[0].mxu0
    %v9212 = vadd.f32 %v9156, %v9211
    %v9213 = vpop.f32.mrb[0].mxu0
    %9214 = vmatprep.mubr.bf16.mxu0 %v8536
    %9215 = vmatmul.mubr.bf16.gmra.mrb[0].mxu0 %v8522
    %v9216 = vpop.f32.mrb[0].mxu0
    %v9217 = vadd.f32 %v9161, %v9216
    %v9218 = vpop.f32.mrb[0].mxu0
    %v9219 = vpop.f32.mrb[0].mxu0
    %v9220 = vpop.f32.mrb[0].mxu0
    %9221 = vdwg.mxu0
    %9222 = vmatprep.subr.bf16.mxu0 0
    %9223 = vmatpush1.bf16.msra.mxu0 %v9014
    %9224 = vmatprep.subr.bf16.mxu0 0
    %9225 = vmatpush1.bf16.msra.mxu0 %v9015
    %9226 = vmatprep.subr.bf16.mxu0 0
    %9227 = vmatpush1.bf16.msra.mxu0 %v9016
    %9228 = vmatprep.subr.bf16.mxu0 0
    %9229 = vmatpush1.bf16.msra.mxu0 %v9017
    %9230 = vmatprep.subr.bf16.mxu0 0
    %9231 = vmatpush1.bf16.msra.mxu0 %v9018
    %9232 = vmatprep.subr.bf16.mxu0 0
    %9233 = vmatpush1.bf16.msra.mxu0 %v9019
    %9234 = vmatprep.subr.bf16.mxu0 0
    %9235 = vmatpush1.bf16.msra.mxu0 %v9020
    %9236 = vmatprep.subr.bf16.mxu0 0
    %9237 = vmatpush1.bf16.msra.mxu0 %v9021
    %9238 = vmatprep.subr.bf16.mxu0 0
    %9239 = vmatpush1.bf16.msra.mxu0 %v9022
    %9240 = vmatprep.subr.bf16.mxu0 0
    %9241 = vmatpush1.bf16.msra.mxu0 %v9023
    %9242 = vmatprep.subr.bf16.mxu0 0
    %9243 = vmatpush1.bf16.msra.mxu0 %v9024
    %9244 = vmatprep.subr.bf16.mxu0 0
    %9245 = vmatpush1.bf16.msra.mxu0 %v9025
    %9246 = vmatprep.subr.bf16.mxu0 0
    %9247 = vmatpush1.bf16.msra.mxu0 %v9026
    %9248 = vmatprep.subr.bf16.mxu0 0
    %9249 = vmatpush1.bf16.msra.mxu0 %v9027
    %9250 = vmatprep.subr.bf16.mxu0 0
    %9251 = vmatpush1.bf16.msra.mxu0 %v9028
    %9252 = vmatprep.subr.bf16.mxu0 0
    %9253 = vmatpush1.bf16.msra.mxu0 %v9029
    %9254 = vmatprep.mubr.bf16.mxu0 %v8557
    %9255 = vmatmul.mubr.bf16.gmra.mrb[0].mxu0 %v8543
    %v9256 = vpop.f32.mrb[0].mxu0
    %v9257 = vadd.f32 %v9201, %v9256
    %v9258 = vpop.f32.mrb[0].mxu0
    %v9259 = vpop.f32.mrb[0].mxu0
    %v9260 = vadd.f32 %v9204, %v9259
    %v9261 = vpop.f32.mrb[0].mxu0
    %9262 = vmatprep.mubr.bf16.mxu0 %v8559
    %9263 = vmatmul.mubr.bf16.gmra.mrb[0].mxu0 %v8544
    %v9264 = vpop.f32.mrb[0].mxu0
    %v9265 = vadd.f32 %v9209, %v9264
    %v9266 = vpop.f32.mrb[0].mxu0
    %v9267 = vpop.f32.mrb[0].mxu0
    %v9268 = vadd.f32 %v9212, %v9267
    %v9269 = vpop.f32.mrb[0].mxu0
    %9270 = vmatprep.mubr.bf16.mxu0 %v8558
    %9271 = vmatmul.mubr.bf16.gmra.mrb[0].mxu0 %v8545
    %v9272 = vpop.f32.mrb[0].mxu0
    %v9273 = vadd.f32 %v9217, %v9272
    %v9274 = vpop.f32.mrb[0].mxu0
    %v9275 = vpop.f32.mrb[0].mxu0
    %v9276 = vpop.f32.mrb[0].mxu0
    %9277 = vdwg.mxu0
    %9278 = vmatprep.subr.bf16.mxu0 0
    %9279 = vmatpush1.bf16.msra.mxu0 %v9030
    %9280 = vmatprep.subr.bf16.mxu0 0
    %9281 = vmatpush1.bf16.msra.mxu0 %v9031
    %9282 = vmatprep.subr.bf16.mxu0 0
    %9283 = vmatpush1.bf16.msra.mxu0 %v9032
    %9284 = vmatprep.subr.bf16.mxu0 0
    %9285 = vmatpush1.bf16.msra.mxu0 %v9033
    %9286 = vmatprep.subr.bf16.mxu0 0
    %9287 = vmatpush1.bf16.msra.mxu0 %v9034
    %9288 = vmatprep.subr.bf16.mxu0 0
    %9289 = vmatpush1.bf16.msra.mxu0 %v9035
    %9290 = vmatprep.subr.bf16.mxu0 0
    %9291 = vmatpush1.bf16.msra.mxu0 %v9036
    %9292 = vmatprep.subr.bf16.mxu0 0
    %9293 = vmatpush1.bf16.msra.mxu0 %v9037
    %9294 = vmatprep.subr.bf16.mxu0 0
    %9295 = vmatpush1.bf16.msra.mxu0 %v9038
    %9296 = vmatprep.subr.bf16.mxu0 0
    %9297 = vmatpush1.bf16.msra.mxu0 %v9039
    %9298 = vmatprep.subr.bf16.mxu0 0
    %9299 = vmatpush1.bf16.msra.mxu0 %v9040
    %9300 = vmatprep.subr.bf16.mxu0 0
    %9301 = vmatpush1.bf16.msra.mxu0 %v9041
    %9302 = vmatprep.subr.bf16.mxu0 0
    %9303 = vmatpush1.bf16.msra.mxu0 %v9042
    %9304 = vmatprep.subr.bf16.mxu0 0
    %9305 = vmatpush1.bf16.msra.mxu0 %v9043
    %9306 = vmatprep.subr.bf16.mxu0 0
    %9307 = vmatpush1.bf16.msra.mxu0 %v9044
    %9308 = vmatprep.subr.bf16.mxu0 0
    %9309 = vmatpush1.bf16.msra.mxu0 %v9045
    %9310 = vmatprep.mubr.bf16.mxu0 %v8585
    %9311 = vmatmul.mubr.bf16.gmra.mrb[0].mxu0 %v8571
    %v9312 = vpop.f32.mrb[0].mxu0
    %v9313 = vadd.f32 %v9257, %v9312
    %v9314 = vpop.f32.mrb[0].mxu0
    %v9315 = vpop.f32.mrb[0].mxu0
    %v9316 = vadd.f32 %v9260, %v9315
    %v9317 = vpop.f32.mrb[0].mxu0
    %9318 = vmatprep.mubr.bf16.mxu0 %v8587
    %9319 = vmatmul.mubr.bf16.gmra.mrb[0].mxu0 %v8573
    %v9320 = vpop.f32.mrb[0].mxu0
    %v9321 = vadd.f32 %v9265, %v9320
    %v9322 = vpop.f32.mrb[0].mxu0
    %v9323 = vpop.f32.mrb[0].mxu0
    %v9324 = vadd.f32 %v9268, %v9323
    %v9325 = vpop.f32.mrb[0].mxu0
    %9326 = vmatprep.mubr.bf16.mxu0 %v8586
    %9327 = vmatmul.mubr.bf16.gmra.mrb[0].mxu0 %v8572
    %v9328 = vpop.f32.mrb[0].mxu0
    %v9329 = vadd.f32 %v9273, %v9328
    %v9330 = vpop.f32.mrb[0].mxu0
    %v9331 = vpop.f32.mrb[0].mxu0
    %v9332 = vpop.f32.mrb[0].mxu0
    %9333 = vdwg.mxu0
    %9334 = vst [vmem:[%s25] sm:$0xff] %v9313
    %9335 = vst [vmem:[%s25 + $0x8] sm:$0xff] %v9316
    %9336 = vst [vmem:[%s25 + $0x10] sm:$0xff] %v9321
    %9337 = vst [vmem:[%s25 + $0x18] sm:$0xff] %v9324
    %9338 = vst [vmem:[%s25 + $0x20] sm:$0xff] %v9329
    // Predicated region
    $region202: #{forward.1} parent=1 // pred_check
      _
    $region203: #{forward.1} parent=1 // pred_check_branch
      %9340 = sbr.rel (0) target = $region205
    $region204: #{forward.1} parent=1 // pred_region
      _
    $region205: #{forward.1} parent=1 // pred_fallthru
      _
    // Predicated region
    $region206: #{forward.1} parent=1 // pred_check
      _
    $region207: #{forward.1} parent=1 // pred_check_branch
      %9342 = sbr.rel (0) target = $region209
    $region208: #{forward.1} parent=1 // pred_region
      _
    $region209: #{forward.1} parent=1 // pred_fallthru
      _
    %9343 = vsyncpa [#allocation9], 1
    %9344 = vsyncpa [#allocation11], 1
    %9345 = vsyncpa [#allocation14], 1
    %9346 = vsyncpa [#allocation17], 1
    %9347 = vsyncpa [#allocation20], 1
    %9348 = vsyncpa [#allocation23], 1
    %9349 = vsyncpa [#allocation26], 1
    %9350 = vsyncpa [#allocation29], 1
    %9351 = vsyncpa [#allocation32], 1
    %9352 = vsyncpa [#allocation35], 1
    %9353 = vsyncpa [#allocation38], 1
    %9354 = vsyncpa [#allocation41], 1
    %9355 = vsyncpa [#allocation44], 1

</llo_original>
